<compile_context>
chip_gen: v7x
topology: tpu7x:2x2x1
jax: 0.10.0
libtpu: 0.0.40
codegen_flags: <defaults>
</compile_context>

<pallas_src>
import functools

import jax
import jax.numpy as jnp
from jax import lax
from jax.experimental import pallas as pl
from jax.experimental.pallas import tpu as pltpu

_MARGIN = 128                      # zero margin (lanes) around the flattened pixel axis
_VMEM_LIMIT = 32 * 1024 * 1024     # explicit scoped-VMEM budget (safe on v5e/v6e/v7x)


# ------------------------------ small helpers ---------------------------------

def _round_up(v, m):
    return (v + m - 1) // m * m


def _pad_last(a, n):
    if a.shape[-1] == n:
        return a
    pads = [(0, 0)] * (a.ndim - 1) + [(0, n - a.shape[-1])]
    return jnp.pad(a, pads)


def _pick_tm(m):
    # Largest tile dividing M that still yields >= 2 grid steps (even v7x 2-TC split).
    for tm in (1024, 512, 256, 128, 64, 32, 16, 8):
        if m % tm == 0 and m // tm >= 2:
            return tm
    return m


# ------------------------------ stem Pallas kernel -----------------------------

def _stem_kernel(x_ref, w_ref, b_ref, o_ref):
    acc = jnp.dot(x_ref[...], w_ref[...], preferred_element_type=jnp.float32)
    acc = jnp.maximum(acc + b_ref[...], 0.0)
    o_ref[...] = acc.astype(o_ref.dtype)


def stem_conv(patches, w, b):
    """patches (M, K) bf16, w (K, N) bf16, b (1, N) f32 -> (M, N) bf16 (N mult of 128)."""
    M, K = patches.shape
    N = w.shape[1]
    TM = _pick_tm(M)
    return pl.pallas_call(
        _stem_kernel,
        grid=(M // TM,),
        in_specs=[pl.BlockSpec((TM, K), lambda i: (i, 0)),
                  pl.BlockSpec((K, N), lambda i: (0, 0)),
                  pl.BlockSpec((1, N), lambda i: (0, 0))],
        out_specs=pl.BlockSpec((TM, N), lambda i: (i, 0)),
        out_shape=jax.ShapeDtypeStruct((M, N), jnp.bfloat16),
        compiler_params=pltpu.CompilerParams(
            dimension_semantics=("parallel",),
            vmem_limit_bytes=_VMEM_LIMIT),
    )(patches, w, b)


# ---------------------- fused BasicBlock / tower kernels -----------------------
#
# Activations live in a channels-major flattened layout:
#   flat[c, margin + ((b*(H+2)+r)*(W+2)+cpix)] = act[b, r-1, cpix-1, c]
# with zeros at spatial borders and in the margins, so a 3x3/p1 conv tap (dh, dw)
# is a static lane slice at offset (dh-1)*(W+2)+(dw-1).

def _conv3x3_flat(src_ref, w_ref, offsets, npix, margin, cout):
    acc = jnp.zeros((cout, npix), jnp.float32)
    for t, off in enumerate(offsets):
        view = src_ref[:, pl.ds(margin + off, npix)]            # (Cin, npix) bf16
        acc = acc + jnp.dot(w_ref[t], view, preferred_element_type=jnp.float32)
    return acc


def _block_kernel(x_ref, w1_ref, b1_ref, w2_ref, b2_ref, mask_ref, o_ref, y_scr,
                  *, offsets, npix, margin):
    ntot = x_ref.shape[1]
    mask = mask_ref[...]                                         # (1, npix) f32
    # conv1 + bn1 + relu
    acc = _conv3x3_flat(x_ref, w1_ref, offsets, npix, margin, 64)
    y = jnp.maximum(acc + b1_ref[...], 0.0) * mask
    y_scr[...] = jnp.zeros((64, ntot), jnp.bfloat16)
    y_scr[:, pl.ds(margin, npix)] = y.astype(jnp.bfloat16)
    # conv2 + bn2 + residual + relu
    acc2 = _conv3x3_flat(y_scr, w2_ref, offsets, npix, margin, 64)
    res = x_ref[:, pl.ds(margin, npix)].astype(jnp.float32)
    z = jnp.maximum(acc2 + b2_ref[...] + res, 0.0) * mask
    o_ref[...] = jnp.zeros((64, ntot), jnp.bfloat16)
    o_ref[:, pl.ds(margin, npix)] = z.astype(jnp.bfloat16)


def _tower_kernel(x_ref, w1_ref, b1_ref, w2_ref, b2_ref, hw_ref, mask_ref,
                  o_ref, y_scr, z_scr, *, offsets, npix, margin):
    ntot = x_ref.shape[1]
    mask = mask_ref[...]
    # tower BasicBlock (residual from the shared input h)
    acc = _conv3x3_flat(x_ref, w1_ref, offsets, npix, margin, 64)
    y = jnp.maximum(acc + b1_ref[...], 0.0) * mask
    y_scr[...] = jnp.zeros((64, ntot), jnp.bfloat16)
    y_scr[:, pl.ds(margin, npix)] = y.astype(jnp.bfloat16)
    acc2 = _conv3x3_flat(y_scr, w2_ref, offsets, npix, margin, 64)
    res = x_ref[:, pl.ds(margin, npix)].astype(jnp.float32)
    z = jnp.maximum(acc2 + b2_ref[...] + res, 0.0) * mask
    z_scr[...] = jnp.zeros((64, ntot), jnp.bfloat16)
    z_scr[:, pl.ds(margin, npix)] = z.astype(jnp.bfloat16)
    # 1-channel head conv (row 0 of the 8-row padded weight holds the real filter)
    acc_h = _conv3x3_flat(z_scr, hw_ref, offsets, npix, margin, 8)
    o_ref[...] = jnp.zeros((8, ntot), jnp.float32)
    o_ref[:, pl.ds(margin, npix)] = acc_h


def fused_block(x_flat, w1, b1, w2, b2, mask, *, npix, margin, offsets):
    C, ntot = x_flat.shape
    kern = functools.partial(_block_kernel, offsets=offsets, npix=npix, margin=margin)
    return pl.pallas_call(
        kern,
        grid=(1,),
        in_specs=[pl.BlockSpec((C, ntot), lambda i: (0, 0)),
                  pl.BlockSpec((9, 64, 64), lambda i: (0, 0, 0)),
                  pl.BlockSpec((64, 1), lambda i: (0, 0)),
                  pl.BlockSpec((9, 64, 64), lambda i: (0, 0, 0)),
                  pl.BlockSpec((64, 1), lambda i: (0, 0)),
                  pl.BlockSpec((1, npix), lambda i: (0, 0))],
        out_specs=pl.BlockSpec((C, ntot), lambda i: (0, 0)),
        out_shape=jax.ShapeDtypeStruct((C, ntot), jnp.bfloat16),
        scratch_shapes=[pltpu.VMEM((C, ntot), jnp.bfloat16)],
        compiler_params=pltpu.CompilerParams(
            dimension_semantics=("arbitrary",),
            vmem_limit_bytes=_VMEM_LIMIT),
    )(x_flat, w1, b1, w2, b2, mask)


def fused_towers(h_flat, tw1, tb1, tw2, tb2, thw, mask, *, npix, margin, offsets):
    C, ntot = h_flat.shape
    T = tw1.shape[0]
    kern = functools.partial(_tower_kernel, offsets=offsets, npix=npix, margin=margin)
    return pl.pallas_call(
        kern,
        grid=(T,),
        in_specs=[pl.BlockSpec((C, ntot), lambda g: (0, 0)),          # shared h, broadcast
                  pl.BlockSpec((None, 9, 64, 64), lambda g: (g, 0, 0, 0)),
                  pl.BlockSpec((None, 64, 1), lambda g: (g, 0, 0)),
                  pl.BlockSpec((None, 9, 64, 64), lambda g: (g, 0, 0, 0)),
                  pl.BlockSpec((None, 64, 1), lambda g: (g, 0, 0)),
                  pl.BlockSpec((None, 9, 8, 64), lambda g: (g, 0, 0, 0)),
                  pl.BlockSpec((1, npix), lambda g: (0, 0))],
        out_specs=pl.BlockSpec((None, 8, ntot), lambda g: (g, 0, 0)),
        out_shape=jax.ShapeDtypeStruct((T, 8, ntot), jnp.float32),
        scratch_shapes=[pltpu.VMEM((C, ntot), jnp.bfloat16),
                        pltpu.VMEM((C, ntot), jnp.bfloat16)],
        compiler_params=pltpu.CompilerParams(
            dimension_semantics=("parallel",),
            vmem_limit_bytes=_VMEM_LIMIT),
    )(h_flat, tw1, tb1, tw2, tb2, thw, mask)


# --------------------------------- JAX glue -------------------------------------

def im2col(x, kh, kw, stride, pad):
    """NHWC -> (B*Ho*Wo, kh*kw*C), channel innermost (stem only)."""
    B, H, W, C = x.shape
    Ho = (H + 2 * pad - kh) // stride + 1
    Wo = (W + 2 * pad - kw) // stride + 1
    xp = jnp.pad(x, ((0, 0), (pad, pad), (pad, pad), (0, 0)))
    cols = []
    for dh in range(kh):
        for dw in range(kw):
            cols.append(xp[:, dh:dh + stride * (Ho - 1) + 1:stride,
                              dw:dw + stride * (Wo - 1) + 1:stride, :])
    pat = jnp.stack(cols, axis=3)
    return pat.reshape(B * Ho * Wo, kh * kw * C), Ho, Wo


def maxpool_nhwc(x, kh, kw, stride, pad):
    """Max pool as a tree of shifted elementwise maxima (no patch blow-up)."""
    B, H, W, C = x.shape
    Ho = (H + 2 * pad - kh) // stride + 1
    Wo = (W + 2 * pad - kw) // stride + 1
    xp = jnp.pad(x, ((0, 0), (pad, pad), (pad, pad), (0, 0)),
                 constant_values=-jnp.inf)
    out = None
    for dh in range(kh):
        for dw in range(kw):
            v = xp[:, dh:dh + stride * (Ho - 1) + 1:stride,
                      dw:dw + stride * (Wo - 1) + 1:stride, :]
            out = v if out is None else jnp.maximum(out, v)
    return out


def to_cmajor_flat(h, margin):
    """(B, H, W, C) -> (C, margin + B*(H+2)*(W+2) + margin), zero borders/margins."""
    B, H, W, C = h.shape
    hp = jnp.pad(h, ((0, 0), (1, 1), (1, 1), (0, 0)))
    flat = jnp.transpose(hp, (3, 0, 1, 2)).reshape(C, B * (H + 2) * (W + 2))
    return jnp.pad(flat, ((0, 0), (margin, margin)))


def interior_mask(B, H, W):
    m = jnp.zeros((B, H + 2, W + 2), jnp.float32).at[:, 1:-1, 1:-1].set(1.0)
    return m.reshape(1, B * (H + 2) * (W + 2))


def from_flat_interior(flat, B, H, W, margin):
    npix = B * (H + 2) * (W + 2)
    core = flat[..., margin:margin + npix]
    core = core.reshape(flat.shape[:-1] + (B, H + 2, W + 2))
    return core[..., 1:-1, 1:-1]


def adaptive_max_pool(x, k):
    *lead, H, W = x.shape
    assert H % k == 0 and W % k == 0  # TODO(synk): non-divisible adaptive pool unsupported
    x = x.reshape(*lead, k, H // k, k, W // k)
    return x.max(axis=(-3, -1))


# --------------------------------- forward --------------------------------------

def forward(prep, x_nchw, k):
    B = x_nchw.shape[0]
    x = jnp.transpose(x_nchw, (0, 2, 3, 1)).astype(jnp.bfloat16)      # NCHW -> NHWC

    # ---- stem: conv 7x7 s2 p3 (3->64) + BN + ReLU (Pallas matmul, bf16 out) ----
    pat, Ho, Wo = im2col(x, 7, 7, 2, 3)
    pat = _pad_last(pat, prep["stem_w"].shape[0])
    h = stem_conv(pat, prep["stem_w"], prep["stem_b"])[:, :64]
    h = h.reshape(B, Ho, Wo, 64)

    # ---- maxpool 3x3 s2 p1 ----
    h = maxpool_nhwc(h, 3, 3, 2, 1)
    _, Hp, Wp, _ = h.shape
    npix = B * (Hp + 2) * (Wp + 2)
    offsets = tuple((dh - 1) * (Wp + 2) + (dw - 1) for dh in range(3) for dw in range(3))
    mask = interior_mask(B, Hp, Wp)
    flat = to_cmajor_flat(h, _MARGIN)                                  # (64, Ntot) bf16

    # ---- layer1[0]: fused BasicBlock on a VMEM-resident tile ----
    bp = prep["block"]
    h2 = fused_block(flat, bp["w1"], bp["b1"], bp["w2"], bp["b2"], mask,
                     npix=npix, margin=_MARGIN, offsets=offsets)       # (64, Ntot) bf16

    # ---- towers: fused BasicBlock + 1-channel head conv, batched over towers ----
    tw = prep["towers"]
    heads = fused_towers(h2, tw["w1"], tw["b1"], tw["w2"], tw["b2"], tw["head"],
                         mask, npix=npix, margin=_MARGIN, offsets=offsets)   # (T,8,Ntot)
    c = from_flat_interior(heads[:, 0, :], B, Hp, Wp, _MARGIN)         # (T, B, Hp, Wp)

    # ---- AdaptiveMaxPool2d((k, k)) + flatten ----
    out = adaptive_max_pool(c, k)                                      # (T, B, k, k)
    T = c.shape[0]
    return out.reshape(T, B, k * k)


# ------------------------- parameter init / preparation -------------------------

def init_raw_params(key, n_tasks):
    keys = iter(jax.random.split(key, 128))

    def conv(shape):
        fan_in = shape[1] * shape[2] * shape[3]
        std = (2.0 / fan_in) ** 0.5
        return std * jax.random.normal(next(keys), shape, jnp.float32)

    def bn(c):
        g = 1.0 + 0.1 * jax.random.normal(next(keys), (c,), jnp.float32)
        beta = 0.1 * jax.random.normal(next(keys), (c,), jnp.float32)
        mean = 0.1 * jax.random.normal(next(keys), (c,), jnp.float32)
        var = 1.0 + 0.1 * jnp.abs(jax.random.normal(next(keys), (c,), jnp.float32))
        return (g, beta, mean, var)

    def block():
        return {"w1": conv((64, 64, 3, 3)), "bn1": bn(64),
                "w2": conv((64, 64, 3, 3)), "bn2": bn(64)}

    raw = {"conv1_w": conv((64, 3, 7, 7)), "bn1": bn(64), "block": block(), "towers": []}
    for _ in range(n_tasks):
        raw["towers"].append({"block": block(), "conv_w": conv((1, 64, 3, 3))})
    return raw


def prepare_params(raw, eps=1e-5):
    """Fold BN (inference stats), pre-layout, pad, and bf16-cast all weights ONCE."""
    def fold(w_oihw, bn):
        g, beta, mean, var = bn
        s = g / jnp.sqrt(var + eps)
        return w_oihw * s[:, None, None, None], (beta - mean * s).astype(jnp.float32)

    # stem: im2col matmul layout (kh*kw*Cin, Cout), K->256, N->128
    wf, bf = fold(raw["conv1_w"], raw["bn1"])
    w_mm = jnp.transpose(wf, (2, 3, 1, 0)).reshape(7 * 7 * 3, 64)
    Kp = _round_up(w_mm.shape[0], 128)
    w_mm = jnp.pad(w_mm, ((0, Kp - w_mm.shape[0]), (0, 128 - 64))).astype(jnp.bfloat16)
    b_mm = jnp.pad(bf, (0, 128 - 64)).reshape(1, 128)

    def fold3x3(w, bn):
        wf3, b = fold(w, bn)
        w9 = jnp.transpose(wf3, (2, 3, 0, 1)).reshape(9, w.shape[0], w.shape[1])
        return w9.astype(jnp.bfloat16), b.reshape(-1, 1)

    bw1, bb1 = fold3x3(raw["block"]["w1"], raw["block"]["bn1"])
    bw2, bb2 = fold3x3(raw["block"]["w2"], raw["block"]["bn2"])

    tws1, tbs1, tws2, tbs2, heads = [], [], [], [], []
    for tp in raw["towers"]:
        w1, b1 = fold3x3(tp["block"]["w1"], tp["block"]["bn1"])
        w2, b2 = fold3x3(tp["block"]["w2"], tp["block"]["bn2"])
        hw = jnp.transpose(tp["conv_w"], (2, 3, 0, 1)).reshape(9, 1, 64)
        hw = jnp.pad(hw, ((0, 0), (0, 7), (0, 0))).astype(jnp.bfloat16)   # (9, 8, 64)
        tws1.append(w1); tbs1.append(b1); tws2.append(w2); tbs2.append(b2); heads.append(hw)

    return {
        "stem_w": w_mm, "stem_b": b_mm,
        "block": {"w1": bw1, "b1": bb1, "w2": bw2, "b2": bb2},
        "towers": {"w1": jnp.stack(tws1), "b1": jnp.stack(tbs1),
                   "w2": jnp.stack(tws2), "b2": jnp.stack(tbs2),
                   "head": jnp.stack(heads)},
    }


# ------------------------------ pure-JAX reference -------------------------------

def _conv_nhwc(x, w_hwio, stride, pad):
    return lax.conv_general_dilated(
        x, w_hwio, window_strides=(stride, stride),
        padding=((pad, pad), (pad, pad)),
        dimension_numbers=("NHWC", "HWIO", "NHWC"),
        preferred_element_type=jnp.float32)


def reference_forward(prep, x_nchw, k):
    """Plain-JAX reference with the same folded bf16 weights / bf16 activation casts."""
    B = x_nchw.shape[0]
    x = jnp.transpose(x_nchw, (0, 2, 3, 1)).astype(jnp.bfloat16)
    stem_w = prep["stem_w"][:7 * 7 * 3, :64].reshape(7, 7, 3, 64)
    stem_b = prep["stem_b"][0, :64]
    h = jnp.maximum(_conv_nhwc(x, stem_w, 2, 3) + stem_b, 0.0).astype(jnp.bfloat16)
    h = maxpool_nhwc(h, 3, 3, 2, 1)

    def w9_to_hwio(w9):
        return jnp.transpose(w9.reshape(3, 3, w9.shape[1], w9.shape[2]), (0, 1, 3, 2))

    def basic_block(hin, w9_1, b1, w9_2, b2):
        y = jnp.maximum(_conv_nhwc(hin, w9_to_hwio(w9_1), 1, 1) + b1[:, 0], 0.0)
        y = y.astype(jnp.bfloat16)
        z = jnp.maximum(_conv_nhwc(y, w9_to_hwio(w9_2), 1, 1) + b2[:, 0]
                        + hin.astype(jnp.float32), 0.0)
        return z.astype(jnp.bfloat16)

    bp = prep["block"]
    h = basic_block(h, bp["w1"], bp["b1"], bp["w2"], bp["b2"])

    tw = prep["towers"]
    outs = []
    for t in range(tw["w1"].shape[0]):
        z = basic_block(h, tw["w1"][t], tw["b1"][t], tw["w2"][t], tw["b2"][t])
        hw_hwio = tw["head"][t][:, 0, :].reshape(3, 3, 64, 1)
        c = _conv_nhwc(z, hw_hwio, 1, 1)[..., 0]                     # (B, Hp, Wp) f32
        outs.append(adaptive_max_pool(c, k).reshape(B, k * k))
    return jnp.stack(outs)


# ------------------------------------ main ---------------------------------------

if __name__ == "__main__":
    k_adapt, n_tasks = 2, 3
    B, Cin, H, W = 2, 3, 32, 32

    key = jax.random.PRNGKey(0)
    pkey, xkey = jax.random.split(key)
    raw = init_raw_params(pkey, n_tasks)
    prep = prepare_params(raw)                  # folded/padded/bf16 weights, built once
    x = jax.random.normal(xkey, (B, Cin, H, W), jnp.float32)

    fwd = jax.jit(functools.partial(forward, k=k_adapt))
    out = jax.block_until_ready(fwd(prep, x))

    ref = reference_forward(prep, x, k_adapt)

    assert out.shape == (n_tasks, B, k_adapt * k_adapt), out.shape
    assert bool(jnp.all(jnp.isfinite(out)))
    # Same bf16 weights / cast points in both paths -> only dot-reassociation noise;
    # normalized tolerance is generous vs. bf16 but far below any structural error.
    err = float(jnp.max(jnp.abs(out - ref)) / (1.0 + jnp.max(jnp.abs(ref))))
    assert err < 5e-2, err

    print("KERNEL_OK")
</pallas_src>

<mosaic_0001>
module attributes {stable_mosaic.version = 11 : i64} {
  func.func @_stem_kernel(%arg0: i32, %arg1: memref<256x256xbf16, #tpu.memory_space<vmem>>, %arg2: memref<256x128xbf16, #tpu.memory_space<vmem>>, %arg3: memref<1x128xf32, #tpu.memory_space<vmem>>, %arg4: memref<256x128xbf16, #tpu.memory_space<vmem>>) attributes {dimension_semantics = [#tpu.dimension_semantics<parallel>], iteration_bounds = array<i64: 2>, scalar_prefetch = 0 : i64, scratch_operands = 0 : i64, tpu.core_type = #tpu.core_type<tc>, window_params = [{transform_indices = @transform_0, window_bounds = array<i64: 256, 256>}, {pipeline_mode = #tpu.pipeline_mode<synchronous>, transform_indices = @transform_1, window_bounds = array<i64: 256, 128>}, {pipeline_mode = #tpu.pipeline_mode<synchronous>, transform_indices = @transform_2, window_bounds = array<i64: 1, 128>}, {transform_indices = @transform_3, window_bounds = array<i64: 256, 128>}]} {
    %c0 = arith.constant 0 : index
    %c0_0 = arith.constant 0 : index
    %0 = vector.load %arg1[%c0, %c0_0] : memref<256x256xbf16, #tpu.memory_space<vmem>>, vector<256x256xbf16>
    %c0_1 = arith.constant 0 : index
    %c0_2 = arith.constant 0 : index
    %1 = vector.load %arg2[%c0_1, %c0_2] : memref<256x128xbf16, #tpu.memory_space<vmem>>, vector<256x128xbf16>
    %cst = arith.constant dense<0.000000e+00> : vector<256x128xf32>
    %2 = tpu.matmul %0, %1, %cst {dimension_numbers = #tpu.dot_dimension_numbers<[1], [0], [0], [1], [0, 0, 1, 1], [], []>} : vector<256x256xbf16>, vector<256x128xbf16>, vector<256x128xf32> -> vector<256x128xf32>
    %c0_3 = arith.constant 0 : index
    %c0_4 = arith.constant 0 : index
    %3 = vector.load %arg3[%c0_3, %c0_4] : memref<1x128xf32, #tpu.memory_space<vmem>>, vector<1x128xf32>
    %4 = vector.broadcast %3 : vector<1x128xf32> to vector<256x128xf32>
    %5 = arith.addf %2, %4 : vector<256x128xf32>
    %cst_5 = arith.constant 0.000000e+00 : f32
    %6 = vector.broadcast %cst_5 : f32 to vector<256x128xf32>
    %7 = arith.maximumf %5, %6 : vector<256x128xf32>
    %8 = arith.truncf %7 : vector<256x128xf32> to vector<256x128xbf16>
    %c0_6 = arith.constant 0 : index
    %c0_7 = arith.constant 0 : index
    %9 = vector.load %arg4[%c0_6, %c0_7] : memref<256x128xbf16, #tpu.memory_space<vmem>>, vector<256x128xbf16>
    tpu.vector_store %arg4[%c0_6, %c0_7], %8 {strides = array<i32>} : memref<256x128xbf16, #tpu.memory_space<vmem>>, vector<256x128xbf16>,
    return
  }
  func.func @transform_0(%arg0: i32) -> (i32, i32) {
    %c0_i32 = arith.constant 0 : i32
    %c0_i32_0 = arith.constant 0 : i32
    return %arg0, %c0_i32 : i32, i32
  }
  func.func @transform_1(%arg0: i32) -> (i32, i32) {
    %c0_i32 = arith.constant 0 : i32
    %c0_i32_0 = arith.constant 0 : i32
    %c0_i32_1 = arith.constant 0 : i32
    return %c0_i32, %c0_i32_0 : i32, i32
  }
  func.func @transform_2(%arg0: i32) -> (i32, i32) {
    %c0_i32 = arith.constant 0 : i32
    %c0_i32_0 = arith.constant 0 : i32
    %c0_i32_1 = arith.constant 0 : i32
    return %c0_i32, %c0_i32_0 : i32, i32
  }
  func.func @transform_3(%arg0: i32) -> (i32, i32) {
    %c0_i32 = arith.constant 0 : i32
    %c0_i32_0 = arith.constant 0 : i32
    return %arg0, %c0_i32 : i32, i32
  }
}

module attributes {stable_mosaic.version = 11 : i64} {
  func.func @_block_kernel(%arg0: i32, %arg1: memref<64x456xbf16, #tpu.memory_space<vmem>>, %arg2: memref<9x64x64xbf16, #tpu.memory_space<vmem>>, %arg3: memref<64x1xf32, #tpu.memory_space<vmem>>, %arg4: memref<9x64x64xbf16, #tpu.memory_space<vmem>>, %arg5: memref<64x1xf32, #tpu.memory_space<vmem>>, %arg6: memref<1x200xf32, #tpu.memory_space<vmem>>, %arg7: memref<64x456xbf16, #tpu.memory_space<vmem>>, %arg8: memref<64x456xbf16, #tpu.memory_space<vmem>>) attributes {dimension_semantics = [#tpu.dimension_semantics<arbitrary>], iteration_bounds = array<i64: 1>, scalar_prefetch = 0 : i64, scratch_operands = 1 : i64, tpu.core_type = #tpu.core_type<tc>, window_params = [{pipeline_mode = #tpu.pipeline_mode<synchronous>, transform_indices = @transform_0, window_bounds = array<i64: 64, 456>}, {pipeline_mode = #tpu.pipeline_mode<synchronous>, transform_indices = @transform_1, window_bounds = array<i64: 9, 64, 64>}, {pipeline_mode = #tpu.pipeline_mode<synchronous>, transform_indices = @transform_2, window_bounds = array<i64: 64, 1>}, {pipeline_mode = #tpu.pipeline_mode<synchronous>, transform_indices = @transform_3, window_bounds = array<i64: 9, 64, 64>}, {pipeline_mode = #tpu.pipeline_mode<synchronous>, transform_indices = @transform_4, window_bounds = array<i64: 64, 1>}, {pipeline_mode = #tpu.pipeline_mode<synchronous>, transform_indices = @transform_5, window_bounds = array<i64: 1, 200>}, {pipeline_mode = #tpu.pipeline_mode<synchronous>, transform_indices = @transform_6, window_bounds = array<i64: 64, 456>}]} {
    %c0 = arith.constant 0 : index
    %c0_0 = arith.constant 0 : index
    %0 = vector.load %arg6[%c0, %c0_0] : memref<1x200xf32, #tpu.memory_space<vmem>>, vector<1x200xf32>
    %cst = arith.constant 0.000000e+00 : f32
    %1 = vector.broadcast %cst : f32 to vector<64x200xf32>
    %c0_1 = arith.constant 0 : index
    %c117 = arith.constant 117 : index
    %2 = vector.load %arg1[%c0_1, %c117] : memref<64x456xbf16, #tpu.memory_space<vmem>>, vector<64x200xbf16>
    %c0_2 = arith.constant 0 : index
    %c0_3 = arith.constant 0 : index
    %c0_4 = arith.constant 0 : index
    %3 = vector.load %arg2[%c0_2, %c0_3, %c0_4] : memref<9x64x64xbf16, #tpu.memory_space<vmem>>, vector<1x64x64xbf16>
    %4 = vector.shape_cast %3 : vector<1x64x64xbf16> to vector<64x64xbf16>
    %cst_5 = arith.constant dense<0.000000e+00> : vector<64x200xf32>
    %5 = tpu.matmul %4, %2, %cst_5 {dimension_numbers = #tpu.dot_dimension_numbers<[1], [0], [0], [1], [0, 0, 1, 1], [], []>} : vector<64x64xbf16>, vector<64x200xbf16>, vector<64x200xf32> -> vector<64x200xf32>
    %6 = arith.addf %1, %5 : vector<64x200xf32>
    %c0_6 = arith.constant 0 : index
    %c118 = arith.constant 118 : index
    %7 = vector.load %arg1[%c0_6, %c118] : memref<64x456xbf16, #tpu.memory_space<vmem>>, vector<64x200xbf16>
    %c1 = arith.constant 1 : index
    %c0_7 = arith.constant 0 : index
    %c0_8 = arith.constant 0 : index
    %8 = vector.load %arg2[%c1, %c0_7, %c0_8] : memref<9x64x64xbf16, #tpu.memory_space<vmem>>, vector<1x64x64xbf16>
    %9 = vector.shape_cast %8 : vector<1x64x64xbf16> to vector<64x64xbf16>
    %cst_9 = arith.constant dense<0.000000e+00> : vector<64x200xf32>
    %10 = tpu.matmul %9, %7, %cst_9 {dimension_numbers = #tpu.dot_dimension_numbers<[1], [0], [0], [1], [0, 0, 1, 1], [], []>} : vector<64x64xbf16>, vector<64x200xbf16>, vector<64x200xf32> -> vector<64x200xf32>
    %11 = arith.addf %6, %10 : vector<64x200xf32>
    %c0_10 = arith.constant 0 : index
    %c119 = arith.constant 119 : index
    %12 = vector.load %arg1[%c0_10, %c119] : memref<64x456xbf16, #tpu.memory_space<vmem>>, vector<64x200xbf16>
    %c2 = arith.constant 2 : index
    %c0_11 = arith.constant 0 : index
    %c0_12 = arith.constant 0 : index
    %13 = vector.load %arg2[%c2, %c0_11, %c0_12] : memref<9x64x64xbf16, #tpu.memory_space<vmem>>, vector<1x64x64xbf16>
    %14 = vector.shape_cast %13 : vector<1x64x64xbf16> to vector<64x64xbf16>
    %cst_13 = arith.constant dense<0.000000e+00> : vector<64x200xf32>
    %15 = tpu.matmul %14, %12, %cst_13 {dimension_numbers = #tpu.dot_dimension_numbers<[1], [0], [0], [1], [0, 0, 1, 1], [], []>} : vector<64x64xbf16>, vector<64x200xbf16>, vector<64x200xf32> -> vector<64x200xf32>
    %16 = arith.addf %11, %15 : vector<64x200xf32>
    %c0_14 = arith.constant 0 : index
    %c127 = arith.constant 127 : index
    %17 = vector.load %arg1[%c0_14, %c127] : memref<64x456xbf16, #tpu.memory_space<vmem>>, vector<64x200xbf16>
    %c3 = arith.constant 3 : index
    %c0_15 = arith.constant 0 : index
    %c0_16 = arith.constant 0 : index
    %18 = vector.load %arg2[%c3, %c0_15, %c0_16] : memref<9x64x64xbf16, #tpu.memory_space<vmem>>, vector<1x64x64xbf16>
    %19 = vector.shape_cast %18 : vector<1x64x64xbf16> to vector<64x64xbf16>
    %cst_17 = arith.constant dense<0.000000e+00> : vector<64x200xf32>
    %20 = tpu.matmul %19, %17, %cst_17 {dimension_numbers = #tpu.dot_dimension_numbers<[1], [0], [0], [1], [0, 0, 1, 1], [], []>} : vector<64x64xbf16>, vector<64x200xbf16>, vector<64x200xf32> -> vector<64x200xf32>
    %21 = arith.addf %16, %20 : vector<64x200xf32>
    %c0_18 = arith.constant 0 : index
    %c128 = arith.constant 128 : index
    %22 = vector.load %arg1[%c0_18, %c128] : memref<64x456xbf16, #tpu.memory_space<vmem>>, vector<64x200xbf16>
    %c4 = arith.constant 4 : index
    %c0_19 = arith.constant 0 : index
    %c0_20 = arith.constant 0 : index
    %23 = vector.load %arg2[%c4, %c0_19, %c0_20] : memref<9x64x64xbf16, #tpu.memory_space<vmem>>, vector<1x64x64xbf16>
    %24 = vector.shape_cast %23 : vector<1x64x64xbf16> to vector<64x64xbf16>
    %cst_21 = arith.constant dense<0.000000e+00> : vector<64x200xf32>
    %25 = tpu.matmul %24, %22, %cst_21 {dimension_numbers = #tpu.dot_dimension_numbers<[1], [0], [0], [1], [0, 0, 1, 1], [], []>} : vector<64x64xbf16>, vector<64x200xbf16>, vector<64x200xf32> -> vector<64x200xf32>
    %26 = arith.addf %21, %25 : vector<64x200xf32>
    %c0_22 = arith.constant 0 : index
    %c129 = arith.constant 129 : index
    %27 = vector.load %arg1[%c0_22, %c129] : memref<64x456xbf16, #tpu.memory_space<vmem>>, vector<64x200xbf16>
    %c5 = arith.constant 5 : index
    %c0_23 = arith.constant 0 : index
    %c0_24 = arith.constant 0 : index
    %28 = vector.load %arg2[%c5, %c0_23, %c0_24] : memref<9x64x64xbf16, #tpu.memory_space<vmem>>, vector<1x64x64xbf16>
    %29 = vector.shape_cast %28 : vector<1x64x64xbf16> to vector<64x64xbf16>
    %cst_25 = arith.constant dense<0.000000e+00> : vector<64x200xf32>
    %30 = tpu.matmul %29, %27, %cst_25 {dimension_numbers = #tpu.dot_dimension_numbers<[1], [0], [0], [1], [0, 0, 1, 1], [], []>} : vector<64x64xbf16>, vector<64x200xbf16>, vector<64x200xf32> -> vector<64x200xf32>
    %31 = arith.addf %26, %30 : vector<64x200xf32>
    %c0_26 = arith.constant 0 : index
    %c137 = arith.constant 137 : index
    %32 = vector.load %arg1[%c0_26, %c137] : memref<64x456xbf16, #tpu.memory_space<vmem>>, vector<64x200xbf16>
    %c6 = arith.constant 6 : index
    %c0_27 = arith.constant 0 : index
    %c0_28 = arith.constant 0 : index
    %33 = vector.load %arg2[%c6, %c0_27, %c0_28] : memref<9x64x64xbf16, #tpu.memory_space<vmem>>, vector<1x64x64xbf16>
    %34 = vector.shape_cast %33 : vector<1x64x64xbf16> to vector<64x64xbf16>
    %cst_29 = arith.constant dense<0.000000e+00> : vector<64x200xf32>
    %35 = tpu.matmul %34, %32, %cst_29 {dimension_numbers = #tpu.dot_dimension_numbers<[1], [0], [0], [1], [0, 0, 1, 1], [], []>} : vector<64x64xbf16>, vector<64x200xbf16>, vector<64x200xf32> -> vector<64x200xf32>
    %36 = arith.addf %31, %35 : vector<64x200xf32>
    %c0_30 = arith.constant 0 : index
    %c138 = arith.constant 138 : index
    %37 = vector.load %arg1[%c0_30, %c138] : memref<64x456xbf16, #tpu.memory_space<vmem>>, vector<64x200xbf16>
    %c7 = arith.constant 7 : index
    %c0_31 = arith.constant 0 : index
    %c0_32 = arith.constant 0 : index
    %38 = vector.load %arg2[%c7, %c0_31, %c0_32] : memref<9x64x64xbf16, #tpu.memory_space<vmem>>, vector<1x64x64xbf16>
    %39 = vector.shape_cast %38 : vector<1x64x64xbf16> to vector<64x64xbf16>
    %cst_33 = arith.constant dense<0.000000e+00> : vector<64x200xf32>
    %40 = tpu.matmul %39, %37, %cst_33 {dimension_numbers = #tpu.dot_dimension_numbers<[1], [0], [0], [1], [0, 0, 1, 1], [], []>} : vector<64x64xbf16>, vector<64x200xbf16>, vector<64x200xf32> -> vector<64x200xf32>
    %41 = arith.addf %36, %40 : vector<64x200xf32>
    %c0_34 = arith.constant 0 : index
    %c139 = arith.constant 139 : index
    %42 = vector.load %arg1[%c0_34, %c139] : memref<64x456xbf16, #tpu.memory_space<vmem>>, vector<64x200xbf16>
    %c8 = arith.constant 8 : index
    %c0_35 = arith.constant 0 : index
    %c0_36 = arith.constant 0 : index
    %43 = vector.load %arg2[%c8, %c0_35, %c0_36] : memref<9x64x64xbf16, #tpu.memory_space<vmem>>, vector<1x64x64xbf16>
    %44 = vector.shape_cast %43 : vector<1x64x64xbf16> to vector<64x64xbf16>
    %cst_37 = arith.constant dense<0.000000e+00> : vector<64x200xf32>
    %45 = tpu.matmul %44, %42, %cst_37 {dimension_numbers = #tpu.dot_dimension_numbers<[1], [0], [0], [1], [0, 0, 1, 1], [], []>} : vector<64x64xbf16>, vector<64x200xbf16>, vector<64x200xf32> -> vector<64x200xf32>
    %46 = arith.addf %41, %45 : vector<64x200xf32>
    %c0_38 = arith.constant 0 : index
    %c0_39 = arith.constant 0 : index
    %47 = vector.load %arg3[%c0_38, %c0_39] : memref<64x1xf32, #tpu.memory_space<vmem>>, vector<64x1xf32>
    %48 = vector.broadcast %47 : vector<64x1xf32> to vector<64x200xf32>
    %49 = arith.addf %46, %48 : vector<64x200xf32>
    %cst_40 = arith.constant 0.000000e+00 : f32
    %50 = vector.broadcast %cst_40 : f32 to vector<64x200xf32>
    %51 = arith.maximumf %49, %50 : vector<64x200xf32>
    %52 = vector.broadcast %0 : vector<1x200xf32> to vector<64x200xf32>
    %53 = arith.mulf %51, %52 : vector<64x200xf32>
    %cst_41 = arith.constant 0.000000e+00 : bf16
    %54 = vector.broadcast %cst_41 : bf16 to vector<64x456xbf16>
    %c0_42 = arith.constant 0 : index
    %c0_43 = arith.constant 0 : index
    %55 = vector.load %arg8[%c0_42, %c0_43] : memref<64x456xbf16, #tpu.memory_space<vmem>>, vector<64x456xbf16>
    tpu.vector_store %arg8[%c0_42, %c0_43], %54 {strides = array<i32>} : memref<64x456xbf16, #tpu.memory_space<vmem>>, vector<64x456xbf16>,
    %56 = arith.truncf %53 : vector<64x200xf32> to vector<64x200xbf16>
    %c0_44 = arith.constant 0 : index
    %c128_45 = arith.constant 128 : index
    %57 = vector.load %arg8[%c0_44, %c128_45] : memref<64x456xbf16, #tpu.memory_space<vmem>>, vector<64x200xbf16>
    tpu.vector_store %arg8[%c0_44, %c128_45], %56 {strides = array<i32>} : memref<64x456xbf16, #tpu.memory_space<vmem>>, vector<64x200xbf16>,
    %cst_46 = arith.constant 0.000000e+00 : f32
    %58 = vector.broadcast %cst_46 : f32 to vector<64x200xf32>
    %c0_47 = arith.constant 0 : index
    %c117_48 = arith.constant 117 : index
    %59 = vector.load %arg8[%c0_47, %c117_48] : memref<64x456xbf16, #tpu.memory_space<vmem>>, vector<64x200xbf16>
    %c0_49 = arith.constant 0 : index
    %c0_50 = arith.constant 0 : index
    %c0_51 = arith.constant 0 : index
    %60 = vector.load %arg4[%c0_49, %c0_50, %c0_51] : memref<9x64x64xbf16, #tpu.memory_space<vmem>>, vector<1x64x64xbf16>
    %61 = vector.shape_cast %60 : vector<1x64x64xbf16> to vector<64x64xbf16>
    %cst_52 = arith.constant dense<0.000000e+00> : vector<64x200xf32>
    %62 = tpu.matmul %61, %59, %cst_52 {dimension_numbers = #tpu.dot_dimension_numbers<[1], [0], [0], [1], [0, 0, 1, 1], [], []>} : vector<64x64xbf16>, vector<64x200xbf16>, vector<64x200xf32> -> vector<64x200xf32>
    %63 = arith.addf %58, %62 : vector<64x200xf32>
    %c0_53 = arith.constant 0 : index
    %c118_54 = arith.constant 118 : index
    %64 = vector.load %arg8[%c0_53, %c118_54] : memref<64x456xbf16, #tpu.memory_space<vmem>>, vector<64x200xbf16>
    %c1_55 = arith.constant 1 : index
    %c0_56 = arith.constant 0 : index
    %c0_57 = arith.constant 0 : index
    %65 = vector.load %arg4[%c1_55, %c0_56, %c0_57] : memref<9x64x64xbf16, #tpu.memory_space<vmem>>, vector<1x64x64xbf16>
    %66 = vector.shape_cast %65 : vector<1x64x64xbf16> to vector<64x64xbf16>
    %cst_58 = arith.constant dense<0.000000e+00> : vector<64x200xf32>
    %67 = tpu.matmul %66, %64, %cst_58 {dimension_numbers = #tpu.dot_dimension_numbers<[1], [0], [0], [1], [0, 0, 1, 1], [], []>} : vector<64x64xbf16>, vector<64x200xbf16>, vector<64x200xf32> -> vector<64x200xf32>
    %68 = arith.addf %63, %67 : vector<64x200xf32>
    %c0_59 = arith.constant 0 : index
    %c119_60 = arith.constant 119 : index
    %69 = vector.load %arg8[%c0_59, %c119_60] : memref<64x456xbf16, #tpu.memory_space<vmem>>, vector<64x200xbf16>
    %c2_61 = arith.constant 2 : index
    %c0_62 = arith.constant 0 : index
    %c0_63 = arith.constant 0 : index
    %70 = vector.load %arg4[%c2_61, %c0_62, %c0_63] : memref<9x64x64xbf16, #tpu.memory_space<vmem>>, vector<1x64x64xbf16>
    %71 = vector.shape_cast %70 : vector<1x64x64xbf16> to vector<64x64xbf16>
    %cst_64 = arith.constant dense<0.000000e+00> : vector<64x200xf32>
    %72 = tpu.matmul %71, %69, %cst_64 {dimension_numbers = #tpu.dot_dimension_numbers<[1], [0], [0], [1], [0, 0, 1, 1], [], []>} : vector<64x64xbf16>, vector<64x200xbf16>, vector<64x200xf32> -> vector<64x200xf32>
    %73 = arith.addf %68, %72 : vector<64x200xf32>
    %c0_65 = arith.constant 0 : index
    %c127_66 = arith.constant 127 : index
    %74 = vector.load %arg8[%c0_65, %c127_66] : memref<64x456xbf16, #tpu.memory_space<vmem>>, vector<64x200xbf16>
    %c3_67 = arith.constant 3 : index
    %c0_68 = arith.constant 0 : index
    %c0_69 = arith.constant 0 : index
    %75 = vector.load %arg4[%c3_67, %c0_68, %c0_69] : memref<9x64x64xbf16, #tpu.memory_space<vmem>>, vector<1x64x64xbf16>
    %76 = vector.shape_cast %75 : vector<1x64x64xbf16> to vector<64x64xbf16>
    %cst_70 = arith.constant dense<0.000000e+00> : vector<64x200xf32>
    %77 = tpu.matmul %76, %74, %cst_70 {dimension_numbers = #tpu.dot_dimension_numbers<[1], [0], [0], [1], [0, 0, 1, 1], [], []>} : vector<64x64xbf16>, vector<64x200xbf16>, vector<64x200xf32> -> vector<64x200xf32>
    %78 = arith.addf %73, %77 : vector<64x200xf32>
    %c0_71 = arith.constant 0 : index
    %c128_72 = arith.constant 128 : index
    %79 = vector.load %arg8[%c0_71, %c128_72] : memref<64x456xbf16, #tpu.memory_space<vmem>>, vector<64x200xbf16>
    %c4_73 = arith.constant 4 : index
    %c0_74 = arith.constant 0 : index
    %c0_75 = arith.constant 0 : index
    %80 = vector.load %arg4[%c4_73, %c0_74, %c0_75] : memref<9x64x64xbf16, #tpu.memory_space<vmem>>, vector<1x64x64xbf16>
    %81 = vector.shape_cast %80 : vector<1x64x64xbf16> to vector<64x64xbf16>
    %cst_76 = arith.constant dense<0.000000e+00> : vector<64x200xf32>
    %82 = tpu.matmul %81, %79, %cst_76 {dimension_numbers = #tpu.dot_dimension_numbers<[1], [0], [0], [1], [0, 0, 1, 1], [], []>} : vector<64x64xbf16>, vector<64x200xbf16>, vector<64x200xf32> -> vector<64x200xf32>
    %83 = arith.addf %78, %82 : vector<64x200xf32>
    %c0_77 = arith.constant 0 : index
    %c129_78 = arith.constant 129 : index
    %84 = vector.load %arg8[%c0_77, %c129_78] : memref<64x456xbf16, #tpu.memory_space<vmem>>, vector<64x200xbf16>
    %c5_79 = arith.constant 5 : index
    %c0_80 = arith.constant 0 : index
    %c0_81 = arith.constant 0 : index
    %85 = vector.load %arg4[%c5_79, %c0_80, %c0_81] : memref<9x64x64xbf16, #tpu.memory_space<vmem>>, vector<1x64x64xbf16>
    %86 = vector.shape_cast %85 : vector<1x64x64xbf16> to vector<64x64xbf16>
    %cst_82 = arith.constant dense<0.000000e+00> : vector<64x200xf32>
    %87 = tpu.matmul %86, %84, %cst_82 {dimension_numbers = #tpu.dot_dimension_numbers<[1], [0], [0], [1], [0, 0, 1, 1], [], []>} : vector<64x64xbf16>, vector<64x200xbf16>, vector<64x200xf32> -> vector<64x200xf32>
    %88 = arith.addf %83, %87 : vector<64x200xf32>
    %c0_83 = arith.constant 0 : index
    %c137_84 = arith.constant 137 : index
    %89 = vector.load %arg8[%c0_83, %c137_84] : memref<64x456xbf16, #tpu.memory_space<vmem>>, vector<64x200xbf16>
    %c6_85 = arith.constant 6 : index
    %c0_86 = arith.constant 0 : index
    %c0_87 = arith.constant 0 : index
    %90 = vector.load %arg4[%c6_85, %c0_86, %c0_87] : memref<9x64x64xbf16, #tpu.memory_space<vmem>>, vector<1x64x64xbf16>
    %91 = vector.shape_cast %90 : vector<1x64x64xbf16> to vector<64x64xbf16>
    %cst_88 = arith.constant dense<0.000000e+00> : vector<64x200xf32>
    %92 = tpu.matmul %91, %89, %cst_88 {dimension_numbers = #tpu.dot_dimension_numbers<[1], [0], [0], [1], [0, 0, 1, 1], [], []>} : vector<64x64xbf16>, vector<64x200xbf16>, vector<64x200xf32> -> vector<64x200xf32>
    %93 = arith.addf %88, %92 : vector<64x200xf32>
    %c0_89 = arith.constant 0 : index
    %c138_90 = arith.constant 138 : index
    %94 = vector.load %arg8[%c0_89, %c138_90] : memref<64x456xbf16, #tpu.memory_space<vmem>>, vector<64x200xbf16>
    %c7_91 = arith.constant 7 : index
    %c0_92 = arith.constant 0 : index
    %c0_93 = arith.constant 0 : index
    %95 = vector.load %arg4[%c7_91, %c0_92, %c0_93] : memref<9x64x64xbf16, #tpu.memory_space<vmem>>, vector<1x64x64xbf16>
    %96 = vector.shape_cast %95 : vector<1x64x64xbf16> to vector<64x64xbf16>
    %cst_94 = arith.constant dense<0.000000e+00> : vector<64x200xf32>
    %97 = tpu.matmul %96, %94, %cst_94 {dimension_numbers = #tpu.dot_dimension_numbers<[1], [0], [0], [1], [0, 0, 1, 1], [], []>} : vector<64x64xbf16>, vector<64x200xbf16>, vector<64x200xf32> -> vector<64x200xf32>
    %98 = arith.addf %93, %97 : vector<64x200xf32>
    %c0_95 = arith.constant 0 : index
    %c139_96 = arith.constant 139 : index
    %99 = vector.load %arg8[%c0_95, %c139_96] : memref<64x456xbf16, #tpu.memory_space<vmem>>, vector<64x200xbf16>
    %c8_97 = arith.constant 8 : index
    %c0_98 = arith.constant 0 : index
    %c0_99 = arith.constant 0 : index
    %100 = vector.load %arg4[%c8_97, %c0_98, %c0_99] : memref<9x64x64xbf16, #tpu.memory_space<vmem>>, vector<1x64x64xbf16>
    %101 = vector.shape_cast %100 : vector<1x64x64xbf16> to vector<64x64xbf16>
    %cst_100 = arith.constant dense<0.000000e+00> : vector<64x200xf32>
    %102 = tpu.matmul %101, %99, %cst_100 {dimension_numbers = #tpu.dot_dimension_numbers<[1], [0], [0], [1], [0, 0, 1, 1], [], []>} : vector<64x64xbf16>, vector<64x200xbf16>, vector<64x200xf32> -> vector<64x200xf32>
    %103 = arith.addf %98, %102 : vector<64x200xf32>
    %c0_101 = arith.constant 0 : index
    %c128_102 = arith.constant 128 : index
    %104 = vector.load %arg1[%c0_101, %c128_102] : memref<64x456xbf16, #tpu.memory_space<vmem>>, vector<64x200xbf16>
    %105 = arith.extf %104 : vector<64x200xbf16> to vector<64x200xf32>
    %c0_103 = arith.constant 0 : index
    %c0_104 = arith.constant 0 : index
    %106 = vector.load %arg5[%c0_103, %c0_104] : memref<64x1xf32, #tpu.memory_space<vmem>>, vector<64x1xf32>
    %107 = vector.broadcast %106 : vector<64x1xf32> to vector<64x200xf32>
    %108 = arith.addf %103, %107 : vector<64x200xf32>
    %109 = arith.addf %108, %105 : vector<64x200xf32>
    %cst_105 = arith.constant 0.000000e+00 : f32
    %110 = vector.broadcast %cst_105 : f32 to vector<64x200xf32>
    %111 = arith.maximumf %109, %110 : vector<64x200xf32>
    %112 = vector.broadcast %0 : vector<1x200xf32> to vector<64x200xf32>
    %113 = arith.mulf %111, %112 : vector<64x200xf32>
    %cst_106 = arith.constant 0.000000e+00 : bf16
    %114 = vector.broadcast %cst_106 : bf16 to vector<64x456xbf16>
    %c0_107 = arith.constant 0 : index
    %c0_108 = arith.constant 0 : index
    %115 = vector.load %arg7[%c0_107, %c0_108] : memref<64x456xbf16, #tpu.memory_space<vmem>>, vector<64x456xbf16>
    tpu.vector_store %arg7[%c0_107, %c0_108], %114 {strides = array<i32>} : memref<64x456xbf16, #tpu.memory_space<vmem>>, vector<64x456xbf16>,
    %116 = arith.truncf %113 : vector<64x200xf32> to vector<64x200xbf16>
    %c0_109 = arith.constant 0 : index
    %c128_110 = arith.constant 128 : index
    %117 = vector.load %arg7[%c0_109, %c128_110] : memref<64x456xbf16, #tpu.memory_space<vmem>>, vector<64x200xbf16>
    tpu.vector_store %arg7[%c0_109, %c128_110], %116 {strides = array<i32>} : memref<64x456xbf16, #tpu.memory_space<vmem>>, vector<64x200xbf16>,
    return
  }
  func.func @transform_0(%arg0: i32) -> (i32, i32) {
    %c0_i32 = arith.constant 0 : i32
    %c0_i32_0 = arith.constant 0 : i32
    %c0_i32_1 = arith.constant 0 : i32
    return %c0_i32, %c0_i32_0 : i32, i32
  }
  func.func @transform_1(%arg0: i32) -> (i32, i32, i32) {
    %c0_i32 = arith.constant 0 : i32
    %c0_i32_0 = arith.constant 0 : i32
    %c0_i32_1 = arith.constant 0 : i32
    %c0_i32_2 = arith.constant 0 : i32
    return %c0_i32, %c0_i32_0, %c0_i32_1 : i32, i32, i32
  }
  func.func @transform_2(%arg0: i32) -> (i32, i32) {
    %c0_i32 = arith.constant 0 : i32
    %c0_i32_0 = arith.constant 0 : i32
    %c0_i32_1 = arith.constant 0 : i32
    return %c0_i32, %c0_i32_0 : i32, i32
  }
  func.func @transform_3(%arg0: i32) -> (i32, i32, i32) {
    %c0_i32 = arith.constant 0 : i32
    %c0_i32_0 = arith.constant 0 : i32
    %c0_i32_1 = arith.constant 0 : i32
    %c0_i32_2 = arith.constant 0 : i32
    return %c0_i32, %c0_i32_0, %c0_i32_1 : i32, i32, i32
  }
  func.func @transform_4(%arg0: i32) -> (i32, i32) {
    %c0_i32 = arith.constant 0 : i32
    %c0_i32_0 = arith.constant 0 : i32
    %c0_i32_1 = arith.constant 0 : i32
    return %c0_i32, %c0_i32_0 : i32, i32
  }
  func.func @transform_5(%arg0: i32) -> (i32, i32) {
    %c0_i32 = arith.constant 0 : i32
    %c0_i32_0 = arith.constant 0 : i32
    %c0_i32_1 = arith.constant 0 : i32
    return %c0_i32, %c0_i32_0 : i32, i32
  }
  func.func @transform_6(%arg0: i32) -> (i32, i32) {
    %c0_i32 = arith.constant 0 : i32
    %c0_i32_0 = arith.constant 0 : i32
    %c0_i32_1 = arith.constant 0 : i32
    return %c0_i32, %c0_i32_0 : i32, i32
  }
}

module attributes {stable_mosaic.version = 11 : i64} {
  func.func @_tower_kernel(%arg0: i32, %arg1: memref<64x456xbf16, #tpu.memory_space<vmem>>, %arg2: memref<1x9x64x64xbf16, #tpu.memory_space<vmem>>, %arg3: memref<1x64x1xf32, #tpu.memory_space<vmem>>, %arg4: memref<1x9x64x64xbf16, #tpu.memory_space<vmem>>, %arg5: memref<1x64x1xf32, #tpu.memory_space<vmem>>, %arg6: memref<1x9x8x64xbf16, #tpu.memory_space<vmem>>, %arg7: memref<1x200xf32, #tpu.memory_space<vmem>>, %arg8: memref<1x8x456xf32, #tpu.memory_space<vmem>>, %arg9: memref<64x456xbf16, #tpu.memory_space<vmem>>, %arg10: memref<64x456xbf16, #tpu.memory_space<vmem>>) attributes {dimension_semantics = [#tpu.dimension_semantics<parallel>], iteration_bounds = array<i64: 3>, scalar_prefetch = 0 : i64, scratch_operands = 2 : i64, tpu.core_type = #tpu.core_type<tc>, window_params = [{pipeline_mode = #tpu.pipeline_mode<synchronous>, transform_indices = @transform_0, window_bounds = array<i64: 64, 456>}, {transform_indices = @transform_1, window_bounds = array<i64: 1, 9, 64, 64>}, {transform_indices = @transform_2, window_bounds = array<i64: 1, 64, 1>}, {transform_indices = @transform_3, window_bounds = array<i64: 1, 9, 64, 64>}, {transform_indices = @transform_4, window_bounds = array<i64: 1, 64, 1>}, {transform_indices = @transform_5, window_bounds = array<i64: 1, 9, 8, 64>}, {pipeline_mode = #tpu.pipeline_mode<synchronous>, transform_indices = @transform_6, window_bounds = array<i64: 1, 200>}, {transform_indices = @transform_7, window_bounds = array<i64: 1, 8, 456>}]} {
    %c0 = arith.constant 0 : index
    %c0_0 = arith.constant 0 : index
    %0 = vector.load %arg7[%c0, %c0_0] : memref<1x200xf32, #tpu.memory_space<vmem>>, vector<1x200xf32>
    %cst = arith.constant 0.000000e+00 : f32
    %1 = vector.broadcast %cst : f32 to vector<64x200xf32>
    %c0_1 = arith.constant 0 : index
    %c117 = arith.constant 117 : index
    %2 = vector.load %arg1[%c0_1, %c117] : memref<64x456xbf16, #tpu.memory_space<vmem>>, vector<64x200xbf16>
    %c0_2 = arith.constant 0 : index
    %c0_3 = arith.constant 0 : index
    %c0_4 = arith.constant 0 : index
    %c0_5 = arith.constant 0 : index
    %3 = vector.load %arg2[%c0_2, %c0_3, %c0_4, %c0_5] : memref<1x9x64x64xbf16, #tpu.memory_space<vmem>>, vector<1x1x64x64xbf16>
    %4 = vector.shape_cast %3 : vector<1x1x64x64xbf16> to vector<64x64xbf16>
    %cst_6 = arith.constant dense<0.000000e+00> : vector<64x200xf32>
    %5 = tpu.matmul %4, %2, %cst_6 {dimension_numbers = #tpu.dot_dimension_numbers<[1], [0], [0], [1], [0, 0, 1, 1], [], []>} : vector<64x64xbf16>, vector<64x200xbf16>, vector<64x200xf32> -> vector<64x200xf32>
    %6 = arith.addf %1, %5 : vector<64x200xf32>
    %c0_7 = arith.constant 0 : index
    %c118 = arith.constant 118 : index
    %7 = vector.load %arg1[%c0_7, %c118] : memref<64x456xbf16, #tpu.memory_space<vmem>>, vector<64x200xbf16>
    %c0_8 = arith.constant 0 : index
    %c1 = arith.constant 1 : index
    %c0_9 = arith.constant 0 : index
    %c0_10 = arith.constant 0 : index
    %8 = vector.load %arg2[%c0_8, %c1, %c0_9, %c0_10] : memref<1x9x64x64xbf16, #tpu.memory_space<vmem>>, vector<1x1x64x64xbf16>
    %9 = vector.shape_cast %8 : vector<1x1x64x64xbf16> to vector<64x64xbf16>
    %cst_11 = arith.constant dense<0.000000e+00> : vector<64x200xf32>
    %10 = tpu.matmul %9, %7, %cst_11 {dimension_numbers = #tpu.dot_dimension_numbers<[1], [0], [0], [1], [0, 0, 1, 1], [], []>} : vector<64x64xbf16>, vector<64x200xbf16>, vector<64x200xf32> -> vector<64x200xf32>
    %11 = arith.addf %6, %10 : vector<64x200xf32>
    %c0_12 = arith.constant 0 : index
    %c119 = arith.constant 119 : index
    %12 = vector.load %arg1[%c0_12, %c119] : memref<64x456xbf16, #tpu.memory_space<vmem>>, vector<64x200xbf16>
    %c0_13 = arith.constant 0 : index
    %c2 = arith.constant 2 : index
    %c0_14 = arith.constant 0 : index
    %c0_15 = arith.constant 0 : index
    %13 = vector.load %arg2[%c0_13, %c2, %c0_14, %c0_15] : memref<1x9x64x64xbf16, #tpu.memory_space<vmem>>, vector<1x1x64x64xbf16>
    %14 = vector.shape_cast %13 : vector<1x1x64x64xbf16> to vector<64x64xbf16>
    %cst_16 = arith.constant dense<0.000000e+00> : vector<64x200xf32>
    %15 = tpu.matmul %14, %12, %cst_16 {dimension_numbers = #tpu.dot_dimension_numbers<[1], [0], [0], [1], [0, 0, 1, 1], [], []>} : vector<64x64xbf16>, vector<64x200xbf16>, vector<64x200xf32> -> vector<64x200xf32>
    %16 = arith.addf %11, %15 : vector<64x200xf32>
    %c0_17 = arith.constant 0 : index
    %c127 = arith.constant 127 : index
    %17 = vector.load %arg1[%c0_17, %c127] : memref<64x456xbf16, #tpu.memory_space<vmem>>, vector<64x200xbf16>
    %c0_18 = arith.constant 0 : index
    %c3 = arith.constant 3 : index
    %c0_19 = arith.constant 0 : index
    %c0_20 = arith.constant 0 : index
    %18 = vector.load %arg2[%c0_18, %c3, %c0_19, %c0_20] : memref<1x9x64x64xbf16, #tpu.memory_space<vmem>>, vector<1x1x64x64xbf16>
    %19 = vector.shape_cast %18 : vector<1x1x64x64xbf16> to vector<64x64xbf16>
    %cst_21 = arith.constant dense<0.000000e+00> : vector<64x200xf32>
    %20 = tpu.matmul %19, %17, %cst_21 {dimension_numbers = #tpu.dot_dimension_numbers<[1], [0], [0], [1], [0, 0, 1, 1], [], []>} : vector<64x64xbf16>, vector<64x200xbf16>, vector<64x200xf32> -> vector<64x200xf32>
    %21 = arith.addf %16, %20 : vector<64x200xf32>
    %c0_22 = arith.constant 0 : index
    %c128 = arith.constant 128 : index
    %22 = vector.load %arg1[%c0_22, %c128] : memref<64x456xbf16, #tpu.memory_space<vmem>>, vector<64x200xbf16>
    %c0_23 = arith.constant 0 : index
    %c4 = arith.constant 4 : index
    %c0_24 = arith.constant 0 : index
    %c0_25 = arith.constant 0 : index
    %23 = vector.load %arg2[%c0_23, %c4, %c0_24, %c0_25] : memref<1x9x64x64xbf16, #tpu.memory_space<vmem>>, vector<1x1x64x64xbf16>
    %24 = vector.shape_cast %23 : vector<1x1x64x64xbf16> to vector<64x64xbf16>
    %cst_26 = arith.constant dense<0.000000e+00> : vector<64x200xf32>
    %25 = tpu.matmul %24, %22, %cst_26 {dimension_numbers = #tpu.dot_dimension_numbers<[1], [0], [0], [1], [0, 0, 1, 1], [], []>} : vector<64x64xbf16>, vector<64x200xbf16>, vector<64x200xf32> -> vector<64x200xf32>
    %26 = arith.addf %21, %25 : vector<64x200xf32>
    %c0_27 = arith.constant 0 : index
    %c129 = arith.constant 129 : index
    %27 = vector.load %arg1[%c0_27, %c129] : memref<64x456xbf16, #tpu.memory_space<vmem>>, vector<64x200xbf16>
    %c0_28 = arith.constant 0 : index
    %c5 = arith.constant 5 : index
    %c0_29 = arith.constant 0 : index
    %c0_30 = arith.constant 0 : index
    %28 = vector.load %arg2[%c0_28, %c5, %c0_29, %c0_30] : memref<1x9x64x64xbf16, #tpu.memory_space<vmem>>, vector<1x1x64x64xbf16>
    %29 = vector.shape_cast %28 : vector<1x1x64x64xbf16> to vector<64x64xbf16>
    %cst_31 = arith.constant dense<0.000000e+00> : vector<64x200xf32>
    %30 = tpu.matmul %29, %27, %cst_31 {dimension_numbers = #tpu.dot_dimension_numbers<[1], [0], [0], [1], [0, 0, 1, 1], [], []>} : vector<64x64xbf16>, vector<64x200xbf16>, vector<64x200xf32> -> vector<64x200xf32>
    %31 = arith.addf %26, %30 : vector<64x200xf32>
    %c0_32 = arith.constant 0 : index
    %c137 = arith.constant 137 : index
    %32 = vector.load %arg1[%c0_32, %c137] : memref<64x456xbf16, #tpu.memory_space<vmem>>, vector<64x200xbf16>
    %c0_33 = arith.constant 0 : index
    %c6 = arith.constant 6 : index
    %c0_34 = arith.constant 0 : index
    %c0_35 = arith.constant 0 : index
    %33 = vector.load %arg2[%c0_33, %c6, %c0_34, %c0_35] : memref<1x9x64x64xbf16, #tpu.memory_space<vmem>>, vector<1x1x64x64xbf16>
    %34 = vector.shape_cast %33 : vector<1x1x64x64xbf16> to vector<64x64xbf16>
    %cst_36 = arith.constant dense<0.000000e+00> : vector<64x200xf32>
    %35 = tpu.matmul %34, %32, %cst_36 {dimension_numbers = #tpu.dot_dimension_numbers<[1], [0], [0], [1], [0, 0, 1, 1], [], []>} : vector<64x64xbf16>, vector<64x200xbf16>, vector<64x200xf32> -> vector<64x200xf32>
    %36 = arith.addf %31, %35 : vector<64x200xf32>
    %c0_37 = arith.constant 0 : index
    %c138 = arith.constant 138 : index
    %37 = vector.load %arg1[%c0_37, %c138] : memref<64x456xbf16, #tpu.memory_space<vmem>>, vector<64x200xbf16>
    %c0_38 = arith.constant 0 : index
    %c7 = arith.constant 7 : index
    %c0_39 = arith.constant 0 : index
    %c0_40 = arith.constant 0 : index
    %38 = vector.load %arg2[%c0_38, %c7, %c0_39, %c0_40] : memref<1x9x64x64xbf16, #tpu.memory_space<vmem>>, vector<1x1x64x64xbf16>
    %39 = vector.shape_cast %38 : vector<1x1x64x64xbf16> to vector<64x64xbf16>
    %cst_41 = arith.constant dense<0.000000e+00> : vector<64x200xf32>
    %40 = tpu.matmul %39, %37, %cst_41 {dimension_numbers = #tpu.dot_dimension_numbers<[1], [0], [0], [1], [0, 0, 1, 1], [], []>} : vector<64x64xbf16>, vector<64x200xbf16>, vector<64x200xf32> -> vector<64x200xf32>
    %41 = arith.addf %36, %40 : vector<64x200xf32>
    %c0_42 = arith.constant 0 : index
    %c139 = arith.constant 139 : index
    %42 = vector.load %arg1[%c0_42, %c139] : memref<64x456xbf16, #tpu.memory_space<vmem>>, vector<64x200xbf16>
    %c0_43 = arith.constant 0 : index
    %c8 = arith.constant 8 : index
    %c0_44 = arith.constant 0 : index
    %c0_45 = arith.constant 0 : index
    %43 = vector.load %arg2[%c0_43, %c8, %c0_44, %c0_45] : memref<1x9x64x64xbf16, #tpu.memory_space<vmem>>, vector<1x1x64x64xbf16>
    %44 = vector.shape_cast %43 : vector<1x1x64x64xbf16> to vector<64x64xbf16>
    %cst_46 = arith.constant dense<0.000000e+00> : vector<64x200xf32>
    %45 = tpu.matmul %44, %42, %cst_46 {dimension_numbers = #tpu.dot_dimension_numbers<[1], [0], [0], [1], [0, 0, 1, 1], [], []>} : vector<64x64xbf16>, vector<64x200xbf16>, vector<64x200xf32> -> vector<64x200xf32>
    %46 = arith.addf %41, %45 : vector<64x200xf32>
    %c0_47 = arith.constant 0 : index
    %c0_48 = arith.constant 0 : index
    %c0_49 = arith.constant 0 : index
    %47 = vector.load %arg3[%c0_47, %c0_48, %c0_49] : memref<1x64x1xf32, #tpu.memory_space<vmem>>, vector<1x64x1xf32>
    %48 = vector.shape_cast %47 : vector<1x64x1xf32> to vector<64x1xf32>
    %49 = vector.broadcast %48 : vector<64x1xf32> to vector<64x200xf32>
    %50 = arith.addf %46, %49 : vector<64x200xf32>
    %cst_50 = arith.constant 0.000000e+00 : f32
    %51 = vector.broadcast %cst_50 : f32 to vector<64x200xf32>
    %52 = arith.maximumf %50, %51 : vector<64x200xf32>
    %53 = vector.broadcast %0 : vector<1x200xf32> to vector<64x200xf32>
    %54 = arith.mulf %52, %53 : vector<64x200xf32>
    %cst_51 = arith.constant 0.000000e+00 : bf16
    %55 = vector.broadcast %cst_51 : bf16 to vector<64x456xbf16>
    %c0_52 = arith.constant 0 : index
    %c0_53 = arith.constant 0 : index
    %56 = vector.load %arg9[%c0_52, %c0_53] : memref<64x456xbf16, #tpu.memory_space<vmem>>, vector<64x456xbf16>
    tpu.vector_store %arg9[%c0_52, %c0_53], %55 {strides = array<i32>} : memref<64x456xbf16, #tpu.memory_space<vmem>>, vector<64x456xbf16>,
    %57 = arith.truncf %54 : vector<64x200xf32> to vector<64x200xbf16>
    %c0_54 = arith.constant 0 : index
    %c128_55 = arith.constant 128 : index
    %58 = vector.load %arg9[%c0_54, %c128_55] : memref<64x456xbf16, #tpu.memory_space<vmem>>, vector<64x200xbf16>
    tpu.vector_store %arg9[%c0_54, %c128_55], %57 {strides = array<i32>} : memref<64x456xbf16, #tpu.memory_space<vmem>>, vector<64x200xbf16>,
    %cst_56 = arith.constant 0.000000e+00 : f32
    %59 = vector.broadcast %cst_56 : f32 to vector<64x200xf32>
    %c0_57 = arith.constant 0 : index
    %c117_58 = arith.constant 117 : index
    %60 = vector.load %arg9[%c0_57, %c117_58] : memref<64x456xbf16, #tpu.memory_space<vmem>>, vector<64x200xbf16>
    %c0_59 = arith.constant 0 : index
    %c0_60 = arith.constant 0 : index
    %c0_61 = arith.constant 0 : index
    %c0_62 = arith.constant 0 : index
    %61 = vector.load %arg4[%c0_59, %c0_60, %c0_61, %c0_62] : memref<1x9x64x64xbf16, #tpu.memory_space<vmem>>, vector<1x1x64x64xbf16>
    %62 = vector.shape_cast %61 : vector<1x1x64x64xbf16> to vector<64x64xbf16>
    %cst_63 = arith.constant dense<0.000000e+00> : vector<64x200xf32>
    %63 = tpu.matmul %62, %60, %cst_63 {dimension_numbers = #tpu.dot_dimension_numbers<[1], [0], [0], [1], [0, 0, 1, 1], [], []>} : vector<64x64xbf16>, vector<64x200xbf16>, vector<64x200xf32> -> vector<64x200xf32>
    %64 = arith.addf %59, %63 : vector<64x200xf32>
    %c0_64 = arith.constant 0 : index
    %c118_65 = arith.constant 118 : index
    %65 = vector.load %arg9[%c0_64, %c118_65] : memref<64x456xbf16, #tpu.memory_space<vmem>>, vector<64x200xbf16>
    %c0_66 = arith.constant 0 : index
    %c1_67 = arith.constant 1 : index
    %c0_68 = arith.constant 0 : index
    %c0_69 = arith.constant 0 : index
    %66 = vector.load %arg4[%c0_66, %c1_67, %c0_68, %c0_69] : memref<1x9x64x64xbf16, #tpu.memory_space<vmem>>, vector<1x1x64x64xbf16>
    %67 = vector.shape_cast %66 : vector<1x1x64x64xbf16> to vector<64x64xbf16>
    %cst_70 = arith.constant dense<0.000000e+00> : vector<64x200xf32>
    %68 = tpu.matmul %67, %65, %cst_70 {dimension_numbers = #tpu.dot_dimension_numbers<[1], [0], [0], [1], [0, 0, 1, 1], [], []>} : vector<64x64xbf16>, vector<64x200xbf16>, vector<64x200xf32> -> vector<64x200xf32>
    %69 = arith.addf %64, %68 : vector<64x200xf32>
    %c0_71 = arith.constant 0 : index
    %c119_72 = arith.constant 119 : index
    %70 = vector.load %arg9[%c0_71, %c119_72] : memref<64x456xbf16, #tpu.memory_space<vmem>>, vector<64x200xbf16>
    %c0_73 = arith.constant 0 : index
    %c2_74 = arith.constant 2 : index
    %c0_75 = arith.constant 0 : index
    %c0_76 = arith.constant 0 : index
    %71 = vector.load %arg4[%c0_73, %c2_74, %c0_75, %c0_76] : memref<1x9x64x64xbf16, #tpu.memory_space<vmem>>, vector<1x1x64x64xbf16>
    %72 = vector.shape_cast %71 : vector<1x1x64x64xbf16> to vector<64x64xbf16>
    %cst_77 = arith.constant dense<0.000000e+00> : vector<64x200xf32>
    %73 = tpu.matmul %72, %70, %cst_77 {dimension_numbers = #tpu.dot_dimension_numbers<[1], [0], [0], [1], [0, 0, 1, 1], [], []>} : vector<64x64xbf16>, vector<64x200xbf16>, vector<64x200xf32> -> vector<64x200xf32>
    %74 = arith.addf %69, %73 : vector<64x200xf32>
    %c0_78 = arith.constant 0 : index
    %c127_79 = arith.constant 127 : index
    %75 = vector.load %arg9[%c0_78, %c127_79] : memref<64x456xbf16, #tpu.memory_space<vmem>>, vector<64x200xbf16>
    %c0_80 = arith.constant 0 : index
    %c3_81 = arith.constant 3 : index
    %c0_82 = arith.constant 0 : index
    %c0_83 = arith.constant 0 : index
    %76 = vector.load %arg4[%c0_80, %c3_81, %c0_82, %c0_83] : memref<1x9x64x64xbf16, #tpu.memory_space<vmem>>, vector<1x1x64x64xbf16>
    %77 = vector.shape_cast %76 : vector<1x1x64x64xbf16> to vector<64x64xbf16>
    %cst_84 = arith.constant dense<0.000000e+00> : vector<64x200xf32>
    %78 = tpu.matmul %77, %75, %cst_84 {dimension_numbers = #tpu.dot_dimension_numbers<[1], [0], [0], [1], [0, 0, 1, 1], [], []>} : vector<64x64xbf16>, vector<64x200xbf16>, vector<64x200xf32> -> vector<64x200xf32>
    %79 = arith.addf %74, %78 : vector<64x200xf32>
    %c0_85 = arith.constant 0 : index
    %c128_86 = arith.constant 128 : index
    %80 = vector.load %arg9[%c0_85, %c128_86] : memref<64x456xbf16, #tpu.memory_space<vmem>>, vector<64x200xbf16>
    %c0_87 = arith.constant 0 : index
    %c4_88 = arith.constant 4 : index
    %c0_89 = arith.constant 0 : index
    %c0_90 = arith.constant 0 : index
    %81 = vector.load %arg4[%c0_87, %c4_88, %c0_89, %c0_90] : memref<1x9x64x64xbf16, #tpu.memory_space<vmem>>, vector<1x1x64x64xbf16>
    %82 = vector.shape_cast %81 : vector<1x1x64x64xbf16> to vector<64x64xbf16>
    %cst_91 = arith.constant dense<0.000000e+00> : vector<64x200xf32>
    %83 = tpu.matmul %82, %80, %cst_91 {dimension_numbers = #tpu.dot_dimension_numbers<[1], [0], [0], [1], [0, 0, 1, 1], [], []>} : vector<64x64xbf16>, vector<64x200xbf16>, vector<64x200xf32> -> vector<64x200xf32>
    %84 = arith.addf %79, %83 : vector<64x200xf32>
    %c0_92 = arith.constant 0 : index
    %c129_93 = arith.constant 129 : index
    %85 = vector.load %arg9[%c0_92, %c129_93] : memref<64x456xbf16, #tpu.memory_space<vmem>>, vector<64x200xbf16>
    %c0_94 = arith.constant 0 : index
    %c5_95 = arith.constant 5 : index
    %c0_96 = arith.constant 0 : index
    %c0_97 = arith.constant 0 : index
    %86 = vector.load %arg4[%c0_94, %c5_95, %c0_96, %c0_97] : memref<1x9x64x64xbf16, #tpu.memory_space<vmem>>, vector<1x1x64x64xbf16>
    %87 = vector.shape_cast %86 : vector<1x1x64x64xbf16> to vector<64x64xbf16>
    %cst_98 = arith.constant dense<0.000000e+00> : vector<64x200xf32>
    %88 = tpu.matmul %87, %85, %cst_98 {dimension_numbers = #tpu.dot_dimension_numbers<[1], [0], [0], [1], [0, 0, 1, 1], [], []>} : vector<64x64xbf16>, vector<64x200xbf16>, vector<64x200xf32> -> vector<64x200xf32>
    %89 = arith.addf %84, %88 : vector<64x200xf32>
    %c0_99 = arith.constant 0 : index
    %c137_100 = arith.constant 137 : index
    %90 = vector.load %arg9[%c0_99, %c137_100] : memref<64x456xbf16, #tpu.memory_space<vmem>>, vector<64x200xbf16>
    %c0_101 = arith.constant 0 : index
    %c6_102 = arith.constant 6 : index
    %c0_103 = arith.constant 0 : index
    %c0_104 = arith.constant 0 : index
    %91 = vector.load %arg4[%c0_101, %c6_102, %c0_103, %c0_104] : memref<1x9x64x64xbf16, #tpu.memory_space<vmem>>, vector<1x1x64x64xbf16>
    %92 = vector.shape_cast %91 : vector<1x1x64x64xbf16> to vector<64x64xbf16>
    %cst_105 = arith.constant dense<0.000000e+00> : vector<64x200xf32>
    %93 = tpu.matmul %92, %90, %cst_105 {dimension_numbers = #tpu.dot_dimension_numbers<[1], [0], [0], [1], [0, 0, 1, 1], [], []>} : vector<64x64xbf16>, vector<64x200xbf16>, vector<64x200xf32> -> vector<64x200xf32>
    %94 = arith.addf %89, %93 : vector<64x200xf32>
    %c0_106 = arith.constant 0 : index
    %c138_107 = arith.constant 138 : index
    %95 = vector.load %arg9[%c0_106, %c138_107] : memref<64x456xbf16, #tpu.memory_space<vmem>>, vector<64x200xbf16>
    %c0_108 = arith.constant 0 : index
    %c7_109 = arith.constant 7 : index
    %c0_110 = arith.constant 0 : index
    %c0_111 = arith.constant 0 : index
    %96 = vector.load %arg4[%c0_108, %c7_109, %c0_110, %c0_111] : memref<1x9x64x64xbf16, #tpu.memory_space<vmem>>, vector<1x1x64x64xbf16>
    %97 = vector.shape_cast %96 : vector<1x1x64x64xbf16> to vector<64x64xbf16>
    %cst_112 = arith.constant dense<0.000000e+00> : vector<64x200xf32>
    %98 = tpu.matmul %97, %95, %cst_112 {dimension_numbers = #tpu.dot_dimension_numbers<[1], [0], [0], [1], [0, 0, 1, 1], [], []>} : vector<64x64xbf16>, vector<64x200xbf16>, vector<64x200xf32> -> vector<64x200xf32>
    %99 = arith.addf %94, %98 : vector<64x200xf32>
    %c0_113 = arith.constant 0 : index
    %c139_114 = arith.constant 139 : index
    %100 = vector.load %arg9[%c0_113, %c139_114] : memref<64x456xbf16, #tpu.memory_space<vmem>>, vector<64x200xbf16>
    %c0_115 = arith.constant 0 : index
    %c8_116 = arith.constant 8 : index
    %c0_117 = arith.constant 0 : index
    %c0_118 = arith.constant 0 : index
    %101 = vector.load %arg4[%c0_115, %c8_116, %c0_117, %c0_118] : memref<1x9x64x64xbf16, #tpu.memory_space<vmem>>, vector<1x1x64x64xbf16>
    %102 = vector.shape_cast %101 : vector<1x1x64x64xbf16> to vector<64x64xbf16>
    %cst_119 = arith.constant dense<0.000000e+00> : vector<64x200xf32>
    %103 = tpu.matmul %102, %100, %cst_119 {dimension_numbers = #tpu.dot_dimension_numbers<[1], [0], [0], [1], [0, 0, 1, 1], [], []>} : vector<64x64xbf16>, vector<64x200xbf16>, vector<64x200xf32> -> vector<64x200xf32>
    %104 = arith.addf %99, %103 : vector<64x200xf32>
    %c0_120 = arith.constant 0 : index
    %c128_121 = arith.constant 128 : index
    %105 = vector.load %arg1[%c0_120, %c128_121] : memref<64x456xbf16, #tpu.memory_space<vmem>>, vector<64x200xbf16>
    %106 = arith.extf %105 : vector<64x200xbf16> to vector<64x200xf32>
    %c0_122 = arith.constant 0 : index
    %c0_123 = arith.constant 0 : index
    %c0_124 = arith.constant 0 : index
    %107 = vector.load %arg5[%c0_122, %c0_123, %c0_124] : memref<1x64x1xf32, #tpu.memory_space<vmem>>, vector<1x64x1xf32>
    %108 = vector.shape_cast %107 : vector<1x64x1xf32> to vector<64x1xf32>
    %109 = vector.broadcast %108 : vector<64x1xf32> to vector<64x200xf32>
    %110 = arith.addf %104, %109 : vector<64x200xf32>
    %111 = arith.addf %110, %106 : vector<64x200xf32>
    %cst_125 = arith.constant 0.000000e+00 : f32
    %112 = vector.broadcast %cst_125 : f32 to vector<64x200xf32>
    %113 = arith.maximumf %111, %112 : vector<64x200xf32>
    %114 = vector.broadcast %0 : vector<1x200xf32> to vector<64x200xf32>
    %115 = arith.mulf %113, %114 : vector<64x200xf32>
    %cst_126 = arith.constant 0.000000e+00 : bf16
    %116 = vector.broadcast %cst_126 : bf16 to vector<64x456xbf16>
    %c0_127 = arith.constant 0 : index
    %c0_128 = arith.constant 0 : index
    %117 = vector.load %arg10[%c0_127, %c0_128] : memref<64x456xbf16, #tpu.memory_space<vmem>>, vector<64x456xbf16>
    tpu.vector_store %arg10[%c0_127, %c0_128], %116 {strides = array<i32>} : memref<64x456xbf16, #tpu.memory_space<vmem>>, vector<64x456xbf16>,
    %118 = arith.truncf %115 : vector<64x200xf32> to vector<64x200xbf16>
    %c0_129 = arith.constant 0 : index
    %c128_130 = arith.constant 128 : index
    %119 = vector.load %arg10[%c0_129, %c128_130] : memref<64x456xbf16, #tpu.memory_space<vmem>>, vector<64x200xbf16>
    tpu.vector_store %arg10[%c0_129, %c128_130], %118 {strides = array<i32>} : memref<64x456xbf16, #tpu.memory_space<vmem>>, vector<64x200xbf16>,
    %cst_131 = arith.constant 0.000000e+00 : f32
    %120 = vector.broadcast %cst_131 : f32 to vector<8x200xf32>
    %c0_132 = arith.constant 0 : index
    %c117_133 = arith.constant 117 : index
    %121 = vector.load %arg10[%c0_132, %c117_133] : memref<64x456xbf16, #tpu.memory_space<vmem>>, vector<64x200xbf16>
    %c0_134 = arith.constant 0 : index
    %c0_135 = arith.constant 0 : index
    %c0_136 = arith.constant 0 : index
    %c0_137 = arith.constant 0 : index
    %122 = vector.load %arg6[%c0_134, %c0_135, %c0_136, %c0_137] : memref<1x9x8x64xbf16, #tpu.memory_space<vmem>>, vector<1x1x8x64xbf16>
    %123 = vector.shape_cast %122 : vector<1x1x8x64xbf16> to vector<8x64xbf16>
    %cst_138 = arith.constant dense<0.000000e+00> : vector<8x200xf32>
    %124 = tpu.matmul %123, %121, %cst_138 {dimension_numbers = #tpu.dot_dimension_numbers<[1], [0], [0], [1], [0, 0, 1, 1], [], []>} : vector<8x64xbf16>, vector<64x200xbf16>, vector<8x200xf32> -> vector<8x200xf32>
    %125 = arith.addf %120, %124 : vector<8x200xf32>
    %c0_139 = arith.constant 0 : index
    %c118_140 = arith.constant 118 : index
    %126 = vector.load %arg10[%c0_139, %c118_140] : memref<64x456xbf16, #tpu.memory_space<vmem>>, vector<64x200xbf16>
    %c0_141 = arith.constant 0 : index
    %c1_142 = arith.constant 1 : index
    %c0_143 = arith.constant 0 : index
    %c0_144 = arith.constant 0 : index
    %127 = vector.load %arg6[%c0_141, %c1_142, %c0_143, %c0_144] : memref<1x9x8x64xbf16, #tpu.memory_space<vmem>>, vector<1x1x8x64xbf16>
    %128 = vector.shape_cast %127 : vector<1x1x8x64xbf16> to vector<8x64xbf16>
    %cst_145 = arith.constant dense<0.000000e+00> : vector<8x200xf32>
    %129 = tpu.matmul %128, %126, %cst_145 {dimension_numbers = #tpu.dot_dimension_numbers<[1], [0], [0], [1], [0, 0, 1, 1], [], []>} : vector<8x64xbf16>, vector<64x200xbf16>, vector<8x200xf32> -> vector<8x200xf32>
    %130 = arith.addf %125, %129 : vector<8x200xf32>
    %c0_146 = arith.constant 0 : index
    %c119_147 = arith.constant 119 : index
    %131 = vector.load %arg10[%c0_146, %c119_147] : memref<64x456xbf16, #tpu.memory_space<vmem>>, vector<64x200xbf16>
    %c0_148 = arith.constant 0 : index
    %c2_149 = arith.constant 2 : index
    %c0_150 = arith.constant 0 : index
    %c0_151 = arith.constant 0 : index
    %132 = vector.load %arg6[%c0_148, %c2_149, %c0_150, %c0_151] : memref<1x9x8x64xbf16, #tpu.memory_space<vmem>>, vector<1x1x8x64xbf16>
    %133 = vector.shape_cast %132 : vector<1x1x8x64xbf16> to vector<8x64xbf16>
    %cst_152 = arith.constant dense<0.000000e+00> : vector<8x200xf32>
    %134 = tpu.matmul %133, %131, %cst_152 {dimension_numbers = #tpu.dot_dimension_numbers<[1], [0], [0], [1], [0, 0, 1, 1], [], []>} : vector<8x64xbf16>, vector<64x200xbf16>, vector<8x200xf32> -> vector<8x200xf32>
    %135 = arith.addf %130, %134 : vector<8x200xf32>
    %c0_153 = arith.constant 0 : index
    %c127_154 = arith.constant 127 : index
    %136 = vector.load %arg10[%c0_153, %c127_154] : memref<64x456xbf16, #tpu.memory_space<vmem>>, vector<64x200xbf16>
    %c0_155 = arith.constant 0 : index
    %c3_156 = arith.constant 3 : index
    %c0_157 = arith.constant 0 : index
    %c0_158 = arith.constant 0 : index
    %137 = vector.load %arg6[%c0_155, %c3_156, %c0_157, %c0_158] : memref<1x9x8x64xbf16, #tpu.memory_space<vmem>>, vector<1x1x8x64xbf16>
    %138 = vector.shape_cast %137 : vector<1x1x8x64xbf16> to vector<8x64xbf16>
    %cst_159 = arith.constant dense<0.000000e+00> : vector<8x200xf32>
    %139 = tpu.matmul %138, %136, %cst_159 {dimension_numbers = #tpu.dot_dimension_numbers<[1], [0], [0], [1], [0, 0, 1, 1], [], []>} : vector<8x64xbf16>, vector<64x200xbf16>, vector<8x200xf32> -> vector<8x200xf32>
    %140 = arith.addf %135, %139 : vector<8x200xf32>
    %c0_160 = arith.constant 0 : index
    %c128_161 = arith.constant 128 : index
    %141 = vector.load %arg10[%c0_160, %c128_161] : memref<64x456xbf16, #tpu.memory_space<vmem>>, vector<64x200xbf16>
    %c0_162 = arith.constant 0 : index
    %c4_163 = arith.constant 4 : index
    %c0_164 = arith.constant 0 : index
    %c0_165 = arith.constant 0 : index
    %142 = vector.load %arg6[%c0_162, %c4_163, %c0_164, %c0_165] : memref<1x9x8x64xbf16, #tpu.memory_space<vmem>>, vector<1x1x8x64xbf16>
    %143 = vector.shape_cast %142 : vector<1x1x8x64xbf16> to vector<8x64xbf16>
    %cst_166 = arith.constant dense<0.000000e+00> : vector<8x200xf32>
    %144 = tpu.matmul %143, %141, %cst_166 {dimension_numbers = #tpu.dot_dimension_numbers<[1], [0], [0], [1], [0, 0, 1, 1], [], []>} : vector<8x64xbf16>, vector<64x200xbf16>, vector<8x200xf32> -> vector<8x200xf32>
    %145 = arith.addf %140, %144 : vector<8x200xf32>
    %c0_167 = arith.constant 0 : index
    %c129_168 = arith.constant 129 : index
    %146 = vector.load %arg10[%c0_167, %c129_168] : memref<64x456xbf16, #tpu.memory_space<vmem>>, vector<64x200xbf16>
    %c0_169 = arith.constant 0 : index
    %c5_170 = arith.constant 5 : index
    %c0_171 = arith.constant 0 : index
    %c0_172 = arith.constant 0 : index
    %147 = vector.load %arg6[%c0_169, %c5_170, %c0_171, %c0_172] : memref<1x9x8x64xbf16, #tpu.memory_space<vmem>>, vector<1x1x8x64xbf16>
    %148 = vector.shape_cast %147 : vector<1x1x8x64xbf16> to vector<8x64xbf16>
    %cst_173 = arith.constant dense<0.000000e+00> : vector<8x200xf32>
    %149 = tpu.matmul %148, %146, %cst_173 {dimension_numbers = #tpu.dot_dimension_numbers<[1], [0], [0], [1], [0, 0, 1, 1], [], []>} : vector<8x64xbf16>, vector<64x200xbf16>, vector<8x200xf32> -> vector<8x200xf32>
    %150 = arith.addf %145, %149 : vector<8x200xf32>
    %c0_174 = arith.constant 0 : index
    %c137_175 = arith.constant 137 : index
    %151 = vector.load %arg10[%c0_174, %c137_175] : memref<64x456xbf16, #tpu.memory_space<vmem>>, vector<64x200xbf16>
    %c0_176 = arith.constant 0 : index
    %c6_177 = arith.constant 6 : index
    %c0_178 = arith.constant 0 : index
    %c0_179 = arith.constant 0 : index
    %152 = vector.load %arg6[%c0_176, %c6_177, %c0_178, %c0_179] : memref<1x9x8x64xbf16, #tpu.memory_space<vmem>>, vector<1x1x8x64xbf16>
    %153 = vector.shape_cast %152 : vector<1x1x8x64xbf16> to vector<8x64xbf16>
    %cst_180 = arith.constant dense<0.000000e+00> : vector<8x200xf32>
    %154 = tpu.matmul %153, %151, %cst_180 {dimension_numbers = #tpu.dot_dimension_numbers<[1], [0], [0], [1], [0, 0, 1, 1], [], []>} : vector<8x64xbf16>, vector<64x200xbf16>, vector<8x200xf32> -> vector<8x200xf32>
    %155 = arith.addf %150, %154 : vector<8x200xf32>
    %c0_181 = arith.constant 0 : index
    %c138_182 = arith.constant 138 : index
    %156 = vector.load %arg10[%c0_181, %c138_182] : memref<64x456xbf16, #tpu.memory_space<vmem>>, vector<64x200xbf16>
    %c0_183 = arith.constant 0 : index
    %c7_184 = arith.constant 7 : index
    %c0_185 = arith.constant 0 : index
    %c0_186 = arith.constant 0 : index
    %157 = vector.load %arg6[%c0_183, %c7_184, %c0_185, %c0_186] : memref<1x9x8x64xbf16, #tpu.memory_space<vmem>>, vector<1x1x8x64xbf16>
    %158 = vector.shape_cast %157 : vector<1x1x8x64xbf16> to vector<8x64xbf16>
    %cst_187 = arith.constant dense<0.000000e+00> : vector<8x200xf32>
    %159 = tpu.matmul %158, %156, %cst_187 {dimension_numbers = #tpu.dot_dimension_numbers<[1], [0], [0], [1], [0, 0, 1, 1], [], []>} : vector<8x64xbf16>, vector<64x200xbf16>, vector<8x200xf32> -> vector<8x200xf32>
    %160 = arith.addf %155, %159 : vector<8x200xf32>
    %c0_188 = arith.constant 0 : index
    %c139_189 = arith.constant 139 : index
    %161 = vector.load %arg10[%c0_188, %c139_189] : memref<64x456xbf16, #tpu.memory_space<vmem>>, vector<64x200xbf16>
    %c0_190 = arith.constant 0 : index
    %c8_191 = arith.constant 8 : index
    %c0_192 = arith.constant 0 : index
    %c0_193 = arith.constant 0 : index
    %162 = vector.load %arg6[%c0_190, %c8_191, %c0_192, %c0_193] : memref<1x9x8x64xbf16, #tpu.memory_space<vmem>>, vector<1x1x8x64xbf16>
    %163 = vector.shape_cast %162 : vector<1x1x8x64xbf16> to vector<8x64xbf16>
    %cst_194 = arith.constant dense<0.000000e+00> : vector<8x200xf32>
    %164 = tpu.matmul %163, %161, %cst_194 {dimension_numbers = #tpu.dot_dimension_numbers<[1], [0], [0], [1], [0, 0, 1, 1], [], []>} : vector<8x64xbf16>, vector<64x200xbf16>, vector<8x200xf32> -> vector<8x200xf32>
    %165 = arith.addf %160, %164 : vector<8x200xf32>
    %cst_195 = arith.constant 0.000000e+00 : f32
    %166 = vector.broadcast %cst_195 : f32 to vector<8x456xf32>
    %c0_196 = arith.constant 0 : index
    %c0_197 = arith.constant 0 : index
    %c0_198 = arith.constant 0 : index
    %167 = vector.load %arg8[%c0_196, %c0_197, %c0_198] : memref<1x8x456xf32, #tpu.memory_space<vmem>>, vector<1x8x456xf32>
    %168 = vector.shape_cast %167 : vector<1x8x456xf32> to vector<8x456xf32>
    %169 = vector.shape_cast %166 : vector<8x456xf32> to vector<1x8x456xf32>
    tpu.vector_store %arg8[%c0_196, %c0_197, %c0_198], %169 {strides = array<i32>} : memref<1x8x456xf32, #tpu.memory_space<vmem>>, vector<1x8x456xf32>,
    %c0_199 = arith.constant 0 : index
    %c0_200 = arith.constant 0 : index
    %c128_201 = arith.constant 128 : index
    %170 = vector.load %arg8[%c0_199, %c0_200, %c128_201] : memref<1x8x456xf32, #tpu.memory_space<vmem>>, vector<1x8x200xf32>
    %171 = vector.shape_cast %170 : vector<1x8x200xf32> to vector<8x200xf32>
    %172 = vector.shape_cast %165 : vector<8x200xf32> to vector<1x8x200xf32>
    tpu.vector_store %arg8[%c0_199, %c0_200, %c128_201], %172 {strides = array<i32>} : memref<1x8x456xf32, #tpu.memory_space<vmem>>, vector<1x8x200xf32>,
    return
  }
  func.func @transform_0(%arg0: i32) -> (i32, i32) {
    %c0_i32 = arith.constant 0 : i32
    %c0_i32_0 = arith.constant 0 : i32
    %c0_i32_1 = arith.constant 0 : i32
    return %c0_i32, %c0_i32_0 : i32, i32
  }
  func.func @transform_1(%arg0: i32) -> (i32, i32, i32, i32) {
    %c0_i32 = arith.constant 0 : i32
    %c0_i32_0 = arith.constant 0 : i32
    %c0_i32_1 = arith.constant 0 : i32
    %c0_i32_2 = arith.constant 0 : i32
    return %arg0, %c0_i32, %c0_i32_0, %c0_i32_1 : i32, i32, i32, i32
  }
  func.func @transform_2(%arg0: i32) -> (i32, i32, i32) {
    %c0_i32 = arith.constant 0 : i32
    %c0_i32_0 = arith.constant 0 : i32
    %c0_i32_1 = arith.constant 0 : i32
    return %arg0, %c0_i32, %c0_i32_0 : i32, i32, i32
  }
  func.func @transform_3(%arg0: i32) -> (i32, i32, i32, i32) {
    %c0_i32 = arith.constant 0 : i32
    %c0_i32_0 = arith.constant 0 : i32
    %c0_i32_1 = arith.constant 0 : i32
    %c0_i32_2 = arith.constant 0 : i32
    return %arg0, %c0_i32, %c0_i32_0, %c0_i32_1 : i32, i32, i32, i32
  }
  func.func @transform_4(%arg0: i32) -> (i32, i32, i32) {
    %c0_i32 = arith.constant 0 : i32
    %c0_i32_0 = arith.constant 0 : i32
    %c0_i32_1 = arith.constant 0 : i32
    return %arg0, %c0_i32, %c0_i32_0 : i32, i32, i32
  }
  func.func @transform_5(%arg0: i32) -> (i32, i32, i32, i32) {
    %c0_i32 = arith.constant 0 : i32
    %c0_i32_0 = arith.constant 0 : i32
    %c0_i32_1 = arith.constant 0 : i32
    %c0_i32_2 = arith.constant 0 : i32
    return %arg0, %c0_i32, %c0_i32_0, %c0_i32_1 : i32, i32, i32, i32
  }
  func.func @transform_6(%arg0: i32) -> (i32, i32) {
    %c0_i32 = arith.constant 0 : i32
    %c0_i32_0 = arith.constant 0 : i32
    %c0_i32_1 = arith.constant 0 : i32
    return %c0_i32, %c0_i32_0 : i32, i32
  }
  func.func @transform_7(%arg0: i32) -> (i32, i32, i32) {
    %c0_i32 = arith.constant 0 : i32
    %c0_i32_0 = arith.constant 0 : i32
    %c0_i32_1 = arith.constant 0 : i32
    return %arg0, %c0_i32, %c0_i32_0 : i32, i32, i32
  }
}

</mosaic_0001>

<llo_original>
// kernel: forward.3
$region0: #{forward.3}
  #allocation0 [shape = 'u32[]', space=smem, size = 0x4, offset = 0x4, fixed_abs, tag = 'smem constant byte address 0x4 - core index']
  #allocation1 [shape = 'u32[144,128]{1,0:T(1,128)}', space=vmem, size = 0x12000, scoped, tag = 'internal scratch']
  %s0 = inlined_call_operand.vmem [shape: bf16[512,256], index: 0, kind: input, shape index: {}]
  %s1 = inlined_call_operand.vmem [shape: bf16[256,128], index: 1, kind: input, shape index: {}]
  %s2 = inlined_call_operand.vmem [shape: f32[1,128], index: 2, kind: input, shape index: {}]
  %s3 = inlined_call_operand.vmem [shape: bf16[512,128], index: 3, kind: output, shape index: {}]
  %s4 = sld [smem:[#allocation0]]
  $region45: #{forward.3} parent=0
    _
  %s6 = ssub.s32 1, %s4
  %s7 = scalar_select 0, %s6, %s4
  loop: start=0, step=1, limit=4
  $region2: #{forward.3} parent=0 // loop_pre_header
    _
  $region3: #{forward.3} parent=0 // loop_header
    %s9 = sphi 0, %s13
    %p10 = scmp.ge.s32.totalorder %s9, 4
    %s19 = sphi 0, %s21
    %s22 = sphi 0, %s19
    %s23 = sphi 0, %s22
    %s39 = sphi 0, %s23
    %s43 = sphi 0, %s43
    %s45 = sphi 0, %s43
    %s46 = sphi 0, %s45
    %s60 = sphi 0, %s46
    %s64 = sphi 0, %s64
    %s66 = sphi 0, %s64
    %s67 = sphi 0, %s66
    %s81 = sphi 0, %s67
    %s87 = sphi 0, %s89
    %s90 = sphi 0, %s87
    %s91 = sphi 0, %s90
    %s107 = sphi 0, %s91
  $region4: #{forward.3} parent=0 // loop_header_branch
    %12 = sbr.rel (%p10) target = $region8
  $region5: #{forward.3} parent=0 // loop_body
    %s14 = ssub.s32 %s9, 1
    %s15 = ssub.s32 %s9, 2
    %s16 = sadd.s32 %s9, 1
    %s17 = ssub.s32 %s9, %s16
    %p18 = scmp.eq.s32.totalorder %s17, 0
    %s20 = sadd.s32 %s19, 1
    %s21 = scalar_select %p18, %s19, %s20
    %p24 = pneg %p18
    %p25 = scmp.eq.s32.totalorder %s9, 1
    %p26 = por %p24, %p25
    %p27 = scmp.ne.s32.totalorder %s19, %s22
    %p28 = scmp.eq.s32.totalorder %s9, 0
    %p29 = por %p27, %p28
    %p30 = scmp.ne.s32.totalorder %s19, %s22
    %p31 = scmp.eq.s32.totalorder %s14, 1
    %p32 = por %p30, %p31
    %p33 = scmp.ne.s32.totalorder %s22, %s23
    %p34 = scmp.eq.s32.totalorder %s14, 0
    %p35 = por %p33, %p34
    %p36 = scmp.ne.s32.totalorder %s22, %s23
    %p37 = scmp.eq.s32.totalorder %s15, 1
    %p38 = por %p36, %p37
    %p40 = scmp.ne.s32.totalorder %s23, %s39
    %p41 = scmp.eq.s32.totalorder %s15, 0
    %p42 = por %p40, %p41
    %s44 = sadd.s32 %s43, 1
    %p47 = scmp.eq.s32.totalorder %s9, 1
    %p48 = scmp.ne.s32.totalorder %s43, %s45
    %p49 = scmp.eq.s32.totalorder %s9, 0
    %p50 = por %p48, %p49
    %p51 = scmp.ne.s32.totalorder %s43, %s45
    %p52 = scmp.eq.s32.totalorder %s14, 1
    %p53 = por %p51, %p52
    %p54 = scmp.ne.s32.totalorder %s45, %s46
    %p55 = scmp.eq.s32.totalorder %s14, 0
    %p56 = por %p54, %p55
    %p57 = scmp.ne.s32.totalorder %s45, %s46
    %p58 = scmp.eq.s32.totalorder %s15, 1
    %p59 = por %p57, %p58
    %p61 = scmp.ne.s32.totalorder %s46, %s60
    %p62 = scmp.eq.s32.totalorder %s15, 0
    %p63 = por %p61, %p62
    %s65 = sadd.s32 %s64, 1
    %p68 = scmp.eq.s32.totalorder %s9, 1
    %p69 = scmp.ne.s32.totalorder %s64, %s66
    %p70 = scmp.eq.s32.totalorder %s9, 0
    %p71 = por %p69, %p70
    %p72 = scmp.ne.s32.totalorder %s64, %s66
    %p73 = scmp.eq.s32.totalorder %s14, 1
    %p74 = por %p72, %p73
    %p75 = scmp.ne.s32.totalorder %s66, %s67
    %p76 = scmp.eq.s32.totalorder %s14, 0
    %p77 = por %p75, %p76
    %p78 = scmp.ne.s32.totalorder %s66, %s67
    %p79 = scmp.eq.s32.totalorder %s15, 1
    %p80 = por %p78, %p79
    %p82 = scmp.ne.s32.totalorder %s67, %s81
    %p83 = scmp.eq.s32.totalorder %s15, 0
    %p84 = por %p82, %p83
    %s85 = ssub.s32 %s9, %s16
    %p86 = scmp.eq.s32.totalorder %s85, 0
    %s88 = sadd.s32 %s87, 1
    %s89 = scalar_select %p86, %s87, %s88
    %p92 = pneg %p86
    %p93 = scmp.eq.s32.totalorder %s9, 1
    %p94 = por %p92, %p93
    %p95 = scmp.ne.s32.totalorder %s87, %s90
    %p96 = scmp.eq.s32.totalorder %s9, 0
    %p97 = por %p95, %p96
    %p98 = scmp.ne.s32.totalorder %s87, %s90
    %p99 = scmp.eq.s32.totalorder %s14, 1
    %p100 = por %p98, %p99
    %p101 = scmp.ne.s32.totalorder %s90, %s91
    %p102 = scmp.eq.s32.totalorder %s14, 0
    %p103 = por %p101, %p102
    %p104 = scmp.ne.s32.totalorder %s90, %s91
    %p105 = scmp.eq.s32.totalorder %s15, 1
    %p106 = por %p104, %p105
    %p108 = scmp.ne.s32.totalorder %s91, %s107
    %p109 = scmp.eq.s32.totalorder %s15, 0
    %p110 = por %p108, %p109
    %p111 = scmp.le.s32.totalorder 1, %s9
    %p112 = scmp.lt.s32.totalorder %s9, 3
    %p113 = pnand %p111, %p112
    %p114 = pneg %p113
    // Predicated region
    $region9: #{forward.3} parent=5 // pred_check
      _
    $region10: #{forward.3} parent=5 // pred_check_branch
      %116 = sbr.rel (%p113) target = $region12
    $region11: #{forward.3} parent=5 // pred_region
      %s117 = ssub.s32 %s9, 1
      // Predicated region
      $region13: #{forward.3} parent=11 // pred_check
        %p118 = pneg %p56
      $region14: #{forward.3} parent=11 // pred_check_branch
        %120 = sbr.rel (%p118) target = $region16
      $region15: #{forward.3} parent=11 // pred_region
        _
      $region16: #{forward.3} parent=11 // pred_fallthru
        _
      // Predicated region
      $region17: #{forward.3} parent=11 // pred_check
        %p121 = pneg %p77
      $region18: #{forward.3} parent=11 // pred_check_branch
        %123 = sbr.rel (%p121) target = $region20
      $region19: #{forward.3} parent=11 // pred_region
        _
      $region20: #{forward.3} parent=11 // pred_fallthru
        _
    $region12: #{forward.3} parent=5 // pred_fallthru
      _
    %p124 = scmp.lt.s32.totalorder %s9, 2
    // Predicated region
    $region21: #{forward.3} parent=5 // pred_check
      %p125 = pneg %p124
    $region22: #{forward.3} parent=5 // pred_check_branch
      %127 = sbr.rel (%p125) target = $region24
    $region23: #{forward.3} parent=5 // pred_region
      // Predicated region
      $region25: #{forward.3} parent=23 // pred_check
        %p128 = pneg %p29
      $region26: #{forward.3} parent=23 // pred_check_branch
        %130 = sbr.rel (%p128) target = $region28
      $region27: #{forward.3} parent=23 // pred_region
        %s131 = smul.u32 32, %s9
        %p132 = scmp.lt.s32.totalorder %s131, 63
        %s133 = scalar_select %p132, %s131, 63
        %s134 = smul.addr %s133, 2
        %s135 = smul.addr %s134, 4
        %s136 = scalar_lea.vmem %s0, %s135
        %s137 = smul.u32 32, %s9
      $region28: #{forward.3} parent=23 // pred_fallthru
        _
    $region24: #{forward.3} parent=5 // pred_fallthru
      _
    %p138 = scmp.le.s32.totalorder 1, %s9
    %p139 = scmp.lt.s32.totalorder %s9, 3
    %p140 = pnand %p138, %p139
    %p141 = pneg %p140
    // Predicated region
    $region29: #{forward.3} parent=5 // pred_check
      _
    $region30: #{forward.3} parent=5 // pred_check_branch
      %143 = sbr.rel (%p140) target = $region32
    $region31: #{forward.3} parent=5 // pred_region
      %s144 = ssub.s32 %s9, 1
      %s145 = smul.u32 32, %s14
      %p146 = scmp.lt.s32.totalorder %s145, 63
      %s147 = scalar_select %p146, %s145, 63
      %s148 = smul.addr %s147, 2
      %s149 = smul.addr %s148, 4
      %s150 = scalar_lea.vmem %s0, %s149
      %p151 = pneg %p35
      %p152 = pneg %p32
      %p153 = pneg %p56
      %p154 = pneg %p53
      %p155 = pneg %p77
      %p156 = pneg %p74
      %p157 = pneg %p103
      %p158 = pneg %p100
      %s159 = smul.u32 32, %s14
      %p160 = scmp.lt.s32.totalorder %s159, 63
      %s161 = scalar_select %p160, %s159, 63
      %s162 = smul.addr %s161, 4
      %s163 = scalar_lea.vmem %s3, %s162
      %s164 = smul.u32 32, %s14
      %p165 = scmp.lt.s32.totalorder %s164, 63
      %s166 = scalar_select %p165, %s164, 63
      %s167 = smul.addr %s166, 2
      %s168 = smul.addr %s167, 4
      %s169 = scalar_lea.vmem %s0, %s168
      %s170 = smul.u32 32, %s14
      %s171 = smul.u32 32, %s14
      %p172 = scmp.lt.s32.totalorder %s171, 63
      %s173 = scalar_select %p172, %s171, 63
      %s174 = smul.addr %s173, 4
      %s175 = scalar_lea.vmem %s3, %s174
      %s176 = smul.u32 32, %s14
      %v178 = vld [vmem:[%s169] sm:$0xff]
      %v179 = vld [vmem:[%s169 + $0x8] sm:$0xff]
      %v180 = vld [vmem:[%s169 + $0x10] sm:$0xff]
      %v181 = vld [vmem:[%s169 + $0x18] sm:$0xff]
      %v182 = vld [vmem:[%s169 + $0x20] sm:$0xff]
      %v183 = vld [vmem:[%s169 + $0x28] sm:$0xff]
      %v184 = vld [vmem:[%s169 + $0x30] sm:$0xff]
      %v185 = vld [vmem:[%s169 + $0x38] sm:$0xff]
      %v186 = vld [vmem:[%s169 + $0x40] sm:$0xff]
      %v187 = vld [vmem:[%s169 + $0x48] sm:$0xff]
      %v188 = vld [vmem:[%s169 + $0x50] sm:$0xff]
      %v189 = vld [vmem:[%s169 + $0x58] sm:$0xff]
      %v190 = vld [vmem:[%s169 + $0x60] sm:$0xff]
      %v191 = vld [vmem:[%s169 + $0x68] sm:$0xff]
      %v192 = vld [vmem:[%s169 + $0x70] sm:$0xff]
      %v193 = vld [vmem:[%s169 + $0x78] sm:$0xff]
      %v194 = vld [vmem:[%s169 + $0x80] sm:$0xff]
      %v195 = vld [vmem:[%s169 + $0x88] sm:$0xff]
      %v196 = vld [vmem:[%s169 + $0x90] sm:$0xff]
      %v197 = vld [vmem:[%s169 + $0x98] sm:$0xff]
      %v198 = vld [vmem:[%s169 + $0xa0] sm:$0xff]
      %v199 = vld [vmem:[%s169 + $0xa8] sm:$0xff]
      %v200 = vld [vmem:[%s169 + $0xb0] sm:$0xff]
      %v201 = vld [vmem:[%s169 + $0xb8] sm:$0xff]
      %v202 = vld [vmem:[%s169 + $0xc0] sm:$0xff]
      %v203 = vld [vmem:[%s169 + $0xc8] sm:$0xff]
      %v204 = vld [vmem:[%s169 + $0xd0] sm:$0xff]
      %v205 = vld [vmem:[%s169 + $0xd8] sm:$0xff]
      %v206 = vld [vmem:[%s169 + $0xe0] sm:$0xff]
      %v207 = vld [vmem:[%s169 + $0xe8] sm:$0xff]
      %v208 = vld [vmem:[%s169 + $0xf0] sm:$0xff]
      %v209 = vld [vmem:[%s169 + $0xf8] sm:$0xff]
      %v210 = vld [vmem:[%s1] sm:$0xf]
      %v211 = vld [vmem:[%s1 + $0x4] sm:$0xf]
      %v212 = vld [vmem:[%s1 + $0x8] sm:$0xf]
      %v213 = vld [vmem:[%s1 + $0xc] sm:$0xf]
      %v214 = vld [vmem:[%s1 + $0x10] sm:$0xf]
      %v215 = vld [vmem:[%s1 + $0x14] sm:$0xf]
      %v216 = vld [vmem:[%s1 + $0x18] sm:$0xf]
      %v217 = vld [vmem:[%s1 + $0x1c] sm:$0xf]
      %v218 = vld [vmem:[%s1 + $0x20] sm:$0xf]
      %v219 = vld [vmem:[%s1 + $0x24] sm:$0xf]
      %v220 = vld [vmem:[%s1 + $0x28] sm:$0xf]
      %v221 = vld [vmem:[%s1 + $0x2c] sm:$0xf]
      %v222 = vld [vmem:[%s1 + $0x30] sm:$0xf]
      %v223 = vld [vmem:[%s1 + $0x34] sm:$0xf]
      %v224 = vld [vmem:[%s1 + $0x38] sm:$0xf]
      %v225 = vld [vmem:[%s1 + $0x3c] sm:$0xf]
      %v226 = vld [vmem:[%s1 + $0x40] sm:$0xf]
      %v227 = vld [vmem:[%s1 + $0x44] sm:$0xf]
      %v228 = vld [vmem:[%s1 + $0x48] sm:$0xf]
      %v229 = vld [vmem:[%s1 + $0x4c] sm:$0xf]
      %v230 = vld [vmem:[%s1 + $0x50] sm:$0xf]
      %v231 = vld [vmem:[%s1 + $0x54] sm:$0xf]
      %v232 = vld [vmem:[%s1 + $0x58] sm:$0xf]
      %v233 = vld [vmem:[%s1 + $0x5c] sm:$0xf]
      %v234 = vld [vmem:[%s1 + $0x60] sm:$0xf]
      %v235 = vld [vmem:[%s1 + $0x64] sm:$0xf]
      %v236 = vld [vmem:[%s1 + $0x68] sm:$0xf]
      %v237 = vld [vmem:[%s1 + $0x6c] sm:$0xf]
      %v238 = vld [vmem:[%s1 + $0x70] sm:$0xf]
      %v239 = vld [vmem:[%s1 + $0x74] sm:$0xf]
      %v240 = vld [vmem:[%s1 + $0x78] sm:$0xf]
      %v241 = vld [vmem:[%s1 + $0x7c] sm:$0xf]
      %v242 = vld [vmem:[%s2] sm:$0x1]
      %v244 = vlaneseq
      %v245 = vshrl.u32 %v244, 7
      %v246 = vsub.s32 0, %v245
      %v247 = vrot.slane %v242, %v246
      %v281 = vunpack.c.l.b16 %v178
      %v282 = vunpack.c.h.b16 %v178
      %v283 = vunpack.c.l.b16 %v179
      %v284 = vunpack.c.h.b16 %v179
      %v285 = vunpack.c.l.b16 %v180
      %v286 = vunpack.c.h.b16 %v180
      %v287 = vunpack.c.l.b16 %v181
      %v288 = vunpack.c.h.b16 %v181
      %v289 = vunpack.c.l.b16 %v182
      %v290 = vunpack.c.h.b16 %v182
      %v291 = vunpack.c.l.b16 %v183
      %v292 = vunpack.c.h.b16 %v183
      %v293 = vunpack.c.l.b16 %v184
      %v294 = vunpack.c.h.b16 %v184
      %v295 = vunpack.c.l.b16 %v185
      %v296 = vunpack.c.h.b16 %v185
      %v297 = vunpack.c.l.b16 %v186
      %v298 = vunpack.c.h.b16 %v186
      %v299 = vunpack.c.l.b16 %v187
      %v300 = vunpack.c.h.b16 %v187
      %v301 = vunpack.c.l.b16 %v188
      %v302 = vunpack.c.h.b16 %v188
      %v303 = vunpack.c.l.b16 %v189
      %v304 = vunpack.c.h.b16 %v189
      %v305 = vunpack.c.l.b16 %v190
      %v306 = vunpack.c.h.b16 %v190
      %v307 = vunpack.c.l.b16 %v191
      %v308 = vunpack.c.h.b16 %v191
      %v309 = vunpack.c.l.b16 %v192
      %v310 = vunpack.c.h.b16 %v192
      %v311 = vunpack.c.l.b16 %v193
      %v312 = vunpack.c.h.b16 %v193
      %v313 = vunpack.c.l.b16 %v194
      %v314 = vunpack.c.h.b16 %v194
      %v315 = vunpack.c.l.b16 %v195
      %v316 = vunpack.c.h.b16 %v195
      %v317 = vunpack.c.l.b16 %v196
      %v318 = vunpack.c.h.b16 %v196
      %v319 = vunpack.c.l.b16 %v197
      %v320 = vunpack.c.h.b16 %v197
      %v321 = vunpack.c.l.b16 %v198
      %v322 = vunpack.c.h.b16 %v198
      %v323 = vunpack.c.l.b16 %v199
      %v324 = vunpack.c.h.b16 %v199
      %v325 = vunpack.c.l.b16 %v200
      %v326 = vunpack.c.h.b16 %v200
      %v327 = vunpack.c.l.b16 %v201
      %v328 = vunpack.c.h.b16 %v201
      %v329 = vunpack.c.l.b16 %v202
      %v330 = vunpack.c.h.b16 %v202
      %v331 = vunpack.c.l.b16 %v203
      %v332 = vunpack.c.h.b16 %v203
      %v333 = vunpack.c.l.b16 %v204
      %v334 = vunpack.c.h.b16 %v204
      %v335 = vunpack.c.l.b16 %v205
      %v336 = vunpack.c.h.b16 %v205
      %v337 = vunpack.c.l.b16 %v206
      %v338 = vunpack.c.h.b16 %v206
      %v339 = vunpack.c.l.b16 %v207
      %v340 = vunpack.c.h.b16 %v207
      %v341 = vunpack.c.l.b16 %v208
      %v342 = vunpack.c.h.b16 %v208
      %v343 = vunpack.c.l.b16 %v209
      %v344 = vunpack.c.h.b16 %v209
      %v345 = vpack.c.b16 %v283, %v281
      %v346 = vpack.c.b16 %v284, %v282
      %v347 = vpack.c.b16 %v287, %v285
      %v348 = vpack.c.b16 %v288, %v286
      %v349 = vpack.c.b16 %v291, %v289
      %v350 = vpack.c.b16 %v292, %v290
      %v351 = vpack.c.b16 %v295, %v293
      %v352 = vpack.c.b16 %v296, %v294
      %v353 = vpack.c.b16 %v299, %v297
      %v354 = vpack.c.b16 %v300, %v298
      %v355 = vpack.c.b16 %v303, %v301
      %v356 = vpack.c.b16 %v304, %v302
      %v357 = vpack.c.b16 %v307, %v305
      %v358 = vpack.c.b16 %v308, %v306
      %v359 = vpack.c.b16 %v311, %v309
      %v360 = vpack.c.b16 %v312, %v310
      %v361 = vpack.c.b16 %v315, %v313
      %v362 = vpack.c.b16 %v316, %v314
      %v363 = vpack.c.b16 %v319, %v317
      %v364 = vpack.c.b16 %v320, %v318
      %v365 = vpack.c.b16 %v323, %v321
      %v366 = vpack.c.b16 %v324, %v322
      %v367 = vpack.c.b16 %v327, %v325
      %v368 = vpack.c.b16 %v328, %v326
      %v369 = vpack.c.b16 %v331, %v329
      %v370 = vpack.c.b16 %v332, %v330
      %v371 = vpack.c.b16 %v335, %v333
      %v372 = vpack.c.b16 %v336, %v334
      %v373 = vpack.c.b16 %v339, %v337
      %v374 = vpack.c.b16 %v340, %v338
      %v375 = vpack.c.b16 %v343, %v341
      %v376 = vpack.c.b16 %v344, %v342
      %v441 = vunpack.c.l.b16 %v210
      %v442 = vunpack.c.l.b16 %v211
      %v443 = vunpack.c.l.b16 %v212
      %v444 = vunpack.c.l.b16 %v213
      %v445 = vunpack.c.l.b16 %v214
      %v446 = vunpack.c.l.b16 %v215
      %v447 = vunpack.c.l.b16 %v216
      %v448 = vunpack.c.l.b16 %v217
      %v449 = vunpack.c.l.b16 %v218
      %v450 = vunpack.c.l.b16 %v219
      %v451 = vunpack.c.l.b16 %v220
      %v452 = vunpack.c.l.b16 %v221
      %v453 = vunpack.c.l.b16 %v222
      %v454 = vunpack.c.l.b16 %v223
      %v455 = vunpack.c.l.b16 %v224
      %v456 = vunpack.c.l.b16 %v225
      %v457 = vunpack.c.l.b16 %v226
      %v458 = vunpack.c.l.b16 %v227
      %v459 = vunpack.c.l.b16 %v228
      %v460 = vunpack.c.l.b16 %v229
      %v461 = vunpack.c.l.b16 %v230
      %v462 = vunpack.c.l.b16 %v231
      %v463 = vunpack.c.l.b16 %v232
      %v464 = vunpack.c.l.b16 %v233
      %v465 = vunpack.c.l.b16 %v234
      %v466 = vunpack.c.l.b16 %v235
      %v467 = vunpack.c.l.b16 %v236
      %v468 = vunpack.c.l.b16 %v237
      %v469 = vunpack.c.l.b16 %v238
      %v470 = vunpack.c.l.b16 %v239
      %v471 = vunpack.c.l.b16 %v240
      %v472 = vunpack.c.l.b16 %v241
      %v473 = vpack.c.b16 %v442, %v441
      %v474 = vpack.c.b16 %v444, %v443
      %v475 = vpack.c.b16 %v446, %v445
      %v476 = vpack.c.b16 %v448, %v447
      %v477 = vpack.c.b16 %v450, %v449
      %v478 = vpack.c.b16 %v452, %v451
      %v479 = vpack.c.b16 %v454, %v453
      %v480 = vpack.c.b16 %v456, %v455
      %v481 = vpack.c.b16 %v458, %v457
      %v482 = vpack.c.b16 %v460, %v459
      %v483 = vpack.c.b16 %v462, %v461
      %v484 = vpack.c.b16 %v464, %v463
      %v485 = vpack.c.b16 %v466, %v465
      %v486 = vpack.c.b16 %v468, %v467
      %v487 = vpack.c.b16 %v470, %v469
      %v488 = vpack.c.b16 %v472, %v471
      %505 = vmatprep.subr.bf16.mxu0 0
      %506 = vmatpush1.bf16.msra.mxu0 %v473
      %507 = vmatprep.subr.bf16.mxu0 0
      %508 = vmatpush1.bf16.msra.mxu0 %v474
      %509 = vmatprep.subr.bf16.mxu0 0
      %510 = vmatpush1.bf16.msra.mxu0 %v475
      %511 = vmatprep.subr.bf16.mxu0 0
      %512 = vmatpush1.bf16.msra.mxu0 %v476
      %513 = vmatprep.subr.bf16.mxu0 0
      %514 = vmatpush1.bf16.msra.mxu0 %v477
      %515 = vmatprep.subr.bf16.mxu0 0
      %516 = vmatpush1.bf16.msra.mxu0 %v478
      %517 = vmatprep.subr.bf16.mxu0 0
      %518 = vmatpush1.bf16.msra.mxu0 %v479
      %519 = vmatprep.subr.bf16.mxu0 0
      %520 = vmatpush1.bf16.msra.mxu0 %v480
      %521 = vmatprep.subr.bf16.mxu0 0
      %522 = vmatpush1.bf16.msra.mxu0 %v481
      %523 = vmatprep.subr.bf16.mxu0 0
      %524 = vmatpush1.bf16.msra.mxu0 %v482
      %525 = vmatprep.subr.bf16.mxu0 0
      %526 = vmatpush1.bf16.msra.mxu0 %v483
      %527 = vmatprep.subr.bf16.mxu0 0
      %528 = vmatpush1.bf16.msra.mxu0 %v484
      %529 = vmatprep.subr.bf16.mxu0 0
      %530 = vmatpush1.bf16.msra.mxu0 %v485
      %531 = vmatprep.subr.bf16.mxu0 0
      %532 = vmatpush1.bf16.msra.mxu0 %v486
      %533 = vmatprep.subr.bf16.mxu0 0
      %534 = vmatpush1.bf16.msra.mxu0 %v487
      %535 = vmatprep.subr.bf16.mxu0 0
      %536 = vmatpush1.bf16.msra.mxu0 %v488
      %537 = vmatprep.mubr.bf16.mxu0 %v346
      %538 = vmatmul.mubr.bf16.gmra.mrb[0].mxu0 %v345
      %v539 = vpop.f32.mrb[0].mxu0
      %v540 = vadd.f32 %v247, %v539
      %v541 = vpop.f32.mrb[0].mxu0
      %v542 = vpop.f32.mrb[0].mxu0
      %v543 = vadd.f32 %v247, %v542
      %v544 = vpop.f32.mrb[0].mxu0
      %545 = vmatprep.mubr.bf16.mxu0 %v348
      %546 = vmatmul.mubr.bf16.gmra.mrb[0].mxu0 %v347
      %v547 = vpop.f32.mrb[0].mxu0
      %v548 = vadd.f32 %v247, %v547
      %v549 = vpop.f32.mrb[0].mxu0
      %v550 = vpop.f32.mrb[0].mxu0
      %v551 = vadd.f32 %v247, %v550
      %v552 = vpop.f32.mrb[0].mxu0
      %553 = vmatprep.mubr.bf16.mxu0 %v350
      %554 = vmatmul.mubr.bf16.gmra.mrb[0].mxu0 %v349
      %v555 = vpop.f32.mrb[0].mxu0
      %v556 = vadd.f32 %v247, %v555
      %v557 = vpop.f32.mrb[0].mxu0
      %v558 = vpop.f32.mrb[0].mxu0
      %v559 = vadd.f32 %v247, %v558
      %v560 = vpop.f32.mrb[0].mxu0
      %561 = vmatprep.mubr.bf16.mxu0 %v352
      %562 = vmatmul.mubr.bf16.gmra.mrb[0].mxu0 %v351
      %v563 = vpop.f32.mrb[0].mxu0
      %v564 = vadd.f32 %v247, %v563
      %v565 = vpop.f32.mrb[0].mxu0
      %v566 = vpop.f32.mrb[0].mxu0
      %v567 = vadd.f32 %v247, %v566
      %v568 = vpop.f32.mrb[0].mxu0
      %569 = vmatprep.mubr.bf16.mxu0 %v354
      %570 = vmatmul.mubr.bf16.gmra.mrb[0].mxu0 %v353
      %v571 = vpop.f32.mrb[0].mxu0
      %v572 = vadd.f32 %v247, %v571
      %v573 = vpop.f32.mrb[0].mxu0
      %v574 = vpop.f32.mrb[0].mxu0
      %v575 = vadd.f32 %v247, %v574
      %v576 = vpop.f32.mrb[0].mxu0
      %577 = vmatprep.mubr.bf16.mxu0 %v356
      %578 = vmatmul.mubr.bf16.gmra.mrb[0].mxu0 %v355
      %v579 = vpop.f32.mrb[0].mxu0
      %v580 = vadd.f32 %v247, %v579
      %v581 = vpop.f32.mrb[0].mxu0
      %v582 = vpop.f32.mrb[0].mxu0
      %v583 = vadd.f32 %v247, %v582
      %v584 = vpop.f32.mrb[0].mxu0
      %585 = vmatprep.mubr.bf16.mxu0 %v358
      %586 = vmatmul.mubr.bf16.gmra.mrb[0].mxu0 %v357
      %v587 = vpop.f32.mrb[0].mxu0
      %v588 = vadd.f32 %v247, %v587
      %v589 = vpop.f32.mrb[0].mxu0
      %v590 = vpop.f32.mrb[0].mxu0
      %v591 = vadd.f32 %v247, %v590
      %v592 = vpop.f32.mrb[0].mxu0
      %593 = vmatprep.mubr.bf16.mxu0 %v360
      %594 = vmatmul.mubr.bf16.gmra.mrb[0].mxu0 %v359
      %v595 = vpop.f32.mrb[0].mxu0
      %v596 = vadd.f32 %v247, %v595
      %v597 = vpop.f32.mrb[0].mxu0
      %v598 = vpop.f32.mrb[0].mxu0
      %v599 = vadd.f32 %v247, %v598
      %v600 = vpop.f32.mrb[0].mxu0
      %601 = vmatprep.mubr.bf16.mxu0 %v362
      %602 = vmatmul.mubr.bf16.gmra.mrb[0].mxu0 %v361
      %v603 = vpop.f32.mrb[0].mxu0
      %v604 = vadd.f32 %v247, %v603
      %v605 = vpop.f32.mrb[0].mxu0
      %v606 = vpop.f32.mrb[0].mxu0
      %v607 = vadd.f32 %v247, %v606
      %v608 = vpop.f32.mrb[0].mxu0
      %609 = vmatprep.mubr.bf16.mxu0 %v364
      %610 = vmatmul.mubr.bf16.gmra.mrb[0].mxu0 %v363
      %v611 = vpop.f32.mrb[0].mxu0
      %v612 = vadd.f32 %v247, %v611
      %v613 = vpop.f32.mrb[0].mxu0
      %v614 = vpop.f32.mrb[0].mxu0
      %v615 = vadd.f32 %v247, %v614
      %v616 = vpop.f32.mrb[0].mxu0
      %617 = vmatprep.mubr.bf16.mxu0 %v366
      %618 = vmatmul.mubr.bf16.gmra.mrb[0].mxu0 %v365
      %v619 = vpop.f32.mrb[0].mxu0
      %v620 = vadd.f32 %v247, %v619
      %v621 = vpop.f32.mrb[0].mxu0
      %v622 = vpop.f32.mrb[0].mxu0
      %v623 = vadd.f32 %v247, %v622
      %v624 = vpop.f32.mrb[0].mxu0
      %625 = vmatprep.mubr.bf16.mxu0 %v368
      %626 = vmatmul.mubr.bf16.gmra.mrb[0].mxu0 %v367
      %v627 = vpop.f32.mrb[0].mxu0
      %v628 = vadd.f32 %v247, %v627
      %v629 = vpop.f32.mrb[0].mxu0
      %v630 = vpop.f32.mrb[0].mxu0
      %v631 = vadd.f32 %v247, %v630
      %v632 = vpop.f32.mrb[0].mxu0
      %633 = vmatprep.mubr.bf16.mxu0 %v370
      %634 = vmatmul.mubr.bf16.gmra.mrb[0].mxu0 %v369
      %v635 = vpop.f32.mrb[0].mxu0
      %v636 = vadd.f32 %v247, %v635
      %v637 = vpop.f32.mrb[0].mxu0
      %v638 = vpop.f32.mrb[0].mxu0
      %v639 = vadd.f32 %v247, %v638
      %v640 = vpop.f32.mrb[0].mxu0
      %641 = vmatprep.mubr.bf16.mxu0 %v372
      %642 = vmatmul.mubr.bf16.gmra.mrb[0].mxu0 %v371
      %v643 = vpop.f32.mrb[0].mxu0
      %v644 = vadd.f32 %v247, %v643
      %v645 = vpop.f32.mrb[0].mxu0
      %v646 = vpop.f32.mrb[0].mxu0
      %v647 = vadd.f32 %v247, %v646
      %v648 = vpop.f32.mrb[0].mxu0
      %649 = vmatprep.mubr.bf16.mxu0 %v374
      %650 = vmatmul.mubr.bf16.gmra.mrb[0].mxu0 %v373
      %v651 = vpop.f32.mrb[0].mxu0
      %v652 = vadd.f32 %v247, %v651
      %v653 = vpop.f32.mrb[0].mxu0
      %v654 = vpop.f32.mrb[0].mxu0
      %v655 = vadd.f32 %v247, %v654
      %v656 = vpop.f32.mrb[0].mxu0
      %657 = vmatprep.mubr.bf16.mxu0 %v376
      %658 = vmatmul.mubr.bf16.gmra.mrb[0].mxu0 %v375
      %v659 = vpop.f32.mrb[0].mxu0
      %v660 = vadd.f32 %v247, %v659
      %v661 = vpop.f32.mrb[0].mxu0
      %v662 = vpop.f32.mrb[0].mxu0
      %v663 = vadd.f32 %v247, %v662
      %v664 = vpop.f32.mrb[0].mxu0
      %665 = vdwg.mxu0
      %v666 = vmax.f32 %v540, 0.0
      %v667 = vmax.f32 %v543, 0.0
      %v668 = vmax.f32 %v548, 0.0
      %v669 = vmax.f32 %v551, 0.0
      %v670 = vmax.f32 %v556, 0.0
      %v671 = vmax.f32 %v559, 0.0
      %v672 = vmax.f32 %v564, 0.0
      %v673 = vmax.f32 %v567, 0.0
      %v674 = vmax.f32 %v572, 0.0
      %v675 = vmax.f32 %v575, 0.0
      %v676 = vmax.f32 %v580, 0.0
      %v677 = vmax.f32 %v583, 0.0
      %v678 = vmax.f32 %v588, 0.0
      %v679 = vmax.f32 %v591, 0.0
      %v680 = vmax.f32 %v596, 0.0
      %v681 = vmax.f32 %v599, 0.0
      %v682 = vmax.f32 %v604, 0.0
      %v683 = vmax.f32 %v607, 0.0
      %v684 = vmax.f32 %v612, 0.0
      %v685 = vmax.f32 %v615, 0.0
      %v686 = vmax.f32 %v620, 0.0
      %v687 = vmax.f32 %v623, 0.0
      %v688 = vmax.f32 %v628, 0.0
      %v689 = vmax.f32 %v631, 0.0
      %v690 = vmax.f32 %v636, 0.0
      %v691 = vmax.f32 %v639, 0.0
      %v692 = vmax.f32 %v644, 0.0
      %v693 = vmax.f32 %v647, 0.0
      %v694 = vmax.f32 %v652, 0.0
      %v695 = vmax.f32 %v655, 0.0
      %v696 = vmax.f32 %v660, 0.0
      %v697 = vmax.f32 %v663, 0.0
      %v698 = vpack.c.bf16 %v667, %v666
      %v699 = vpack.c.bf16 %v669, %v668
      %v700 = vpack.c.bf16 %v671, %v670
      %v701 = vpack.c.bf16 %v673, %v672
      %v702 = vpack.c.bf16 %v675, %v674
      %v703 = vpack.c.bf16 %v677, %v676
      %v704 = vpack.c.bf16 %v679, %v678
      %v705 = vpack.c.bf16 %v681, %v680
      %v706 = vpack.c.bf16 %v683, %v682
      %v707 = vpack.c.bf16 %v685, %v684
      %v708 = vpack.c.bf16 %v687, %v686
      %v709 = vpack.c.bf16 %v689, %v688
      %v710 = vpack.c.bf16 %v691, %v690
      %v711 = vpack.c.bf16 %v693, %v692
      %v712 = vpack.c.bf16 %v695, %v694
      %v713 = vpack.c.bf16 %v697, %v696
      %v730 = vunpack.c.l.b16 %v698
      %v731 = vunpack.c.h.b16 %v698
      %v732 = vunpack.c.l.b16 %v699
      %v733 = vunpack.c.h.b16 %v699
      %v734 = vunpack.c.l.b16 %v700
      %v735 = vunpack.c.h.b16 %v700
      %v736 = vunpack.c.l.b16 %v701
      %v737 = vunpack.c.h.b16 %v701
      %v738 = vunpack.c.l.b16 %v702
      %v739 = vunpack.c.h.b16 %v702
      %v740 = vunpack.c.l.b16 %v703
      %v741 = vunpack.c.h.b16 %v703
      %v742 = vunpack.c.l.b16 %v704
      %v743 = vunpack.c.h.b16 %v704
      %v744 = vunpack.c.l.b16 %v705
      %v745 = vunpack.c.h.b16 %v705
      %v746 = vunpack.c.l.b16 %v706
      %v747 = vunpack.c.h.b16 %v706
      %v748 = vunpack.c.l.b16 %v707
      %v749 = vunpack.c.h.b16 %v707
      %v750 = vunpack.c.l.b16 %v708
      %v751 = vunpack.c.h.b16 %v708
      %v752 = vunpack.c.l.b16 %v709
      %v753 = vunpack.c.h.b16 %v709
      %v754 = vunpack.c.l.b16 %v710
      %v755 = vunpack.c.h.b16 %v710
      %v756 = vunpack.c.l.b16 %v711
      %v757 = vunpack.c.h.b16 %v711
      %v758 = vunpack.c.l.b16 %v712
      %v759 = vunpack.c.h.b16 %v712
      %v760 = vunpack.c.l.b16 %v713
      %v761 = vunpack.c.h.b16 %v713
      %v762 = vpack.c.b16 %v730, %v730
      %v763 = vpack.c.b16 %v731, %v731
      %v764 = vpack.c.b16 %v732, %v732
      %v765 = vpack.c.b16 %v733, %v733
      %v766 = vpack.c.b16 %v734, %v734
      %v767 = vpack.c.b16 %v735, %v735
      %v768 = vpack.c.b16 %v736, %v736
      %v769 = vpack.c.b16 %v737, %v737
      %v770 = vpack.c.b16 %v738, %v738
      %v771 = vpack.c.b16 %v739, %v739
      %v772 = vpack.c.b16 %v740, %v740
      %v773 = vpack.c.b16 %v741, %v741
      %v774 = vpack.c.b16 %v742, %v742
      %v775 = vpack.c.b16 %v743, %v743
      %v776 = vpack.c.b16 %v744, %v744
      %v777 = vpack.c.b16 %v745, %v745
      %v778 = vpack.c.b16 %v746, %v746
      %v779 = vpack.c.b16 %v747, %v747
      %v780 = vpack.c.b16 %v748, %v748
      %v781 = vpack.c.b16 %v749, %v749
      %v782 = vpack.c.b16 %v750, %v750
      %v783 = vpack.c.b16 %v751, %v751
      %v784 = vpack.c.b16 %v752, %v752
      %v785 = vpack.c.b16 %v753, %v753
      %v786 = vpack.c.b16 %v754, %v754
      %v787 = vpack.c.b16 %v755, %v755
      %v788 = vpack.c.b16 %v756, %v756
      %v789 = vpack.c.b16 %v757, %v757
      %v790 = vpack.c.b16 %v758, %v758
      %v791 = vpack.c.b16 %v759, %v759
      %v792 = vpack.c.b16 %v760, %v760
      %v793 = vpack.c.b16 %v761, %v761
      %826 = vst [vmem:[%s175] sm:$0xf] %v762
      %827 = vst [vmem:[%s175 + $0x4] sm:$0xf] %v763
      %828 = vst [vmem:[%s175 + $0x8] sm:$0xf] %v764
      %829 = vst [vmem:[%s175 + $0xc] sm:$0xf] %v765
      %830 = vst [vmem:[%s175 + $0x10] sm:$0xf] %v766
      %831 = vst [vmem:[%s175 + $0x14] sm:$0xf] %v767
      %832 = vst [vmem:[%s175 + $0x18] sm:$0xf] %v768
      %833 = vst [vmem:[%s175 + $0x1c] sm:$0xf] %v769
      %834 = vst [vmem:[%s175 + $0x20] sm:$0xf] %v770
      %835 = vst [vmem:[%s175 + $0x24] sm:$0xf] %v771
      %836 = vst [vmem:[%s175 + $0x28] sm:$0xf] %v772
      %837 = vst [vmem:[%s175 + $0x2c] sm:$0xf] %v773
      %838 = vst [vmem:[%s175 + $0x30] sm:$0xf] %v774
      %839 = vst [vmem:[%s175 + $0x34] sm:$0xf] %v775
      %840 = vst [vmem:[%s175 + $0x38] sm:$0xf] %v776
      %841 = vst [vmem:[%s175 + $0x3c] sm:$0xf] %v777
      %842 = vst [vmem:[%s175 + $0x40] sm:$0xf] %v778
      %843 = vst [vmem:[%s175 + $0x44] sm:$0xf] %v779
      %844 = vst [vmem:[%s175 + $0x48] sm:$0xf] %v780
      %845 = vst [vmem:[%s175 + $0x4c] sm:$0xf] %v781
      %846 = vst [vmem:[%s175 + $0x50] sm:$0xf] %v782
      %847 = vst [vmem:[%s175 + $0x54] sm:$0xf] %v783
      %848 = vst [vmem:[%s175 + $0x58] sm:$0xf] %v784
      %849 = vst [vmem:[%s175 + $0x5c] sm:$0xf] %v785
      %850 = vst [vmem:[%s175 + $0x60] sm:$0xf] %v786
      %851 = vst [vmem:[%s175 + $0x64] sm:$0xf] %v787
      %852 = vst [vmem:[%s175 + $0x68] sm:$0xf] %v788
      %853 = vst [vmem:[%s175 + $0x6c] sm:$0xf] %v789
      %854 = vst [vmem:[%s175 + $0x70] sm:$0xf] %v790
      %855 = vst [vmem:[%s175 + $0x74] sm:$0xf] %v791
      %856 = vst [vmem:[%s175 + $0x78] sm:$0xf] %v792
      %857 = vst [vmem:[%s175 + $0x7c] sm:$0xf] %v793
      %s858 = smul.u32 32, %s14
      %p859 = scmp.lt.s32.totalorder %s858, 63
      %s860 = scalar_select %p859, %s858, 63
      %s861 = smul.addr %s860, 4
      %s862 = scalar_lea.vmem %s3, %s861
      // Predicated region
      $region33: #{forward.3} parent=31 // pred_check
        %p863 = pneg %p100
      $region34: #{forward.3} parent=31 // pred_check_branch
        %865 = sbr.rel (%p863) target = $region36
      $region35: #{forward.3} parent=31 // pred_region
        %s866 = smul.u32 32, %s14
      $region36: #{forward.3} parent=31 // pred_fallthru
        _
    $region32: #{forward.3} parent=5 // pred_fallthru
      _
    %p867 = scmp.le.s32.totalorder 2, %s9
    // Predicated region
    $region37: #{forward.3} parent=5 // pred_check
      %p868 = pneg %p867
    $region38: #{forward.3} parent=5 // pred_check_branch
      %870 = sbr.rel (%p868) target = $region40
    $region39: #{forward.3} parent=5 // pred_region
      %s871 = ssub.s32 %s9, 2
      // Predicated region
      $region41: #{forward.3} parent=39 // pred_check
        %p872 = pneg %p106
      $region42: #{forward.3} parent=39 // pred_check_branch
        %874 = sbr.rel (%p872) target = $region44
      $region43: #{forward.3} parent=39 // pred_region
        %s875 = smul.u32 32, %s15
        %p876 = scmp.lt.s32.totalorder %s875, 63
        %s877 = scalar_select %p876, %s875, 63
        %s878 = smul.addr %s877, 4
        %s879 = scalar_lea.vmem %s3, %s878
      $region44: #{forward.3} parent=39 // pred_fallthru
        _
    $region40: #{forward.3} parent=5 // pred_fallthru
      _
  $region6: #{forward.3} parent=0 // loop_footer
    %s13 = sadd.s32 1, %s9
  $region7: #{forward.3} parent=0 // loop_footer_branch
    %8 = sbr.rel target = $region3
  $region8: #{forward.3} parent=0 // loop_exit
    _

// kernel: forward.4
$region0: #{forward.4}
  #allocation0 [shape = 'u32[]', space=smem, size = 0x4, offset = 0x4, fixed_abs, tag = 'smem constant byte address 0x4 - core index']
  #allocation1 [shape = 'u32[144,128]{1,0:T(1,128)}', space=vmem, size = 0x12000, scoped, tag = 'internal scratch']
  #allocation2 [shape = 'bf16[64,456]{1,0:T(16,128)(2,1)}', space=vmem, size = 0x10000, scoped, tag = 'scratch operand']
  %s0 = inlined_call_operand.vmem [shape: bf16[64,456], index: 0, kind: input, shape index: {}]
  %s1 = inlined_call_operand.vmem [shape: bf16[9,64,64], index: 1, kind: input, shape index: {}]
  %s2 = inlined_call_operand.vmem [shape: f32[64,1], index: 2, kind: input, shape index: {}]
  %s3 = inlined_call_operand.vmem [shape: bf16[9,64,64], index: 3, kind: input, shape index: {}]
  %s4 = inlined_call_operand.vmem [shape: f32[64,1], index: 4, kind: input, shape index: {}]
  %s5 = inlined_call_operand.vmem [shape: f32[1,200], index: 5, kind: input, shape index: {}]
  %s6 = inlined_call_operand.vmem [shape: bf16[64,456], index: 6, kind: output, shape index: {}]
  %s7 = sld [smem:[#allocation0]]
  $region34: #{forward.4} parent=0
    _
  %s9 = ssub.s32 1, %s7
  %s10 = scalar_select 0, %s9, %s7
  // Predicated region
  $region2: #{forward.4} parent=0 // pred_check
    _
  $region3: #{forward.4} parent=0 // pred_check_branch
    %12 = sbr.rel (0) target = $region5
  $region4: #{forward.4} parent=0 // pred_region
    _
  $region5: #{forward.4} parent=0 // pred_fallthru
    _
  // Predicated region
  $region6: #{forward.4} parent=0 // pred_check
    _
  $region7: #{forward.4} parent=0 // pred_check_branch
    %14 = sbr.rel (0) target = $region9
  $region8: #{forward.4} parent=0 // pred_region
    _
  $region9: #{forward.4} parent=0 // pred_fallthru
    _
  // Predicated region
  $region10: #{forward.4} parent=0 // pred_check
    _
  $region11: #{forward.4} parent=0 // pred_check_branch
    %16 = sbr.rel (0) target = $region13
  $region12: #{forward.4} parent=0 // pred_region
    _
  $region13: #{forward.4} parent=0 // pred_fallthru
    _
  // Predicated region
  $region14: #{forward.4} parent=0 // pred_check
    _
  $region15: #{forward.4} parent=0 // pred_check_branch
    %18 = sbr.rel (0) target = $region17
  $region16: #{forward.4} parent=0 // pred_region
    _
  $region17: #{forward.4} parent=0 // pred_fallthru
    _
  // Predicated region
  $region18: #{forward.4} parent=0 // pred_check
    _
  $region19: #{forward.4} parent=0 // pred_check_branch
    %20 = sbr.rel (0) target = $region21
  $region20: #{forward.4} parent=0 // pred_region
    _
  $region21: #{forward.4} parent=0 // pred_fallthru
    _
  // Predicated region
  $region22: #{forward.4} parent=0 // pred_check
    _
  $region23: #{forward.4} parent=0 // pred_check_branch
    %22 = sbr.rel (0) target = $region25
  $region24: #{forward.4} parent=0 // pred_region
    _
  $region25: #{forward.4} parent=0 // pred_fallthru
    _
  %v24 = vld [vmem:[%s5] sm:$0x3]
  %v25 = vld [vmem:[%s0] sm:$0xff]
  %v26 = vld [vmem:[%s0 + $0x8] sm:$0xf]
  %v27 = vld [vmem:[%s0 + $0x10] sm:$0xff]
  %v28 = vld [vmem:[%s0 + $0x18] sm:$0xf]
  %v29 = vld [vmem:[%s0 + $0x20] sm:$0xff]
  %v30 = vld [vmem:[%s0 + $0x28] sm:$0xf]
  %v31 = vld [vmem:[%s0 + $0x30] sm:$0xff]
  %v32 = vld [vmem:[%s0 + $0x38] sm:$0xf]
  %v33 = vld [vmem:[%s0 + $0x40] sm:$0xff]
  %v34 = vld [vmem:[%s0 + $0x48] sm:$0xf]
  %v35 = vld [vmem:[%s0 + $0x50] sm:$0xff]
  %v36 = vld [vmem:[%s0 + $0x58] sm:$0xf]
  %v37 = vld [vmem:[%s0 + $0x60] sm:$0xff]
  %v38 = vld [vmem:[%s0 + $0x68] sm:$0xf]
  %v39 = vld [vmem:[%s0 + $0x70] sm:$0xff]
  %v40 = vld [vmem:[%s0 + $0x78] sm:$0xf]
  %v41 = vld [vmem:[%s1] sm:$0xf]
  %v42 = vld [vmem:[%s1 + $0x4] sm:$0xf]
  %v43 = vld [vmem:[%s1 + $0x8] sm:$0xf]
  %v44 = vld [vmem:[%s1 + $0xc] sm:$0xf]
  %v45 = vld [vmem:[%s1 + $0x10] sm:$0xf]
  %v46 = vld [vmem:[%s1 + $0x14] sm:$0xf]
  %v47 = vld [vmem:[%s1 + $0x18] sm:$0xf]
  %v48 = vld [vmem:[%s1 + $0x1c] sm:$0xf]
  %s49 = scalar_lea.vmem %s1, 32
  %v50 = vld [vmem:[%s49] sm:$0xf]
  %v51 = vld [vmem:[%s49 + $0x4] sm:$0xf]
  %v52 = vld [vmem:[%s49 + $0x8] sm:$0xf]
  %v53 = vld [vmem:[%s49 + $0xc] sm:$0xf]
  %v54 = vld [vmem:[%s49 + $0x10] sm:$0xf]
  %v55 = vld [vmem:[%s49 + $0x14] sm:$0xf]
  %v56 = vld [vmem:[%s49 + $0x18] sm:$0xf]
  %v57 = vld [vmem:[%s49 + $0x1c] sm:$0xf]
  %v66 = vunpack.c.l.b16 %v50
  %v67 = vunpack.c.l.b16 %v51
  %v68 = vunpack.c.l.b16 %v52
  %v69 = vunpack.c.l.b16 %v53
  %v70 = vunpack.c.l.b16 %v54
  %v71 = vunpack.c.l.b16 %v55
  %v72 = vunpack.c.l.b16 %v56
  %v73 = vunpack.c.l.b16 %v57
  %v74 = vpack.c.b16 %v67, %v66
  %v75 = vpack.c.b16 %v69, %v68
  %v76 = vpack.c.b16 %v71, %v70
  %v77 = vpack.c.b16 %v73, %v72
  %v94 = vunpack.c.l.b16 %v25
  %v95 = vunpack.c.h.b16 %v25
  %v96 = vunpack.c.l.b16 %v26
  %v97 = vunpack.c.l.b16 %v27
  %v98 = vunpack.c.h.b16 %v27
  %v99 = vunpack.c.l.b16 %v28
  %v100 = vunpack.c.l.b16 %v29
  %v101 = vunpack.c.h.b16 %v29
  %v102 = vunpack.c.l.b16 %v30
  %v103 = vunpack.c.l.b16 %v31
  %v104 = vunpack.c.h.b16 %v31
  %v105 = vunpack.c.l.b16 %v32
  %v106 = vunpack.c.l.b16 %v33
  %v107 = vunpack.c.h.b16 %v33
  %v108 = vunpack.c.l.b16 %v34
  %v109 = vunpack.c.l.b16 %v35
  %v110 = vunpack.c.h.b16 %v35
  %v111 = vunpack.c.l.b16 %v36
  %v112 = vunpack.c.l.b16 %v37
  %v113 = vunpack.c.h.b16 %v37
  %v114 = vunpack.c.l.b16 %v38
  %v115 = vunpack.c.l.b16 %v39
  %v116 = vunpack.c.h.b16 %v39
  %v117 = vunpack.c.l.b16 %v40
  %v118 = vpack.c.b16 %v97, %v94
  %v119 = vpack.c.b16 %v98, %v95
  %v120 = vpack.c.b16 %v99, %v96
  %v121 = vpack.c.b16 %v103, %v100
  %v122 = vpack.c.b16 %v104, %v101
  %v123 = vpack.c.b16 %v105, %v102
  %v124 = vpack.c.b16 %v109, %v106
  %v125 = vpack.c.b16 %v110, %v107
  %v126 = vpack.c.b16 %v111, %v108
  %v127 = vpack.c.b16 %v115, %v112
  %v128 = vpack.c.b16 %v116, %v113
  %v129 = vpack.c.b16 %v117, %v114
  %130 = vrot.lane.b32.xlu0 %v118, 10
  %v131 = vpop.permute.xlu0 %130
  %132 = vrot.lane.b32.xlu0 %v119, 10
  %v133 = vpop.permute.xlu0 %132
  %134 = vrot.lane.b32.xlu0 %v120, 10
  %v135 = vpop.permute.xlu0 %134
  %136 = vrot.lane.b32.xlu0 %v121, 10
  %v137 = vpop.permute.xlu0 %136
  %138 = vrot.lane.b32.xlu0 %v122, 10
  %v139 = vpop.permute.xlu0 %138
  %140 = vrot.lane.b32.xlu0 %v123, 10
  %v141 = vpop.permute.xlu0 %140
  %142 = vrot.lane.b32.xlu0 %v124, 10
  %v143 = vpop.permute.xlu0 %142
  %144 = vrot.lane.b32.xlu0 %v125, 10
  %v145 = vpop.permute.xlu0 %144
  %146 = vrot.lane.b32.xlu0 %v126, 10
  %v147 = vpop.permute.xlu0 %146
  %148 = vrot.lane.b32.xlu0 %v127, 10
  %v149 = vpop.permute.xlu0 %148
  %150 = vrot.lane.b32.xlu0 %v128, 10
  %v151 = vpop.permute.xlu0 %150
  %152 = vrot.lane.b32.xlu0 %v129, 10
  %v153 = vpop.permute.xlu0 %152
  %vm154 = vcmask 80896
  %v155 = vsel %vm154, %v131, %v133
  %v156 = vsel %vm154, %v133, %v135
  %v157 = vsel %vm154, %v137, %v139
  %v158 = vsel %vm154, %v139, %v141
  %v159 = vsel %vm154, %v143, %v145
  %v160 = vsel %vm154, %v145, %v147
  %v161 = vsel %vm154, %v149, %v151
  %v162 = vsel %vm154, %v151, %v153
  %vm171 = vcmask 523264
  %v173 = vsel %vm171, %v74, 0
  %v176 = vsel %vm171, %v75, 0
  %v179 = vsel %vm171, %v76, 0
  %v182 = vsel %vm171, %v77, 0
  %184 = vmatprep.subr.bf16.mxu0 %v156
  %185 = vmatpush1.bf16.msra.mxu0 %v155
  %186 = vmatprep.subr.bf16.mxu0 %v158
  %187 = vmatpush1.bf16.msra.mxu0 %v157
  %188 = vmatprep.subr.bf16.mxu0 %v160
  %189 = vmatpush1.bf16.msra.mxu0 %v159
  %190 = vmatprep.subr.bf16.mxu0 %v162
  %191 = vmatpush1.bf16.msra.mxu0 %v161
  %192 = vmatprep.subr.bf16.mxu0 0
  %193 = vmatpush1.bf16.msra.mxu0 0
  %194 = vmatprep.subr.bf16.mxu0 0
  %195 = vmatpush1.bf16.msra.mxu0 0
  %196 = vmatprep.subr.bf16.mxu0 0
  %197 = vmatpush1.bf16.msra.mxu0 0
  %198 = vmatprep.subr.bf16.mxu0 0
  %199 = vmatpush1.bf16.msra.mxu0 0
  %200 = vmatprep.subr.bf16.mxu0 0
  %201 = vmatpush1.bf16.msra.mxu0 0
  %202 = vmatprep.subr.bf16.mxu0 0
  %203 = vmatpush1.bf16.msra.mxu0 0
  %204 = vmatprep.subr.bf16.mxu0 0
  %205 = vmatpush1.bf16.msra.mxu0 0
  %206 = vmatprep.subr.bf16.mxu0 0
  %207 = vmatpush1.bf16.msra.mxu0 0
  %208 = vmatprep.subr.bf16.mxu0 0
  %209 = vmatpush1.bf16.msra.mxu0 0
  %210 = vmatprep.subr.bf16.mxu0 0
  %211 = vmatpush1.bf16.msra.mxu0 0
  %212 = vmatprep.subr.bf16.mxu0 0
  %213 = vmatpush1.bf16.msra.mxu0 0
  %214 = vmatprep.subr.bf16.mxu0 0
  %215 = vmatpush1.bf16.msra.mxu0 0
  %216 = vmatprep.mubr.bf16.mxu0 0
  %217 = vmatmul.mubr.bf16.gmra.mrb[0].mxu0 %v173
  %v218 = vpop.f32.mrb[0].mxu0
  %v219 = vadd.f32 0.0, %v218
  %v220 = vpop.f32.mrb[0].mxu0
  %v221 = vadd.f32 0.0, %v220
  %v222 = vpop.f32.mrb[0].mxu0
  %v223 = vadd.f32 0.0, %v222
  %v224 = vpop.f32.mrb[0].mxu0
  %v225 = vadd.f32 0.0, %v224
  %226 = vmatprep.mubr.bf16.mxu0 0
  %227 = vmatmul.mubr.bf16.gmra.mrb[0].mxu0 %v176
  %v228 = vpop.f32.mrb[0].mxu0
  %v229 = vadd.f32 0.0, %v228
  %v230 = vpop.f32.mrb[0].mxu0
  %v231 = vadd.f32 0.0, %v230
  %v232 = vpop.f32.mrb[0].mxu0
  %v233 = vadd.f32 0.0, %v232
  %v234 = vpop.f32.mrb[0].mxu0
  %v235 = vadd.f32 0.0, %v234
  %236 = vmatprep.mubr.bf16.mxu0 0
  %237 = vmatmul.mubr.bf16.gmra.mrb[0].mxu0 %v179
  %v238 = vpop.f32.mrb[0].mxu0
  %v239 = vadd.f32 0.0, %v238
  %v240 = vpop.f32.mrb[0].mxu0
  %v241 = vadd.f32 0.0, %v240
  %v242 = vpop.f32.mrb[0].mxu0
  %v243 = vadd.f32 0.0, %v242
  %v244 = vpop.f32.mrb[0].mxu0
  %v245 = vadd.f32 0.0, %v244
  %246 = vmatprep.mubr.bf16.mxu0 0
  %247 = vmatmul.mubr.bf16.gmra.mrb[0].mxu0 %v182
  %v248 = vpop.f32.mrb[0].mxu0
  %v249 = vadd.f32 0.0, %v248
  %v250 = vpop.f32.mrb[0].mxu0
  %v251 = vadd.f32 0.0, %v250
  %v252 = vpop.f32.mrb[0].mxu0
  %v253 = vadd.f32 0.0, %v252
  %v254 = vpop.f32.mrb[0].mxu0
  %v255 = vadd.f32 0.0, %v254
  %256 = vdwg.mxu0
  %v265 = vunpack.c.l.b16 %v41
  %v266 = vunpack.c.l.b16 %v42
  %v267 = vunpack.c.l.b16 %v43
  %v268 = vunpack.c.l.b16 %v44
  %v269 = vunpack.c.l.b16 %v45
  %v270 = vunpack.c.l.b16 %v46
  %v271 = vunpack.c.l.b16 %v47
  %v272 = vunpack.c.l.b16 %v48
  %v273 = vpack.c.b16 %v266, %v265
  %v274 = vpack.c.b16 %v268, %v267
  %v275 = vpack.c.b16 %v270, %v269
  %v276 = vpack.c.b16 %v272, %v271
  %277 = vrot.lane.b32.xlu0 %v118, 11
  %v278 = vpop.permute.xlu0 %277
  %279 = vrot.lane.b32.xlu0 %v119, 11
  %v280 = vpop.permute.xlu0 %279
  %281 = vrot.lane.b32.xlu0 %v120, 11
  %v282 = vpop.permute.xlu0 %281
  %283 = vrot.lane.b32.xlu0 %v121, 11
  %v284 = vpop.permute.xlu0 %283
  %285 = vrot.lane.b32.xlu0 %v122, 11
  %v286 = vpop.permute.xlu0 %285
  %287 = vrot.lane.b32.xlu0 %v123, 11
  %v288 = vpop.permute.xlu0 %287
  %289 = vrot.lane.b32.xlu0 %v124, 11
  %v290 = vpop.permute.xlu0 %289
  %291 = vrot.lane.b32.xlu0 %v125, 11
  %v292 = vpop.permute.xlu0 %291
  %293 = vrot.lane.b32.xlu0 %v126, 11
  %v294 = vpop.permute.xlu0 %293
  %295 = vrot.lane.b32.xlu0 %v127, 11
  %v296 = vpop.permute.xlu0 %295
  %297 = vrot.lane.b32.xlu0 %v128, 11
  %v298 = vpop.permute.xlu0 %297
  %299 = vrot.lane.b32.xlu0 %v129, 11
  %v300 = vpop.permute.xlu0 %299
  %vm301 = vcmask 89088
  %v302 = vsel %vm301, %v278, %v280
  %v303 = vsel %vm301, %v280, %v282
  %v304 = vsel %vm301, %v284, %v286
  %v305 = vsel %vm301, %v286, %v288
  %v306 = vsel %vm301, %v290, %v292
  %v307 = vsel %vm301, %v292, %v294
  %v308 = vsel %vm301, %v296, %v298
  %v309 = vsel %vm301, %v298, %v300
  %v319 = vsel %vm171, %v273, 0
  %v322 = vsel %vm171, %v274, 0
  %v325 = vsel %vm171, %v275, 0
  %v328 = vsel %vm171, %v276, 0
  %330 = vmatprep.subr.bf16.mxu0 %v303
  %331 = vmatpush1.bf16.msra.mxu0 %v302
  %332 = vmatprep.subr.bf16.mxu0 %v305
  %333 = vmatpush1.bf16.msra.mxu0 %v304
  %334 = vmatprep.subr.bf16.mxu0 %v307
  %335 = vmatpush1.bf16.msra.mxu0 %v306
  %336 = vmatprep.subr.bf16.mxu0 %v309
  %337 = vmatpush1.bf16.msra.mxu0 %v308
  %338 = vmatprep.subr.bf16.mxu0 0
  %339 = vmatpush1.bf16.msra.mxu0 0
  %340 = vmatprep.subr.bf16.mxu0 0
  %341 = vmatpush1.bf16.msra.mxu0 0
  %342 = vmatprep.subr.bf16.mxu0 0
  %343 = vmatpush1.bf16.msra.mxu0 0
  %344 = vmatprep.subr.bf16.mxu0 0
  %345 = vmatpush1.bf16.msra.mxu0 0
  %346 = vmatprep.subr.bf16.mxu0 0
  %347 = vmatpush1.bf16.msra.mxu0 0
  %348 = vmatprep.subr.bf16.mxu0 0
  %349 = vmatpush1.bf16.msra.mxu0 0
  %350 = vmatprep.subr.bf16.mxu0 0
  %351 = vmatpush1.bf16.msra.mxu0 0
  %352 = vmatprep.subr.bf16.mxu0 0
  %353 = vmatpush1.bf16.msra.mxu0 0
  %354 = vmatprep.subr.bf16.mxu0 0
  %355 = vmatpush1.bf16.msra.mxu0 0
  %356 = vmatprep.subr.bf16.mxu0 0
  %357 = vmatpush1.bf16.msra.mxu0 0
  %358 = vmatprep.subr.bf16.mxu0 0
  %359 = vmatpush1.bf16.msra.mxu0 0
  %360 = vmatprep.subr.bf16.mxu0 0
  %361 = vmatpush1.bf16.msra.mxu0 0
  %362 = vmatprep.mubr.bf16.mxu0 0
  %363 = vmatmul.mubr.bf16.gmra.mrb[0].mxu0 %v319
  %v364 = vpop.f32.mrb[0].mxu0
  %v365 = vadd.f32 %v219, %v364
  %v366 = vpop.f32.mrb[0].mxu0
  %v367 = vadd.f32 %v221, %v366
  %v368 = vpop.f32.mrb[0].mxu0
  %v369 = vadd.f32 %v223, %v368
  %v370 = vpop.f32.mrb[0].mxu0
  %v371 = vadd.f32 %v225, %v370
  %372 = vmatprep.mubr.bf16.mxu0 0
  %373 = vmatmul.mubr.bf16.gmra.mrb[0].mxu0 %v322
  %v374 = vpop.f32.mrb[0].mxu0
  %v375 = vadd.f32 %v229, %v374
  %v376 = vpop.f32.mrb[0].mxu0
  %v377 = vadd.f32 %v231, %v376
  %v378 = vpop.f32.mrb[0].mxu0
  %v379 = vadd.f32 %v233, %v378
  %v380 = vpop.f32.mrb[0].mxu0
  %v381 = vadd.f32 %v235, %v380
  %382 = vmatprep.mubr.bf16.mxu0 0
  %383 = vmatmul.mubr.bf16.gmra.mrb[0].mxu0 %v325
  %v384 = vpop.f32.mrb[0].mxu0
  %v385 = vadd.f32 %v239, %v384
  %v386 = vpop.f32.mrb[0].mxu0
  %v387 = vadd.f32 %v241, %v386
  %v388 = vpop.f32.mrb[0].mxu0
  %v389 = vadd.f32 %v243, %v388
  %v390 = vpop.f32.mrb[0].mxu0
  %v391 = vadd.f32 %v245, %v390
  %392 = vmatprep.mubr.bf16.mxu0 0
  %393 = vmatmul.mubr.bf16.gmra.mrb[0].mxu0 %v328
  %v394 = vpop.f32.mrb[0].mxu0
  %v395 = vadd.f32 %v249, %v394
  %v396 = vpop.f32.mrb[0].mxu0
  %v397 = vadd.f32 %v251, %v396
  %v398 = vpop.f32.mrb[0].mxu0
  %v399 = vadd.f32 %v253, %v398
  %v400 = vpop.f32.mrb[0].mxu0
  %v401 = vadd.f32 %v255, %v400
  %402 = vdwg.mxu0
  %s403 = scalar_lea.vmem %s1, 64
  %v404 = vld [vmem:[%s403] sm:$0xf]
  %v405 = vld [vmem:[%s403 + $0x4] sm:$0xf]
  %v406 = vld [vmem:[%s403 + $0x8] sm:$0xf]
  %v407 = vld [vmem:[%s403 + $0xc] sm:$0xf]
  %v408 = vld [vmem:[%s403 + $0x10] sm:$0xf]
  %v409 = vld [vmem:[%s403 + $0x14] sm:$0xf]
  %v410 = vld [vmem:[%s403 + $0x18] sm:$0xf]
  %v411 = vld [vmem:[%s403 + $0x1c] sm:$0xf]
  %v420 = vunpack.c.l.b16 %v404
  %v421 = vunpack.c.l.b16 %v405
  %v422 = vunpack.c.l.b16 %v406
  %v423 = vunpack.c.l.b16 %v407
  %v424 = vunpack.c.l.b16 %v408
  %v425 = vunpack.c.l.b16 %v409
  %v426 = vunpack.c.l.b16 %v410
  %v427 = vunpack.c.l.b16 %v411
  %v428 = vpack.c.b16 %v421, %v420
  %v429 = vpack.c.b16 %v423, %v422
  %v430 = vpack.c.b16 %v425, %v424
  %v431 = vpack.c.b16 %v427, %v426
  %432 = vrot.lane.b32.xlu0 %v118, 9
  %v433 = vpop.permute.xlu0 %432
  %434 = vrot.lane.b32.xlu0 %v119, 9
  %v435 = vpop.permute.xlu0 %434
  %436 = vrot.lane.b32.xlu0 %v120, 9
  %v437 = vpop.permute.xlu0 %436
  %438 = vrot.lane.b32.xlu0 %v121, 9
  %v439 = vpop.permute.xlu0 %438
  %440 = vrot.lane.b32.xlu0 %v122, 9
  %v441 = vpop.permute.xlu0 %440
  %442 = vrot.lane.b32.xlu0 %v123, 9
  %v443 = vpop.permute.xlu0 %442
  %444 = vrot.lane.b32.xlu0 %v124, 9
  %v445 = vpop.permute.xlu0 %444
  %446 = vrot.lane.b32.xlu0 %v125, 9
  %v447 = vpop.permute.xlu0 %446
  %448 = vrot.lane.b32.xlu0 %v126, 9
  %v449 = vpop.permute.xlu0 %448
  %450 = vrot.lane.b32.xlu0 %v127, 9
  %v451 = vpop.permute.xlu0 %450
  %452 = vrot.lane.b32.xlu0 %v128, 9
  %v453 = vpop.permute.xlu0 %452
  %454 = vrot.lane.b32.xlu0 %v129, 9
  %v455 = vpop.permute.xlu0 %454
  %vm456 = vcmask 72704
  %v457 = vsel %vm456, %v433, %v435
  %v458 = vsel %vm456, %v435, %v437
  %v459 = vsel %vm456, %v439, %v441
  %v460 = vsel %vm456, %v441, %v443
  %v461 = vsel %vm456, %v445, %v447
  %v462 = vsel %vm456, %v447, %v449
  %v463 = vsel %vm456, %v451, %v453
  %v464 = vsel %vm456, %v453, %v455
  %v474 = vsel %vm171, %v428, 0
  %v477 = vsel %vm171, %v429, 0
  %v480 = vsel %vm171, %v430, 0
  %v483 = vsel %vm171, %v431, 0
  %485 = vmatprep.subr.bf16.mxu0 %v458
  %486 = vmatpush1.bf16.msra.mxu0 %v457
  %487 = vmatprep.subr.bf16.mxu0 %v460
  %488 = vmatpush1.bf16.msra.mxu0 %v459
  %489 = vmatprep.subr.bf16.mxu0 %v462
  %490 = vmatpush1.bf16.msra.mxu0 %v461
  %491 = vmatprep.subr.bf16.mxu0 %v464
  %492 = vmatpush1.bf16.msra.mxu0 %v463
  %493 = vmatprep.subr.bf16.mxu0 0
  %494 = vmatpush1.bf16.msra.mxu0 0
  %495 = vmatprep.subr.bf16.mxu0 0
  %496 = vmatpush1.bf16.msra.mxu0 0
  %497 = vmatprep.subr.bf16.mxu0 0
  %498 = vmatpush1.bf16.msra.mxu0 0
  %499 = vmatprep.subr.bf16.mxu0 0
  %500 = vmatpush1.bf16.msra.mxu0 0
  %501 = vmatprep.subr.bf16.mxu0 0
  %502 = vmatpush1.bf16.msra.mxu0 0
  %503 = vmatprep.subr.bf16.mxu0 0
  %504 = vmatpush1.bf16.msra.mxu0 0
  %505 = vmatprep.subr.bf16.mxu0 0
  %506 = vmatpush1.bf16.msra.mxu0 0
  %507 = vmatprep.subr.bf16.mxu0 0
  %508 = vmatpush1.bf16.msra.mxu0 0
  %509 = vmatprep.subr.bf16.mxu0 0
  %510 = vmatpush1.bf16.msra.mxu0 0
  %511 = vmatprep.subr.bf16.mxu0 0
  %512 = vmatpush1.bf16.msra.mxu0 0
  %513 = vmatprep.subr.bf16.mxu0 0
  %514 = vmatpush1.bf16.msra.mxu0 0
  %515 = vmatprep.subr.bf16.mxu0 0
  %516 = vmatpush1.bf16.msra.mxu0 0
  %517 = vmatprep.mubr.bf16.mxu0 0
  %518 = vmatmul.mubr.bf16.gmra.mrb[0].mxu0 %v474
  %v519 = vpop.f32.mrb[0].mxu0
  %v520 = vadd.f32 0.0, %v519
  %v521 = vpop.f32.mrb[0].mxu0
  %v522 = vadd.f32 0.0, %v521
  %v523 = vpop.f32.mrb[0].mxu0
  %v524 = vadd.f32 0.0, %v523
  %v525 = vpop.f32.mrb[0].mxu0
  %v526 = vadd.f32 0.0, %v525
  %527 = vmatprep.mubr.bf16.mxu0 0
  %528 = vmatmul.mubr.bf16.gmra.mrb[0].mxu0 %v477
  %v529 = vpop.f32.mrb[0].mxu0
  %v530 = vadd.f32 0.0, %v529
  %v531 = vpop.f32.mrb[0].mxu0
  %v532 = vadd.f32 0.0, %v531
  %v533 = vpop.f32.mrb[0].mxu0
  %v534 = vadd.f32 0.0, %v533
  %v535 = vpop.f32.mrb[0].mxu0
  %v536 = vadd.f32 0.0, %v535
  %537 = vmatprep.mubr.bf16.mxu0 0
  %538 = vmatmul.mubr.bf16.gmra.mrb[0].mxu0 %v480
  %v539 = vpop.f32.mrb[0].mxu0
  %v540 = vadd.f32 0.0, %v539
  %v541 = vpop.f32.mrb[0].mxu0
  %v542 = vadd.f32 0.0, %v541
  %v543 = vpop.f32.mrb[0].mxu0
  %v544 = vadd.f32 0.0, %v543
  %v545 = vpop.f32.mrb[0].mxu0
  %v546 = vadd.f32 0.0, %v545
  %547 = vmatprep.mubr.bf16.mxu0 0
  %548 = vmatmul.mubr.bf16.gmra.mrb[0].mxu0 %v483
  %v549 = vpop.f32.mrb[0].mxu0
  %v550 = vadd.f32 0.0, %v549
  %v551 = vpop.f32.mrb[0].mxu0
  %v552 = vadd.f32 0.0, %v551
  %v553 = vpop.f32.mrb[0].mxu0
  %v554 = vadd.f32 0.0, %v553
  %v555 = vpop.f32.mrb[0].mxu0
  %v556 = vadd.f32 0.0, %v555
  %557 = vdwg.mxu0
  %v558 = vadd.f32 %v365, %v520
  %v559 = vadd.f32 %v367, %v522
  %v560 = vadd.f32 %v369, %v524
  %v561 = vadd.f32 %v371, %v526
  %v562 = vadd.f32 %v375, %v530
  %v563 = vadd.f32 %v377, %v532
  %v564 = vadd.f32 %v379, %v534
  %v565 = vadd.f32 %v381, %v536
  %v566 = vadd.f32 %v385, %v540
  %v567 = vadd.f32 %v387, %v542
  %v568 = vadd.f32 %v389, %v544
  %v569 = vadd.f32 %v391, %v546
  %v570 = vadd.f32 %v395, %v550
  %v571 = vadd.f32 %v397, %v552
  %v572 = vadd.f32 %v399, %v554
  %v573 = vadd.f32 %v401, %v556
  %s574 = scalar_lea.vmem %s1, 96
  %v575 = vld [vmem:[%s574] sm:$0xf]
  %v576 = vld [vmem:[%s574 + $0x4] sm:$0xf]
  %v577 = vld [vmem:[%s574 + $0x8] sm:$0xf]
  %v578 = vld [vmem:[%s574 + $0xc] sm:$0xf]
  %v579 = vld [vmem:[%s574 + $0x10] sm:$0xf]
  %v580 = vld [vmem:[%s574 + $0x14] sm:$0xf]
  %v581 = vld [vmem:[%s574 + $0x18] sm:$0xf]
  %v582 = vld [vmem:[%s574 + $0x1c] sm:$0xf]
  %v591 = vunpack.c.l.b16 %v575
  %v592 = vunpack.c.l.b16 %v576
  %v593 = vunpack.c.l.b16 %v577
  %v594 = vunpack.c.l.b16 %v578
  %v595 = vunpack.c.l.b16 %v579
  %v596 = vunpack.c.l.b16 %v580
  %v597 = vunpack.c.l.b16 %v581
  %v598 = vunpack.c.l.b16 %v582
  %v599 = vpack.c.b16 %v592, %v591
  %v600 = vpack.c.b16 %v594, %v593
  %v601 = vpack.c.b16 %v596, %v595
  %v602 = vpack.c.b16 %v598, %v597
  %603 = vrot.lane.b32.xlu0 %v118, 1
  %v604 = vpop.permute.xlu0 %603
  %605 = vrot.lane.b32.xlu0 %v119, 1
  %v606 = vpop.permute.xlu0 %605
  %607 = vrot.lane.b32.xlu0 %v120, 1
  %v608 = vpop.permute.xlu0 %607
  %609 = vrot.lane.b32.xlu0 %v121, 1
  %v610 = vpop.permute.xlu0 %609
  %611 = vrot.lane.b32.xlu0 %v122, 1
  %v612 = vpop.permute.xlu0 %611
  %613 = vrot.lane.b32.xlu0 %v123, 1
  %v614 = vpop.permute.xlu0 %613
  %615 = vrot.lane.b32.xlu0 %v124, 1
  %v616 = vpop.permute.xlu0 %615
  %617 = vrot.lane.b32.xlu0 %v125, 1
  %v618 = vpop.permute.xlu0 %617
  %619 = vrot.lane.b32.xlu0 %v126, 1
  %v620 = vpop.permute.xlu0 %619
  %621 = vrot.lane.b32.xlu0 %v127, 1
  %v622 = vpop.permute.xlu0 %621
  %623 = vrot.lane.b32.xlu0 %v128, 1
  %v624 = vpop.permute.xlu0 %623
  %625 = vrot.lane.b32.xlu0 %v129, 1
  %v626 = vpop.permute.xlu0 %625
  %vm627 = vcmask 7168
  %v628 = vsel %vm627, %v604, %v606
  %v629 = vsel %vm627, %v606, %v608
  %v630 = vsel %vm627, %v610, %v612
  %v631 = vsel %vm627, %v612, %v614
  %v632 = vsel %vm627, %v616, %v618
  %v633 = vsel %vm627, %v618, %v620
  %v634 = vsel %vm627, %v622, %v624
  %v635 = vsel %vm627, %v624, %v626
  %v645 = vsel %vm171, %v599, 0
  %v648 = vsel %vm171, %v600, 0
  %v651 = vsel %vm171, %v601, 0
  %v654 = vsel %vm171, %v602, 0
  %656 = vmatprep.subr.bf16.mxu0 %v629
  %657 = vmatpush1.bf16.msra.mxu0 %v628
  %658 = vmatprep.subr.bf16.mxu0 %v631
  %659 = vmatpush1.bf16.msra.mxu0 %v630
  %660 = vmatprep.subr.bf16.mxu0 %v633
  %661 = vmatpush1.bf16.msra.mxu0 %v632
  %662 = vmatprep.subr.bf16.mxu0 %v635
  %663 = vmatpush1.bf16.msra.mxu0 %v634
  %664 = vmatprep.subr.bf16.mxu0 0
  %665 = vmatpush1.bf16.msra.mxu0 0
  %666 = vmatprep.subr.bf16.mxu0 0
  %667 = vmatpush1.bf16.msra.mxu0 0
  %668 = vmatprep.subr.bf16.mxu0 0
  %669 = vmatpush1.bf16.msra.mxu0 0
  %670 = vmatprep.subr.bf16.mxu0 0
  %671 = vmatpush1.bf16.msra.mxu0 0
  %672 = vmatprep.subr.bf16.mxu0 0
  %673 = vmatpush1.bf16.msra.mxu0 0
  %674 = vmatprep.subr.bf16.mxu0 0
  %675 = vmatpush1.bf16.msra.mxu0 0
  %676 = vmatprep.subr.bf16.mxu0 0
  %677 = vmatpush1.bf16.msra.mxu0 0
  %678 = vmatprep.subr.bf16.mxu0 0
  %679 = vmatpush1.bf16.msra.mxu0 0
  %680 = vmatprep.subr.bf16.mxu0 0
  %681 = vmatpush1.bf16.msra.mxu0 0
  %682 = vmatprep.subr.bf16.mxu0 0
  %683 = vmatpush1.bf16.msra.mxu0 0
  %684 = vmatprep.subr.bf16.mxu0 0
  %685 = vmatpush1.bf16.msra.mxu0 0
  %686 = vmatprep.subr.bf16.mxu0 0
  %687 = vmatpush1.bf16.msra.mxu0 0
  %688 = vmatprep.mubr.bf16.mxu0 0
  %689 = vmatmul.mubr.bf16.gmra.mrb[0].mxu0 %v645
  %v690 = vpop.f32.mrb[0].mxu0
  %v691 = vadd.f32 0.0, %v690
  %v692 = vpop.f32.mrb[0].mxu0
  %v693 = vadd.f32 0.0, %v692
  %v694 = vpop.f32.mrb[0].mxu0
  %v695 = vadd.f32 0.0, %v694
  %v696 = vpop.f32.mrb[0].mxu0
  %v697 = vadd.f32 0.0, %v696
  %698 = vmatprep.mubr.bf16.mxu0 0
  %699 = vmatmul.mubr.bf16.gmra.mrb[0].mxu0 %v648
  %v700 = vpop.f32.mrb[0].mxu0
  %v701 = vadd.f32 0.0, %v700
  %v702 = vpop.f32.mrb[0].mxu0
  %v703 = vadd.f32 0.0, %v702
  %v704 = vpop.f32.mrb[0].mxu0
  %v705 = vadd.f32 0.0, %v704
  %v706 = vpop.f32.mrb[0].mxu0
  %v707 = vadd.f32 0.0, %v706
  %708 = vmatprep.mubr.bf16.mxu0 0
  %709 = vmatmul.mubr.bf16.gmra.mrb[0].mxu0 %v651
  %v710 = vpop.f32.mrb[0].mxu0
  %v711 = vadd.f32 0.0, %v710
  %v712 = vpop.f32.mrb[0].mxu0
  %v713 = vadd.f32 0.0, %v712
  %v714 = vpop.f32.mrb[0].mxu0
  %v715 = vadd.f32 0.0, %v714
  %v716 = vpop.f32.mrb[0].mxu0
  %v717 = vadd.f32 0.0, %v716
  %718 = vmatprep.mubr.bf16.mxu0 0
  %719 = vmatmul.mubr.bf16.gmra.mrb[0].mxu0 %v654
  %v720 = vpop.f32.mrb[0].mxu0
  %v721 = vadd.f32 0.0, %v720
  %v722 = vpop.f32.mrb[0].mxu0
  %v723 = vadd.f32 0.0, %v722
  %v724 = vpop.f32.mrb[0].mxu0
  %v725 = vadd.f32 0.0, %v724
  %v726 = vpop.f32.mrb[0].mxu0
  %v727 = vadd.f32 0.0, %v726
  %728 = vdwg.mxu0
  %v729 = vadd.f32 %v558, %v691
  %v730 = vadd.f32 %v559, %v693
  %v731 = vadd.f32 %v560, %v695
  %v732 = vadd.f32 %v561, %v697
  %v733 = vadd.f32 %v562, %v701
  %v734 = vadd.f32 %v563, %v703
  %v735 = vadd.f32 %v564, %v705
  %v736 = vadd.f32 %v565, %v707
  %v737 = vadd.f32 %v566, %v711
  %v738 = vadd.f32 %v567, %v713
  %v739 = vadd.f32 %v568, %v715
  %v740 = vadd.f32 %v569, %v717
  %v741 = vadd.f32 %v570, %v721
  %v742 = vadd.f32 %v571, %v723
  %v743 = vadd.f32 %v572, %v725
  %v744 = vadd.f32 %v573, %v727
  %v745 = vld [vmem:[%s0 + $0x4] sm:$0xff]
  %v746 = vld [vmem:[%s0 + $0x14] sm:$0xff]
  %v747 = vld [vmem:[%s0 + $0x24] sm:$0xff]
  %v748 = vld [vmem:[%s0 + $0x34] sm:$0xff]
  %v749 = vld [vmem:[%s0 + $0x44] sm:$0xff]
  %v750 = vld [vmem:[%s0 + $0x54] sm:$0xff]
  %v751 = vld [vmem:[%s0 + $0x64] sm:$0xff]
  %v752 = vld [vmem:[%s0 + $0x74] sm:$0xff]
  %s753 = scalar_lea.vmem %s1, 128
  %v754 = vld [vmem:[%s753] sm:$0xf]
  %v755 = vld [vmem:[%s753 + $0x4] sm:$0xf]
  %v756 = vld [vmem:[%s753 + $0x8] sm:$0xf]
  %v757 = vld [vmem:[%s753 + $0xc] sm:$0xf]
  %v758 = vld [vmem:[%s753 + $0x10] sm:$0xf]
  %v759 = vld [vmem:[%s753 + $0x14] sm:$0xf]
  %v760 = vld [vmem:[%s753 + $0x18] sm:$0xf]
  %v761 = vld [vmem:[%s753 + $0x1c] sm:$0xf]
  %v770 = vunpack.c.l.b16 %v754
  %v771 = vunpack.c.l.b16 %v755
  %v772 = vunpack.c.l.b16 %v756
  %v773 = vunpack.c.l.b16 %v757
  %v774 = vunpack.c.l.b16 %v758
  %v775 = vunpack.c.l.b16 %v759
  %v776 = vunpack.c.l.b16 %v760
  %v777 = vunpack.c.l.b16 %v761
  %v778 = vpack.c.b16 %v771, %v770
  %v779 = vpack.c.b16 %v773, %v772
  %v780 = vpack.c.b16 %v775, %v774
  %v781 = vpack.c.b16 %v777, %v776
  %v790 = vunpack.c.l.b16 %v745
  %v791 = vunpack.c.h.b16 %v745
  %v792 = vunpack.c.l.b16 %v746
  %v793 = vunpack.c.h.b16 %v746
  %v794 = vunpack.c.l.b16 %v747
  %v795 = vunpack.c.h.b16 %v747
  %v796 = vunpack.c.l.b16 %v748
  %v797 = vunpack.c.h.b16 %v748
  %v798 = vunpack.c.l.b16 %v749
  %v799 = vunpack.c.h.b16 %v749
  %v800 = vunpack.c.l.b16 %v750
  %v801 = vunpack.c.h.b16 %v750
  %v802 = vunpack.c.l.b16 %v751
  %v803 = vunpack.c.h.b16 %v751
  %v804 = vunpack.c.l.b16 %v752
  %v805 = vunpack.c.h.b16 %v752
  %v806 = vpack.c.b16 %v792, %v790
  %v807 = vpack.c.b16 %v793, %v791
  %v808 = vpack.c.b16 %v796, %v794
  %v809 = vpack.c.b16 %v797, %v795
  %v810 = vpack.c.b16 %v800, %v798
  %v811 = vpack.c.b16 %v801, %v799
  %v812 = vpack.c.b16 %v804, %v802
  %v813 = vpack.c.b16 %v805, %v803
  %v823 = vsel %vm171, %v778, 0
  %v826 = vsel %vm171, %v779, 0
  %v829 = vsel %vm171, %v780, 0
  %v832 = vsel %vm171, %v781, 0
  %834 = vmatprep.subr.bf16.mxu0 %v807
  %835 = vmatpush1.bf16.msra.mxu0 %v806
  %836 = vmatprep.subr.bf16.mxu0 %v809
  %837 = vmatpush1.bf16.msra.mxu0 %v808
  %838 = vmatprep.subr.bf16.mxu0 %v811
  %839 = vmatpush1.bf16.msra.mxu0 %v810
  %840 = vmatprep.subr.bf16.mxu0 %v813
  %841 = vmatpush1.bf16.msra.mxu0 %v812
  %842 = vmatprep.subr.bf16.mxu0 0
  %843 = vmatpush1.bf16.msra.mxu0 0
  %844 = vmatprep.subr.bf16.mxu0 0
  %845 = vmatpush1.bf16.msra.mxu0 0
  %846 = vmatprep.subr.bf16.mxu0 0
  %847 = vmatpush1.bf16.msra.mxu0 0
  %848 = vmatprep.subr.bf16.mxu0 0
  %849 = vmatpush1.bf16.msra.mxu0 0
  %850 = vmatprep.subr.bf16.mxu0 0
  %851 = vmatpush1.bf16.msra.mxu0 0
  %852 = vmatprep.subr.bf16.mxu0 0
  %853 = vmatpush1.bf16.msra.mxu0 0
  %854 = vmatprep.subr.bf16.mxu0 0
  %855 = vmatpush1.bf16.msra.mxu0 0
  %856 = vmatprep.subr.bf16.mxu0 0
  %857 = vmatpush1.bf16.msra.mxu0 0
  %858 = vmatprep.subr.bf16.mxu0 0
  %859 = vmatpush1.bf16.msra.mxu0 0
  %860 = vmatprep.subr.bf16.mxu0 0
  %861 = vmatpush1.bf16.msra.mxu0 0
  %862 = vmatprep.subr.bf16.mxu0 0
  %863 = vmatpush1.bf16.msra.mxu0 0
  %864 = vmatprep.subr.bf16.mxu0 0
  %865 = vmatpush1.bf16.msra.mxu0 0
  %866 = vmatprep.mubr.bf16.mxu0 0
  %867 = vmatmul.mubr.bf16.gmra.mrb[0].mxu0 %v823
  %v868 = vpop.f32.mrb[0].mxu0
  %v869 = vadd.f32 0.0, %v868
  %v870 = vpop.f32.mrb[0].mxu0
  %v871 = vadd.f32 0.0, %v870
  %v872 = vpop.f32.mrb[0].mxu0
  %v873 = vadd.f32 0.0, %v872
  %v874 = vpop.f32.mrb[0].mxu0
  %v875 = vadd.f32 0.0, %v874
  %876 = vmatprep.mubr.bf16.mxu0 0
  %877 = vmatmul.mubr.bf16.gmra.mrb[0].mxu0 %v826
  %v878 = vpop.f32.mrb[0].mxu0
  %v879 = vadd.f32 0.0, %v878
  %v880 = vpop.f32.mrb[0].mxu0
  %v881 = vadd.f32 0.0, %v880
  %v882 = vpop.f32.mrb[0].mxu0
  %v883 = vadd.f32 0.0, %v882
  %v884 = vpop.f32.mrb[0].mxu0
  %v885 = vadd.f32 0.0, %v884
  %886 = vmatprep.mubr.bf16.mxu0 0
  %887 = vmatmul.mubr.bf16.gmra.mrb[0].mxu0 %v829
  %v888 = vpop.f32.mrb[0].mxu0
  %v889 = vadd.f32 0.0, %v888
  %v890 = vpop.f32.mrb[0].mxu0
  %v891 = vadd.f32 0.0, %v890
  %v892 = vpop.f32.mrb[0].mxu0
  %v893 = vadd.f32 0.0, %v892
  %v894 = vpop.f32.mrb[0].mxu0
  %v895 = vadd.f32 0.0, %v894
  %896 = vmatprep.mubr.bf16.mxu0 0
  %897 = vmatmul.mubr.bf16.gmra.mrb[0].mxu0 %v832
  %v898 = vpop.f32.mrb[0].mxu0
  %v899 = vadd.f32 0.0, %v898
  %v900 = vpop.f32.mrb[0].mxu0
  %v901 = vadd.f32 0.0, %v900
  %v902 = vpop.f32.mrb[0].mxu0
  %v903 = vadd.f32 0.0, %v902
  %v904 = vpop.f32.mrb[0].mxu0
  %v905 = vadd.f32 0.0, %v904
  %906 = vdwg.mxu0
  %v907 = vadd.f32 %v729, %v869
  %v908 = vadd.f32 %v730, %v871
  %v909 = vadd.f32 %v731, %v873
  %v910 = vadd.f32 %v732, %v875
  %v911 = vadd.f32 %v733, %v879
  %v912 = vadd.f32 %v734, %v881
  %v913 = vadd.f32 %v735, %v883
  %v914 = vadd.f32 %v736, %v885
  %v915 = vadd.f32 %v737, %v889
  %v916 = vadd.f32 %v738, %v891
  %v917 = vadd.f32 %v739, %v893
  %v918 = vadd.f32 %v740, %v895
  %v919 = vadd.f32 %v741, %v899
  %v920 = vadd.f32 %v742, %v901
  %v921 = vadd.f32 %v743, %v903
  %v922 = vadd.f32 %v744, %v905
  %s923 = scalar_lea.vmem %s1, 160
  %v924 = vld [vmem:[%s923] sm:$0xf]
  %v925 = vld [vmem:[%s923 + $0x4] sm:$0xf]
  %v926 = vld [vmem:[%s923 + $0x8] sm:$0xf]
  %v927 = vld [vmem:[%s923 + $0xc] sm:$0xf]
  %v928 = vld [vmem:[%s923 + $0x10] sm:$0xf]
  %v929 = vld [vmem:[%s923 + $0x14] sm:$0xf]
  %v930 = vld [vmem:[%s923 + $0x18] sm:$0xf]
  %v931 = vld [vmem:[%s923 + $0x1c] sm:$0xf]
  %v940 = vunpack.c.l.b16 %v924
  %v941 = vunpack.c.l.b16 %v925
  %v942 = vunpack.c.l.b16 %v926
  %v943 = vunpack.c.l.b16 %v927
  %v944 = vunpack.c.l.b16 %v928
  %v945 = vunpack.c.l.b16 %v929
  %v946 = vunpack.c.l.b16 %v930
  %v947 = vunpack.c.l.b16 %v931
  %v948 = vpack.c.b16 %v941, %v940
  %v949 = vpack.c.b16 %v943, %v942
  %v950 = vpack.c.b16 %v945, %v944
  %v951 = vpack.c.b16 %v947, %v946
  %952 = vrot.lane.b32.xlu0 %v806, 127
  %v953 = vpop.permute.xlu0 %952
  %954 = vrot.lane.b32.xlu0 %v807, 127
  %v955 = vpop.permute.xlu0 %954
  %956 = vrot.lane.b32.xlu0 %v808, 127
  %v957 = vpop.permute.xlu0 %956
  %958 = vrot.lane.b32.xlu0 %v809, 127
  %v959 = vpop.permute.xlu0 %958
  %960 = vrot.lane.b32.xlu0 %v810, 127
  %v961 = vpop.permute.xlu0 %960
  %962 = vrot.lane.b32.xlu0 %v811, 127
  %v963 = vpop.permute.xlu0 %962
  %964 = vrot.lane.b32.xlu0 %v812, 127
  %v965 = vpop.permute.xlu0 %964
  %966 = vrot.lane.b32.xlu0 %v813, 127
  %v967 = vpop.permute.xlu0 %966
  %vm968 = vcmask 1039360
  %v969 = vsel %vm968, %v953, %v955
  %v970 = vsel %vm968, %v957, %v959
  %v971 = vsel %vm968, %v961, %v963
  %v972 = vsel %vm968, %v965, %v967
  %v982 = vsel %vm171, %v948, 0
  %v985 = vsel %vm171, %v949, 0
  %v988 = vsel %vm171, %v950, 0
  %v991 = vsel %vm171, %v951, 0
  %993 = vmatprep.subr.bf16.mxu0 %v955
  %994 = vmatpush1.bf16.msra.mxu0 %v969
  %995 = vmatprep.subr.bf16.mxu0 %v959
  %996 = vmatpush1.bf16.msra.mxu0 %v970
  %997 = vmatprep.subr.bf16.mxu0 %v963
  %998 = vmatpush1.bf16.msra.mxu0 %v971
  %999 = vmatprep.subr.bf16.mxu0 %v967
  %1000 = vmatpush1.bf16.msra.mxu0 %v972
  %1001 = vmatprep.subr.bf16.mxu0 0
  %1002 = vmatpush1.bf16.msra.mxu0 0
  %1003 = vmatprep.subr.bf16.mxu0 0
  %1004 = vmatpush1.bf16.msra.mxu0 0
  %1005 = vmatprep.subr.bf16.mxu0 0
  %1006 = vmatpush1.bf16.msra.mxu0 0
  %1007 = vmatprep.subr.bf16.mxu0 0
  %1008 = vmatpush1.bf16.msra.mxu0 0
  %1009 = vmatprep.subr.bf16.mxu0 0
  %1010 = vmatpush1.bf16.msra.mxu0 0
  %1011 = vmatprep.subr.bf16.mxu0 0
  %1012 = vmatpush1.bf16.msra.mxu0 0
  %1013 = vmatprep.subr.bf16.mxu0 0
  %1014 = vmatpush1.bf16.msra.mxu0 0
  %1015 = vmatprep.subr.bf16.mxu0 0
  %1016 = vmatpush1.bf16.msra.mxu0 0
  %1017 = vmatprep.subr.bf16.mxu0 0
  %1018 = vmatpush1.bf16.msra.mxu0 0
  %1019 = vmatprep.subr.bf16.mxu0 0
  %1020 = vmatpush1.bf16.msra.mxu0 0
  %1021 = vmatprep.subr.bf16.mxu0 0
  %1022 = vmatpush1.bf16.msra.mxu0 0
  %1023 = vmatprep.subr.bf16.mxu0 0
  %1024 = vmatpush1.bf16.msra.mxu0 0
  %1025 = vmatprep.mubr.bf16.mxu0 0
  %1026 = vmatmul.mubr.bf16.gmra.mrb[0].mxu0 %v982
  %v1027 = vpop.f32.mrb[0].mxu0
  %v1028 = vadd.f32 0.0, %v1027
  %v1029 = vpop.f32.mrb[0].mxu0
  %v1030 = vadd.f32 0.0, %v1029
  %v1031 = vpop.f32.mrb[0].mxu0
  %v1032 = vadd.f32 0.0, %v1031
  %v1033 = vpop.f32.mrb[0].mxu0
  %v1034 = vadd.f32 0.0, %v1033
  %1035 = vmatprep.mubr.bf16.mxu0 0
  %1036 = vmatmul.mubr.bf16.gmra.mrb[0].mxu0 %v985
  %v1037 = vpop.f32.mrb[0].mxu0
  %v1038 = vadd.f32 0.0, %v1037
  %v1039 = vpop.f32.mrb[0].mxu0
  %v1040 = vadd.f32 0.0, %v1039
  %v1041 = vpop.f32.mrb[0].mxu0
  %v1042 = vadd.f32 0.0, %v1041
  %v1043 = vpop.f32.mrb[0].mxu0
  %v1044 = vadd.f32 0.0, %v1043
  %1045 = vmatprep.mubr.bf16.mxu0 0
  %1046 = vmatmul.mubr.bf16.gmra.mrb[0].mxu0 %v988
  %v1047 = vpop.f32.mrb[0].mxu0
  %v1048 = vadd.f32 0.0, %v1047
  %v1049 = vpop.f32.mrb[0].mxu0
  %v1050 = vadd.f32 0.0, %v1049
  %v1051 = vpop.f32.mrb[0].mxu0
  %v1052 = vadd.f32 0.0, %v1051
  %v1053 = vpop.f32.mrb[0].mxu0
  %v1054 = vadd.f32 0.0, %v1053
  %1055 = vmatprep.mubr.bf16.mxu0 0
  %1056 = vmatmul.mubr.bf16.gmra.mrb[0].mxu0 %v991
  %v1057 = vpop.f32.mrb[0].mxu0
  %v1058 = vadd.f32 0.0, %v1057
  %v1059 = vpop.f32.mrb[0].mxu0
  %v1060 = vadd.f32 0.0, %v1059
  %v1061 = vpop.f32.mrb[0].mxu0
  %v1062 = vadd.f32 0.0, %v1061
  %v1063 = vpop.f32.mrb[0].mxu0
  %v1064 = vadd.f32 0.0, %v1063
  %1065 = vdwg.mxu0
  %v1066 = vadd.f32 %v907, %v1028
  %v1067 = vadd.f32 %v908, %v1030
  %v1068 = vadd.f32 %v909, %v1032
  %v1069 = vadd.f32 %v910, %v1034
  %v1070 = vadd.f32 %v911, %v1038
  %v1071 = vadd.f32 %v912, %v1040
  %v1072 = vadd.f32 %v913, %v1042
  %v1073 = vadd.f32 %v914, %v1044
  %v1074 = vadd.f32 %v915, %v1048
  %v1075 = vadd.f32 %v916, %v1050
  %v1076 = vadd.f32 %v917, %v1052
  %v1077 = vadd.f32 %v918, %v1054
  %v1078 = vadd.f32 %v919, %v1058
  %v1079 = vadd.f32 %v920, %v1060
  %v1080 = vadd.f32 %v921, %v1062
  %v1081 = vadd.f32 %v922, %v1064
  %s1082 = scalar_lea.vmem %s1, 192
  %v1083 = vld [vmem:[%s1082] sm:$0xf]
  %v1084 = vld [vmem:[%s1082 + $0x4] sm:$0xf]
  %v1085 = vld [vmem:[%s1082 + $0x8] sm:$0xf]
  %v1086 = vld [vmem:[%s1082 + $0xc] sm:$0xf]
  %v1087 = vld [vmem:[%s1082 + $0x10] sm:$0xf]
  %v1088 = vld [vmem:[%s1082 + $0x14] sm:$0xf]
  %v1089 = vld [vmem:[%s1082 + $0x18] sm:$0xf]
  %v1090 = vld [vmem:[%s1082 + $0x1c] sm:$0xf]
  %v1099 = vunpack.c.l.b16 %v1083
  %v1100 = vunpack.c.l.b16 %v1084
  %v1101 = vunpack.c.l.b16 %v1085
  %v1102 = vunpack.c.l.b16 %v1086
  %v1103 = vunpack.c.l.b16 %v1087
  %v1104 = vunpack.c.l.b16 %v1088
  %v1105 = vunpack.c.l.b16 %v1089
  %v1106 = vunpack.c.l.b16 %v1090
  %v1107 = vpack.c.b16 %v1100, %v1099
  %v1108 = vpack.c.b16 %v1102, %v1101
  %v1109 = vpack.c.b16 %v1104, %v1103
  %v1110 = vpack.c.b16 %v1106, %v1105
  %1111 = vrot.lane.b32.xlu0 %v806, 119
  %v1112 = vpop.permute.xlu0 %1111
  %1113 = vrot.lane.b32.xlu0 %v807, 119
  %v1114 = vpop.permute.xlu0 %1113
  %1115 = vrot.lane.b32.xlu0 %v808, 119
  %v1116 = vpop.permute.xlu0 %1115
  %1117 = vrot.lane.b32.xlu0 %v809, 119
  %v1118 = vpop.permute.xlu0 %1117
  %1119 = vrot.lane.b32.xlu0 %v810, 119
  %v1120 = vpop.permute.xlu0 %1119
  %1121 = vrot.lane.b32.xlu0 %v811, 119
  %v1122 = vpop.permute.xlu0 %1121
  %1123 = vrot.lane.b32.xlu0 %v812, 119
  %v1124 = vpop.permute.xlu0 %1123
  %1125 = vrot.lane.b32.xlu0 %v813, 119
  %v1126 = vpop.permute.xlu0 %1125
  %vm1127 = vcmask 973824
  %v1128 = vsel %vm1127, %v1112, %v1114
  %v1129 = vsel %vm1127, %v1116, %v1118
  %v1130 = vsel %vm1127, %v1120, %v1122
  %v1131 = vsel %vm1127, %v1124, %v1126
  %v1141 = vsel %vm171, %v1107, 0
  %v1144 = vsel %vm171, %v1108, 0
  %v1147 = vsel %vm171, %v1109, 0
  %v1150 = vsel %vm171, %v1110, 0
  %1152 = vmatprep.subr.bf16.mxu0 %v1114
  %1153 = vmatpush1.bf16.msra.mxu0 %v1128
  %1154 = vmatprep.subr.bf16.mxu0 %v1118
  %1155 = vmatpush1.bf16.msra.mxu0 %v1129
  %1156 = vmatprep.subr.bf16.mxu0 %v1122
  %1157 = vmatpush1.bf16.msra.mxu0 %v1130
  %1158 = vmatprep.subr.bf16.mxu0 %v1126
  %1159 = vmatpush1.bf16.msra.mxu0 %v1131
  %1160 = vmatprep.subr.bf16.mxu0 0
  %1161 = vmatpush1.bf16.msra.mxu0 0
  %1162 = vmatprep.subr.bf16.mxu0 0
  %1163 = vmatpush1.bf16.msra.mxu0 0
  %1164 = vmatprep.subr.bf16.mxu0 0
  %1165 = vmatpush1.bf16.msra.mxu0 0
  %1166 = vmatprep.subr.bf16.mxu0 0
  %1167 = vmatpush1.bf16.msra.mxu0 0
  %1168 = vmatprep.subr.bf16.mxu0 0
  %1169 = vmatpush1.bf16.msra.mxu0 0
  %1170 = vmatprep.subr.bf16.mxu0 0
  %1171 = vmatpush1.bf16.msra.mxu0 0
  %1172 = vmatprep.subr.bf16.mxu0 0
  %1173 = vmatpush1.bf16.msra.mxu0 0
  %1174 = vmatprep.subr.bf16.mxu0 0
  %1175 = vmatpush1.bf16.msra.mxu0 0
  %1176 = vmatprep.subr.bf16.mxu0 0
  %1177 = vmatpush1.bf16.msra.mxu0 0
  %1178 = vmatprep.subr.bf16.mxu0 0
  %1179 = vmatpush1.bf16.msra.mxu0 0
  %1180 = vmatprep.subr.bf16.mxu0 0
  %1181 = vmatpush1.bf16.msra.mxu0 0
  %1182 = vmatprep.subr.bf16.mxu0 0
  %1183 = vmatpush1.bf16.msra.mxu0 0
  %1184 = vmatprep.mubr.bf16.mxu0 0
  %1185 = vmatmul.mubr.bf16.gmra.mrb[0].mxu0 %v1141
  %v1186 = vpop.f32.mrb[0].mxu0
  %v1187 = vadd.f32 0.0, %v1186
  %v1188 = vpop.f32.mrb[0].mxu0
  %v1189 = vadd.f32 0.0, %v1188
  %v1190 = vpop.f32.mrb[0].mxu0
  %v1191 = vadd.f32 0.0, %v1190
  %v1192 = vpop.f32.mrb[0].mxu0
  %v1193 = vadd.f32 0.0, %v1192
  %1194 = vmatprep.mubr.bf16.mxu0 0
  %1195 = vmatmul.mubr.bf16.gmra.mrb[0].mxu0 %v1144
  %v1196 = vpop.f32.mrb[0].mxu0
  %v1197 = vadd.f32 0.0, %v1196
  %v1198 = vpop.f32.mrb[0].mxu0
  %v1199 = vadd.f32 0.0, %v1198
  %v1200 = vpop.f32.mrb[0].mxu0
  %v1201 = vadd.f32 0.0, %v1200
  %v1202 = vpop.f32.mrb[0].mxu0
  %v1203 = vadd.f32 0.0, %v1202
  %1204 = vmatprep.mubr.bf16.mxu0 0
  %1205 = vmatmul.mubr.bf16.gmra.mrb[0].mxu0 %v1147
  %v1206 = vpop.f32.mrb[0].mxu0
  %v1207 = vadd.f32 0.0, %v1206
  %v1208 = vpop.f32.mrb[0].mxu0
  %v1209 = vadd.f32 0.0, %v1208
  %v1210 = vpop.f32.mrb[0].mxu0
  %v1211 = vadd.f32 0.0, %v1210
  %v1212 = vpop.f32.mrb[0].mxu0
  %v1213 = vadd.f32 0.0, %v1212
  %1214 = vmatprep.mubr.bf16.mxu0 0
  %1215 = vmatmul.mubr.bf16.gmra.mrb[0].mxu0 %v1150
  %v1216 = vpop.f32.mrb[0].mxu0
  %v1217 = vadd.f32 0.0, %v1216
  %v1218 = vpop.f32.mrb[0].mxu0
  %v1219 = vadd.f32 0.0, %v1218
  %v1220 = vpop.f32.mrb[0].mxu0
  %v1221 = vadd.f32 0.0, %v1220
  %v1222 = vpop.f32.mrb[0].mxu0
  %v1223 = vadd.f32 0.0, %v1222
  %1224 = vdwg.mxu0
  %v1225 = vadd.f32 %v1066, %v1187
  %v1226 = vadd.f32 %v1067, %v1189
  %v1227 = vadd.f32 %v1068, %v1191
  %v1228 = vadd.f32 %v1069, %v1193
  %v1229 = vadd.f32 %v1070, %v1197
  %v1230 = vadd.f32 %v1071, %v1199
  %v1231 = vadd.f32 %v1072, %v1201
  %v1232 = vadd.f32 %v1073, %v1203
  %v1233 = vadd.f32 %v1074, %v1207
  %v1234 = vadd.f32 %v1075, %v1209
  %v1235 = vadd.f32 %v1076, %v1211
  %v1236 = vadd.f32 %v1077, %v1213
  %v1237 = vadd.f32 %v1078, %v1217
  %v1238 = vadd.f32 %v1079, %v1219
  %v1239 = vadd.f32 %v1080, %v1221
  %v1240 = vadd.f32 %v1081, %v1223
  %s1241 = scalar_lea.vmem %s1, 224
  %v1242 = vld [vmem:[%s1241] sm:$0xf]
  %v1243 = vld [vmem:[%s1241 + $0x4] sm:$0xf]
  %v1244 = vld [vmem:[%s1241 + $0x8] sm:$0xf]
  %v1245 = vld [vmem:[%s1241 + $0xc] sm:$0xf]
  %v1246 = vld [vmem:[%s1241 + $0x10] sm:$0xf]
  %v1247 = vld [vmem:[%s1241 + $0x14] sm:$0xf]
  %v1248 = vld [vmem:[%s1241 + $0x18] sm:$0xf]
  %v1249 = vld [vmem:[%s1241 + $0x1c] sm:$0xf]
  %v1258 = vunpack.c.l.b16 %v1242
  %v1259 = vunpack.c.l.b16 %v1243
  %v1260 = vunpack.c.l.b16 %v1244
  %v1261 = vunpack.c.l.b16 %v1245
  %v1262 = vunpack.c.l.b16 %v1246
  %v1263 = vunpack.c.l.b16 %v1247
  %v1264 = vunpack.c.l.b16 %v1248
  %v1265 = vunpack.c.l.b16 %v1249
  %v1266 = vpack.c.b16 %v1259, %v1258
  %v1267 = vpack.c.b16 %v1261, %v1260
  %v1268 = vpack.c.b16 %v1263, %v1262
  %v1269 = vpack.c.b16 %v1265, %v1264
  %1270 = vrot.lane.b32.xlu0 %v806, 118
  %v1271 = vpop.permute.xlu0 %1270
  %1272 = vrot.lane.b32.xlu0 %v807, 118
  %v1273 = vpop.permute.xlu0 %1272
  %1274 = vrot.lane.b32.xlu0 %v808, 118
  %v1275 = vpop.permute.xlu0 %1274
  %1276 = vrot.lane.b32.xlu0 %v809, 118
  %v1277 = vpop.permute.xlu0 %1276
  %1278 = vrot.lane.b32.xlu0 %v810, 118
  %v1279 = vpop.permute.xlu0 %1278
  %1280 = vrot.lane.b32.xlu0 %v811, 118
  %v1281 = vpop.permute.xlu0 %1280
  %1282 = vrot.lane.b32.xlu0 %v812, 118
  %v1283 = vpop.permute.xlu0 %1282
  %1284 = vrot.lane.b32.xlu0 %v813, 118
  %v1285 = vpop.permute.xlu0 %1284
  %vm1286 = vcmask 965632
  %v1287 = vsel %vm1286, %v1271, %v1273
  %v1288 = vsel %vm1286, %v1275, %v1277
  %v1289 = vsel %vm1286, %v1279, %v1281
  %v1290 = vsel %vm1286, %v1283, %v1285
  %v1300 = vsel %vm171, %v1266, 0
  %v1303 = vsel %vm171, %v1267, 0
  %v1306 = vsel %vm171, %v1268, 0
  %v1309 = vsel %vm171, %v1269, 0
  %1311 = vmatprep.subr.bf16.mxu0 %v1273
  %1312 = vmatpush1.bf16.msra.mxu0 %v1287
  %1313 = vmatprep.subr.bf16.mxu0 %v1277
  %1314 = vmatpush1.bf16.msra.mxu0 %v1288
  %1315 = vmatprep.subr.bf16.mxu0 %v1281
  %1316 = vmatpush1.bf16.msra.mxu0 %v1289
  %1317 = vmatprep.subr.bf16.mxu0 %v1285
  %1318 = vmatpush1.bf16.msra.mxu0 %v1290
  %1319 = vmatprep.subr.bf16.mxu0 0
  %1320 = vmatpush1.bf16.msra.mxu0 0
  %1321 = vmatprep.subr.bf16.mxu0 0
  %1322 = vmatpush1.bf16.msra.mxu0 0
  %1323 = vmatprep.subr.bf16.mxu0 0
  %1324 = vmatpush1.bf16.msra.mxu0 0
  %1325 = vmatprep.subr.bf16.mxu0 0
  %1326 = vmatpush1.bf16.msra.mxu0 0
  %1327 = vmatprep.subr.bf16.mxu0 0
  %1328 = vmatpush1.bf16.msra.mxu0 0
  %1329 = vmatprep.subr.bf16.mxu0 0
  %1330 = vmatpush1.bf16.msra.mxu0 0
  %1331 = vmatprep.subr.bf16.mxu0 0
  %1332 = vmatpush1.bf16.msra.mxu0 0
  %1333 = vmatprep.subr.bf16.mxu0 0
  %1334 = vmatpush1.bf16.msra.mxu0 0
  %1335 = vmatprep.subr.bf16.mxu0 0
  %1336 = vmatpush1.bf16.msra.mxu0 0
  %1337 = vmatprep.subr.bf16.mxu0 0
  %1338 = vmatpush1.bf16.msra.mxu0 0
  %1339 = vmatprep.subr.bf16.mxu0 0
  %1340 = vmatpush1.bf16.msra.mxu0 0
  %1341 = vmatprep.subr.bf16.mxu0 0
  %1342 = vmatpush1.bf16.msra.mxu0 0
  %1343 = vmatprep.mubr.bf16.mxu0 0
  %1344 = vmatmul.mubr.bf16.gmra.mrb[0].mxu0 %v1300
  %v1345 = vpop.f32.mrb[0].mxu0
  %v1346 = vadd.f32 0.0, %v1345
  %v1347 = vpop.f32.mrb[0].mxu0
  %v1348 = vadd.f32 0.0, %v1347
  %v1349 = vpop.f32.mrb[0].mxu0
  %v1350 = vadd.f32 0.0, %v1349
  %v1351 = vpop.f32.mrb[0].mxu0
  %v1352 = vadd.f32 0.0, %v1351
  %1353 = vmatprep.mubr.bf16.mxu0 0
  %1354 = vmatmul.mubr.bf16.gmra.mrb[0].mxu0 %v1303
  %v1355 = vpop.f32.mrb[0].mxu0
  %v1356 = vadd.f32 0.0, %v1355
  %v1357 = vpop.f32.mrb[0].mxu0
  %v1358 = vadd.f32 0.0, %v1357
  %v1359 = vpop.f32.mrb[0].mxu0
  %v1360 = vadd.f32 0.0, %v1359
  %v1361 = vpop.f32.mrb[0].mxu0
  %v1362 = vadd.f32 0.0, %v1361
  %1363 = vmatprep.mubr.bf16.mxu0 0
  %1364 = vmatmul.mubr.bf16.gmra.mrb[0].mxu0 %v1306
  %v1365 = vpop.f32.mrb[0].mxu0
  %v1366 = vadd.f32 0.0, %v1365
  %v1367 = vpop.f32.mrb[0].mxu0
  %v1368 = vadd.f32 0.0, %v1367
  %v1369 = vpop.f32.mrb[0].mxu0
  %v1370 = vadd.f32 0.0, %v1369
  %v1371 = vpop.f32.mrb[0].mxu0
  %v1372 = vadd.f32 0.0, %v1371
  %1373 = vmatprep.mubr.bf16.mxu0 0
  %1374 = vmatmul.mubr.bf16.gmra.mrb[0].mxu0 %v1309
  %v1375 = vpop.f32.mrb[0].mxu0
  %v1376 = vadd.f32 0.0, %v1375
  %v1377 = vpop.f32.mrb[0].mxu0
  %v1378 = vadd.f32 0.0, %v1377
  %v1379 = vpop.f32.mrb[0].mxu0
  %v1380 = vadd.f32 0.0, %v1379
  %v1381 = vpop.f32.mrb[0].mxu0
  %v1382 = vadd.f32 0.0, %v1381
  %1383 = vdwg.mxu0
  %v1384 = vadd.f32 %v1225, %v1346
  %v1385 = vadd.f32 %v1226, %v1348
  %v1386 = vadd.f32 %v1227, %v1350
  %v1387 = vadd.f32 %v1228, %v1352
  %v1388 = vadd.f32 %v1229, %v1356
  %v1389 = vadd.f32 %v1230, %v1358
  %v1390 = vadd.f32 %v1231, %v1360
  %v1391 = vadd.f32 %v1232, %v1362
  %v1392 = vadd.f32 %v1233, %v1366
  %v1393 = vadd.f32 %v1234, %v1368
  %v1394 = vadd.f32 %v1235, %v1370
  %v1395 = vadd.f32 %v1236, %v1372
  %v1396 = vadd.f32 %v1237, %v1376
  %v1397 = vadd.f32 %v1238, %v1378
  %v1398 = vadd.f32 %v1239, %v1380
  %v1399 = vadd.f32 %v1240, %v1382
  %s1400 = scalar_lea.vmem %s1, 256
  %v1401 = vld [vmem:[%s1400] sm:$0xf]
  %v1402 = vld [vmem:[%s1400 + $0x4] sm:$0xf]
  %v1403 = vld [vmem:[%s1400 + $0x8] sm:$0xf]
  %v1404 = vld [vmem:[%s1400 + $0xc] sm:$0xf]
  %v1405 = vld [vmem:[%s1400 + $0x10] sm:$0xf]
  %v1406 = vld [vmem:[%s1400 + $0x14] sm:$0xf]
  %v1407 = vld [vmem:[%s1400 + $0x18] sm:$0xf]
  %v1408 = vld [vmem:[%s1400 + $0x1c] sm:$0xf]
  %v1417 = vunpack.c.l.b16 %v1401
  %v1418 = vunpack.c.l.b16 %v1402
  %v1419 = vunpack.c.l.b16 %v1403
  %v1420 = vunpack.c.l.b16 %v1404
  %v1421 = vunpack.c.l.b16 %v1405
  %v1422 = vunpack.c.l.b16 %v1406
  %v1423 = vunpack.c.l.b16 %v1407
  %v1424 = vunpack.c.l.b16 %v1408
  %v1425 = vpack.c.b16 %v1418, %v1417
  %v1426 = vpack.c.b16 %v1420, %v1419
  %v1427 = vpack.c.b16 %v1422, %v1421
  %v1428 = vpack.c.b16 %v1424, %v1423
  %1429 = vrot.lane.b32.xlu0 %v806, 117
  %v1430 = vpop.permute.xlu0 %1429
  %1431 = vrot.lane.b32.xlu0 %v807, 117
  %v1432 = vpop.permute.xlu0 %1431
  %1433 = vrot.lane.b32.xlu0 %v808, 117
  %v1434 = vpop.permute.xlu0 %1433
  %1435 = vrot.lane.b32.xlu0 %v809, 117
  %v1436 = vpop.permute.xlu0 %1435
  %1437 = vrot.lane.b32.xlu0 %v810, 117
  %v1438 = vpop.permute.xlu0 %1437
  %1439 = vrot.lane.b32.xlu0 %v811, 117
  %v1440 = vpop.permute.xlu0 %1439
  %1441 = vrot.lane.b32.xlu0 %v812, 117
  %v1442 = vpop.permute.xlu0 %1441
  %1443 = vrot.lane.b32.xlu0 %v813, 117
  %v1444 = vpop.permute.xlu0 %1443
  %vm1445 = vcmask 957440
  %v1446 = vsel %vm1445, %v1430, %v1432
  %v1447 = vsel %vm1445, %v1434, %v1436
  %v1448 = vsel %vm1445, %v1438, %v1440
  %v1449 = vsel %vm1445, %v1442, %v1444
  %v1459 = vsel %vm171, %v1425, 0
  %v1462 = vsel %vm171, %v1426, 0
  %v1465 = vsel %vm171, %v1427, 0
  %v1468 = vsel %vm171, %v1428, 0
  %1470 = vmatprep.subr.bf16.mxu0 %v1432
  %1471 = vmatpush1.bf16.msra.mxu0 %v1446
  %1472 = vmatprep.subr.bf16.mxu0 %v1436
  %1473 = vmatpush1.bf16.msra.mxu0 %v1447
  %1474 = vmatprep.subr.bf16.mxu0 %v1440
  %1475 = vmatpush1.bf16.msra.mxu0 %v1448
  %1476 = vmatprep.subr.bf16.mxu0 %v1444
  %1477 = vmatpush1.bf16.msra.mxu0 %v1449
  %1478 = vmatprep.subr.bf16.mxu0 0
  %1479 = vmatpush1.bf16.msra.mxu0 0
  %1480 = vmatprep.subr.bf16.mxu0 0
  %1481 = vmatpush1.bf16.msra.mxu0 0
  %1482 = vmatprep.subr.bf16.mxu0 0
  %1483 = vmatpush1.bf16.msra.mxu0 0
  %1484 = vmatprep.subr.bf16.mxu0 0
  %1485 = vmatpush1.bf16.msra.mxu0 0
  %1486 = vmatprep.subr.bf16.mxu0 0
  %1487 = vmatpush1.bf16.msra.mxu0 0
  %1488 = vmatprep.subr.bf16.mxu0 0
  %1489 = vmatpush1.bf16.msra.mxu0 0
  %1490 = vmatprep.subr.bf16.mxu0 0
  %1491 = vmatpush1.bf16.msra.mxu0 0
  %1492 = vmatprep.subr.bf16.mxu0 0
  %1493 = vmatpush1.bf16.msra.mxu0 0
  %1494 = vmatprep.subr.bf16.mxu0 0
  %1495 = vmatpush1.bf16.msra.mxu0 0
  %1496 = vmatprep.subr.bf16.mxu0 0
  %1497 = vmatpush1.bf16.msra.mxu0 0
  %1498 = vmatprep.subr.bf16.mxu0 0
  %1499 = vmatpush1.bf16.msra.mxu0 0
  %1500 = vmatprep.subr.bf16.mxu0 0
  %1501 = vmatpush1.bf16.msra.mxu0 0
  %1502 = vmatprep.mubr.bf16.mxu0 0
  %1503 = vmatmul.mubr.bf16.gmra.mrb[0].mxu0 %v1459
  %v1504 = vpop.f32.mrb[0].mxu0
  %v1505 = vadd.f32 0.0, %v1504
  %v1506 = vpop.f32.mrb[0].mxu0
  %v1507 = vadd.f32 0.0, %v1506
  %v1508 = vpop.f32.mrb[0].mxu0
  %v1509 = vadd.f32 0.0, %v1508
  %v1510 = vpop.f32.mrb[0].mxu0
  %v1511 = vadd.f32 0.0, %v1510
  %1512 = vmatprep.mubr.bf16.mxu0 0
  %1513 = vmatmul.mubr.bf16.gmra.mrb[0].mxu0 %v1462
  %v1514 = vpop.f32.mrb[0].mxu0
  %v1515 = vadd.f32 0.0, %v1514
  %v1516 = vpop.f32.mrb[0].mxu0
  %v1517 = vadd.f32 0.0, %v1516
  %v1518 = vpop.f32.mrb[0].mxu0
  %v1519 = vadd.f32 0.0, %v1518
  %v1520 = vpop.f32.mrb[0].mxu0
  %v1521 = vadd.f32 0.0, %v1520
  %1522 = vmatprep.mubr.bf16.mxu0 0
  %1523 = vmatmul.mubr.bf16.gmra.mrb[0].mxu0 %v1465
  %v1524 = vpop.f32.mrb[0].mxu0
  %v1525 = vadd.f32 0.0, %v1524
  %v1526 = vpop.f32.mrb[0].mxu0
  %v1527 = vadd.f32 0.0, %v1526
  %v1528 = vpop.f32.mrb[0].mxu0
  %v1529 = vadd.f32 0.0, %v1528
  %v1530 = vpop.f32.mrb[0].mxu0
  %v1531 = vadd.f32 0.0, %v1530
  %1532 = vmatprep.mubr.bf16.mxu0 0
  %1533 = vmatmul.mubr.bf16.gmra.mrb[0].mxu0 %v1468
  %v1534 = vpop.f32.mrb[0].mxu0
  %v1535 = vadd.f32 0.0, %v1534
  %v1536 = vpop.f32.mrb[0].mxu0
  %v1537 = vadd.f32 0.0, %v1536
  %v1538 = vpop.f32.mrb[0].mxu0
  %v1539 = vadd.f32 0.0, %v1538
  %v1540 = vpop.f32.mrb[0].mxu0
  %v1541 = vadd.f32 0.0, %v1540
  %1542 = vdwg.mxu0
  %v1543 = vadd.f32 %v1384, %v1505
  %v1544 = vadd.f32 %v1385, %v1507
  %v1545 = vadd.f32 %v1386, %v1509
  %v1546 = vadd.f32 %v1387, %v1511
  %v1547 = vadd.f32 %v1388, %v1515
  %v1548 = vadd.f32 %v1389, %v1517
  %v1549 = vadd.f32 %v1390, %v1519
  %v1550 = vadd.f32 %v1391, %v1521
  %v1551 = vadd.f32 %v1392, %v1525
  %v1552 = vadd.f32 %v1393, %v1527
  %v1553 = vadd.f32 %v1394, %v1529
  %v1554 = vadd.f32 %v1395, %v1531
  %v1555 = vadd.f32 %v1396, %v1535
  %v1556 = vadd.f32 %v1397, %v1537
  %v1557 = vadd.f32 %v1398, %v1539
  %v1558 = vadd.f32 %v1399, %v1541
  %v1559 = vld [vmem:[%s2] sm:$0xff]
  %v1560 = vld [vmem:[%s2 + $0x8] sm:$0xff]
  %v1561 = vld [vmem:[%s2 + $0x10] sm:$0xff]
  %v1562 = vld [vmem:[%s2 + $0x18] sm:$0xff]
  %v1563 = vld [vmem:[%s2 + $0x20] sm:$0xff]
  %v1564 = vld [vmem:[%s2 + $0x28] sm:$0xff]
  %v1565 = vld [vmem:[%s2 + $0x30] sm:$0xff]
  %v1566 = vld [vmem:[%s2 + $0x38] sm:$0xff]
  %1568 = vset.pattern.permute.xlu0 0
  %1569 = vperm.xlu0 %1568, %v1559
  %v1570 = vpop.permute.xlu0 %1569
  %1573 = vset.pattern.permute.xlu0 0
  %1574 = vperm.xlu0 %1573, %v1560
  %v1575 = vpop.permute.xlu0 %1574
  %1578 = vset.pattern.permute.xlu0 0
  %1579 = vperm.xlu0 %1578, %v1561
  %v1580 = vpop.permute.xlu0 %1579
  %1583 = vset.pattern.permute.xlu0 0
  %1584 = vperm.xlu0 %1583, %v1562
  %v1585 = vpop.permute.xlu0 %1584
  %1588 = vset.pattern.permute.xlu0 0
  %1589 = vperm.xlu0 %1588, %v1563
  %v1590 = vpop.permute.xlu0 %1589
  %1593 = vset.pattern.permute.xlu0 0
  %1594 = vperm.xlu0 %1593, %v1564
  %v1595 = vpop.permute.xlu0 %1594
  %1598 = vset.pattern.permute.xlu0 0
  %1599 = vperm.xlu0 %1598, %v1565
  %v1600 = vpop.permute.xlu0 %1599
  %1603 = vset.pattern.permute.xlu0 0
  %1604 = vperm.xlu0 %1603, %v1566
  %v1605 = vpop.permute.xlu0 %1604
  %v1607 = vadd.f32 %v1543, %v1570
  %v1608 = vadd.f32 %v1544, %v1570
  %v1609 = vadd.f32 %v1545, %v1575
  %v1610 = vadd.f32 %v1546, %v1575
  %v1611 = vadd.f32 %v1547, %v1580
  %v1612 = vadd.f32 %v1548, %v1580
  %v1613 = vadd.f32 %v1549, %v1585
  %v1614 = vadd.f32 %v1550, %v1585
  %v1615 = vadd.f32 %v1551, %v1590
  %v1616 = vadd.f32 %v1552, %v1590
  %v1617 = vadd.f32 %v1553, %v1595
  %v1618 = vadd.f32 %v1554, %v1595
  %v1619 = vadd.f32 %v1555, %v1600
  %v1620 = vadd.f32 %v1556, %v1600
  %v1621 = vadd.f32 %v1557, %v1605
  %v1622 = vadd.f32 %v1558, %v1605
  %v1623 = vmax.f32 %v1607, 0.0
  %v1624 = vmax.f32 %v1608, 0.0
  %v1625 = vmax.f32 %v1609, 0.0
  %v1626 = vmax.f32 %v1610, 0.0
  %v1627 = vmax.f32 %v1611, 0.0
  %v1628 = vmax.f32 %v1612, 0.0
  %v1629 = vmax.f32 %v1613, 0.0
  %v1630 = vmax.f32 %v1614, 0.0
  %v1631 = vmax.f32 %v1615, 0.0
  %v1632 = vmax.f32 %v1616, 0.0
  %v1633 = vmax.f32 %v1617, 0.0
  %v1634 = vmax.f32 %v1618, 0.0
  %v1635 = vmax.f32 %v1619, 0.0
  %v1636 = vmax.f32 %v1620, 0.0
  %v1637 = vmax.f32 %v1621, 0.0
  %v1638 = vmax.f32 %v1622, 0.0
  %v1640 = vlaneseq
  %v1641 = vshrl.u32 %v1640, 7
  %v1642 = vsub.s32 0, %v1641
  %v1643 = vrot.slane %v24, %v1642
  %v1644 = vlaneseq
  %v1645 = vshrl.u32 %v1644, 7
  %v1646 = vsub.s32 1, %v1645
  %v1647 = vrot.slane %v24, %v1646
  %v1650 = vmul.f32 %v1623, %v1643
  %v1651 = vmul.f32 %v1624, %v1647
  %v1652 = vmul.f32 %v1625, %v1643
  %v1653 = vmul.f32 %v1626, %v1647
  %v1654 = vmul.f32 %v1627, %v1643
  %v1655 = vmul.f32 %v1628, %v1647
  %v1656 = vmul.f32 %v1629, %v1643
  %v1657 = vmul.f32 %v1630, %v1647
  %v1658 = vmul.f32 %v1631, %v1643
  %v1659 = vmul.f32 %v1632, %v1647
  %v1660 = vmul.f32 %v1633, %v1643
  %v1661 = vmul.f32 %v1634, %v1647
  %v1662 = vmul.f32 %v1635, %v1643
  %v1663 = vmul.f32 %v1636, %v1647
  %v1664 = vmul.f32 %v1637, %v1643
  %v1665 = vmul.f32 %v1638, %v1647
  %1666 = vst [vmem:[#allocation2] sm:$0xff] 0
  %1667 = vst [vmem:[#allocation2 + $0x8] sm:$0xff] 0
  %1668 = vst [vmem:[#allocation2 + $0x10] sm:$0xff] 0
  %vm1669 = vcmask 588800
  %1670 = vst.msk [vmem:[#allocation2 + $0x18] sm:$0xff] %vm1669, 0
  %1671 = vst [vmem:[#allocation2 + $0x20] sm:$0xff] 0
  %1672 = vst [vmem:[#allocation2 + $0x28] sm:$0xff] 0
  %1673 = vst [vmem:[#allocation2 + $0x30] sm:$0xff] 0
  %1674 = vst.msk [vmem:[#allocation2 + $0x38] sm:$0xff] %vm1669, 0
  %1675 = vst [vmem:[#allocation2 + $0x40] sm:$0xff] 0
  %1676 = vst [vmem:[#allocation2 + $0x48] sm:$0xff] 0
  %1677 = vst [vmem:[#allocation2 + $0x50] sm:$0xff] 0
  %1678 = vst.msk [vmem:[#allocation2 + $0x58] sm:$0xff] %vm1669, 0
  %1679 = vst [vmem:[#allocation2 + $0x60] sm:$0xff] 0
  %1680 = vst [vmem:[#allocation2 + $0x68] sm:$0xff] 0
  %1681 = vst [vmem:[#allocation2 + $0x70] sm:$0xff] 0
  %1682 = vst.msk [vmem:[#allocation2 + $0x78] sm:$0xff] %vm1669, 0
  %v1683 = vpack.c.bf16 %v1652, %v1650
  %v1684 = vpack.c.bf16 %v1653, %v1651
  %v1685 = vpack.c.bf16 %v1656, %v1654
  %v1686 = vpack.c.bf16 %v1657, %v1655
  %v1687 = vpack.c.bf16 %v1660, %v1658
  %v1688 = vpack.c.bf16 %v1661, %v1659
  %v1689 = vpack.c.bf16 %v1664, %v1662
  %v1690 = vpack.c.bf16 %v1665, %v1663
  %1691 = vst [vmem:[#allocation2 + $0x8] sm:$0xff] %v1683
  %1692 = vst.msk [vmem:[#allocation2 + $0x10] sm:$0xff] %vm1669, %v1684
  %1693 = vst [vmem:[#allocation2 + $0x28] sm:$0xff] %v1685
  %1694 = vst.msk [vmem:[#allocation2 + $0x30] sm:$0xff] %vm1669, %v1686
  %1695 = vst [vmem:[#allocation2 + $0x48] sm:$0xff] %v1687
  %1696 = vst.msk [vmem:[#allocation2 + $0x50] sm:$0xff] %vm1669, %v1688
  %1697 = vst [vmem:[#allocation2 + $0x68] sm:$0xff] %v1689
  %1698 = vst.msk [vmem:[#allocation2 + $0x70] sm:$0xff] %vm1669, %v1690
  %v1699 = vld [vmem:[#allocation2] sm:$0xff]
  %v1700 = vld [vmem:[#allocation2 + $0x8] sm:$0xff]
  %v1701 = vld [vmem:[#allocation2 + $0x10] sm:$0xff]
  %v1702 = vld [vmem:[#allocation2 + $0x20] sm:$0xff]
  %v1703 = vld [vmem:[#allocation2 + $0x28] sm:$0xff]
  %v1704 = vld [vmem:[#allocation2 + $0x30] sm:$0xff]
  %v1705 = vld [vmem:[#allocation2 + $0x40] sm:$0xff]
  %v1706 = vld [vmem:[#allocation2 + $0x48] sm:$0xff]
  %v1707 = vld [vmem:[#allocation2 + $0x50] sm:$0xff]
  %v1708 = vld [vmem:[#allocation2 + $0x60] sm:$0xff]
  %v1709 = vld [vmem:[#allocation2 + $0x68] sm:$0xff]
  %v1710 = vld [vmem:[#allocation2 + $0x70] sm:$0xff]
  %v1711 = vld [vmem:[%s3] sm:$0xf]
  %v1712 = vld [vmem:[%s3 + $0x4] sm:$0xf]
  %v1713 = vld [vmem:[%s3 + $0x8] sm:$0xf]
  %v1714 = vld [vmem:[%s3 + $0xc] sm:$0xf]
  %v1715 = vld [vmem:[%s3 + $0x10] sm:$0xf]
  %v1716 = vld [vmem:[%s3 + $0x14] sm:$0xf]
  %v1717 = vld [vmem:[%s3 + $0x18] sm:$0xf]
  %v1718 = vld [vmem:[%s3 + $0x1c] sm:$0xf]
  %s1719 = scalar_lea.vmem %s3, 32
  %v1720 = vld [vmem:[%s1719] sm:$0xf]
  %v1721 = vld [vmem:[%s1719 + $0x4] sm:$0xf]
  %v1722 = vld [vmem:[%s1719 + $0x8] sm:$0xf]
  %v1723 = vld [vmem:[%s1719 + $0xc] sm:$0xf]
  %v1724 = vld [vmem:[%s1719 + $0x10] sm:$0xf]
  %v1725 = vld [vmem:[%s1719 + $0x14] sm:$0xf]
  %v1726 = vld [vmem:[%s1719 + $0x18] sm:$0xf]
  %v1727 = vld [vmem:[%s1719 + $0x1c] sm:$0xf]
  %v1736 = vunpack.c.l.b16 %v1720
  %v1737 = vunpack.c.l.b16 %v1721
  %v1738 = vunpack.c.l.b16 %v1722
  %v1739 = vunpack.c.l.b16 %v1723
  %v1740 = vunpack.c.l.b16 %v1724
  %v1741 = vunpack.c.l.b16 %v1725
  %v1742 = vunpack.c.l.b16 %v1726
  %v1743 = vunpack.c.l.b16 %v1727
  %v1744 = vpack.c.b16 %v1737, %v1736
  %v1745 = vpack.c.b16 %v1739, %v1738
  %v1746 = vpack.c.b16 %v1741, %v1740
  %v1747 = vpack.c.b16 %v1743, %v1742
  %1760 = vrot.lane.b32.xlu0 %v1699, 10
  %v1761 = vpop.permute.xlu0 %1760
  %1762 = vrot.lane.b32.xlu0 %v1700, 10
  %v1763 = vpop.permute.xlu0 %1762
  %1764 = vrot.lane.b32.xlu0 %v1701, 10
  %v1765 = vpop.permute.xlu0 %1764
  %1766 = vrot.lane.b32.xlu0 %v1702, 10
  %v1767 = vpop.permute.xlu0 %1766
  %1768 = vrot.lane.b32.xlu0 %v1703, 10
  %v1769 = vpop.permute.xlu0 %1768
  %1770 = vrot.lane.b32.xlu0 %v1704, 10
  %v1771 = vpop.permute.xlu0 %1770
  %1772 = vrot.lane.b32.xlu0 %v1705, 10
  %v1773 = vpop.permute.xlu0 %1772
  %1774 = vrot.lane.b32.xlu0 %v1706, 10
  %v1775 = vpop.permute.xlu0 %1774
  %1776 = vrot.lane.b32.xlu0 %v1707, 10
  %v1777 = vpop.permute.xlu0 %1776
  %1778 = vrot.lane.b32.xlu0 %v1708, 10
  %v1779 = vpop.permute.xlu0 %1778
  %1780 = vrot.lane.b32.xlu0 %v1709, 10
  %v1781 = vpop.permute.xlu0 %1780
  %1782 = vrot.lane.b32.xlu0 %v1710, 10
  %v1783 = vpop.permute.xlu0 %1782
  %v1784 = vsel %vm154, %v1761, %v1763
  %v1785 = vsel %vm154, %v1763, %v1765
  %v1786 = vsel %vm154, %v1767, %v1769
  %v1787 = vsel %vm154, %v1769, %v1771
  %v1788 = vsel %vm154, %v1773, %v1775
  %v1789 = vsel %vm154, %v1775, %v1777
  %v1790 = vsel %vm154, %v1779, %v1781
  %v1791 = vsel %vm154, %v1781, %v1783
  %v1801 = vsel %vm171, %v1744, 0
  %v1804 = vsel %vm171, %v1745, 0
  %v1807 = vsel %vm171, %v1746, 0
  %v1810 = vsel %vm171, %v1747, 0
  %1812 = vmatprep.subr.bf16.mxu0 %v1785
  %1813 = vmatpush1.bf16.msra.mxu0 %v1784
  %1814 = vmatprep.subr.bf16.mxu0 %v1787
  %1815 = vmatpush1.bf16.msra.mxu0 %v1786
  %1816 = vmatprep.subr.bf16.mxu0 %v1789
  %1817 = vmatpush1.bf16.msra.mxu0 %v1788
  %1818 = vmatprep.subr.bf16.mxu0 %v1791
  %1819 = vmatpush1.bf16.msra.mxu0 %v1790
  %1820 = vmatprep.subr.bf16.mxu0 0
  %1821 = vmatpush1.bf16.msra.mxu0 0
  %1822 = vmatprep.subr.bf16.mxu0 0
  %1823 = vmatpush1.bf16.msra.mxu0 0
  %1824 = vmatprep.subr.bf16.mxu0 0
  %1825 = vmatpush1.bf16.msra.mxu0 0
  %1826 = vmatprep.subr.bf16.mxu0 0
  %1827 = vmatpush1.bf16.msra.mxu0 0
  %1828 = vmatprep.subr.bf16.mxu0 0
  %1829 = vmatpush1.bf16.msra.mxu0 0
  %1830 = vmatprep.subr.bf16.mxu0 0
  %1831 = vmatpush1.bf16.msra.mxu0 0
  %1832 = vmatprep.subr.bf16.mxu0 0
  %1833 = vmatpush1.bf16.msra.mxu0 0
  %1834 = vmatprep.subr.bf16.mxu0 0
  %1835 = vmatpush1.bf16.msra.mxu0 0
  %1836 = vmatprep.subr.bf16.mxu0 0
  %1837 = vmatpush1.bf16.msra.mxu0 0
  %1838 = vmatprep.subr.bf16.mxu0 0
  %1839 = vmatpush1.bf16.msra.mxu0 0
  %1840 = vmatprep.subr.bf16.mxu0 0
  %1841 = vmatpush1.bf16.msra.mxu0 0
  %1842 = vmatprep.subr.bf16.mxu0 0
  %1843 = vmatpush1.bf16.msra.mxu0 0
  %1844 = vmatprep.mubr.bf16.mxu0 0
  %1845 = vmatmul.mubr.bf16.gmra.mrb[0].mxu0 %v1801
  %v1846 = vpop.f32.mrb[0].mxu0
  %v1847 = vadd.f32 0.0, %v1846
  %v1848 = vpop.f32.mrb[0].mxu0
  %v1849 = vadd.f32 0.0, %v1848
  %v1850 = vpop.f32.mrb[0].mxu0
  %v1851 = vadd.f32 0.0, %v1850
  %v1852 = vpop.f32.mrb[0].mxu0
  %v1853 = vadd.f32 0.0, %v1852
  %1854 = vmatprep.mubr.bf16.mxu0 0
  %1855 = vmatmul.mubr.bf16.gmra.mrb[0].mxu0 %v1804
  %v1856 = vpop.f32.mrb[0].mxu0
  %v1857 = vadd.f32 0.0, %v1856
  %v1858 = vpop.f32.mrb[0].mxu0
  %v1859 = vadd.f32 0.0, %v1858
  %v1860 = vpop.f32.mrb[0].mxu0
  %v1861 = vadd.f32 0.0, %v1860
  %v1862 = vpop.f32.mrb[0].mxu0
  %v1863 = vadd.f32 0.0, %v1862
  %1864 = vmatprep.mubr.bf16.mxu0 0
  %1865 = vmatmul.mubr.bf16.gmra.mrb[0].mxu0 %v1807
  %v1866 = vpop.f32.mrb[0].mxu0
  %v1867 = vadd.f32 0.0, %v1866
  %v1868 = vpop.f32.mrb[0].mxu0
  %v1869 = vadd.f32 0.0, %v1868
  %v1870 = vpop.f32.mrb[0].mxu0
  %v1871 = vadd.f32 0.0, %v1870
  %v1872 = vpop.f32.mrb[0].mxu0
  %v1873 = vadd.f32 0.0, %v1872
  %1874 = vmatprep.mubr.bf16.mxu0 0
  %1875 = vmatmul.mubr.bf16.gmra.mrb[0].mxu0 %v1810
  %v1876 = vpop.f32.mrb[0].mxu0
  %v1877 = vadd.f32 0.0, %v1876
  %v1878 = vpop.f32.mrb[0].mxu0
  %v1879 = vadd.f32 0.0, %v1878
  %v1880 = vpop.f32.mrb[0].mxu0
  %v1881 = vadd.f32 0.0, %v1880
  %v1882 = vpop.f32.mrb[0].mxu0
  %v1883 = vadd.f32 0.0, %v1882
  %1884 = vdwg.mxu0
  %v1893 = vunpack.c.l.b16 %v1711
  %v1894 = vunpack.c.l.b16 %v1712
  %v1895 = vunpack.c.l.b16 %v1713
  %v1896 = vunpack.c.l.b16 %v1714
  %v1897 = vunpack.c.l.b16 %v1715
  %v1898 = vunpack.c.l.b16 %v1716
  %v1899 = vunpack.c.l.b16 %v1717
  %v1900 = vunpack.c.l.b16 %v1718
  %v1901 = vpack.c.b16 %v1894, %v1893
  %v1902 = vpack.c.b16 %v1896, %v1895
  %v1903 = vpack.c.b16 %v1898, %v1897
  %v1904 = vpack.c.b16 %v1900, %v1899
  %1905 = vrot.lane.b32.xlu0 %v1699, 11
  %v1906 = vpop.permute.xlu0 %1905
  %1907 = vrot.lane.b32.xlu0 %v1700, 11
  %v1908 = vpop.permute.xlu0 %1907
  %1909 = vrot.lane.b32.xlu0 %v1701, 11
  %v1910 = vpop.permute.xlu0 %1909
  %1911 = vrot.lane.b32.xlu0 %v1702, 11
  %v1912 = vpop.permute.xlu0 %1911
  %1913 = vrot.lane.b32.xlu0 %v1703, 11
  %v1914 = vpop.permute.xlu0 %1913
  %1915 = vrot.lane.b32.xlu0 %v1704, 11
  %v1916 = vpop.permute.xlu0 %1915
  %1917 = vrot.lane.b32.xlu0 %v1705, 11
  %v1918 = vpop.permute.xlu0 %1917
  %1919 = vrot.lane.b32.xlu0 %v1706, 11
  %v1920 = vpop.permute.xlu0 %1919
  %1921 = vrot.lane.b32.xlu0 %v1707, 11
  %v1922 = vpop.permute.xlu0 %1921
  %1923 = vrot.lane.b32.xlu0 %v1708, 11
  %v1924 = vpop.permute.xlu0 %1923
  %1925 = vrot.lane.b32.xlu0 %v1709, 11
  %v1926 = vpop.permute.xlu0 %1925
  %1927 = vrot.lane.b32.xlu0 %v1710, 11
  %v1928 = vpop.permute.xlu0 %1927
  %v1929 = vsel %vm301, %v1906, %v1908
  %v1930 = vsel %vm301, %v1908, %v1910
  %v1931 = vsel %vm301, %v1912, %v1914
  %v1932 = vsel %vm301, %v1914, %v1916
  %v1933 = vsel %vm301, %v1918, %v1920
  %v1934 = vsel %vm301, %v1920, %v1922
  %v1935 = vsel %vm301, %v1924, %v1926
  %v1936 = vsel %vm301, %v1926, %v1928
  %v1946 = vsel %vm171, %v1901, 0
  %v1949 = vsel %vm171, %v1902, 0
  %v1952 = vsel %vm171, %v1903, 0
  %v1955 = vsel %vm171, %v1904, 0
  %1957 = vmatprep.subr.bf16.mxu0 %v1930
  %1958 = vmatpush1.bf16.msra.mxu0 %v1929
  %1959 = vmatprep.subr.bf16.mxu0 %v1932
  %1960 = vmatpush1.bf16.msra.mxu0 %v1931
  %1961 = vmatprep.subr.bf16.mxu0 %v1934
  %1962 = vmatpush1.bf16.msra.mxu0 %v1933
  %1963 = vmatprep.subr.bf16.mxu0 %v1936
  %1964 = vmatpush1.bf16.msra.mxu0 %v1935
  %1965 = vmatprep.subr.bf16.mxu0 0
  %1966 = vmatpush1.bf16.msra.mxu0 0
  %1967 = vmatprep.subr.bf16.mxu0 0
  %1968 = vmatpush1.bf16.msra.mxu0 0
  %1969 = vmatprep.subr.bf16.mxu0 0
  %1970 = vmatpush1.bf16.msra.mxu0 0
  %1971 = vmatprep.subr.bf16.mxu0 0
  %1972 = vmatpush1.bf16.msra.mxu0 0
  %1973 = vmatprep.subr.bf16.mxu0 0
  %1974 = vmatpush1.bf16.msra.mxu0 0
  %1975 = vmatprep.subr.bf16.mxu0 0
  %1976 = vmatpush1.bf16.msra.mxu0 0
  %1977 = vmatprep.subr.bf16.mxu0 0
  %1978 = vmatpush1.bf16.msra.mxu0 0
  %1979 = vmatprep.subr.bf16.mxu0 0
  %1980 = vmatpush1.bf16.msra.mxu0 0
  %1981 = vmatprep.subr.bf16.mxu0 0
  %1982 = vmatpush1.bf16.msra.mxu0 0
  %1983 = vmatprep.subr.bf16.mxu0 0
  %1984 = vmatpush1.bf16.msra.mxu0 0
  %1985 = vmatprep.subr.bf16.mxu0 0
  %1986 = vmatpush1.bf16.msra.mxu0 0
  %1987 = vmatprep.subr.bf16.mxu0 0
  %1988 = vmatpush1.bf16.msra.mxu0 0
  %1989 = vmatprep.mubr.bf16.mxu0 0
  %1990 = vmatmul.mubr.bf16.gmra.mrb[0].mxu0 %v1946
  %v1991 = vpop.f32.mrb[0].mxu0
  %v1992 = vadd.f32 %v1847, %v1991
  %v1993 = vpop.f32.mrb[0].mxu0
  %v1994 = vadd.f32 %v1849, %v1993
  %v1995 = vpop.f32.mrb[0].mxu0
  %v1996 = vadd.f32 %v1851, %v1995
  %v1997 = vpop.f32.mrb[0].mxu0
  %v1998 = vadd.f32 %v1853, %v1997
  %1999 = vmatprep.mubr.bf16.mxu0 0
  %2000 = vmatmul.mubr.bf16.gmra.mrb[0].mxu0 %v1949
  %v2001 = vpop.f32.mrb[0].mxu0
  %v2002 = vadd.f32 %v1857, %v2001
  %v2003 = vpop.f32.mrb[0].mxu0
  %v2004 = vadd.f32 %v1859, %v2003
  %v2005 = vpop.f32.mrb[0].mxu0
  %v2006 = vadd.f32 %v1861, %v2005
  %v2007 = vpop.f32.mrb[0].mxu0
  %v2008 = vadd.f32 %v1863, %v2007
  %2009 = vmatprep.mubr.bf16.mxu0 0
  %2010 = vmatmul.mubr.bf16.gmra.mrb[0].mxu0 %v1952
  %v2011 = vpop.f32.mrb[0].mxu0
  %v2012 = vadd.f32 %v1867, %v2011
  %v2013 = vpop.f32.mrb[0].mxu0
  %v2014 = vadd.f32 %v1869, %v2013
  %v2015 = vpop.f32.mrb[0].mxu0
  %v2016 = vadd.f32 %v1871, %v2015
  %v2017 = vpop.f32.mrb[0].mxu0
  %v2018 = vadd.f32 %v1873, %v2017
  %2019 = vmatprep.mubr.bf16.mxu0 0
  %2020 = vmatmul.mubr.bf16.gmra.mrb[0].mxu0 %v1955
  %v2021 = vpop.f32.mrb[0].mxu0
  %v2022 = vadd.f32 %v1877, %v2021
  %v2023 = vpop.f32.mrb[0].mxu0
  %v2024 = vadd.f32 %v1879, %v2023
  %v2025 = vpop.f32.mrb[0].mxu0
  %v2026 = vadd.f32 %v1881, %v2025
  %v2027 = vpop.f32.mrb[0].mxu0
  %v2028 = vadd.f32 %v1883, %v2027
  %2029 = vdwg.mxu0
  %s2030 = scalar_lea.vmem %s3, 64
  %v2031 = vld [vmem:[%s2030] sm:$0xf]
  %v2032 = vld [vmem:[%s2030 + $0x4] sm:$0xf]
  %v2033 = vld [vmem:[%s2030 + $0x8] sm:$0xf]
  %v2034 = vld [vmem:[%s2030 + $0xc] sm:$0xf]
  %v2035 = vld [vmem:[%s2030 + $0x10] sm:$0xf]
  %v2036 = vld [vmem:[%s2030 + $0x14] sm:$0xf]
  %v2037 = vld [vmem:[%s2030 + $0x18] sm:$0xf]
  %v2038 = vld [vmem:[%s2030 + $0x1c] sm:$0xf]
  %v2047 = vunpack.c.l.b16 %v2031
  %v2048 = vunpack.c.l.b16 %v2032
  %v2049 = vunpack.c.l.b16 %v2033
  %v2050 = vunpack.c.l.b16 %v2034
  %v2051 = vunpack.c.l.b16 %v2035
  %v2052 = vunpack.c.l.b16 %v2036
  %v2053 = vunpack.c.l.b16 %v2037
  %v2054 = vunpack.c.l.b16 %v2038
  %v2055 = vpack.c.b16 %v2048, %v2047
  %v2056 = vpack.c.b16 %v2050, %v2049
  %v2057 = vpack.c.b16 %v2052, %v2051
  %v2058 = vpack.c.b16 %v2054, %v2053
  %2059 = vrot.lane.b32.xlu0 %v1699, 9
  %v2060 = vpop.permute.xlu0 %2059
  %2061 = vrot.lane.b32.xlu0 %v1700, 9
  %v2062 = vpop.permute.xlu0 %2061
  %2063 = vrot.lane.b32.xlu0 %v1701, 9
  %v2064 = vpop.permute.xlu0 %2063
  %2065 = vrot.lane.b32.xlu0 %v1702, 9
  %v2066 = vpop.permute.xlu0 %2065
  %2067 = vrot.lane.b32.xlu0 %v1703, 9
  %v2068 = vpop.permute.xlu0 %2067
  %2069 = vrot.lane.b32.xlu0 %v1704, 9
  %v2070 = vpop.permute.xlu0 %2069
  %2071 = vrot.lane.b32.xlu0 %v1705, 9
  %v2072 = vpop.permute.xlu0 %2071
  %2073 = vrot.lane.b32.xlu0 %v1706, 9
  %v2074 = vpop.permute.xlu0 %2073
  %2075 = vrot.lane.b32.xlu0 %v1707, 9
  %v2076 = vpop.permute.xlu0 %2075
  %2077 = vrot.lane.b32.xlu0 %v1708, 9
  %v2078 = vpop.permute.xlu0 %2077
  %2079 = vrot.lane.b32.xlu0 %v1709, 9
  %v2080 = vpop.permute.xlu0 %2079
  %2081 = vrot.lane.b32.xlu0 %v1710, 9
  %v2082 = vpop.permute.xlu0 %2081
  %v2083 = vsel %vm456, %v2060, %v2062
  %v2084 = vsel %vm456, %v2062, %v2064
  %v2085 = vsel %vm456, %v2066, %v2068
  %v2086 = vsel %vm456, %v2068, %v2070
  %v2087 = vsel %vm456, %v2072, %v2074
  %v2088 = vsel %vm456, %v2074, %v2076
  %v2089 = vsel %vm456, %v2078, %v2080
  %v2090 = vsel %vm456, %v2080, %v2082
  %v2100 = vsel %vm171, %v2055, 0
  %v2103 = vsel %vm171, %v2056, 0
  %v2106 = vsel %vm171, %v2057, 0
  %v2109 = vsel %vm171, %v2058, 0
  %2111 = vmatprep.subr.bf16.mxu0 %v2084
  %2112 = vmatpush1.bf16.msra.mxu0 %v2083
  %2113 = vmatprep.subr.bf16.mxu0 %v2086
  %2114 = vmatpush1.bf16.msra.mxu0 %v2085
  %2115 = vmatprep.subr.bf16.mxu0 %v2088
  %2116 = vmatpush1.bf16.msra.mxu0 %v2087
  %2117 = vmatprep.subr.bf16.mxu0 %v2090
  %2118 = vmatpush1.bf16.msra.mxu0 %v2089
  %2119 = vmatprep.subr.bf16.mxu0 0
  %2120 = vmatpush1.bf16.msra.mxu0 0
  %2121 = vmatprep.subr.bf16.mxu0 0
  %2122 = vmatpush1.bf16.msra.mxu0 0
  %2123 = vmatprep.subr.bf16.mxu0 0
  %2124 = vmatpush1.bf16.msra.mxu0 0
  %2125 = vmatprep.subr.bf16.mxu0 0
  %2126 = vmatpush1.bf16.msra.mxu0 0
  %2127 = vmatprep.subr.bf16.mxu0 0
  %2128 = vmatpush1.bf16.msra.mxu0 0
  %2129 = vmatprep.subr.bf16.mxu0 0
  %2130 = vmatpush1.bf16.msra.mxu0 0
  %2131 = vmatprep.subr.bf16.mxu0 0
  %2132 = vmatpush1.bf16.msra.mxu0 0
  %2133 = vmatprep.subr.bf16.mxu0 0
  %2134 = vmatpush1.bf16.msra.mxu0 0
  %2135 = vmatprep.subr.bf16.mxu0 0
  %2136 = vmatpush1.bf16.msra.mxu0 0
  %2137 = vmatprep.subr.bf16.mxu0 0
  %2138 = vmatpush1.bf16.msra.mxu0 0
  %2139 = vmatprep.subr.bf16.mxu0 0
  %2140 = vmatpush1.bf16.msra.mxu0 0
  %2141 = vmatprep.subr.bf16.mxu0 0
  %2142 = vmatpush1.bf16.msra.mxu0 0
  %2143 = vmatprep.mubr.bf16.mxu0 0
  %2144 = vmatmul.mubr.bf16.gmra.mrb[0].mxu0 %v2100
  %v2145 = vpop.f32.mrb[0].mxu0
  %v2146 = vadd.f32 0.0, %v2145
  %v2147 = vpop.f32.mrb[0].mxu0
  %v2148 = vadd.f32 0.0, %v2147
  %v2149 = vpop.f32.mrb[0].mxu0
  %v2150 = vadd.f32 0.0, %v2149
  %v2151 = vpop.f32.mrb[0].mxu0
  %v2152 = vadd.f32 0.0, %v2151
  %2153 = vmatprep.mubr.bf16.mxu0 0
  %2154 = vmatmul.mubr.bf16.gmra.mrb[0].mxu0 %v2103
  %v2155 = vpop.f32.mrb[0].mxu0
  %v2156 = vadd.f32 0.0, %v2155
  %v2157 = vpop.f32.mrb[0].mxu0
  %v2158 = vadd.f32 0.0, %v2157
  %v2159 = vpop.f32.mrb[0].mxu0
  %v2160 = vadd.f32 0.0, %v2159
  %v2161 = vpop.f32.mrb[0].mxu0
  %v2162 = vadd.f32 0.0, %v2161
  %2163 = vmatprep.mubr.bf16.mxu0 0
  %2164 = vmatmul.mubr.bf16.gmra.mrb[0].mxu0 %v2106
  %v2165 = vpop.f32.mrb[0].mxu0
  %v2166 = vadd.f32 0.0, %v2165
  %v2167 = vpop.f32.mrb[0].mxu0
  %v2168 = vadd.f32 0.0, %v2167
  %v2169 = vpop.f32.mrb[0].mxu0
  %v2170 = vadd.f32 0.0, %v2169
  %v2171 = vpop.f32.mrb[0].mxu0
  %v2172 = vadd.f32 0.0, %v2171
  %2173 = vmatprep.mubr.bf16.mxu0 0
  %2174 = vmatmul.mubr.bf16.gmra.mrb[0].mxu0 %v2109
  %v2175 = vpop.f32.mrb[0].mxu0
  %v2176 = vadd.f32 0.0, %v2175
  %v2177 = vpop.f32.mrb[0].mxu0
  %v2178 = vadd.f32 0.0, %v2177
  %v2179 = vpop.f32.mrb[0].mxu0
  %v2180 = vadd.f32 0.0, %v2179
  %v2181 = vpop.f32.mrb[0].mxu0
  %v2182 = vadd.f32 0.0, %v2181
  %2183 = vdwg.mxu0
  %v2184 = vadd.f32 %v1992, %v2146
  %v2185 = vadd.f32 %v1994, %v2148
  %v2186 = vadd.f32 %v1996, %v2150
  %v2187 = vadd.f32 %v1998, %v2152
  %v2188 = vadd.f32 %v2002, %v2156
  %v2189 = vadd.f32 %v2004, %v2158
  %v2190 = vadd.f32 %v2006, %v2160
  %v2191 = vadd.f32 %v2008, %v2162
  %v2192 = vadd.f32 %v2012, %v2166
  %v2193 = vadd.f32 %v2014, %v2168
  %v2194 = vadd.f32 %v2016, %v2170
  %v2195 = vadd.f32 %v2018, %v2172
  %v2196 = vadd.f32 %v2022, %v2176
  %v2197 = vadd.f32 %v2024, %v2178
  %v2198 = vadd.f32 %v2026, %v2180
  %v2199 = vadd.f32 %v2028, %v2182
  %s2200 = scalar_lea.vmem %s3, 96
  %v2201 = vld [vmem:[%s2200] sm:$0xf]
  %v2202 = vld [vmem:[%s2200 + $0x4] sm:$0xf]
  %v2203 = vld [vmem:[%s2200 + $0x8] sm:$0xf]
  %v2204 = vld [vmem:[%s2200 + $0xc] sm:$0xf]
  %v2205 = vld [vmem:[%s2200 + $0x10] sm:$0xf]
  %v2206 = vld [vmem:[%s2200 + $0x14] sm:$0xf]
  %v2207 = vld [vmem:[%s2200 + $0x18] sm:$0xf]
  %v2208 = vld [vmem:[%s2200 + $0x1c] sm:$0xf]
  %v2217 = vunpack.c.l.b16 %v2201
  %v2218 = vunpack.c.l.b16 %v2202
  %v2219 = vunpack.c.l.b16 %v2203
  %v2220 = vunpack.c.l.b16 %v2204
  %v2221 = vunpack.c.l.b16 %v2205
  %v2222 = vunpack.c.l.b16 %v2206
  %v2223 = vunpack.c.l.b16 %v2207
  %v2224 = vunpack.c.l.b16 %v2208
  %v2225 = vpack.c.b16 %v2218, %v2217
  %v2226 = vpack.c.b16 %v2220, %v2219
  %v2227 = vpack.c.b16 %v2222, %v2221
  %v2228 = vpack.c.b16 %v2224, %v2223
  %2229 = vrot.lane.b32.xlu0 %v1699, 1
  %v2230 = vpop.permute.xlu0 %2229
  %2231 = vrot.lane.b32.xlu0 %v1700, 1
  %v2232 = vpop.permute.xlu0 %2231
  %2233 = vrot.lane.b32.xlu0 %v1701, 1
  %v2234 = vpop.permute.xlu0 %2233
  %2235 = vrot.lane.b32.xlu0 %v1702, 1
  %v2236 = vpop.permute.xlu0 %2235
  %2237 = vrot.lane.b32.xlu0 %v1703, 1
  %v2238 = vpop.permute.xlu0 %2237
  %2239 = vrot.lane.b32.xlu0 %v1704, 1
  %v2240 = vpop.permute.xlu0 %2239
  %2241 = vrot.lane.b32.xlu0 %v1705, 1
  %v2242 = vpop.permute.xlu0 %2241
  %2243 = vrot.lane.b32.xlu0 %v1706, 1
  %v2244 = vpop.permute.xlu0 %2243
  %2245 = vrot.lane.b32.xlu0 %v1707, 1
  %v2246 = vpop.permute.xlu0 %2245
  %2247 = vrot.lane.b32.xlu0 %v1708, 1
  %v2248 = vpop.permute.xlu0 %2247
  %2249 = vrot.lane.b32.xlu0 %v1709, 1
  %v2250 = vpop.permute.xlu0 %2249
  %2251 = vrot.lane.b32.xlu0 %v1710, 1
  %v2252 = vpop.permute.xlu0 %2251
  %v2253 = vsel %vm627, %v2230, %v2232
  %v2254 = vsel %vm627, %v2232, %v2234
  %v2255 = vsel %vm627, %v2236, %v2238
  %v2256 = vsel %vm627, %v2238, %v2240
  %v2257 = vsel %vm627, %v2242, %v2244
  %v2258 = vsel %vm627, %v2244, %v2246
  %v2259 = vsel %vm627, %v2248, %v2250
  %v2260 = vsel %vm627, %v2250, %v2252
  %v2270 = vsel %vm171, %v2225, 0
  %v2273 = vsel %vm171, %v2226, 0
  %v2276 = vsel %vm171, %v2227, 0
  %v2279 = vsel %vm171, %v2228, 0
  %2281 = vmatprep.subr.bf16.mxu0 %v2254
  %2282 = vmatpush1.bf16.msra.mxu0 %v2253
  %2283 = vmatprep.subr.bf16.mxu0 %v2256
  %2284 = vmatpush1.bf16.msra.mxu0 %v2255
  %2285 = vmatprep.subr.bf16.mxu0 %v2258
  %2286 = vmatpush1.bf16.msra.mxu0 %v2257
  %2287 = vmatprep.subr.bf16.mxu0 %v2260
  %2288 = vmatpush1.bf16.msra.mxu0 %v2259
  %2289 = vmatprep.subr.bf16.mxu0 0
  %2290 = vmatpush1.bf16.msra.mxu0 0
  %2291 = vmatprep.subr.bf16.mxu0 0
  %2292 = vmatpush1.bf16.msra.mxu0 0
  %2293 = vmatprep.subr.bf16.mxu0 0
  %2294 = vmatpush1.bf16.msra.mxu0 0
  %2295 = vmatprep.subr.bf16.mxu0 0
  %2296 = vmatpush1.bf16.msra.mxu0 0
  %2297 = vmatprep.subr.bf16.mxu0 0
  %2298 = vmatpush1.bf16.msra.mxu0 0
  %2299 = vmatprep.subr.bf16.mxu0 0
  %2300 = vmatpush1.bf16.msra.mxu0 0
  %2301 = vmatprep.subr.bf16.mxu0 0
  %2302 = vmatpush1.bf16.msra.mxu0 0
  %2303 = vmatprep.subr.bf16.mxu0 0
  %2304 = vmatpush1.bf16.msra.mxu0 0
  %2305 = vmatprep.subr.bf16.mxu0 0
  %2306 = vmatpush1.bf16.msra.mxu0 0
  %2307 = vmatprep.subr.bf16.mxu0 0
  %2308 = vmatpush1.bf16.msra.mxu0 0
  %2309 = vmatprep.subr.bf16.mxu0 0
  %2310 = vmatpush1.bf16.msra.mxu0 0
  %2311 = vmatprep.subr.bf16.mxu0 0
  %2312 = vmatpush1.bf16.msra.mxu0 0
  %2313 = vmatprep.mubr.bf16.mxu0 0
  %2314 = vmatmul.mubr.bf16.gmra.mrb[0].mxu0 %v2270
  %v2315 = vpop.f32.mrb[0].mxu0
  %v2316 = vadd.f32 0.0, %v2315
  %v2317 = vpop.f32.mrb[0].mxu0
  %v2318 = vadd.f32 0.0, %v2317
  %v2319 = vpop.f32.mrb[0].mxu0
  %v2320 = vadd.f32 0.0, %v2319
  %v2321 = vpop.f32.mrb[0].mxu0
  %v2322 = vadd.f32 0.0, %v2321
  %2323 = vmatprep.mubr.bf16.mxu0 0
  %2324 = vmatmul.mubr.bf16.gmra.mrb[0].mxu0 %v2273
  %v2325 = vpop.f32.mrb[0].mxu0
  %v2326 = vadd.f32 0.0, %v2325
  %v2327 = vpop.f32.mrb[0].mxu0
  %v2328 = vadd.f32 0.0, %v2327
  %v2329 = vpop.f32.mrb[0].mxu0
  %v2330 = vadd.f32 0.0, %v2329
  %v2331 = vpop.f32.mrb[0].mxu0
  %v2332 = vadd.f32 0.0, %v2331
  %2333 = vmatprep.mubr.bf16.mxu0 0
  %2334 = vmatmul.mubr.bf16.gmra.mrb[0].mxu0 %v2276
  %v2335 = vpop.f32.mrb[0].mxu0
  %v2336 = vadd.f32 0.0, %v2335
  %v2337 = vpop.f32.mrb[0].mxu0
  %v2338 = vadd.f32 0.0, %v2337
  %v2339 = vpop.f32.mrb[0].mxu0
  %v2340 = vadd.f32 0.0, %v2339
  %v2341 = vpop.f32.mrb[0].mxu0
  %v2342 = vadd.f32 0.0, %v2341
  %2343 = vmatprep.mubr.bf16.mxu0 0
  %2344 = vmatmul.mubr.bf16.gmra.mrb[0].mxu0 %v2279
  %v2345 = vpop.f32.mrb[0].mxu0
  %v2346 = vadd.f32 0.0, %v2345
  %v2347 = vpop.f32.mrb[0].mxu0
  %v2348 = vadd.f32 0.0, %v2347
  %v2349 = vpop.f32.mrb[0].mxu0
  %v2350 = vadd.f32 0.0, %v2349
  %v2351 = vpop.f32.mrb[0].mxu0
  %v2352 = vadd.f32 0.0, %v2351
  %2353 = vdwg.mxu0
  %v2354 = vadd.f32 %v2184, %v2316
  %v2355 = vadd.f32 %v2185, %v2318
  %v2356 = vadd.f32 %v2186, %v2320
  %v2357 = vadd.f32 %v2187, %v2322
  %v2358 = vadd.f32 %v2188, %v2326
  %v2359 = vadd.f32 %v2189, %v2328
  %v2360 = vadd.f32 %v2190, %v2330
  %v2361 = vadd.f32 %v2191, %v2332
  %v2362 = vadd.f32 %v2192, %v2336
  %v2363 = vadd.f32 %v2193, %v2338
  %v2364 = vadd.f32 %v2194, %v2340
  %v2365 = vadd.f32 %v2195, %v2342
  %v2366 = vadd.f32 %v2196, %v2346
  %v2367 = vadd.f32 %v2197, %v2348
  %v2368 = vadd.f32 %v2198, %v2350
  %v2369 = vadd.f32 %v2199, %v2352
  %s2370 = scalar_lea.vmem %s3, 128
  %v2371 = vld [vmem:[%s2370] sm:$0xf]
  %v2372 = vld [vmem:[%s2370 + $0x4] sm:$0xf]
  %v2373 = vld [vmem:[%s2370 + $0x8] sm:$0xf]
  %v2374 = vld [vmem:[%s2370 + $0xc] sm:$0xf]
  %v2375 = vld [vmem:[%s2370 + $0x10] sm:$0xf]
  %v2376 = vld [vmem:[%s2370 + $0x14] sm:$0xf]
  %v2377 = vld [vmem:[%s2370 + $0x18] sm:$0xf]
  %v2378 = vld [vmem:[%s2370 + $0x1c] sm:$0xf]
  %v2387 = vunpack.c.l.b16 %v2371
  %v2388 = vunpack.c.l.b16 %v2372
  %v2389 = vunpack.c.l.b16 %v2373
  %v2390 = vunpack.c.l.b16 %v2374
  %v2391 = vunpack.c.l.b16 %v2375
  %v2392 = vunpack.c.l.b16 %v2376
  %v2393 = vunpack.c.l.b16 %v2377
  %v2394 = vunpack.c.l.b16 %v2378
  %v2395 = vpack.c.b16 %v2388, %v2387
  %v2396 = vpack.c.b16 %v2390, %v2389
  %v2397 = vpack.c.b16 %v2392, %v2391
  %v2398 = vpack.c.b16 %v2394, %v2393
  %v2400 = vsel %vm171, %v2395, 0
  %v2403 = vsel %vm171, %v2396, 0
  %v2406 = vsel %vm171, %v2397, 0
  %v2409 = vsel %vm171, %v2398, 0
  %2411 = vmatprep.subr.bf16.mxu0 %v1701
  %2412 = vmatpush1.bf16.msra.mxu0 %v1700
  %2413 = vmatprep.subr.bf16.mxu0 %v1704
  %2414 = vmatpush1.bf16.msra.mxu0 %v1703
  %2415 = vmatprep.subr.bf16.mxu0 %v1707
  %2416 = vmatpush1.bf16.msra.mxu0 %v1706
  %2417 = vmatprep.subr.bf16.mxu0 %v1710
  %2418 = vmatpush1.bf16.msra.mxu0 %v1709
  %2419 = vmatprep.subr.bf16.mxu0 0
  %2420 = vmatpush1.bf16.msra.mxu0 0
  %2421 = vmatprep.subr.bf16.mxu0 0
  %2422 = vmatpush1.bf16.msra.mxu0 0
  %2423 = vmatprep.subr.bf16.mxu0 0
  %2424 = vmatpush1.bf16.msra.mxu0 0
  %2425 = vmatprep.subr.bf16.mxu0 0
  %2426 = vmatpush1.bf16.msra.mxu0 0
  %2427 = vmatprep.subr.bf16.mxu0 0
  %2428 = vmatpush1.bf16.msra.mxu0 0
  %2429 = vmatprep.subr.bf16.mxu0 0
  %2430 = vmatpush1.bf16.msra.mxu0 0
  %2431 = vmatprep.subr.bf16.mxu0 0
  %2432 = vmatpush1.bf16.msra.mxu0 0
  %2433 = vmatprep.subr.bf16.mxu0 0
  %2434 = vmatpush1.bf16.msra.mxu0 0
  %2435 = vmatprep.subr.bf16.mxu0 0
  %2436 = vmatpush1.bf16.msra.mxu0 0
  %2437 = vmatprep.subr.bf16.mxu0 0
  %2438 = vmatpush1.bf16.msra.mxu0 0
  %2439 = vmatprep.subr.bf16.mxu0 0
  %2440 = vmatpush1.bf16.msra.mxu0 0
  %2441 = vmatprep.subr.bf16.mxu0 0
  %2442 = vmatpush1.bf16.msra.mxu0 0
  %2443 = vmatprep.mubr.bf16.mxu0 0
  %2444 = vmatmul.mubr.bf16.gmra.mrb[0].mxu0 %v2400
  %v2445 = vpop.f32.mrb[0].mxu0
  %v2446 = vadd.f32 0.0, %v2445
  %v2447 = vpop.f32.mrb[0].mxu0
  %v2448 = vadd.f32 0.0, %v2447
  %v2449 = vpop.f32.mrb[0].mxu0
  %v2450 = vadd.f32 0.0, %v2449
  %v2451 = vpop.f32.mrb[0].mxu0
  %v2452 = vadd.f32 0.0, %v2451
  %2453 = vmatprep.mubr.bf16.mxu0 0
  %2454 = vmatmul.mubr.bf16.gmra.mrb[0].mxu0 %v2403
  %v2455 = vpop.f32.mrb[0].mxu0
  %v2456 = vadd.f32 0.0, %v2455
  %v2457 = vpop.f32.mrb[0].mxu0
  %v2458 = vadd.f32 0.0, %v2457
  %v2459 = vpop.f32.mrb[0].mxu0
  %v2460 = vadd.f32 0.0, %v2459
  %v2461 = vpop.f32.mrb[0].mxu0
  %v2462 = vadd.f32 0.0, %v2461
  %2463 = vmatprep.mubr.bf16.mxu0 0
  %2464 = vmatmul.mubr.bf16.gmra.mrb[0].mxu0 %v2406
  %v2465 = vpop.f32.mrb[0].mxu0
  %v2466 = vadd.f32 0.0, %v2465
  %v2467 = vpop.f32.mrb[0].mxu0
  %v2468 = vadd.f32 0.0, %v2467
  %v2469 = vpop.f32.mrb[0].mxu0
  %v2470 = vadd.f32 0.0, %v2469
  %v2471 = vpop.f32.mrb[0].mxu0
  %v2472 = vadd.f32 0.0, %v2471
  %2473 = vmatprep.mubr.bf16.mxu0 0
  %2474 = vmatmul.mubr.bf16.gmra.mrb[0].mxu0 %v2409
  %v2475 = vpop.f32.mrb[0].mxu0
  %v2476 = vadd.f32 0.0, %v2475
  %v2477 = vpop.f32.mrb[0].mxu0
  %v2478 = vadd.f32 0.0, %v2477
  %v2479 = vpop.f32.mrb[0].mxu0
  %v2480 = vadd.f32 0.0, %v2479
  %v2481 = vpop.f32.mrb[0].mxu0
  %v2482 = vadd.f32 0.0, %v2481
  %2483 = vdwg.mxu0
  %v2484 = vadd.f32 %v2354, %v2446
  %v2485 = vadd.f32 %v2355, %v2448
  %v2486 = vadd.f32 %v2356, %v2450
  %v2487 = vadd.f32 %v2357, %v2452
  %v2488 = vadd.f32 %v2358, %v2456
  %v2489 = vadd.f32 %v2359, %v2458
  %v2490 = vadd.f32 %v2360, %v2460
  %v2491 = vadd.f32 %v2361, %v2462
  %v2492 = vadd.f32 %v2362, %v2466
  %v2493 = vadd.f32 %v2363, %v2468
  %v2494 = vadd.f32 %v2364, %v2470
  %v2495 = vadd.f32 %v2365, %v2472
  %v2496 = vadd.f32 %v2366, %v2476
  %v2497 = vadd.f32 %v2367, %v2478
  %v2498 = vadd.f32 %v2368, %v2480
  %v2499 = vadd.f32 %v2369, %v2482
  %s2500 = scalar_lea.vmem %s3, 160
  %v2501 = vld [vmem:[%s2500] sm:$0xf]
  %v2502 = vld [vmem:[%s2500 + $0x4] sm:$0xf]
  %v2503 = vld [vmem:[%s2500 + $0x8] sm:$0xf]
  %v2504 = vld [vmem:[%s2500 + $0xc] sm:$0xf]
  %v2505 = vld [vmem:[%s2500 + $0x10] sm:$0xf]
  %v2506 = vld [vmem:[%s2500 + $0x14] sm:$0xf]
  %v2507 = vld [vmem:[%s2500 + $0x18] sm:$0xf]
  %v2508 = vld [vmem:[%s2500 + $0x1c] sm:$0xf]
  %v2517 = vunpack.c.l.b16 %v2501
  %v2518 = vunpack.c.l.b16 %v2502
  %v2519 = vunpack.c.l.b16 %v2503
  %v2520 = vunpack.c.l.b16 %v2504
  %v2521 = vunpack.c.l.b16 %v2505
  %v2522 = vunpack.c.l.b16 %v2506
  %v2523 = vunpack.c.l.b16 %v2507
  %v2524 = vunpack.c.l.b16 %v2508
  %v2525 = vpack.c.b16 %v2518, %v2517
  %v2526 = vpack.c.b16 %v2520, %v2519
  %v2527 = vpack.c.b16 %v2522, %v2521
  %v2528 = vpack.c.b16 %v2524, %v2523
  %2529 = vrot.lane.b32.xlu0 %v1700, 127
  %v2530 = vpop.permute.xlu0 %2529
  %2531 = vrot.lane.b32.xlu0 %v1701, 127
  %v2532 = vpop.permute.xlu0 %2531
  %2533 = vrot.lane.b32.xlu0 %v1703, 127
  %v2534 = vpop.permute.xlu0 %2533
  %2535 = vrot.lane.b32.xlu0 %v1704, 127
  %v2536 = vpop.permute.xlu0 %2535
  %2537 = vrot.lane.b32.xlu0 %v1706, 127
  %v2538 = vpop.permute.xlu0 %2537
  %2539 = vrot.lane.b32.xlu0 %v1707, 127
  %v2540 = vpop.permute.xlu0 %2539
  %2541 = vrot.lane.b32.xlu0 %v1709, 127
  %v2542 = vpop.permute.xlu0 %2541
  %2543 = vrot.lane.b32.xlu0 %v1710, 127
  %v2544 = vpop.permute.xlu0 %2543
  %v2545 = vsel %vm968, %v2530, %v2532
  %v2546 = vsel %vm968, %v2534, %v2536
  %v2547 = vsel %vm968, %v2538, %v2540
  %v2548 = vsel %vm968, %v2542, %v2544
  %v2558 = vsel %vm171, %v2525, 0
  %v2561 = vsel %vm171, %v2526, 0
  %v2564 = vsel %vm171, %v2527, 0
  %v2567 = vsel %vm171, %v2528, 0
  %2569 = vmatprep.subr.bf16.mxu0 %v2532
  %2570 = vmatpush1.bf16.msra.mxu0 %v2545
  %2571 = vmatprep.subr.bf16.mxu0 %v2536
  %2572 = vmatpush1.bf16.msra.mxu0 %v2546
  %2573 = vmatprep.subr.bf16.mxu0 %v2540
  %2574 = vmatpush1.bf16.msra.mxu0 %v2547
  %2575 = vmatprep.subr.bf16.mxu0 %v2544
  %2576 = vmatpush1.bf16.msra.mxu0 %v2548
  %2577 = vmatprep.subr.bf16.mxu0 0
  %2578 = vmatpush1.bf16.msra.mxu0 0
  %2579 = vmatprep.subr.bf16.mxu0 0
  %2580 = vmatpush1.bf16.msra.mxu0 0
  %2581 = vmatprep.subr.bf16.mxu0 0
  %2582 = vmatpush1.bf16.msra.mxu0 0
  %2583 = vmatprep.subr.bf16.mxu0 0
  %2584 = vmatpush1.bf16.msra.mxu0 0
  %2585 = vmatprep.subr.bf16.mxu0 0
  %2586 = vmatpush1.bf16.msra.mxu0 0
  %2587 = vmatprep.subr.bf16.mxu0 0
  %2588 = vmatpush1.bf16.msra.mxu0 0
  %2589 = vmatprep.subr.bf16.mxu0 0
  %2590 = vmatpush1.bf16.msra.mxu0 0
  %2591 = vmatprep.subr.bf16.mxu0 0
  %2592 = vmatpush1.bf16.msra.mxu0 0
  %2593 = vmatprep.subr.bf16.mxu0 0
  %2594 = vmatpush1.bf16.msra.mxu0 0
  %2595 = vmatprep.subr.bf16.mxu0 0
  %2596 = vmatpush1.bf16.msra.mxu0 0
  %2597 = vmatprep.subr.bf16.mxu0 0
  %2598 = vmatpush1.bf16.msra.mxu0 0
  %2599 = vmatprep.subr.bf16.mxu0 0
  %2600 = vmatpush1.bf16.msra.mxu0 0
  %2601 = vmatprep.mubr.bf16.mxu0 0
  %2602 = vmatmul.mubr.bf16.gmra.mrb[0].mxu0 %v2558
  %v2603 = vpop.f32.mrb[0].mxu0
  %v2604 = vadd.f32 0.0, %v2603
  %v2605 = vpop.f32.mrb[0].mxu0
  %v2606 = vadd.f32 0.0, %v2605
  %v2607 = vpop.f32.mrb[0].mxu0
  %v2608 = vadd.f32 0.0, %v2607
  %v2609 = vpop.f32.mrb[0].mxu0
  %v2610 = vadd.f32 0.0, %v2609
  %2611 = vmatprep.mubr.bf16.mxu0 0
  %2612 = vmatmul.mubr.bf16.gmra.mrb[0].mxu0 %v2561
  %v2613 = vpop.f32.mrb[0].mxu0
  %v2614 = vadd.f32 0.0, %v2613
  %v2615 = vpop.f32.mrb[0].mxu0
  %v2616 = vadd.f32 0.0, %v2615
  %v2617 = vpop.f32.mrb[0].mxu0
  %v2618 = vadd.f32 0.0, %v2617
  %v2619 = vpop.f32.mrb[0].mxu0
  %v2620 = vadd.f32 0.0, %v2619
  %2621 = vmatprep.mubr.bf16.mxu0 0
  %2622 = vmatmul.mubr.bf16.gmra.mrb[0].mxu0 %v2564
  %v2623 = vpop.f32.mrb[0].mxu0
  %v2624 = vadd.f32 0.0, %v2623
  %v2625 = vpop.f32.mrb[0].mxu0
  %v2626 = vadd.f32 0.0, %v2625
  %v2627 = vpop.f32.mrb[0].mxu0
  %v2628 = vadd.f32 0.0, %v2627
  %v2629 = vpop.f32.mrb[0].mxu0
  %v2630 = vadd.f32 0.0, %v2629
  %2631 = vmatprep.mubr.bf16.mxu0 0
  %2632 = vmatmul.mubr.bf16.gmra.mrb[0].mxu0 %v2567
  %v2633 = vpop.f32.mrb[0].mxu0
  %v2634 = vadd.f32 0.0, %v2633
  %v2635 = vpop.f32.mrb[0].mxu0
  %v2636 = vadd.f32 0.0, %v2635
  %v2637 = vpop.f32.mrb[0].mxu0
  %v2638 = vadd.f32 0.0, %v2637
  %v2639 = vpop.f32.mrb[0].mxu0
  %v2640 = vadd.f32 0.0, %v2639
  %2641 = vdwg.mxu0
  %v2642 = vadd.f32 %v2484, %v2604
  %v2643 = vadd.f32 %v2485, %v2606
  %v2644 = vadd.f32 %v2486, %v2608
  %v2645 = vadd.f32 %v2487, %v2610
  %v2646 = vadd.f32 %v2488, %v2614
  %v2647 = vadd.f32 %v2489, %v2616
  %v2648 = vadd.f32 %v2490, %v2618
  %v2649 = vadd.f32 %v2491, %v2620
  %v2650 = vadd.f32 %v2492, %v2624
  %v2651 = vadd.f32 %v2493, %v2626
  %v2652 = vadd.f32 %v2494, %v2628
  %v2653 = vadd.f32 %v2495, %v2630
  %v2654 = vadd.f32 %v2496, %v2634
  %v2655 = vadd.f32 %v2497, %v2636
  %v2656 = vadd.f32 %v2498, %v2638
  %v2657 = vadd.f32 %v2499, %v2640
  %s2658 = scalar_lea.vmem %s3, 192
  %v2659 = vld [vmem:[%s2658] sm:$0xf]
  %v2660 = vld [vmem:[%s2658 + $0x4] sm:$0xf]
  %v2661 = vld [vmem:[%s2658 + $0x8] sm:$0xf]
  %v2662 = vld [vmem:[%s2658 + $0xc] sm:$0xf]
  %v2663 = vld [vmem:[%s2658 + $0x10] sm:$0xf]
  %v2664 = vld [vmem:[%s2658 + $0x14] sm:$0xf]
  %v2665 = vld [vmem:[%s2658 + $0x18] sm:$0xf]
  %v2666 = vld [vmem:[%s2658 + $0x1c] sm:$0xf]
  %v2675 = vunpack.c.l.b16 %v2659
  %v2676 = vunpack.c.l.b16 %v2660
  %v2677 = vunpack.c.l.b16 %v2661
  %v2678 = vunpack.c.l.b16 %v2662
  %v2679 = vunpack.c.l.b16 %v2663
  %v2680 = vunpack.c.l.b16 %v2664
  %v2681 = vunpack.c.l.b16 %v2665
  %v2682 = vunpack.c.l.b16 %v2666
  %v2683 = vpack.c.b16 %v2676, %v2675
  %v2684 = vpack.c.b16 %v2678, %v2677
  %v2685 = vpack.c.b16 %v2680, %v2679
  %v2686 = vpack.c.b16 %v2682, %v2681
  %2687 = vrot.lane.b32.xlu0 %v1700, 119
  %v2688 = vpop.permute.xlu0 %2687
  %2689 = vrot.lane.b32.xlu0 %v1701, 119
  %v2690 = vpop.permute.xlu0 %2689
  %2691 = vrot.lane.b32.xlu0 %v1703, 119
  %v2692 = vpop.permute.xlu0 %2691
  %2693 = vrot.lane.b32.xlu0 %v1704, 119
  %v2694 = vpop.permute.xlu0 %2693
  %2695 = vrot.lane.b32.xlu0 %v1706, 119
  %v2696 = vpop.permute.xlu0 %2695
  %2697 = vrot.lane.b32.xlu0 %v1707, 119
  %v2698 = vpop.permute.xlu0 %2697
  %2699 = vrot.lane.b32.xlu0 %v1709, 119
  %v2700 = vpop.permute.xlu0 %2699
  %2701 = vrot.lane.b32.xlu0 %v1710, 119
  %v2702 = vpop.permute.xlu0 %2701
  %v2703 = vsel %vm1127, %v2688, %v2690
  %v2704 = vsel %vm1127, %v2692, %v2694
  %v2705 = vsel %vm1127, %v2696, %v2698
  %v2706 = vsel %vm1127, %v2700, %v2702
  %v2716 = vsel %vm171, %v2683, 0
  %v2719 = vsel %vm171, %v2684, 0
  %v2722 = vsel %vm171, %v2685, 0
  %v2725 = vsel %vm171, %v2686, 0
  %2727 = vmatprep.subr.bf16.mxu0 %v2690
  %2728 = vmatpush1.bf16.msra.mxu0 %v2703
  %2729 = vmatprep.subr.bf16.mxu0 %v2694
  %2730 = vmatpush1.bf16.msra.mxu0 %v2704
  %2731 = vmatprep.subr.bf16.mxu0 %v2698
  %2732 = vmatpush1.bf16.msra.mxu0 %v2705
  %2733 = vmatprep.subr.bf16.mxu0 %v2702
  %2734 = vmatpush1.bf16.msra.mxu0 %v2706
  %2735 = vmatprep.subr.bf16.mxu0 0
  %2736 = vmatpush1.bf16.msra.mxu0 0
  %2737 = vmatprep.subr.bf16.mxu0 0
  %2738 = vmatpush1.bf16.msra.mxu0 0
  %2739 = vmatprep.subr.bf16.mxu0 0
  %2740 = vmatpush1.bf16.msra.mxu0 0
  %2741 = vmatprep.subr.bf16.mxu0 0
  %2742 = vmatpush1.bf16.msra.mxu0 0
  %2743 = vmatprep.subr.bf16.mxu0 0
  %2744 = vmatpush1.bf16.msra.mxu0 0
  %2745 = vmatprep.subr.bf16.mxu0 0
  %2746 = vmatpush1.bf16.msra.mxu0 0
  %2747 = vmatprep.subr.bf16.mxu0 0
  %2748 = vmatpush1.bf16.msra.mxu0 0
  %2749 = vmatprep.subr.bf16.mxu0 0
  %2750 = vmatpush1.bf16.msra.mxu0 0
  %2751 = vmatprep.subr.bf16.mxu0 0
  %2752 = vmatpush1.bf16.msra.mxu0 0
  %2753 = vmatprep.subr.bf16.mxu0 0
  %2754 = vmatpush1.bf16.msra.mxu0 0
  %2755 = vmatprep.subr.bf16.mxu0 0
  %2756 = vmatpush1.bf16.msra.mxu0 0
  %2757 = vmatprep.subr.bf16.mxu0 0
  %2758 = vmatpush1.bf16.msra.mxu0 0
  %2759 = vmatprep.mubr.bf16.mxu0 0
  %2760 = vmatmul.mubr.bf16.gmra.mrb[0].mxu0 %v2716
  %v2761 = vpop.f32.mrb[0].mxu0
  %v2762 = vadd.f32 0.0, %v2761
  %v2763 = vpop.f32.mrb[0].mxu0
  %v2764 = vadd.f32 0.0, %v2763
  %v2765 = vpop.f32.mrb[0].mxu0
  %v2766 = vadd.f32 0.0, %v2765
  %v2767 = vpop.f32.mrb[0].mxu0
  %v2768 = vadd.f32 0.0, %v2767
  %2769 = vmatprep.mubr.bf16.mxu0 0
  %2770 = vmatmul.mubr.bf16.gmra.mrb[0].mxu0 %v2719
  %v2771 = vpop.f32.mrb[0].mxu0
  %v2772 = vadd.f32 0.0, %v2771
  %v2773 = vpop.f32.mrb[0].mxu0
  %v2774 = vadd.f32 0.0, %v2773
  %v2775 = vpop.f32.mrb[0].mxu0
  %v2776 = vadd.f32 0.0, %v2775
  %v2777 = vpop.f32.mrb[0].mxu0
  %v2778 = vadd.f32 0.0, %v2777
  %2779 = vmatprep.mubr.bf16.mxu0 0
  %2780 = vmatmul.mubr.bf16.gmra.mrb[0].mxu0 %v2722
  %v2781 = vpop.f32.mrb[0].mxu0
  %v2782 = vadd.f32 0.0, %v2781
  %v2783 = vpop.f32.mrb[0].mxu0
  %v2784 = vadd.f32 0.0, %v2783
  %v2785 = vpop.f32.mrb[0].mxu0
  %v2786 = vadd.f32 0.0, %v2785
  %v2787 = vpop.f32.mrb[0].mxu0
  %v2788 = vadd.f32 0.0, %v2787
  %2789 = vmatprep.mubr.bf16.mxu0 0
  %2790 = vmatmul.mubr.bf16.gmra.mrb[0].mxu0 %v2725
  %v2791 = vpop.f32.mrb[0].mxu0
  %v2792 = vadd.f32 0.0, %v2791
  %v2793 = vpop.f32.mrb[0].mxu0
  %v2794 = vadd.f32 0.0, %v2793
  %v2795 = vpop.f32.mrb[0].mxu0
  %v2796 = vadd.f32 0.0, %v2795
  %v2797 = vpop.f32.mrb[0].mxu0
  %v2798 = vadd.f32 0.0, %v2797
  %2799 = vdwg.mxu0
  %v2800 = vadd.f32 %v2642, %v2762
  %v2801 = vadd.f32 %v2643, %v2764
  %v2802 = vadd.f32 %v2644, %v2766
  %v2803 = vadd.f32 %v2645, %v2768
  %v2804 = vadd.f32 %v2646, %v2772
  %v2805 = vadd.f32 %v2647, %v2774
  %v2806 = vadd.f32 %v2648, %v2776
  %v2807 = vadd.f32 %v2649, %v2778
  %v2808 = vadd.f32 %v2650, %v2782
  %v2809 = vadd.f32 %v2651, %v2784
  %v2810 = vadd.f32 %v2652, %v2786
  %v2811 = vadd.f32 %v2653, %v2788
  %v2812 = vadd.f32 %v2654, %v2792
  %v2813 = vadd.f32 %v2655, %v2794
  %v2814 = vadd.f32 %v2656, %v2796
  %v2815 = vadd.f32 %v2657, %v2798
  %s2816 = scalar_lea.vmem %s3, 224
  %v2817 = vld [vmem:[%s2816] sm:$0xf]
  %v2818 = vld [vmem:[%s2816 + $0x4] sm:$0xf]
  %v2819 = vld [vmem:[%s2816 + $0x8] sm:$0xf]
  %v2820 = vld [vmem:[%s2816 + $0xc] sm:$0xf]
  %v2821 = vld [vmem:[%s2816 + $0x10] sm:$0xf]
  %v2822 = vld [vmem:[%s2816 + $0x14] sm:$0xf]
  %v2823 = vld [vmem:[%s2816 + $0x18] sm:$0xf]
  %v2824 = vld [vmem:[%s2816 + $0x1c] sm:$0xf]
  %v2833 = vunpack.c.l.b16 %v2817
  %v2834 = vunpack.c.l.b16 %v2818
  %v2835 = vunpack.c.l.b16 %v2819
  %v2836 = vunpack.c.l.b16 %v2820
  %v2837 = vunpack.c.l.b16 %v2821
  %v2838 = vunpack.c.l.b16 %v2822
  %v2839 = vunpack.c.l.b16 %v2823
  %v2840 = vunpack.c.l.b16 %v2824
  %v2841 = vpack.c.b16 %v2834, %v2833
  %v2842 = vpack.c.b16 %v2836, %v2835
  %v2843 = vpack.c.b16 %v2838, %v2837
  %v2844 = vpack.c.b16 %v2840, %v2839
  %2845 = vrot.lane.b32.xlu0 %v1700, 118
  %v2846 = vpop.permute.xlu0 %2845
  %2847 = vrot.lane.b32.xlu0 %v1701, 118
  %v2848 = vpop.permute.xlu0 %2847
  %2849 = vrot.lane.b32.xlu0 %v1703, 118
  %v2850 = vpop.permute.xlu0 %2849
  %2851 = vrot.lane.b32.xlu0 %v1704, 118
  %v2852 = vpop.permute.xlu0 %2851
  %2853 = vrot.lane.b32.xlu0 %v1706, 118
  %v2854 = vpop.permute.xlu0 %2853
  %2855 = vrot.lane.b32.xlu0 %v1707, 118
  %v2856 = vpop.permute.xlu0 %2855
  %2857 = vrot.lane.b32.xlu0 %v1709, 118
  %v2858 = vpop.permute.xlu0 %2857
  %2859 = vrot.lane.b32.xlu0 %v1710, 118
  %v2860 = vpop.permute.xlu0 %2859
  %v2861 = vsel %vm1286, %v2846, %v2848
  %v2862 = vsel %vm1286, %v2850, %v2852
  %v2863 = vsel %vm1286, %v2854, %v2856
  %v2864 = vsel %vm1286, %v2858, %v2860
  %v2874 = vsel %vm171, %v2841, 0
  %v2877 = vsel %vm171, %v2842, 0
  %v2880 = vsel %vm171, %v2843, 0
  %v2883 = vsel %vm171, %v2844, 0
  %2885 = vmatprep.subr.bf16.mxu0 %v2848
  %2886 = vmatpush1.bf16.msra.mxu0 %v2861
  %2887 = vmatprep.subr.bf16.mxu0 %v2852
  %2888 = vmatpush1.bf16.msra.mxu0 %v2862
  %2889 = vmatprep.subr.bf16.mxu0 %v2856
  %2890 = vmatpush1.bf16.msra.mxu0 %v2863
  %2891 = vmatprep.subr.bf16.mxu0 %v2860
  %2892 = vmatpush1.bf16.msra.mxu0 %v2864
  %2893 = vmatprep.subr.bf16.mxu0 0
  %2894 = vmatpush1.bf16.msra.mxu0 0
  %2895 = vmatprep.subr.bf16.mxu0 0
  %2896 = vmatpush1.bf16.msra.mxu0 0
  %2897 = vmatprep.subr.bf16.mxu0 0
  %2898 = vmatpush1.bf16.msra.mxu0 0
  %2899 = vmatprep.subr.bf16.mxu0 0
  %2900 = vmatpush1.bf16.msra.mxu0 0
  %2901 = vmatprep.subr.bf16.mxu0 0
  %2902 = vmatpush1.bf16.msra.mxu0 0
  %2903 = vmatprep.subr.bf16.mxu0 0
  %2904 = vmatpush1.bf16.msra.mxu0 0
  %2905 = vmatprep.subr.bf16.mxu0 0
  %2906 = vmatpush1.bf16.msra.mxu0 0
  %2907 = vmatprep.subr.bf16.mxu0 0
  %2908 = vmatpush1.bf16.msra.mxu0 0
  %2909 = vmatprep.subr.bf16.mxu0 0
  %2910 = vmatpush1.bf16.msra.mxu0 0
  %2911 = vmatprep.subr.bf16.mxu0 0
  %2912 = vmatpush1.bf16.msra.mxu0 0
  %2913 = vmatprep.subr.bf16.mxu0 0
  %2914 = vmatpush1.bf16.msra.mxu0 0
  %2915 = vmatprep.subr.bf16.mxu0 0
  %2916 = vmatpush1.bf16.msra.mxu0 0
  %2917 = vmatprep.mubr.bf16.mxu0 0
  %2918 = vmatmul.mubr.bf16.gmra.mrb[0].mxu0 %v2874
  %v2919 = vpop.f32.mrb[0].mxu0
  %v2920 = vadd.f32 0.0, %v2919
  %v2921 = vpop.f32.mrb[0].mxu0
  %v2922 = vadd.f32 0.0, %v2921
  %v2923 = vpop.f32.mrb[0].mxu0
  %v2924 = vadd.f32 0.0, %v2923
  %v2925 = vpop.f32.mrb[0].mxu0
  %v2926 = vadd.f32 0.0, %v2925
  %2927 = vmatprep.mubr.bf16.mxu0 0
  %2928 = vmatmul.mubr.bf16.gmra.mrb[0].mxu0 %v2877
  %v2929 = vpop.f32.mrb[0].mxu0
  %v2930 = vadd.f32 0.0, %v2929
  %v2931 = vpop.f32.mrb[0].mxu0
  %v2932 = vadd.f32 0.0, %v2931
  %v2933 = vpop.f32.mrb[0].mxu0
  %v2934 = vadd.f32 0.0, %v2933
  %v2935 = vpop.f32.mrb[0].mxu0
  %v2936 = vadd.f32 0.0, %v2935
  %2937 = vmatprep.mubr.bf16.mxu0 0
  %2938 = vmatmul.mubr.bf16.gmra.mrb[0].mxu0 %v2880
  %v2939 = vpop.f32.mrb[0].mxu0
  %v2940 = vadd.f32 0.0, %v2939
  %v2941 = vpop.f32.mrb[0].mxu0
  %v2942 = vadd.f32 0.0, %v2941
  %v2943 = vpop.f32.mrb[0].mxu0
  %v2944 = vadd.f32 0.0, %v2943
  %v2945 = vpop.f32.mrb[0].mxu0
  %v2946 = vadd.f32 0.0, %v2945
  %2947 = vmatprep.mubr.bf16.mxu0 0
  %2948 = vmatmul.mubr.bf16.gmra.mrb[0].mxu0 %v2883
  %v2949 = vpop.f32.mrb[0].mxu0
  %v2950 = vadd.f32 0.0, %v2949
  %v2951 = vpop.f32.mrb[0].mxu0
  %v2952 = vadd.f32 0.0, %v2951
  %v2953 = vpop.f32.mrb[0].mxu0
  %v2954 = vadd.f32 0.0, %v2953
  %v2955 = vpop.f32.mrb[0].mxu0
  %v2956 = vadd.f32 0.0, %v2955
  %2957 = vdwg.mxu0
  %v2958 = vadd.f32 %v2800, %v2920
  %v2959 = vadd.f32 %v2801, %v2922
  %v2960 = vadd.f32 %v2802, %v2924
  %v2961 = vadd.f32 %v2803, %v2926
  %v2962 = vadd.f32 %v2804, %v2930
  %v2963 = vadd.f32 %v2805, %v2932
  %v2964 = vadd.f32 %v2806, %v2934
  %v2965 = vadd.f32 %v2807, %v2936
  %v2966 = vadd.f32 %v2808, %v2940
  %v2967 = vadd.f32 %v2809, %v2942
  %v2968 = vadd.f32 %v2810, %v2944
  %v2969 = vadd.f32 %v2811, %v2946
  %v2970 = vadd.f32 %v2812, %v2950
  %v2971 = vadd.f32 %v2813, %v2952
  %v2972 = vadd.f32 %v2814, %v2954
  %v2973 = vadd.f32 %v2815, %v2956
  %s2974 = scalar_lea.vmem %s3, 256
  %v2975 = vld [vmem:[%s2974] sm:$0xf]
  %v2976 = vld [vmem:[%s2974 + $0x4] sm:$0xf]
  %v2977 = vld [vmem:[%s2974 + $0x8] sm:$0xf]
  %v2978 = vld [vmem:[%s2974 + $0xc] sm:$0xf]
  %v2979 = vld [vmem:[%s2974 + $0x10] sm:$0xf]
  %v2980 = vld [vmem:[%s2974 + $0x14] sm:$0xf]
  %v2981 = vld [vmem:[%s2974 + $0x18] sm:$0xf]
  %v2982 = vld [vmem:[%s2974 + $0x1c] sm:$0xf]
  %v2991 = vunpack.c.l.b16 %v2975
  %v2992 = vunpack.c.l.b16 %v2976
  %v2993 = vunpack.c.l.b16 %v2977
  %v2994 = vunpack.c.l.b16 %v2978
  %v2995 = vunpack.c.l.b16 %v2979
  %v2996 = vunpack.c.l.b16 %v2980
  %v2997 = vunpack.c.l.b16 %v2981
  %v2998 = vunpack.c.l.b16 %v2982
  %v2999 = vpack.c.b16 %v2992, %v2991
  %v3000 = vpack.c.b16 %v2994, %v2993
  %v3001 = vpack.c.b16 %v2996, %v2995
  %v3002 = vpack.c.b16 %v2998, %v2997
  %3003 = vrot.lane.b32.xlu0 %v1700, 117
  %v3004 = vpop.permute.xlu0 %3003
  %3005 = vrot.lane.b32.xlu0 %v1701, 117
  %v3006 = vpop.permute.xlu0 %3005
  %3007 = vrot.lane.b32.xlu0 %v1703, 117
  %v3008 = vpop.permute.xlu0 %3007
  %3009 = vrot.lane.b32.xlu0 %v1704, 117
  %v3010 = vpop.permute.xlu0 %3009
  %3011 = vrot.lane.b32.xlu0 %v1706, 117
  %v3012 = vpop.permute.xlu0 %3011
  %3013 = vrot.lane.b32.xlu0 %v1707, 117
  %v3014 = vpop.permute.xlu0 %3013
  %3015 = vrot.lane.b32.xlu0 %v1709, 117
  %v3016 = vpop.permute.xlu0 %3015
  %3017 = vrot.lane.b32.xlu0 %v1710, 117
  %v3018 = vpop.permute.xlu0 %3017
  %v3019 = vsel %vm1445, %v3004, %v3006
  %v3020 = vsel %vm1445, %v3008, %v3010
  %v3021 = vsel %vm1445, %v3012, %v3014
  %v3022 = vsel %vm1445, %v3016, %v3018
  %v3032 = vsel %vm171, %v2999, 0
  %v3035 = vsel %vm171, %v3000, 0
  %v3038 = vsel %vm171, %v3001, 0
  %v3041 = vsel %vm171, %v3002, 0
  %3043 = vmatprep.subr.bf16.mxu0 %v3006
  %3044 = vmatpush1.bf16.msra.mxu0 %v3019
  %3045 = vmatprep.subr.bf16.mxu0 %v3010
  %3046 = vmatpush1.bf16.msra.mxu0 %v3020
  %3047 = vmatprep.subr.bf16.mxu0 %v3014
  %3048 = vmatpush1.bf16.msra.mxu0 %v3021
  %3049 = vmatprep.subr.bf16.mxu0 %v3018
  %3050 = vmatpush1.bf16.msra.mxu0 %v3022
  %3051 = vmatprep.subr.bf16.mxu0 0
  %3052 = vmatpush1.bf16.msra.mxu0 0
  %3053 = vmatprep.subr.bf16.mxu0 0
  %3054 = vmatpush1.bf16.msra.mxu0 0
  %3055 = vmatprep.subr.bf16.mxu0 0
  %3056 = vmatpush1.bf16.msra.mxu0 0
  %3057 = vmatprep.subr.bf16.mxu0 0
  %3058 = vmatpush1.bf16.msra.mxu0 0
  %3059 = vmatprep.subr.bf16.mxu0 0
  %3060 = vmatpush1.bf16.msra.mxu0 0
  %3061 = vmatprep.subr.bf16.mxu0 0
  %3062 = vmatpush1.bf16.msra.mxu0 0
  %3063 = vmatprep.subr.bf16.mxu0 0
  %3064 = vmatpush1.bf16.msra.mxu0 0
  %3065 = vmatprep.subr.bf16.mxu0 0
  %3066 = vmatpush1.bf16.msra.mxu0 0
  %3067 = vmatprep.subr.bf16.mxu0 0
  %3068 = vmatpush1.bf16.msra.mxu0 0
  %3069 = vmatprep.subr.bf16.mxu0 0
  %3070 = vmatpush1.bf16.msra.mxu0 0
  %3071 = vmatprep.subr.bf16.mxu0 0
  %3072 = vmatpush1.bf16.msra.mxu0 0
  %3073 = vmatprep.subr.bf16.mxu0 0
  %3074 = vmatpush1.bf16.msra.mxu0 0
  %3075 = vmatprep.mubr.bf16.mxu0 0
  %3076 = vmatmul.mubr.bf16.gmra.mrb[0].mxu0 %v3032
  %v3077 = vpop.f32.mrb[0].mxu0
  %v3078 = vadd.f32 0.0, %v3077
  %v3079 = vpop.f32.mrb[0].mxu0
  %v3080 = vadd.f32 0.0, %v3079
  %v3081 = vpop.f32.mrb[0].mxu0
  %v3082 = vadd.f32 0.0, %v3081
  %v3083 = vpop.f32.mrb[0].mxu0
  %v3084 = vadd.f32 0.0, %v3083
  %3085 = vmatprep.mubr.bf16.mxu0 0
  %3086 = vmatmul.mubr.bf16.gmra.mrb[0].mxu0 %v3035
  %v3087 = vpop.f32.mrb[0].mxu0
  %v3088 = vadd.f32 0.0, %v3087
  %v3089 = vpop.f32.mrb[0].mxu0
  %v3090 = vadd.f32 0.0, %v3089
  %v3091 = vpop.f32.mrb[0].mxu0
  %v3092 = vadd.f32 0.0, %v3091
  %v3093 = vpop.f32.mrb[0].mxu0
  %v3094 = vadd.f32 0.0, %v3093
  %3095 = vmatprep.mubr.bf16.mxu0 0
  %3096 = vmatmul.mubr.bf16.gmra.mrb[0].mxu0 %v3038
  %v3097 = vpop.f32.mrb[0].mxu0
  %v3098 = vadd.f32 0.0, %v3097
  %v3099 = vpop.f32.mrb[0].mxu0
  %v3100 = vadd.f32 0.0, %v3099
  %v3101 = vpop.f32.mrb[0].mxu0
  %v3102 = vadd.f32 0.0, %v3101
  %v3103 = vpop.f32.mrb[0].mxu0
  %v3104 = vadd.f32 0.0, %v3103
  %3105 = vmatprep.mubr.bf16.mxu0 0
  %3106 = vmatmul.mubr.bf16.gmra.mrb[0].mxu0 %v3041
  %v3107 = vpop.f32.mrb[0].mxu0
  %v3108 = vadd.f32 0.0, %v3107
  %v3109 = vpop.f32.mrb[0].mxu0
  %v3110 = vadd.f32 0.0, %v3109
  %v3111 = vpop.f32.mrb[0].mxu0
  %v3112 = vadd.f32 0.0, %v3111
  %v3113 = vpop.f32.mrb[0].mxu0
  %v3114 = vadd.f32 0.0, %v3113
  %3115 = vdwg.mxu0
  %v3116 = vadd.f32 %v2958, %v3078
  %v3117 = vadd.f32 %v2959, %v3080
  %v3118 = vadd.f32 %v2960, %v3082
  %v3119 = vadd.f32 %v2961, %v3084
  %v3120 = vadd.f32 %v2962, %v3088
  %v3121 = vadd.f32 %v2963, %v3090
  %v3122 = vadd.f32 %v2964, %v3092
  %v3123 = vadd.f32 %v2965, %v3094
  %v3124 = vadd.f32 %v2966, %v3098
  %v3125 = vadd.f32 %v2967, %v3100
  %v3126 = vadd.f32 %v2968, %v3102
  %v3127 = vadd.f32 %v2969, %v3104
  %v3128 = vadd.f32 %v2970, %v3108
  %v3129 = vadd.f32 %v2971, %v3110
  %v3130 = vadd.f32 %v2972, %v3112
  %v3131 = vadd.f32 %v2973, %v3114
  %v3132 = vld [vmem:[%s0 + $0x4] sm:$0xff]
  %v3133 = vld [vmem:[%s0 + $0x14] sm:$0xff]
  %v3134 = vld [vmem:[%s0 + $0x24] sm:$0xff]
  %v3135 = vld [vmem:[%s0 + $0x34] sm:$0xff]
  %v3136 = vld [vmem:[%s0 + $0x44] sm:$0xff]
  %v3137 = vld [vmem:[%s0 + $0x54] sm:$0xff]
  %v3138 = vld [vmem:[%s0 + $0x64] sm:$0xff]
  %v3139 = vld [vmem:[%s0 + $0x74] sm:$0xff]
  %v3140 = vunpack.c.l.bf16 %v3132
  %v3141 = vunpack.c.h.bf16 %v3132
  %v3142 = vunpack.c.l.bf16 %v3133
  %v3143 = vunpack.c.h.bf16 %v3133
  %v3144 = vunpack.c.l.bf16 %v3134
  %v3145 = vunpack.c.h.bf16 %v3134
  %v3146 = vunpack.c.l.bf16 %v3135
  %v3147 = vunpack.c.h.bf16 %v3135
  %v3148 = vunpack.c.l.bf16 %v3136
  %v3149 = vunpack.c.h.bf16 %v3136
  %v3150 = vunpack.c.l.bf16 %v3137
  %v3151 = vunpack.c.h.bf16 %v3137
  %v3152 = vunpack.c.l.bf16 %v3138
  %v3153 = vunpack.c.h.bf16 %v3138
  %v3154 = vunpack.c.l.bf16 %v3139
  %v3155 = vunpack.c.h.bf16 %v3139
  %v3156 = vld [vmem:[%s4] sm:$0xff]
  %v3157 = vld [vmem:[%s4 + $0x8] sm:$0xff]
  %v3158 = vld [vmem:[%s4 + $0x10] sm:$0xff]
  %v3159 = vld [vmem:[%s4 + $0x18] sm:$0xff]
  %v3160 = vld [vmem:[%s4 + $0x20] sm:$0xff]
  %v3161 = vld [vmem:[%s4 + $0x28] sm:$0xff]
  %v3162 = vld [vmem:[%s4 + $0x30] sm:$0xff]
  %v3163 = vld [vmem:[%s4 + $0x38] sm:$0xff]
  %3165 = vset.pattern.permute.xlu0 0
  %3166 = vperm.xlu0 %3165, %v3156
  %v3167 = vpop.permute.xlu0 %3166
  %3170 = vset.pattern.permute.xlu0 0
  %3171 = vperm.xlu0 %3170, %v3157
  %v3172 = vpop.permute.xlu0 %3171
  %3175 = vset.pattern.permute.xlu0 0
  %3176 = vperm.xlu0 %3175, %v3158
  %v3177 = vpop.permute.xlu0 %3176
  %3180 = vset.pattern.permute.xlu0 0
  %3181 = vperm.xlu0 %3180, %v3159
  %v3182 = vpop.permute.xlu0 %3181
  %3185 = vset.pattern.permute.xlu0 0
  %3186 = vperm.xlu0 %3185, %v3160
  %v3187 = vpop.permute.xlu0 %3186
  %3190 = vset.pattern.permute.xlu0 0
  %3191 = vperm.xlu0 %3190, %v3161
  %v3192 = vpop.permute.xlu0 %3191
  %3195 = vset.pattern.permute.xlu0 0
  %3196 = vperm.xlu0 %3195, %v3162
  %v3197 = vpop.permute.xlu0 %3196
  %3200 = vset.pattern.permute.xlu0 0
  %3201 = vperm.xlu0 %3200, %v3163
  %v3202 = vpop.permute.xlu0 %3201
  %v3204 = vadd.f32 %v3116, %v3167
  %v3205 = vadd.f32 %v3117, %v3167
  %v3206 = vadd.f32 %v3118, %v3172
  %v3207 = vadd.f32 %v3119, %v3172
  %v3208 = vadd.f32 %v3120, %v3177
  %v3209 = vadd.f32 %v3121, %v3177
  %v3210 = vadd.f32 %v3122, %v3182
  %v3211 = vadd.f32 %v3123, %v3182
  %v3212 = vadd.f32 %v3124, %v3187
  %v3213 = vadd.f32 %v3125, %v3187
  %v3214 = vadd.f32 %v3126, %v3192
  %v3215 = vadd.f32 %v3127, %v3192
  %v3216 = vadd.f32 %v3128, %v3197
  %v3217 = vadd.f32 %v3129, %v3197
  %v3218 = vadd.f32 %v3130, %v3202
  %v3219 = vadd.f32 %v3131, %v3202
  %v3220 = vadd.f32 %v3204, %v3140
  %v3221 = vadd.f32 %v3205, %v3141
  %v3222 = vadd.f32 %v3206, %v3142
  %v3223 = vadd.f32 %v3207, %v3143
  %v3224 = vadd.f32 %v3208, %v3144
  %v3225 = vadd.f32 %v3209, %v3145
  %v3226 = vadd.f32 %v3210, %v3146
  %v3227 = vadd.f32 %v3211, %v3147
  %v3228 = vadd.f32 %v3212, %v3148
  %v3229 = vadd.f32 %v3213, %v3149
  %v3230 = vadd.f32 %v3214, %v3150
  %v3231 = vadd.f32 %v3215, %v3151
  %v3232 = vadd.f32 %v3216, %v3152
  %v3233 = vadd.f32 %v3217, %v3153
  %v3234 = vadd.f32 %v3218, %v3154
  %v3235 = vadd.f32 %v3219, %v3155
  %v3236 = vmax.f32 %v3220, 0.0
  %v3237 = vmax.f32 %v3221, 0.0
  %v3238 = vmax.f32 %v3222, 0.0
  %v3239 = vmax.f32 %v3223, 0.0
  %v3240 = vmax.f32 %v3224, 0.0
  %v3241 = vmax.f32 %v3225, 0.0
  %v3242 = vmax.f32 %v3226, 0.0
  %v3243 = vmax.f32 %v3227, 0.0
  %v3244 = vmax.f32 %v3228, 0.0
  %v3245 = vmax.f32 %v3229, 0.0
  %v3246 = vmax.f32 %v3230, 0.0
  %v3247 = vmax.f32 %v3231, 0.0
  %v3248 = vmax.f32 %v3232, 0.0
  %v3249 = vmax.f32 %v3233, 0.0
  %v3250 = vmax.f32 %v3234, 0.0
  %v3251 = vmax.f32 %v3235, 0.0
  %v3252 = vmul.f32 %v3236, %v1643
  %v3253 = vmul.f32 %v3237, %v1647
  %v3254 = vmul.f32 %v3238, %v1643
  %v3255 = vmul.f32 %v3239, %v1647
  %v3256 = vmul.f32 %v3240, %v1643
  %v3257 = vmul.f32 %v3241, %v1647
  %v3258 = vmul.f32 %v3242, %v1643
  %v3259 = vmul.f32 %v3243, %v1647
  %v3260 = vmul.f32 %v3244, %v1643
  %v3261 = vmul.f32 %v3245, %v1647
  %v3262 = vmul.f32 %v3246, %v1643
  %v3263 = vmul.f32 %v3247, %v1647
  %v3264 = vmul.f32 %v3248, %v1643
  %v3265 = vmul.f32 %v3249, %v1647
  %v3266 = vmul.f32 %v3250, %v1643
  %v3267 = vmul.f32 %v3251, %v1647
  %3268 = vst [vmem:[%s6] sm:$0xff] 0
  %vm3269 = vcmask 1043456
  %vm3270 = vcmask 588804
  %vm3271 = vmor %vm3270, %vm3269
  %3272 = vst.msk [vmem:[%s6 + $0x8] sm:$0xff] %vm3271, 0
  %3273 = vst [vmem:[%s6 + $0x10] sm:$0xff] 0
  %3274 = vst.msk [vmem:[%s6 + $0x18] sm:$0xff] %vm3271, 0
  %3275 = vst [vmem:[%s6 + $0x20] sm:$0xff] 0
  %3276 = vst.msk [vmem:[%s6 + $0x28] sm:$0xff] %vm3271, 0
  %3277 = vst [vmem:[%s6 + $0x30] sm:$0xff] 0
  %3278 = vst.msk [vmem:[%s6 + $0x38] sm:$0xff] %vm3271, 0
  %3279 = vst [vmem:[%s6 + $0x40] sm:$0xff] 0
  %3280 = vst.msk [vmem:[%s6 + $0x48] sm:$0xff] %vm3271, 0
  %3281 = vst [vmem:[%s6 + $0x50] sm:$0xff] 0
  %3282 = vst.msk [vmem:[%s6 + $0x58] sm:$0xff] %vm3271, 0
  %3283 = vst [vmem:[%s6 + $0x60] sm:$0xff] 0
  %3284 = vst.msk [vmem:[%s6 + $0x68] sm:$0xff] %vm3271, 0
  %3285 = vst [vmem:[%s6 + $0x70] sm:$0xff] 0
  %3286 = vst.msk [vmem:[%s6 + $0x78] sm:$0xff] %vm3271, 0
  %v3287 = vpack.c.bf16 %v3254, %v3252
  %v3288 = vpack.c.bf16 %v3255, %v3253
  %v3289 = vpack.c.bf16 %v3258, %v3256
  %v3290 = vpack.c.bf16 %v3259, %v3257
  %v3291 = vpack.c.bf16 %v3262, %v3260
  %v3292 = vpack.c.bf16 %v3263, %v3261
  %v3293 = vpack.c.bf16 %v3266, %v3264
  %v3294 = vpack.c.bf16 %v3267, %v3265
  %v3303 = vunpack.c.l.b16 %v3287
  %v3304 = vunpack.c.l.b16 %v3288
  %v3305 = vunpack.c.h.b16 %v3287
  %v3306 = vunpack.c.h.b16 %v3288
  %v3307 = vunpack.c.l.b16 %v3289
  %v3308 = vunpack.c.l.b16 %v3290
  %v3309 = vunpack.c.h.b16 %v3289
  %v3310 = vunpack.c.h.b16 %v3290
  %v3311 = vunpack.c.l.b16 %v3291
  %v3312 = vunpack.c.l.b16 %v3292
  %v3313 = vunpack.c.h.b16 %v3291
  %v3314 = vunpack.c.h.b16 %v3292
  %v3315 = vunpack.c.l.b16 %v3293
  %v3316 = vunpack.c.l.b16 %v3294
  %v3317 = vunpack.c.h.b16 %v3293
  %v3318 = vunpack.c.h.b16 %v3294
  %v3319 = vpack.c.b16 %v3304, %v3303
  %v3320 = vpack.c.b16 %v3306, %v3305
  %v3321 = vpack.c.b16 %v3308, %v3307
  %v3322 = vpack.c.b16 %v3310, %v3309
  %v3323 = vpack.c.b16 %v3312, %v3311
  %v3324 = vpack.c.b16 %v3314, %v3313
  %v3325 = vpack.c.b16 %v3316, %v3315
  %v3326 = vpack.c.b16 %v3318, %v3317
  %3335 = vst.msk [vmem:[%s6 + $0x4] sm:$0xff] %vm3271, %v3319
  %3336 = vst.msk [vmem:[%s6 + $0x14] sm:$0xff] %vm3271, %v3320
  %3337 = vst.msk [vmem:[%s6 + $0x24] sm:$0xff] %vm3271, %v3321
  %3338 = vst.msk [vmem:[%s6 + $0x34] sm:$0xff] %vm3271, %v3322
  %3339 = vst.msk [vmem:[%s6 + $0x44] sm:$0xff] %vm3271, %v3323
  %3340 = vst.msk [vmem:[%s6 + $0x54] sm:$0xff] %vm3271, %v3324
  %3341 = vst.msk [vmem:[%s6 + $0x64] sm:$0xff] %vm3271, %v3325
  %3342 = vst.msk [vmem:[%s6 + $0x74] sm:$0xff] %vm3271, %v3326
  // Predicated region
  $region26: #{forward.4} parent=0 // pred_check
    _
  $region27: #{forward.4} parent=0 // pred_check_branch
    %3344 = sbr.rel (0) target = $region29
  $region28: #{forward.4} parent=0 // pred_region
    _
  $region29: #{forward.4} parent=0 // pred_fallthru
    _
  // Predicated region
  $region30: #{forward.4} parent=0 // pred_check
    _
  $region31: #{forward.4} parent=0 // pred_check_branch
    %3346 = sbr.rel (0) target = $region33
  $region32: #{forward.4} parent=0 // pred_region
    _
  $region33: #{forward.4} parent=0 // pred_fallthru
    _

// kernel: forward.5
$region0: #{forward.5}
  #allocation0 [shape = 'u32[]', space=smem, size = 0x4, offset = 0x4, fixed_abs, tag = 'smem constant byte address 0x4 - core index']
  #allocation1 [shape = 'u32[144,128]{1,0:T(1,128)}', space=vmem, size = 0x12000, scoped, tag = 'internal scratch']
  #allocation2 [shape = 'bf16[64,456]{1,0:T(16,128)(2,1)}', space=vmem, size = 0x10000, scoped, tag = 'scratch operand']
  #allocation3 [shape = 'bf16[64,456]{1,0:T(16,128)(2,1)}', space=vmem, size = 0x10000, scoped, tag = 'scratch operand']
  %s0 = inlined_call_operand.vmem [shape: bf16[64,456], index: 0, kind: input, shape index: {}]
  %s1 = inlined_call_operand.vmem [shape: bf16[3,9,64,64], index: 1, kind: input, shape index: {}]
  %s2 = inlined_call_operand.vmem [shape: f32[3,64,1], index: 2, kind: input, shape index: {}]
  %s3 = inlined_call_operand.vmem [shape: bf16[3,9,64,64], index: 3, kind: input, shape index: {}]
  %s4 = inlined_call_operand.vmem [shape: f32[3,64,1], index: 4, kind: input, shape index: {}]
  %s5 = inlined_call_operand.vmem [shape: bf16[3,9,8,64], index: 5, kind: input, shape index: {}]
  %s6 = inlined_call_operand.vmem [shape: f32[1,200], index: 6, kind: input, shape index: {}]
  %s7 = inlined_call_operand.vmem [shape: f32[3,8,456], index: 7, kind: output, shape index: {}]
  %s8 = sld [smem:[#allocation0]]
  $region61: #{forward.5} parent=0
    _
  %s10 = ssub.s32 1, %s8
  %s11 = scalar_select 0, %s10, %s8
  loop: start=0, step=1, limit=5
  $region2: #{forward.5} parent=0 // loop_pre_header
    _
  $region3: #{forward.5} parent=0 // loop_header
    %s13 = sphi 0, %s17
    %p14 = scmp.ge.s32.totalorder %s13, 5
    %s21 = sphi 0, %s21
    %s23 = sphi 0, %s21
    %s24 = sphi 0, %s23
    %s38 = sphi 0, %s24
    %s44 = sphi 0, %s46
    %s47 = sphi 0, %s44
    %s48 = sphi 0, %s47
    %s64 = sphi 0, %s48
    %s70 = sphi 0, %s72
    %s73 = sphi 0, %s70
    %s74 = sphi 0, %s73
    %s90 = sphi 0, %s74
    %s96 = sphi 0, %s98
    %s99 = sphi 0, %s96
    %s100 = sphi 0, %s99
    %s116 = sphi 0, %s100
    %s122 = sphi 0, %s124
    %s125 = sphi 0, %s122
    %s126 = sphi 0, %s125
    %s142 = sphi 0, %s126
    %s148 = sphi 0, %s150
    %s151 = sphi 0, %s148
    %s152 = sphi 0, %s151
    %s168 = sphi 0, %s152
    %s172 = sphi 0, %s172
    %s174 = sphi 0, %s172
    %s175 = sphi 0, %s174
    %s189 = sphi 0, %s175
    %s195 = sphi 0, %s197
    %s198 = sphi 0, %s195
    %s199 = sphi 0, %s198
    %s215 = sphi 0, %s199
  $region4: #{forward.5} parent=0 // loop_header_branch
    %16 = sbr.rel (%p14) target = $region8
  $region5: #{forward.5} parent=0 // loop_body
    %s18 = ssub.s32 %s13, 1
    %s19 = ssub.s32 %s13, 2
    %s20 = sadd.s32 %s13, 1
    %s22 = sadd.s32 %s21, 1
    %p25 = scmp.eq.s32.totalorder %s13, 2
    %p26 = scmp.ne.s32.totalorder %s21, %s23
    %p27 = scmp.eq.s32.totalorder %s13, 0
    %p28 = por %p26, %p27
    %p29 = scmp.ne.s32.totalorder %s21, %s23
    %p30 = scmp.eq.s32.totalorder %s18, 2
    %p31 = por %p29, %p30
    %p32 = scmp.ne.s32.totalorder %s23, %s24
    %p33 = scmp.eq.s32.totalorder %s18, 0
    %p34 = por %p32, %p33
    %p35 = scmp.ne.s32.totalorder %s23, %s24
    %p36 = scmp.eq.s32.totalorder %s19, 2
    %p37 = por %p35, %p36
    %p39 = scmp.ne.s32.totalorder %s24, %s38
    %p40 = scmp.eq.s32.totalorder %s19, 0
    %p41 = por %p39, %p40
    %s42 = ssub.s32 %s13, %s20
    %p43 = scmp.eq.s32.totalorder %s42, 0
    %s45 = sadd.s32 %s44, 1
    %s46 = scalar_select %p43, %s44, %s45
    %p49 = pneg %p43
    %p50 = scmp.eq.s32.totalorder %s13, 2
    %p51 = por %p49, %p50
    %p52 = scmp.ne.s32.totalorder %s44, %s47
    %p53 = scmp.eq.s32.totalorder %s13, 0
    %p54 = por %p52, %p53
    %p55 = scmp.ne.s32.totalorder %s44, %s47
    %p56 = scmp.eq.s32.totalorder %s18, 2
    %p57 = por %p55, %p56
    %p58 = scmp.ne.s32.totalorder %s47, %s48
    %p59 = scmp.eq.s32.totalorder %s18, 0
    %p60 = por %p58, %p59
    %p61 = scmp.ne.s32.totalorder %s47, %s48
    %p62 = scmp.eq.s32.totalorder %s19, 2
    %p63 = por %p61, %p62
    %p65 = scmp.ne.s32.totalorder %s48, %s64
    %p66 = scmp.eq.s32.totalorder %s19, 0
    %p67 = por %p65, %p66
    %s68 = ssub.s32 %s13, %s20
    %p69 = scmp.eq.s32.totalorder %s68, 0
    %s71 = sadd.s32 %s70, 1
    %s72 = scalar_select %p69, %s70, %s71
    %p75 = pneg %p69
    %p76 = scmp.eq.s32.totalorder %s13, 2
    %p77 = por %p75, %p76
    %p78 = scmp.ne.s32.totalorder %s70, %s73
    %p79 = scmp.eq.s32.totalorder %s13, 0
    %p80 = por %p78, %p79
    %p81 = scmp.ne.s32.totalorder %s70, %s73
    %p82 = scmp.eq.s32.totalorder %s18, 2
    %p83 = por %p81, %p82
    %p84 = scmp.ne.s32.totalorder %s73, %s74
    %p85 = scmp.eq.s32.totalorder %s18, 0
    %p86 = por %p84, %p85
    %p87 = scmp.ne.s32.totalorder %s73, %s74
    %p88 = scmp.eq.s32.totalorder %s19, 2
    %p89 = por %p87, %p88
    %p91 = scmp.ne.s32.totalorder %s74, %s90
    %p92 = scmp.eq.s32.totalorder %s19, 0
    %p93 = por %p91, %p92
    %s94 = ssub.s32 %s13, %s20
    %p95 = scmp.eq.s32.totalorder %s94, 0
    %s97 = sadd.s32 %s96, 1
    %s98 = scalar_select %p95, %s96, %s97
    %p101 = pneg %p95
    %p102 = scmp.eq.s32.totalorder %s13, 2
    %p103 = por %p101, %p102
    %p104 = scmp.ne.s32.totalorder %s96, %s99
    %p105 = scmp.eq.s32.totalorder %s13, 0
    %p106 = por %p104, %p105
    %p107 = scmp.ne.s32.totalorder %s96, %s99
    %p108 = scmp.eq.s32.totalorder %s18, 2
    %p109 = por %p107, %p108
    %p110 = scmp.ne.s32.totalorder %s99, %s100
    %p111 = scmp.eq.s32.totalorder %s18, 0
    %p112 = por %p110, %p111
    %p113 = scmp.ne.s32.totalorder %s99, %s100
    %p114 = scmp.eq.s32.totalorder %s19, 2
    %p115 = por %p113, %p114
    %p117 = scmp.ne.s32.totalorder %s100, %s116
    %p118 = scmp.eq.s32.totalorder %s19, 0
    %p119 = por %p117, %p118
    %s120 = ssub.s32 %s13, %s20
    %p121 = scmp.eq.s32.totalorder %s120, 0
    %s123 = sadd.s32 %s122, 1
    %s124 = scalar_select %p121, %s122, %s123
    %p127 = pneg %p121
    %p128 = scmp.eq.s32.totalorder %s13, 2
    %p129 = por %p127, %p128
    %p130 = scmp.ne.s32.totalorder %s122, %s125
    %p131 = scmp.eq.s32.totalorder %s13, 0
    %p132 = por %p130, %p131
    %p133 = scmp.ne.s32.totalorder %s122, %s125
    %p134 = scmp.eq.s32.totalorder %s18, 2
    %p135 = por %p133, %p134
    %p136 = scmp.ne.s32.totalorder %s125, %s126
    %p137 = scmp.eq.s32.totalorder %s18, 0
    %p138 = por %p136, %p137
    %p139 = scmp.ne.s32.totalorder %s125, %s126
    %p140 = scmp.eq.s32.totalorder %s19, 2
    %p141 = por %p139, %p140
    %p143 = scmp.ne.s32.totalorder %s126, %s142
    %p144 = scmp.eq.s32.totalorder %s19, 0
    %p145 = por %p143, %p144
    %s146 = ssub.s32 %s13, %s20
    %p147 = scmp.eq.s32.totalorder %s146, 0
    %s149 = sadd.s32 %s148, 1
    %s150 = scalar_select %p147, %s148, %s149
    %p153 = pneg %p147
    %p154 = scmp.eq.s32.totalorder %s13, 2
    %p155 = por %p153, %p154
    %p156 = scmp.ne.s32.totalorder %s148, %s151
    %p157 = scmp.eq.s32.totalorder %s13, 0
    %p158 = por %p156, %p157
    %p159 = scmp.ne.s32.totalorder %s148, %s151
    %p160 = scmp.eq.s32.totalorder %s18, 2
    %p161 = por %p159, %p160
    %p162 = scmp.ne.s32.totalorder %s151, %s152
    %p163 = scmp.eq.s32.totalorder %s18, 0
    %p164 = por %p162, %p163
    %p165 = scmp.ne.s32.totalorder %s151, %s152
    %p166 = scmp.eq.s32.totalorder %s19, 2
    %p167 = por %p165, %p166
    %p169 = scmp.ne.s32.totalorder %s152, %s168
    %p170 = scmp.eq.s32.totalorder %s19, 0
    %p171 = por %p169, %p170
    %s173 = sadd.s32 %s172, 1
    %p176 = scmp.eq.s32.totalorder %s13, 2
    %p177 = scmp.ne.s32.totalorder %s172, %s174
    %p178 = scmp.eq.s32.totalorder %s13, 0
    %p179 = por %p177, %p178
    %p180 = scmp.ne.s32.totalorder %s172, %s174
    %p181 = scmp.eq.s32.totalorder %s18, 2
    %p182 = por %p180, %p181
    %p183 = scmp.ne.s32.totalorder %s174, %s175
    %p184 = scmp.eq.s32.totalorder %s18, 0
    %p185 = por %p183, %p184
    %p186 = scmp.ne.s32.totalorder %s174, %s175
    %p187 = scmp.eq.s32.totalorder %s19, 2
    %p188 = por %p186, %p187
    %p190 = scmp.ne.s32.totalorder %s175, %s189
    %p191 = scmp.eq.s32.totalorder %s19, 0
    %p192 = por %p190, %p191
    %s193 = ssub.s32 %s13, %s20
    %p194 = scmp.eq.s32.totalorder %s193, 0
    %s196 = sadd.s32 %s195, 1
    %s197 = scalar_select %p194, %s195, %s196
    %p200 = pneg %p194
    %p201 = scmp.eq.s32.totalorder %s13, 2
    %p202 = por %p200, %p201
    %p203 = scmp.ne.s32.totalorder %s195, %s198
    %p204 = scmp.eq.s32.totalorder %s13, 0
    %p205 = por %p203, %p204
    %p206 = scmp.ne.s32.totalorder %s195, %s198
    %p207 = scmp.eq.s32.totalorder %s18, 2
    %p208 = por %p206, %p207
    %p209 = scmp.ne.s32.totalorder %s198, %s199
    %p210 = scmp.eq.s32.totalorder %s18, 0
    %p211 = por %p209, %p210
    %p212 = scmp.ne.s32.totalorder %s198, %s199
    %p213 = scmp.eq.s32.totalorder %s19, 2
    %p214 = por %p212, %p213
    %p216 = scmp.ne.s32.totalorder %s199, %s215
    %p217 = scmp.eq.s32.totalorder %s19, 0
    %p218 = por %p216, %p217
    %p219 = scmp.le.s32.totalorder 1, %s13
    %p220 = scmp.lt.s32.totalorder %s13, 4
    %p221 = pnand %p219, %p220
    %p222 = pneg %p221
    // Predicated region
    $region9: #{forward.5} parent=5 // pred_check
      _
    $region10: #{forward.5} parent=5 // pred_check_branch
      %224 = sbr.rel (%p221) target = $region12
    $region11: #{forward.5} parent=5 // pred_region
      %s225 = ssub.s32 %s13, 1
      // Predicated region
      $region13: #{forward.5} parent=11 // pred_check
        %p226 = pneg %p34
      $region14: #{forward.5} parent=11 // pred_check_branch
        %228 = sbr.rel (%p226) target = $region16
      $region15: #{forward.5} parent=11 // pred_region
        _
      $region16: #{forward.5} parent=11 // pred_fallthru
        _
      // Predicated region
      $region17: #{forward.5} parent=11 // pred_check
        %p229 = pneg %p185
      $region18: #{forward.5} parent=11 // pred_check_branch
        %231 = sbr.rel (%p229) target = $region20
      $region19: #{forward.5} parent=11 // pred_region
        _
      $region20: #{forward.5} parent=11 // pred_fallthru
        _
    $region12: #{forward.5} parent=5 // pred_fallthru
      _
    %p232 = scmp.lt.s32.totalorder %s13, 3
    // Predicated region
    $region21: #{forward.5} parent=5 // pred_check
      %p233 = pneg %p232
    $region22: #{forward.5} parent=5 // pred_check_branch
      %235 = sbr.rel (%p233) target = $region24
    $region23: #{forward.5} parent=5 // pred_region
      // Predicated region
      $region25: #{forward.5} parent=23 // pred_check
        %p236 = pneg %p54
      $region26: #{forward.5} parent=23 // pred_check_branch
        %238 = sbr.rel (%p236) target = $region28
      $region27: #{forward.5} parent=23 // pred_region
        %p239 = scmp.lt.s32.totalorder %s13, 2
        %s240 = scalar_select %p239, %s13, 2
        %s241 = smul.addr %s240, 72
        %s242 = smul.addr %s241, 4
        %s243 = scalar_lea.vmem %s1, %s242
      $region28: #{forward.5} parent=23 // pred_fallthru
        _
      // Predicated region
      $region29: #{forward.5} parent=23 // pred_check
        %p244 = pneg %p80
      $region30: #{forward.5} parent=23 // pred_check_branch
        %246 = sbr.rel (%p244) target = $region32
      $region31: #{forward.5} parent=23 // pred_region
        %p247 = scmp.lt.s32.totalorder %s13, 2
        %s248 = scalar_select %p247, %s13, 2
        %s249 = smul.addr %s248, 8
        %s250 = smul.addr %s249, 8
        %s251 = scalar_lea.vmem %s2, %s250
      $region32: #{forward.5} parent=23 // pred_fallthru
        _
      // Predicated region
      $region33: #{forward.5} parent=23 // pred_check
        %p252 = pneg %p106
      $region34: #{forward.5} parent=23 // pred_check_branch
        %254 = sbr.rel (%p252) target = $region36
      $region35: #{forward.5} parent=23 // pred_region
        %p255 = scmp.lt.s32.totalorder %s13, 2
        %s256 = scalar_select %p255, %s13, 2
        %s257 = smul.addr %s256, 72
        %s258 = smul.addr %s257, 4
        %s259 = scalar_lea.vmem %s3, %s258
      $region36: #{forward.5} parent=23 // pred_fallthru
        _
      // Predicated region
      $region37: #{forward.5} parent=23 // pred_check
        %p260 = pneg %p132
      $region38: #{forward.5} parent=23 // pred_check_branch
        %262 = sbr.rel (%p260) target = $region40
      $region39: #{forward.5} parent=23 // pred_region
        %p263 = scmp.lt.s32.totalorder %s13, 2
        %s264 = scalar_select %p263, %s13, 2
        %s265 = smul.addr %s264, 8
        %s266 = smul.addr %s265, 8
        %s267 = scalar_lea.vmem %s4, %s266
      $region40: #{forward.5} parent=23 // pred_fallthru
        _
      // Predicated region
      $region41: #{forward.5} parent=23 // pred_check
        %p268 = pneg %p158
      $region42: #{forward.5} parent=23 // pred_check_branch
        %270 = sbr.rel (%p268) target = $region44
      $region43: #{forward.5} parent=23 // pred_region
        %p271 = scmp.lt.s32.totalorder %s13, 2
        %s272 = scalar_select %p271, %s13, 2
        %s273 = smul.addr %s272, 9
        %s274 = smul.addr %s273, 4
        %s275 = scalar_lea.vmem %s5, %s274
      $region44: #{forward.5} parent=23 // pred_fallthru
        _
    $region24: #{forward.5} parent=5 // pred_fallthru
      _
    %p276 = scmp.le.s32.totalorder 1, %s13
    %p277 = scmp.lt.s32.totalorder %s13, 4
    %p278 = pnand %p276, %p277
    %p279 = pneg %p278
    // Predicated region
    $region45: #{forward.5} parent=5 // pred_check
      _
    $region46: #{forward.5} parent=5 // pred_check_branch
      %281 = sbr.rel (%p278) target = $region48
    $region47: #{forward.5} parent=5 // pred_region
      %s282 = ssub.s32 %s13, 1
      %p283 = pneg %p34
      %p284 = pneg %p31
      %p285 = scmp.lt.s32.totalorder %s18, 2
      %s286 = scalar_select %p285, %s18, 2
      %s287 = smul.addr %s286, 72
      %s288 = smul.addr %s287, 4
      %s289 = scalar_lea.vmem %s1, %s288
      %p290 = pneg %p60
      %p291 = pneg %p57
      %p292 = scmp.lt.s32.totalorder %s18, 2
      %s293 = scalar_select %p292, %s18, 2
      %s294 = smul.addr %s293, 8
      %s295 = smul.addr %s294, 8
      %s296 = scalar_lea.vmem %s2, %s295
      %p297 = pneg %p86
      %p298 = pneg %p83
      %p299 = scmp.lt.s32.totalorder %s18, 2
      %s300 = scalar_select %p299, %s18, 2
      %s301 = smul.addr %s300, 72
      %s302 = smul.addr %s301, 4
      %s303 = scalar_lea.vmem %s3, %s302
      %p304 = pneg %p112
      %p305 = pneg %p109
      %p306 = scmp.lt.s32.totalorder %s18, 2
      %s307 = scalar_select %p306, %s18, 2
      %s308 = smul.addr %s307, 8
      %s309 = smul.addr %s308, 8
      %s310 = scalar_lea.vmem %s4, %s309
      %p311 = pneg %p138
      %p312 = pneg %p135
      %p313 = scmp.lt.s32.totalorder %s18, 2
      %s314 = scalar_select %p313, %s18, 2
      %s315 = smul.addr %s314, 9
      %s316 = smul.addr %s315, 4
      %s317 = scalar_lea.vmem %s5, %s316
      %p318 = pneg %p164
      %p319 = pneg %p161
      %p320 = pneg %p185
      %p321 = pneg %p182
      %p322 = pneg %p211
      %p323 = pneg %p208
      %p324 = scmp.lt.s32.totalorder %s18, 2
      %s325 = scalar_select %p324, %s18, 2
      %s326 = smul.addr %s325, 4
      %s327 = smul.addr %s326, 8
      %s328 = scalar_lea.vmem %s7, %s327
      %p329 = scmp.lt.s32.totalorder %s18, 2
      %s330 = scalar_select %p329, %s18, 2
      %s331 = smul.addr %s330, 72
      %s332 = smul.addr %s331, 4
      %s333 = scalar_lea.vmem %s1, %s332
      %p334 = scmp.lt.s32.totalorder %s18, 2
      %s335 = scalar_select %p334, %s18, 2
      %s336 = smul.addr %s335, 8
      %s337 = smul.addr %s336, 8
      %s338 = scalar_lea.vmem %s2, %s337
      %p339 = scmp.lt.s32.totalorder %s18, 2
      %s340 = scalar_select %p339, %s18, 2
      %s341 = smul.addr %s340, 72
      %s342 = smul.addr %s341, 4
      %s343 = scalar_lea.vmem %s3, %s342
      %p344 = scmp.lt.s32.totalorder %s18, 2
      %s345 = scalar_select %p344, %s18, 2
      %s346 = smul.addr %s345, 8
      %s347 = smul.addr %s346, 8
      %s348 = scalar_lea.vmem %s4, %s347
      %p349 = scmp.lt.s32.totalorder %s18, 2
      %s350 = scalar_select %p349, %s18, 2
      %s351 = smul.addr %s350, 9
      %s352 = smul.addr %s351, 4
      %s353 = scalar_lea.vmem %s5, %s352
      %p354 = scmp.lt.s32.totalorder %s18, 2
      %s355 = scalar_select %p354, %s18, 2
      %s356 = smul.addr %s355, 4
      %s357 = smul.addr %s356, 8
      %s358 = scalar_lea.vmem %s7, %s357
      %v360 = vld [vmem:[%s6] sm:$0x3]
      %v361 = vld [vmem:[%s0] sm:$0xff]
      %v362 = vld [vmem:[%s0 + $0x8] sm:$0xf]
      %v363 = vld [vmem:[%s0 + $0x10] sm:$0xff]
      %v364 = vld [vmem:[%s0 + $0x18] sm:$0xf]
      %v365 = vld [vmem:[%s0 + $0x20] sm:$0xff]
      %v366 = vld [vmem:[%s0 + $0x28] sm:$0xf]
      %v367 = vld [vmem:[%s0 + $0x30] sm:$0xff]
      %v368 = vld [vmem:[%s0 + $0x38] sm:$0xf]
      %v369 = vld [vmem:[%s0 + $0x40] sm:$0xff]
      %v370 = vld [vmem:[%s0 + $0x48] sm:$0xf]
      %v371 = vld [vmem:[%s0 + $0x50] sm:$0xff]
      %v372 = vld [vmem:[%s0 + $0x58] sm:$0xf]
      %v373 = vld [vmem:[%s0 + $0x60] sm:$0xff]
      %v374 = vld [vmem:[%s0 + $0x68] sm:$0xf]
      %v375 = vld [vmem:[%s0 + $0x70] sm:$0xff]
      %v376 = vld [vmem:[%s0 + $0x78] sm:$0xf]
      %v377 = vld [vmem:[%s333] sm:$0xf]
      %v378 = vld [vmem:[%s333 + $0x4] sm:$0xf]
      %v379 = vld [vmem:[%s333 + $0x8] sm:$0xf]
      %v380 = vld [vmem:[%s333 + $0xc] sm:$0xf]
      %v381 = vld [vmem:[%s333 + $0x10] sm:$0xf]
      %v382 = vld [vmem:[%s333 + $0x14] sm:$0xf]
      %v383 = vld [vmem:[%s333 + $0x18] sm:$0xf]
      %v384 = vld [vmem:[%s333 + $0x1c] sm:$0xf]
      %s385 = scalar_lea.vmem %s333, 32
      %v386 = vld [vmem:[%s385] sm:$0xf]
      %v387 = vld [vmem:[%s385 + $0x4] sm:$0xf]
      %v388 = vld [vmem:[%s385 + $0x8] sm:$0xf]
      %v389 = vld [vmem:[%s385 + $0xc] sm:$0xf]
      %v390 = vld [vmem:[%s385 + $0x10] sm:$0xf]
      %v391 = vld [vmem:[%s385 + $0x14] sm:$0xf]
      %v392 = vld [vmem:[%s385 + $0x18] sm:$0xf]
      %v393 = vld [vmem:[%s385 + $0x1c] sm:$0xf]
      %v402 = vunpack.c.l.b16 %v386
      %v403 = vunpack.c.l.b16 %v387
      %v404 = vunpack.c.l.b16 %v388
      %v405 = vunpack.c.l.b16 %v389
      %v406 = vunpack.c.l.b16 %v390
      %v407 = vunpack.c.l.b16 %v391
      %v408 = vunpack.c.l.b16 %v392
      %v409 = vunpack.c.l.b16 %v393
      %v410 = vpack.c.b16 %v403, %v402
      %v411 = vpack.c.b16 %v405, %v404
      %v412 = vpack.c.b16 %v407, %v406
      %v413 = vpack.c.b16 %v409, %v408
      %v430 = vunpack.c.l.b16 %v361
      %v431 = vunpack.c.h.b16 %v361
      %v432 = vunpack.c.l.b16 %v362
      %v433 = vunpack.c.l.b16 %v363
      %v434 = vunpack.c.h.b16 %v363
      %v435 = vunpack.c.l.b16 %v364
      %v436 = vunpack.c.l.b16 %v365
      %v437 = vunpack.c.h.b16 %v365
      %v438 = vunpack.c.l.b16 %v366
      %v439 = vunpack.c.l.b16 %v367
      %v440 = vunpack.c.h.b16 %v367
      %v441 = vunpack.c.l.b16 %v368
      %v442 = vunpack.c.l.b16 %v369
      %v443 = vunpack.c.h.b16 %v369
      %v444 = vunpack.c.l.b16 %v370
      %v445 = vunpack.c.l.b16 %v371
      %v446 = vunpack.c.h.b16 %v371
      %v447 = vunpack.c.l.b16 %v372
      %v448 = vunpack.c.l.b16 %v373
      %v449 = vunpack.c.h.b16 %v373
      %v450 = vunpack.c.l.b16 %v374
      %v451 = vunpack.c.l.b16 %v375
      %v452 = vunpack.c.h.b16 %v375
      %v453 = vunpack.c.l.b16 %v376
      %v454 = vpack.c.b16 %v433, %v430
      %v455 = vpack.c.b16 %v434, %v431
      %v456 = vpack.c.b16 %v435, %v432
      %v457 = vpack.c.b16 %v439, %v436
      %v458 = vpack.c.b16 %v440, %v437
      %v459 = vpack.c.b16 %v441, %v438
      %v460 = vpack.c.b16 %v445, %v442
      %v461 = vpack.c.b16 %v446, %v443
      %v462 = vpack.c.b16 %v447, %v444
      %v463 = vpack.c.b16 %v451, %v448
      %v464 = vpack.c.b16 %v452, %v449
      %v465 = vpack.c.b16 %v453, %v450
      %466 = vrot.lane.b32.xlu0 %v454, 10
      %v467 = vpop.permute.xlu0 %466
      %468 = vrot.lane.b32.xlu0 %v455, 10
      %v469 = vpop.permute.xlu0 %468
      %470 = vrot.lane.b32.xlu0 %v456, 10
      %v471 = vpop.permute.xlu0 %470
      %472 = vrot.lane.b32.xlu0 %v457, 10
      %v473 = vpop.permute.xlu0 %472
      %474 = vrot.lane.b32.xlu0 %v458, 10
      %v475 = vpop.permute.xlu0 %474
      %476 = vrot.lane.b32.xlu0 %v459, 10
      %v477 = vpop.permute.xlu0 %476
      %478 = vrot.lane.b32.xlu0 %v460, 10
      %v479 = vpop.permute.xlu0 %478
      %480 = vrot.lane.b32.xlu0 %v461, 10
      %v481 = vpop.permute.xlu0 %480
      %482 = vrot.lane.b32.xlu0 %v462, 10
      %v483 = vpop.permute.xlu0 %482
      %484 = vrot.lane.b32.xlu0 %v463, 10
      %v485 = vpop.permute.xlu0 %484
      %486 = vrot.lane.b32.xlu0 %v464, 10
      %v487 = vpop.permute.xlu0 %486
      %488 = vrot.lane.b32.xlu0 %v465, 10
      %v489 = vpop.permute.xlu0 %488
      %vm490 = vcmask 80896
      %v491 = vsel %vm490, %v467, %v469
      %v492 = vsel %vm490, %v469, %v471
      %v493 = vsel %vm490, %v473, %v475
      %v494 = vsel %vm490, %v475, %v477
      %v495 = vsel %vm490, %v479, %v481
      %v496 = vsel %vm490, %v481, %v483
      %v497 = vsel %vm490, %v485, %v487
      %v498 = vsel %vm490, %v487, %v489
      %vm507 = vcmask 523264
      %v509 = vsel %vm507, %v410, 0
      %v512 = vsel %vm507, %v411, 0
      %v515 = vsel %vm507, %v412, 0
      %v518 = vsel %vm507, %v413, 0
      %520 = vmatprep.subr.bf16.mxu0 %v492
      %521 = vmatpush1.bf16.msra.mxu0 %v491
      %522 = vmatprep.subr.bf16.mxu0 %v494
      %523 = vmatpush1.bf16.msra.mxu0 %v493
      %524 = vmatprep.subr.bf16.mxu0 %v496
      %525 = vmatpush1.bf16.msra.mxu0 %v495
      %526 = vmatprep.subr.bf16.mxu0 %v498
      %527 = vmatpush1.bf16.msra.mxu0 %v497
      %528 = vmatprep.subr.bf16.mxu0 0
      %529 = vmatpush1.bf16.msra.mxu0 0
      %530 = vmatprep.subr.bf16.mxu0 0
      %531 = vmatpush1.bf16.msra.mxu0 0
      %532 = vmatprep.subr.bf16.mxu0 0
      %533 = vmatpush1.bf16.msra.mxu0 0
      %534 = vmatprep.subr.bf16.mxu0 0
      %535 = vmatpush1.bf16.msra.mxu0 0
      %536 = vmatprep.subr.bf16.mxu0 0
      %537 = vmatpush1.bf16.msra.mxu0 0
      %538 = vmatprep.subr.bf16.mxu0 0
      %539 = vmatpush1.bf16.msra.mxu0 0
      %540 = vmatprep.subr.bf16.mxu0 0
      %541 = vmatpush1.bf16.msra.mxu0 0
      %542 = vmatprep.subr.bf16.mxu0 0
      %543 = vmatpush1.bf16.msra.mxu0 0
      %544 = vmatprep.subr.bf16.mxu0 0
      %545 = vmatpush1.bf16.msra.mxu0 0
      %546 = vmatprep.subr.bf16.mxu0 0
      %547 = vmatpush1.bf16.msra.mxu0 0
      %548 = vmatprep.subr.bf16.mxu0 0
      %549 = vmatpush1.bf16.msra.mxu0 0
      %550 = vmatprep.subr.bf16.mxu0 0
      %551 = vmatpush1.bf16.msra.mxu0 0
      %552 = vmatprep.mubr.bf16.mxu0 0
      %553 = vmatmul.mubr.bf16.gmra.mrb[0].mxu0 %v509
      %v554 = vpop.f32.mrb[0].mxu0
      %v555 = vadd.f32 0.0, %v554
      %v556 = vpop.f32.mrb[0].mxu0
      %v557 = vadd.f32 0.0, %v556
      %v558 = vpop.f32.mrb[0].mxu0
      %v559 = vadd.f32 0.0, %v558
      %v560 = vpop.f32.mrb[0].mxu0
      %v561 = vadd.f32 0.0, %v560
      %562 = vmatprep.mubr.bf16.mxu0 0
      %563 = vmatmul.mubr.bf16.gmra.mrb[0].mxu0 %v512
      %v564 = vpop.f32.mrb[0].mxu0
      %v565 = vadd.f32 0.0, %v564
      %v566 = vpop.f32.mrb[0].mxu0
      %v567 = vadd.f32 0.0, %v566
      %v568 = vpop.f32.mrb[0].mxu0
      %v569 = vadd.f32 0.0, %v568
      %v570 = vpop.f32.mrb[0].mxu0
      %v571 = vadd.f32 0.0, %v570
      %572 = vmatprep.mubr.bf16.mxu0 0
      %573 = vmatmul.mubr.bf16.gmra.mrb[0].mxu0 %v515
      %v574 = vpop.f32.mrb[0].mxu0
      %v575 = vadd.f32 0.0, %v574
      %v576 = vpop.f32.mrb[0].mxu0
      %v577 = vadd.f32 0.0, %v576
      %v578 = vpop.f32.mrb[0].mxu0
      %v579 = vadd.f32 0.0, %v578
      %v580 = vpop.f32.mrb[0].mxu0
      %v581 = vadd.f32 0.0, %v580
      %582 = vmatprep.mubr.bf16.mxu0 0
      %583 = vmatmul.mubr.bf16.gmra.mrb[0].mxu0 %v518
      %v584 = vpop.f32.mrb[0].mxu0
      %v585 = vadd.f32 0.0, %v584
      %v586 = vpop.f32.mrb[0].mxu0
      %v587 = vadd.f32 0.0, %v586
      %v588 = vpop.f32.mrb[0].mxu0
      %v589 = vadd.f32 0.0, %v588
      %v590 = vpop.f32.mrb[0].mxu0
      %v591 = vadd.f32 0.0, %v590
      %592 = vdwg.mxu0
      %v601 = vunpack.c.l.b16 %v377
      %v602 = vunpack.c.l.b16 %v378
      %v603 = vunpack.c.l.b16 %v379
      %v604 = vunpack.c.l.b16 %v380
      %v605 = vunpack.c.l.b16 %v381
      %v606 = vunpack.c.l.b16 %v382
      %v607 = vunpack.c.l.b16 %v383
      %v608 = vunpack.c.l.b16 %v384
      %v609 = vpack.c.b16 %v602, %v601
      %v610 = vpack.c.b16 %v604, %v603
      %v611 = vpack.c.b16 %v606, %v605
      %v612 = vpack.c.b16 %v608, %v607
      %613 = vrot.lane.b32.xlu0 %v454, 11
      %v614 = vpop.permute.xlu0 %613
      %615 = vrot.lane.b32.xlu0 %v455, 11
      %v616 = vpop.permute.xlu0 %615
      %617 = vrot.lane.b32.xlu0 %v456, 11
      %v618 = vpop.permute.xlu0 %617
      %619 = vrot.lane.b32.xlu0 %v457, 11
      %v620 = vpop.permute.xlu0 %619
      %621 = vrot.lane.b32.xlu0 %v458, 11
      %v622 = vpop.permute.xlu0 %621
      %623 = vrot.lane.b32.xlu0 %v459, 11
      %v624 = vpop.permute.xlu0 %623
      %625 = vrot.lane.b32.xlu0 %v460, 11
      %v626 = vpop.permute.xlu0 %625
      %627 = vrot.lane.b32.xlu0 %v461, 11
      %v628 = vpop.permute.xlu0 %627
      %629 = vrot.lane.b32.xlu0 %v462, 11
      %v630 = vpop.permute.xlu0 %629
      %631 = vrot.lane.b32.xlu0 %v463, 11
      %v632 = vpop.permute.xlu0 %631
      %633 = vrot.lane.b32.xlu0 %v464, 11
      %v634 = vpop.permute.xlu0 %633
      %635 = vrot.lane.b32.xlu0 %v465, 11
      %v636 = vpop.permute.xlu0 %635
      %vm637 = vcmask 89088
      %v638 = vsel %vm637, %v614, %v616
      %v639 = vsel %vm637, %v616, %v618
      %v640 = vsel %vm637, %v620, %v622
      %v641 = vsel %vm637, %v622, %v624
      %v642 = vsel %vm637, %v626, %v628
      %v643 = vsel %vm637, %v628, %v630
      %v644 = vsel %vm637, %v632, %v634
      %v645 = vsel %vm637, %v634, %v636
      %v655 = vsel %vm507, %v609, 0
      %v658 = vsel %vm507, %v610, 0
      %v661 = vsel %vm507, %v611, 0
      %v664 = vsel %vm507, %v612, 0
      %666 = vmatprep.subr.bf16.mxu0 %v639
      %667 = vmatpush1.bf16.msra.mxu0 %v638
      %668 = vmatprep.subr.bf16.mxu0 %v641
      %669 = vmatpush1.bf16.msra.mxu0 %v640
      %670 = vmatprep.subr.bf16.mxu0 %v643
      %671 = vmatpush1.bf16.msra.mxu0 %v642
      %672 = vmatprep.subr.bf16.mxu0 %v645
      %673 = vmatpush1.bf16.msra.mxu0 %v644
      %674 = vmatprep.subr.bf16.mxu0 0
      %675 = vmatpush1.bf16.msra.mxu0 0
      %676 = vmatprep.subr.bf16.mxu0 0
      %677 = vmatpush1.bf16.msra.mxu0 0
      %678 = vmatprep.subr.bf16.mxu0 0
      %679 = vmatpush1.bf16.msra.mxu0 0
      %680 = vmatprep.subr.bf16.mxu0 0
      %681 = vmatpush1.bf16.msra.mxu0 0
      %682 = vmatprep.subr.bf16.mxu0 0
      %683 = vmatpush1.bf16.msra.mxu0 0
      %684 = vmatprep.subr.bf16.mxu0 0
      %685 = vmatpush1.bf16.msra.mxu0 0
      %686 = vmatprep.subr.bf16.mxu0 0
      %687 = vmatpush1.bf16.msra.mxu0 0
      %688 = vmatprep.subr.bf16.mxu0 0
      %689 = vmatpush1.bf16.msra.mxu0 0
      %690 = vmatprep.subr.bf16.mxu0 0
      %691 = vmatpush1.bf16.msra.mxu0 0
      %692 = vmatprep.subr.bf16.mxu0 0
      %693 = vmatpush1.bf16.msra.mxu0 0
      %694 = vmatprep.subr.bf16.mxu0 0
      %695 = vmatpush1.bf16.msra.mxu0 0
      %696 = vmatprep.subr.bf16.mxu0 0
      %697 = vmatpush1.bf16.msra.mxu0 0
      %698 = vmatprep.mubr.bf16.mxu0 0
      %699 = vmatmul.mubr.bf16.gmra.mrb[0].mxu0 %v655
      %v700 = vpop.f32.mrb[0].mxu0
      %v701 = vadd.f32 %v555, %v700
      %v702 = vpop.f32.mrb[0].mxu0
      %v703 = vadd.f32 %v557, %v702
      %v704 = vpop.f32.mrb[0].mxu0
      %v705 = vadd.f32 %v559, %v704
      %v706 = vpop.f32.mrb[0].mxu0
      %v707 = vadd.f32 %v561, %v706
      %708 = vmatprep.mubr.bf16.mxu0 0
      %709 = vmatmul.mubr.bf16.gmra.mrb[0].mxu0 %v658
      %v710 = vpop.f32.mrb[0].mxu0
      %v711 = vadd.f32 %v565, %v710
      %v712 = vpop.f32.mrb[0].mxu0
      %v713 = vadd.f32 %v567, %v712
      %v714 = vpop.f32.mrb[0].mxu0
      %v715 = vadd.f32 %v569, %v714
      %v716 = vpop.f32.mrb[0].mxu0
      %v717 = vadd.f32 %v571, %v716
      %718 = vmatprep.mubr.bf16.mxu0 0
      %719 = vmatmul.mubr.bf16.gmra.mrb[0].mxu0 %v661
      %v720 = vpop.f32.mrb[0].mxu0
      %v721 = vadd.f32 %v575, %v720
      %v722 = vpop.f32.mrb[0].mxu0
      %v723 = vadd.f32 %v577, %v722
      %v724 = vpop.f32.mrb[0].mxu0
      %v725 = vadd.f32 %v579, %v724
      %v726 = vpop.f32.mrb[0].mxu0
      %v727 = vadd.f32 %v581, %v726
      %728 = vmatprep.mubr.bf16.mxu0 0
      %729 = vmatmul.mubr.bf16.gmra.mrb[0].mxu0 %v664
      %v730 = vpop.f32.mrb[0].mxu0
      %v731 = vadd.f32 %v585, %v730
      %v732 = vpop.f32.mrb[0].mxu0
      %v733 = vadd.f32 %v587, %v732
      %v734 = vpop.f32.mrb[0].mxu0
      %v735 = vadd.f32 %v589, %v734
      %v736 = vpop.f32.mrb[0].mxu0
      %v737 = vadd.f32 %v591, %v736
      %738 = vdwg.mxu0
      %s739 = scalar_lea.vmem %s333, 64
      %v740 = vld [vmem:[%s739] sm:$0xf]
      %v741 = vld [vmem:[%s739 + $0x4] sm:$0xf]
      %v742 = vld [vmem:[%s739 + $0x8] sm:$0xf]
      %v743 = vld [vmem:[%s739 + $0xc] sm:$0xf]
      %v744 = vld [vmem:[%s739 + $0x10] sm:$0xf]
      %v745 = vld [vmem:[%s739 + $0x14] sm:$0xf]
      %v746 = vld [vmem:[%s739 + $0x18] sm:$0xf]
      %v747 = vld [vmem:[%s739 + $0x1c] sm:$0xf]
      %v756 = vunpack.c.l.b16 %v740
      %v757 = vunpack.c.l.b16 %v741
      %v758 = vunpack.c.l.b16 %v742
      %v759 = vunpack.c.l.b16 %v743
      %v760 = vunpack.c.l.b16 %v744
      %v761 = vunpack.c.l.b16 %v745
      %v762 = vunpack.c.l.b16 %v746
      %v763 = vunpack.c.l.b16 %v747
      %v764 = vpack.c.b16 %v757, %v756
      %v765 = vpack.c.b16 %v759, %v758
      %v766 = vpack.c.b16 %v761, %v760
      %v767 = vpack.c.b16 %v763, %v762
      %768 = vrot.lane.b32.xlu0 %v454, 9
      %v769 = vpop.permute.xlu0 %768
      %770 = vrot.lane.b32.xlu0 %v455, 9
      %v771 = vpop.permute.xlu0 %770
      %772 = vrot.lane.b32.xlu0 %v456, 9
      %v773 = vpop.permute.xlu0 %772
      %774 = vrot.lane.b32.xlu0 %v457, 9
      %v775 = vpop.permute.xlu0 %774
      %776 = vrot.lane.b32.xlu0 %v458, 9
      %v777 = vpop.permute.xlu0 %776
      %778 = vrot.lane.b32.xlu0 %v459, 9
      %v779 = vpop.permute.xlu0 %778
      %780 = vrot.lane.b32.xlu0 %v460, 9
      %v781 = vpop.permute.xlu0 %780
      %782 = vrot.lane.b32.xlu0 %v461, 9
      %v783 = vpop.permute.xlu0 %782
      %784 = vrot.lane.b32.xlu0 %v462, 9
      %v785 = vpop.permute.xlu0 %784
      %786 = vrot.lane.b32.xlu0 %v463, 9
      %v787 = vpop.permute.xlu0 %786
      %788 = vrot.lane.b32.xlu0 %v464, 9
      %v789 = vpop.permute.xlu0 %788
      %790 = vrot.lane.b32.xlu0 %v465, 9
      %v791 = vpop.permute.xlu0 %790
      %vm792 = vcmask 72704
      %v793 = vsel %vm792, %v769, %v771
      %v794 = vsel %vm792, %v771, %v773
      %v795 = vsel %vm792, %v775, %v777
      %v796 = vsel %vm792, %v777, %v779
      %v797 = vsel %vm792, %v781, %v783
      %v798 = vsel %vm792, %v783, %v785
      %v799 = vsel %vm792, %v787, %v789
      %v800 = vsel %vm792, %v789, %v791
      %v810 = vsel %vm507, %v764, 0
      %v813 = vsel %vm507, %v765, 0
      %v816 = vsel %vm507, %v766, 0
      %v819 = vsel %vm507, %v767, 0
      %821 = vmatprep.subr.bf16.mxu0 %v794
      %822 = vmatpush1.bf16.msra.mxu0 %v793
      %823 = vmatprep.subr.bf16.mxu0 %v796
      %824 = vmatpush1.bf16.msra.mxu0 %v795
      %825 = vmatprep.subr.bf16.mxu0 %v798
      %826 = vmatpush1.bf16.msra.mxu0 %v797
      %827 = vmatprep.subr.bf16.mxu0 %v800
      %828 = vmatpush1.bf16.msra.mxu0 %v799
      %829 = vmatprep.subr.bf16.mxu0 0
      %830 = vmatpush1.bf16.msra.mxu0 0
      %831 = vmatprep.subr.bf16.mxu0 0
      %832 = vmatpush1.bf16.msra.mxu0 0
      %833 = vmatprep.subr.bf16.mxu0 0
      %834 = vmatpush1.bf16.msra.mxu0 0
      %835 = vmatprep.subr.bf16.mxu0 0
      %836 = vmatpush1.bf16.msra.mxu0 0
      %837 = vmatprep.subr.bf16.mxu0 0
      %838 = vmatpush1.bf16.msra.mxu0 0
      %839 = vmatprep.subr.bf16.mxu0 0
      %840 = vmatpush1.bf16.msra.mxu0 0
      %841 = vmatprep.subr.bf16.mxu0 0
      %842 = vmatpush1.bf16.msra.mxu0 0
      %843 = vmatprep.subr.bf16.mxu0 0
      %844 = vmatpush1.bf16.msra.mxu0 0
      %845 = vmatprep.subr.bf16.mxu0 0
      %846 = vmatpush1.bf16.msra.mxu0 0
      %847 = vmatprep.subr.bf16.mxu0 0
      %848 = vmatpush1.bf16.msra.mxu0 0
      %849 = vmatprep.subr.bf16.mxu0 0
      %850 = vmatpush1.bf16.msra.mxu0 0
      %851 = vmatprep.subr.bf16.mxu0 0
      %852 = vmatpush1.bf16.msra.mxu0 0
      %853 = vmatprep.mubr.bf16.mxu0 0
      %854 = vmatmul.mubr.bf16.gmra.mrb[0].mxu0 %v810
      %v855 = vpop.f32.mrb[0].mxu0
      %v856 = vadd.f32 0.0, %v855
      %v857 = vpop.f32.mrb[0].mxu0
      %v858 = vadd.f32 0.0, %v857
      %v859 = vpop.f32.mrb[0].mxu0
      %v860 = vadd.f32 0.0, %v859
      %v861 = vpop.f32.mrb[0].mxu0
      %v862 = vadd.f32 0.0, %v861
      %863 = vmatprep.mubr.bf16.mxu0 0
      %864 = vmatmul.mubr.bf16.gmra.mrb[0].mxu0 %v813
      %v865 = vpop.f32.mrb[0].mxu0
      %v866 = vadd.f32 0.0, %v865
      %v867 = vpop.f32.mrb[0].mxu0
      %v868 = vadd.f32 0.0, %v867
      %v869 = vpop.f32.mrb[0].mxu0
      %v870 = vadd.f32 0.0, %v869
      %v871 = vpop.f32.mrb[0].mxu0
      %v872 = vadd.f32 0.0, %v871
      %873 = vmatprep.mubr.bf16.mxu0 0
      %874 = vmatmul.mubr.bf16.gmra.mrb[0].mxu0 %v816
      %v875 = vpop.f32.mrb[0].mxu0
      %v876 = vadd.f32 0.0, %v875
      %v877 = vpop.f32.mrb[0].mxu0
      %v878 = vadd.f32 0.0, %v877
      %v879 = vpop.f32.mrb[0].mxu0
      %v880 = vadd.f32 0.0, %v879
      %v881 = vpop.f32.mrb[0].mxu0
      %v882 = vadd.f32 0.0, %v881
      %883 = vmatprep.mubr.bf16.mxu0 0
      %884 = vmatmul.mubr.bf16.gmra.mrb[0].mxu0 %v819
      %v885 = vpop.f32.mrb[0].mxu0
      %v886 = vadd.f32 0.0, %v885
      %v887 = vpop.f32.mrb[0].mxu0
      %v888 = vadd.f32 0.0, %v887
      %v889 = vpop.f32.mrb[0].mxu0
      %v890 = vadd.f32 0.0, %v889
      %v891 = vpop.f32.mrb[0].mxu0
      %v892 = vadd.f32 0.0, %v891
      %893 = vdwg.mxu0
      %v894 = vadd.f32 %v701, %v856
      %v895 = vadd.f32 %v703, %v858
      %v896 = vadd.f32 %v705, %v860
      %v897 = vadd.f32 %v707, %v862
      %v898 = vadd.f32 %v711, %v866
      %v899 = vadd.f32 %v713, %v868
      %v900 = vadd.f32 %v715, %v870
      %v901 = vadd.f32 %v717, %v872
      %v902 = vadd.f32 %v721, %v876
      %v903 = vadd.f32 %v723, %v878
      %v904 = vadd.f32 %v725, %v880
      %v905 = vadd.f32 %v727, %v882
      %v906 = vadd.f32 %v731, %v886
      %v907 = vadd.f32 %v733, %v888
      %v908 = vadd.f32 %v735, %v890
      %v909 = vadd.f32 %v737, %v892
      %s910 = scalar_lea.vmem %s333, 96
      %v911 = vld [vmem:[%s910] sm:$0xf]
      %v912 = vld [vmem:[%s910 + $0x4] sm:$0xf]
      %v913 = vld [vmem:[%s910 + $0x8] sm:$0xf]
      %v914 = vld [vmem:[%s910 + $0xc] sm:$0xf]
      %v915 = vld [vmem:[%s910 + $0x10] sm:$0xf]
      %v916 = vld [vmem:[%s910 + $0x14] sm:$0xf]
      %v917 = vld [vmem:[%s910 + $0x18] sm:$0xf]
      %v918 = vld [vmem:[%s910 + $0x1c] sm:$0xf]
      %v927 = vunpack.c.l.b16 %v911
      %v928 = vunpack.c.l.b16 %v912
      %v929 = vunpack.c.l.b16 %v913
      %v930 = vunpack.c.l.b16 %v914
      %v931 = vunpack.c.l.b16 %v915
      %v932 = vunpack.c.l.b16 %v916
      %v933 = vunpack.c.l.b16 %v917
      %v934 = vunpack.c.l.b16 %v918
      %v935 = vpack.c.b16 %v928, %v927
      %v936 = vpack.c.b16 %v930, %v929
      %v937 = vpack.c.b16 %v932, %v931
      %v938 = vpack.c.b16 %v934, %v933
      %939 = vrot.lane.b32.xlu0 %v454, 1
      %v940 = vpop.permute.xlu0 %939
      %941 = vrot.lane.b32.xlu0 %v455, 1
      %v942 = vpop.permute.xlu0 %941
      %943 = vrot.lane.b32.xlu0 %v456, 1
      %v944 = vpop.permute.xlu0 %943
      %945 = vrot.lane.b32.xlu0 %v457, 1
      %v946 = vpop.permute.xlu0 %945
      %947 = vrot.lane.b32.xlu0 %v458, 1
      %v948 = vpop.permute.xlu0 %947
      %949 = vrot.lane.b32.xlu0 %v459, 1
      %v950 = vpop.permute.xlu0 %949
      %951 = vrot.lane.b32.xlu0 %v460, 1
      %v952 = vpop.permute.xlu0 %951
      %953 = vrot.lane.b32.xlu0 %v461, 1
      %v954 = vpop.permute.xlu0 %953
      %955 = vrot.lane.b32.xlu0 %v462, 1
      %v956 = vpop.permute.xlu0 %955
      %957 = vrot.lane.b32.xlu0 %v463, 1
      %v958 = vpop.permute.xlu0 %957
      %959 = vrot.lane.b32.xlu0 %v464, 1
      %v960 = vpop.permute.xlu0 %959
      %961 = vrot.lane.b32.xlu0 %v465, 1
      %v962 = vpop.permute.xlu0 %961
      %vm963 = vcmask 7168
      %v964 = vsel %vm963, %v940, %v942
      %v965 = vsel %vm963, %v942, %v944
      %v966 = vsel %vm963, %v946, %v948
      %v967 = vsel %vm963, %v948, %v950
      %v968 = vsel %vm963, %v952, %v954
      %v969 = vsel %vm963, %v954, %v956
      %v970 = vsel %vm963, %v958, %v960
      %v971 = vsel %vm963, %v960, %v962
      %v981 = vsel %vm507, %v935, 0
      %v984 = vsel %vm507, %v936, 0
      %v987 = vsel %vm507, %v937, 0
      %v990 = vsel %vm507, %v938, 0
      %992 = vmatprep.subr.bf16.mxu0 %v965
      %993 = vmatpush1.bf16.msra.mxu0 %v964
      %994 = vmatprep.subr.bf16.mxu0 %v967
      %995 = vmatpush1.bf16.msra.mxu0 %v966
      %996 = vmatprep.subr.bf16.mxu0 %v969
      %997 = vmatpush1.bf16.msra.mxu0 %v968
      %998 = vmatprep.subr.bf16.mxu0 %v971
      %999 = vmatpush1.bf16.msra.mxu0 %v970
      %1000 = vmatprep.subr.bf16.mxu0 0
      %1001 = vmatpush1.bf16.msra.mxu0 0
      %1002 = vmatprep.subr.bf16.mxu0 0
      %1003 = vmatpush1.bf16.msra.mxu0 0
      %1004 = vmatprep.subr.bf16.mxu0 0
      %1005 = vmatpush1.bf16.msra.mxu0 0
      %1006 = vmatprep.subr.bf16.mxu0 0
      %1007 = vmatpush1.bf16.msra.mxu0 0
      %1008 = vmatprep.subr.bf16.mxu0 0
      %1009 = vmatpush1.bf16.msra.mxu0 0
      %1010 = vmatprep.subr.bf16.mxu0 0
      %1011 = vmatpush1.bf16.msra.mxu0 0
      %1012 = vmatprep.subr.bf16.mxu0 0
      %1013 = vmatpush1.bf16.msra.mxu0 0
      %1014 = vmatprep.subr.bf16.mxu0 0
      %1015 = vmatpush1.bf16.msra.mxu0 0
      %1016 = vmatprep.subr.bf16.mxu0 0
      %1017 = vmatpush1.bf16.msra.mxu0 0
      %1018 = vmatprep.subr.bf16.mxu0 0
      %1019 = vmatpush1.bf16.msra.mxu0 0
      %1020 = vmatprep.subr.bf16.mxu0 0
      %1021 = vmatpush1.bf16.msra.mxu0 0
      %1022 = vmatprep.subr.bf16.mxu0 0
      %1023 = vmatpush1.bf16.msra.mxu0 0
      %1024 = vmatprep.mubr.bf16.mxu0 0
      %1025 = vmatmul.mubr.bf16.gmra.mrb[0].mxu0 %v981
      %v1026 = vpop.f32.mrb[0].mxu0
      %v1027 = vadd.f32 0.0, %v1026
      %v1028 = vpop.f32.mrb[0].mxu0
      %v1029 = vadd.f32 0.0, %v1028
      %v1030 = vpop.f32.mrb[0].mxu0
      %v1031 = vadd.f32 0.0, %v1030
      %v1032 = vpop.f32.mrb[0].mxu0
      %v1033 = vadd.f32 0.0, %v1032
      %1034 = vmatprep.mubr.bf16.mxu0 0
      %1035 = vmatmul.mubr.bf16.gmra.mrb[0].mxu0 %v984
      %v1036 = vpop.f32.mrb[0].mxu0
      %v1037 = vadd.f32 0.0, %v1036
      %v1038 = vpop.f32.mrb[0].mxu0
      %v1039 = vadd.f32 0.0, %v1038
      %v1040 = vpop.f32.mrb[0].mxu0
      %v1041 = vadd.f32 0.0, %v1040
      %v1042 = vpop.f32.mrb[0].mxu0
      %v1043 = vadd.f32 0.0, %v1042
      %1044 = vmatprep.mubr.bf16.mxu0 0
      %1045 = vmatmul.mubr.bf16.gmra.mrb[0].mxu0 %v987
      %v1046 = vpop.f32.mrb[0].mxu0
      %v1047 = vadd.f32 0.0, %v1046
      %v1048 = vpop.f32.mrb[0].mxu0
      %v1049 = vadd.f32 0.0, %v1048
      %v1050 = vpop.f32.mrb[0].mxu0
      %v1051 = vadd.f32 0.0, %v1050
      %v1052 = vpop.f32.mrb[0].mxu0
      %v1053 = vadd.f32 0.0, %v1052
      %1054 = vmatprep.mubr.bf16.mxu0 0
      %1055 = vmatmul.mubr.bf16.gmra.mrb[0].mxu0 %v990
      %v1056 = vpop.f32.mrb[0].mxu0
      %v1057 = vadd.f32 0.0, %v1056
      %v1058 = vpop.f32.mrb[0].mxu0
      %v1059 = vadd.f32 0.0, %v1058
      %v1060 = vpop.f32.mrb[0].mxu0
      %v1061 = vadd.f32 0.0, %v1060
      %v1062 = vpop.f32.mrb[0].mxu0
      %v1063 = vadd.f32 0.0, %v1062
      %1064 = vdwg.mxu0
      %v1065 = vadd.f32 %v894, %v1027
      %v1066 = vadd.f32 %v895, %v1029
      %v1067 = vadd.f32 %v896, %v1031
      %v1068 = vadd.f32 %v897, %v1033
      %v1069 = vadd.f32 %v898, %v1037
      %v1070 = vadd.f32 %v899, %v1039
      %v1071 = vadd.f32 %v900, %v1041
      %v1072 = vadd.f32 %v901, %v1043
      %v1073 = vadd.f32 %v902, %v1047
      %v1074 = vadd.f32 %v903, %v1049
      %v1075 = vadd.f32 %v904, %v1051
      %v1076 = vadd.f32 %v905, %v1053
      %v1077 = vadd.f32 %v906, %v1057
      %v1078 = vadd.f32 %v907, %v1059
      %v1079 = vadd.f32 %v908, %v1061
      %v1080 = vadd.f32 %v909, %v1063
      %v1081 = vld [vmem:[%s0 + $0x4] sm:$0xff]
      %v1082 = vld [vmem:[%s0 + $0x14] sm:$0xff]
      %v1083 = vld [vmem:[%s0 + $0x24] sm:$0xff]
      %v1084 = vld [vmem:[%s0 + $0x34] sm:$0xff]
      %v1085 = vld [vmem:[%s0 + $0x44] sm:$0xff]
      %v1086 = vld [vmem:[%s0 + $0x54] sm:$0xff]
      %v1087 = vld [vmem:[%s0 + $0x64] sm:$0xff]
      %v1088 = vld [vmem:[%s0 + $0x74] sm:$0xff]
      %s1089 = scalar_lea.vmem %s333, 128
      %v1090 = vld [vmem:[%s1089] sm:$0xf]
      %v1091 = vld [vmem:[%s1089 + $0x4] sm:$0xf]
      %v1092 = vld [vmem:[%s1089 + $0x8] sm:$0xf]
      %v1093 = vld [vmem:[%s1089 + $0xc] sm:$0xf]
      %v1094 = vld [vmem:[%s1089 + $0x10] sm:$0xf]
      %v1095 = vld [vmem:[%s1089 + $0x14] sm:$0xf]
      %v1096 = vld [vmem:[%s1089 + $0x18] sm:$0xf]
      %v1097 = vld [vmem:[%s1089 + $0x1c] sm:$0xf]
      %v1106 = vunpack.c.l.b16 %v1090
      %v1107 = vunpack.c.l.b16 %v1091
      %v1108 = vunpack.c.l.b16 %v1092
      %v1109 = vunpack.c.l.b16 %v1093
      %v1110 = vunpack.c.l.b16 %v1094
      %v1111 = vunpack.c.l.b16 %v1095
      %v1112 = vunpack.c.l.b16 %v1096
      %v1113 = vunpack.c.l.b16 %v1097
      %v1114 = vpack.c.b16 %v1107, %v1106
      %v1115 = vpack.c.b16 %v1109, %v1108
      %v1116 = vpack.c.b16 %v1111, %v1110
      %v1117 = vpack.c.b16 %v1113, %v1112
      %v1126 = vunpack.c.l.b16 %v1081
      %v1127 = vunpack.c.h.b16 %v1081
      %v1128 = vunpack.c.l.b16 %v1082
      %v1129 = vunpack.c.h.b16 %v1082
      %v1130 = vunpack.c.l.b16 %v1083
      %v1131 = vunpack.c.h.b16 %v1083
      %v1132 = vunpack.c.l.b16 %v1084
      %v1133 = vunpack.c.h.b16 %v1084
      %v1134 = vunpack.c.l.b16 %v1085
      %v1135 = vunpack.c.h.b16 %v1085
      %v1136 = vunpack.c.l.b16 %v1086
      %v1137 = vunpack.c.h.b16 %v1086
      %v1138 = vunpack.c.l.b16 %v1087
      %v1139 = vunpack.c.h.b16 %v1087
      %v1140 = vunpack.c.l.b16 %v1088
      %v1141 = vunpack.c.h.b16 %v1088
      %v1142 = vpack.c.b16 %v1128, %v1126
      %v1143 = vpack.c.b16 %v1129, %v1127
      %v1144 = vpack.c.b16 %v1132, %v1130
      %v1145 = vpack.c.b16 %v1133, %v1131
      %v1146 = vpack.c.b16 %v1136, %v1134
      %v1147 = vpack.c.b16 %v1137, %v1135
      %v1148 = vpack.c.b16 %v1140, %v1138
      %v1149 = vpack.c.b16 %v1141, %v1139
      %v1159 = vsel %vm507, %v1114, 0
      %v1162 = vsel %vm507, %v1115, 0
      %v1165 = vsel %vm507, %v1116, 0
      %v1168 = vsel %vm507, %v1117, 0
      %1170 = vmatprep.subr.bf16.mxu0 %v1143
      %1171 = vmatpush1.bf16.msra.mxu0 %v1142
      %1172 = vmatprep.subr.bf16.mxu0 %v1145
      %1173 = vmatpush1.bf16.msra.mxu0 %v1144
      %1174 = vmatprep.subr.bf16.mxu0 %v1147
      %1175 = vmatpush1.bf16.msra.mxu0 %v1146
      %1176 = vmatprep.subr.bf16.mxu0 %v1149
      %1177 = vmatpush1.bf16.msra.mxu0 %v1148
      %1178 = vmatprep.subr.bf16.mxu0 0
      %1179 = vmatpush1.bf16.msra.mxu0 0
      %1180 = vmatprep.subr.bf16.mxu0 0
      %1181 = vmatpush1.bf16.msra.mxu0 0
      %1182 = vmatprep.subr.bf16.mxu0 0
      %1183 = vmatpush1.bf16.msra.mxu0 0
      %1184 = vmatprep.subr.bf16.mxu0 0
      %1185 = vmatpush1.bf16.msra.mxu0 0
      %1186 = vmatprep.subr.bf16.mxu0 0
      %1187 = vmatpush1.bf16.msra.mxu0 0
      %1188 = vmatprep.subr.bf16.mxu0 0
      %1189 = vmatpush1.bf16.msra.mxu0 0
      %1190 = vmatprep.subr.bf16.mxu0 0
      %1191 = vmatpush1.bf16.msra.mxu0 0
      %1192 = vmatprep.subr.bf16.mxu0 0
      %1193 = vmatpush1.bf16.msra.mxu0 0
      %1194 = vmatprep.subr.bf16.mxu0 0
      %1195 = vmatpush1.bf16.msra.mxu0 0
      %1196 = vmatprep.subr.bf16.mxu0 0
      %1197 = vmatpush1.bf16.msra.mxu0 0
      %1198 = vmatprep.subr.bf16.mxu0 0
      %1199 = vmatpush1.bf16.msra.mxu0 0
      %1200 = vmatprep.subr.bf16.mxu0 0
      %1201 = vmatpush1.bf16.msra.mxu0 0
      %1202 = vmatprep.mubr.bf16.mxu0 0
      %1203 = vmatmul.mubr.bf16.gmra.mrb[0].mxu0 %v1159
      %v1204 = vpop.f32.mrb[0].mxu0
      %v1205 = vadd.f32 0.0, %v1204
      %v1206 = vpop.f32.mrb[0].mxu0
      %v1207 = vadd.f32 0.0, %v1206
      %v1208 = vpop.f32.mrb[0].mxu0
      %v1209 = vadd.f32 0.0, %v1208
      %v1210 = vpop.f32.mrb[0].mxu0
      %v1211 = vadd.f32 0.0, %v1210
      %1212 = vmatprep.mubr.bf16.mxu0 0
      %1213 = vmatmul.mubr.bf16.gmra.mrb[0].mxu0 %v1162
      %v1214 = vpop.f32.mrb[0].mxu0
      %v1215 = vadd.f32 0.0, %v1214
      %v1216 = vpop.f32.mrb[0].mxu0
      %v1217 = vadd.f32 0.0, %v1216
      %v1218 = vpop.f32.mrb[0].mxu0
      %v1219 = vadd.f32 0.0, %v1218
      %v1220 = vpop.f32.mrb[0].mxu0
      %v1221 = vadd.f32 0.0, %v1220
      %1222 = vmatprep.mubr.bf16.mxu0 0
      %1223 = vmatmul.mubr.bf16.gmra.mrb[0].mxu0 %v1165
      %v1224 = vpop.f32.mrb[0].mxu0
      %v1225 = vadd.f32 0.0, %v1224
      %v1226 = vpop.f32.mrb[0].mxu0
      %v1227 = vadd.f32 0.0, %v1226
      %v1228 = vpop.f32.mrb[0].mxu0
      %v1229 = vadd.f32 0.0, %v1228
      %v1230 = vpop.f32.mrb[0].mxu0
      %v1231 = vadd.f32 0.0, %v1230
      %1232 = vmatprep.mubr.bf16.mxu0 0
      %1233 = vmatmul.mubr.bf16.gmra.mrb[0].mxu0 %v1168
      %v1234 = vpop.f32.mrb[0].mxu0
      %v1235 = vadd.f32 0.0, %v1234
      %v1236 = vpop.f32.mrb[0].mxu0
      %v1237 = vadd.f32 0.0, %v1236
      %v1238 = vpop.f32.mrb[0].mxu0
      %v1239 = vadd.f32 0.0, %v1238
      %v1240 = vpop.f32.mrb[0].mxu0
      %v1241 = vadd.f32 0.0, %v1240
      %1242 = vdwg.mxu0
      %v1243 = vadd.f32 %v1065, %v1205
      %v1244 = vadd.f32 %v1066, %v1207
      %v1245 = vadd.f32 %v1067, %v1209
      %v1246 = vadd.f32 %v1068, %v1211
      %v1247 = vadd.f32 %v1069, %v1215
      %v1248 = vadd.f32 %v1070, %v1217
      %v1249 = vadd.f32 %v1071, %v1219
      %v1250 = vadd.f32 %v1072, %v1221
      %v1251 = vadd.f32 %v1073, %v1225
      %v1252 = vadd.f32 %v1074, %v1227
      %v1253 = vadd.f32 %v1075, %v1229
      %v1254 = vadd.f32 %v1076, %v1231
      %v1255 = vadd.f32 %v1077, %v1235
      %v1256 = vadd.f32 %v1078, %v1237
      %v1257 = vadd.f32 %v1079, %v1239
      %v1258 = vadd.f32 %v1080, %v1241
      %s1259 = scalar_lea.vmem %s333, 160
      %v1260 = vld [vmem:[%s1259] sm:$0xf]
      %v1261 = vld [vmem:[%s1259 + $0x4] sm:$0xf]
      %v1262 = vld [vmem:[%s1259 + $0x8] sm:$0xf]
      %v1263 = vld [vmem:[%s1259 + $0xc] sm:$0xf]
      %v1264 = vld [vmem:[%s1259 + $0x10] sm:$0xf]
      %v1265 = vld [vmem:[%s1259 + $0x14] sm:$0xf]
      %v1266 = vld [vmem:[%s1259 + $0x18] sm:$0xf]
      %v1267 = vld [vmem:[%s1259 + $0x1c] sm:$0xf]
      %v1276 = vunpack.c.l.b16 %v1260
      %v1277 = vunpack.c.l.b16 %v1261
      %v1278 = vunpack.c.l.b16 %v1262
      %v1279 = vunpack.c.l.b16 %v1263
      %v1280 = vunpack.c.l.b16 %v1264
      %v1281 = vunpack.c.l.b16 %v1265
      %v1282 = vunpack.c.l.b16 %v1266
      %v1283 = vunpack.c.l.b16 %v1267
      %v1284 = vpack.c.b16 %v1277, %v1276
      %v1285 = vpack.c.b16 %v1279, %v1278
      %v1286 = vpack.c.b16 %v1281, %v1280
      %v1287 = vpack.c.b16 %v1283, %v1282
      %1288 = vrot.lane.b32.xlu0 %v1142, 127
      %v1289 = vpop.permute.xlu0 %1288
      %1290 = vrot.lane.b32.xlu0 %v1143, 127
      %v1291 = vpop.permute.xlu0 %1290
      %1292 = vrot.lane.b32.xlu0 %v1144, 127
      %v1293 = vpop.permute.xlu0 %1292
      %1294 = vrot.lane.b32.xlu0 %v1145, 127
      %v1295 = vpop.permute.xlu0 %1294
      %1296 = vrot.lane.b32.xlu0 %v1146, 127
      %v1297 = vpop.permute.xlu0 %1296
      %1298 = vrot.lane.b32.xlu0 %v1147, 127
      %v1299 = vpop.permute.xlu0 %1298
      %1300 = vrot.lane.b32.xlu0 %v1148, 127
      %v1301 = vpop.permute.xlu0 %1300
      %1302 = vrot.lane.b32.xlu0 %v1149, 127
      %v1303 = vpop.permute.xlu0 %1302
      %vm1304 = vcmask 1039360
      %v1305 = vsel %vm1304, %v1289, %v1291
      %v1306 = vsel %vm1304, %v1293, %v1295
      %v1307 = vsel %vm1304, %v1297, %v1299
      %v1308 = vsel %vm1304, %v1301, %v1303
      %v1318 = vsel %vm507, %v1284, 0
      %v1321 = vsel %vm507, %v1285, 0
      %v1324 = vsel %vm507, %v1286, 0
      %v1327 = vsel %vm507, %v1287, 0
      %1329 = vmatprep.subr.bf16.mxu0 %v1291
      %1330 = vmatpush1.bf16.msra.mxu0 %v1305
      %1331 = vmatprep.subr.bf16.mxu0 %v1295
      %1332 = vmatpush1.bf16.msra.mxu0 %v1306
      %1333 = vmatprep.subr.bf16.mxu0 %v1299
      %1334 = vmatpush1.bf16.msra.mxu0 %v1307
      %1335 = vmatprep.subr.bf16.mxu0 %v1303
      %1336 = vmatpush1.bf16.msra.mxu0 %v1308
      %1337 = vmatprep.subr.bf16.mxu0 0
      %1338 = vmatpush1.bf16.msra.mxu0 0
      %1339 = vmatprep.subr.bf16.mxu0 0
      %1340 = vmatpush1.bf16.msra.mxu0 0
      %1341 = vmatprep.subr.bf16.mxu0 0
      %1342 = vmatpush1.bf16.msra.mxu0 0
      %1343 = vmatprep.subr.bf16.mxu0 0
      %1344 = vmatpush1.bf16.msra.mxu0 0
      %1345 = vmatprep.subr.bf16.mxu0 0
      %1346 = vmatpush1.bf16.msra.mxu0 0
      %1347 = vmatprep.subr.bf16.mxu0 0
      %1348 = vmatpush1.bf16.msra.mxu0 0
      %1349 = vmatprep.subr.bf16.mxu0 0
      %1350 = vmatpush1.bf16.msra.mxu0 0
      %1351 = vmatprep.subr.bf16.mxu0 0
      %1352 = vmatpush1.bf16.msra.mxu0 0
      %1353 = vmatprep.subr.bf16.mxu0 0
      %1354 = vmatpush1.bf16.msra.mxu0 0
      %1355 = vmatprep.subr.bf16.mxu0 0
      %1356 = vmatpush1.bf16.msra.mxu0 0
      %1357 = vmatprep.subr.bf16.mxu0 0
      %1358 = vmatpush1.bf16.msra.mxu0 0
      %1359 = vmatprep.subr.bf16.mxu0 0
      %1360 = vmatpush1.bf16.msra.mxu0 0
      %1361 = vmatprep.mubr.bf16.mxu0 0
      %1362 = vmatmul.mubr.bf16.gmra.mrb[0].mxu0 %v1318
      %v1363 = vpop.f32.mrb[0].mxu0
      %v1364 = vadd.f32 0.0, %v1363
      %v1365 = vpop.f32.mrb[0].mxu0
      %v1366 = vadd.f32 0.0, %v1365
      %v1367 = vpop.f32.mrb[0].mxu0
      %v1368 = vadd.f32 0.0, %v1367
      %v1369 = vpop.f32.mrb[0].mxu0
      %v1370 = vadd.f32 0.0, %v1369
      %1371 = vmatprep.mubr.bf16.mxu0 0
      %1372 = vmatmul.mubr.bf16.gmra.mrb[0].mxu0 %v1321
      %v1373 = vpop.f32.mrb[0].mxu0
      %v1374 = vadd.f32 0.0, %v1373
      %v1375 = vpop.f32.mrb[0].mxu0
      %v1376 = vadd.f32 0.0, %v1375
      %v1377 = vpop.f32.mrb[0].mxu0
      %v1378 = vadd.f32 0.0, %v1377
      %v1379 = vpop.f32.mrb[0].mxu0
      %v1380 = vadd.f32 0.0, %v1379
      %1381 = vmatprep.mubr.bf16.mxu0 0
      %1382 = vmatmul.mubr.bf16.gmra.mrb[0].mxu0 %v1324
      %v1383 = vpop.f32.mrb[0].mxu0
      %v1384 = vadd.f32 0.0, %v1383
      %v1385 = vpop.f32.mrb[0].mxu0
      %v1386 = vadd.f32 0.0, %v1385
      %v1387 = vpop.f32.mrb[0].mxu0
      %v1388 = vadd.f32 0.0, %v1387
      %v1389 = vpop.f32.mrb[0].mxu0
      %v1390 = vadd.f32 0.0, %v1389
      %1391 = vmatprep.mubr.bf16.mxu0 0
      %1392 = vmatmul.mubr.bf16.gmra.mrb[0].mxu0 %v1327
      %v1393 = vpop.f32.mrb[0].mxu0
      %v1394 = vadd.f32 0.0, %v1393
      %v1395 = vpop.f32.mrb[0].mxu0
      %v1396 = vadd.f32 0.0, %v1395
      %v1397 = vpop.f32.mrb[0].mxu0
      %v1398 = vadd.f32 0.0, %v1397
      %v1399 = vpop.f32.mrb[0].mxu0
      %v1400 = vadd.f32 0.0, %v1399
      %1401 = vdwg.mxu0
      %v1402 = vadd.f32 %v1243, %v1364
      %v1403 = vadd.f32 %v1244, %v1366
      %v1404 = vadd.f32 %v1245, %v1368
      %v1405 = vadd.f32 %v1246, %v1370
      %v1406 = vadd.f32 %v1247, %v1374
      %v1407 = vadd.f32 %v1248, %v1376
      %v1408 = vadd.f32 %v1249, %v1378
      %v1409 = vadd.f32 %v1250, %v1380
      %v1410 = vadd.f32 %v1251, %v1384
      %v1411 = vadd.f32 %v1252, %v1386
      %v1412 = vadd.f32 %v1253, %v1388
      %v1413 = vadd.f32 %v1254, %v1390
      %v1414 = vadd.f32 %v1255, %v1394
      %v1415 = vadd.f32 %v1256, %v1396
      %v1416 = vadd.f32 %v1257, %v1398
      %v1417 = vadd.f32 %v1258, %v1400
      %s1418 = scalar_lea.vmem %s333, 192
      %v1419 = vld [vmem:[%s1418] sm:$0xf]
      %v1420 = vld [vmem:[%s1418 + $0x4] sm:$0xf]
      %v1421 = vld [vmem:[%s1418 + $0x8] sm:$0xf]
      %v1422 = vld [vmem:[%s1418 + $0xc] sm:$0xf]
      %v1423 = vld [vmem:[%s1418 + $0x10] sm:$0xf]
      %v1424 = vld [vmem:[%s1418 + $0x14] sm:$0xf]
      %v1425 = vld [vmem:[%s1418 + $0x18] sm:$0xf]
      %v1426 = vld [vmem:[%s1418 + $0x1c] sm:$0xf]
      %v1435 = vunpack.c.l.b16 %v1419
      %v1436 = vunpack.c.l.b16 %v1420
      %v1437 = vunpack.c.l.b16 %v1421
      %v1438 = vunpack.c.l.b16 %v1422
      %v1439 = vunpack.c.l.b16 %v1423
      %v1440 = vunpack.c.l.b16 %v1424
      %v1441 = vunpack.c.l.b16 %v1425
      %v1442 = vunpack.c.l.b16 %v1426
      %v1443 = vpack.c.b16 %v1436, %v1435
      %v1444 = vpack.c.b16 %v1438, %v1437
      %v1445 = vpack.c.b16 %v1440, %v1439
      %v1446 = vpack.c.b16 %v1442, %v1441
      %1447 = vrot.lane.b32.xlu0 %v1142, 119
      %v1448 = vpop.permute.xlu0 %1447
      %1449 = vrot.lane.b32.xlu0 %v1143, 119
      %v1450 = vpop.permute.xlu0 %1449
      %1451 = vrot.lane.b32.xlu0 %v1144, 119
      %v1452 = vpop.permute.xlu0 %1451
      %1453 = vrot.lane.b32.xlu0 %v1145, 119
      %v1454 = vpop.permute.xlu0 %1453
      %1455 = vrot.lane.b32.xlu0 %v1146, 119
      %v1456 = vpop.permute.xlu0 %1455
      %1457 = vrot.lane.b32.xlu0 %v1147, 119
      %v1458 = vpop.permute.xlu0 %1457
      %1459 = vrot.lane.b32.xlu0 %v1148, 119
      %v1460 = vpop.permute.xlu0 %1459
      %1461 = vrot.lane.b32.xlu0 %v1149, 119
      %v1462 = vpop.permute.xlu0 %1461
      %vm1463 = vcmask 973824
      %v1464 = vsel %vm1463, %v1448, %v1450
      %v1465 = vsel %vm1463, %v1452, %v1454
      %v1466 = vsel %vm1463, %v1456, %v1458
      %v1467 = vsel %vm1463, %v1460, %v1462
      %v1477 = vsel %vm507, %v1443, 0
      %v1480 = vsel %vm507, %v1444, 0
      %v1483 = vsel %vm507, %v1445, 0
      %v1486 = vsel %vm507, %v1446, 0
      %1488 = vmatprep.subr.bf16.mxu0 %v1450
      %1489 = vmatpush1.bf16.msra.mxu0 %v1464
      %1490 = vmatprep.subr.bf16.mxu0 %v1454
      %1491 = vmatpush1.bf16.msra.mxu0 %v1465
      %1492 = vmatprep.subr.bf16.mxu0 %v1458
      %1493 = vmatpush1.bf16.msra.mxu0 %v1466
      %1494 = vmatprep.subr.bf16.mxu0 %v1462
      %1495 = vmatpush1.bf16.msra.mxu0 %v1467
      %1496 = vmatprep.subr.bf16.mxu0 0
      %1497 = vmatpush1.bf16.msra.mxu0 0
      %1498 = vmatprep.subr.bf16.mxu0 0
      %1499 = vmatpush1.bf16.msra.mxu0 0
      %1500 = vmatprep.subr.bf16.mxu0 0
      %1501 = vmatpush1.bf16.msra.mxu0 0
      %1502 = vmatprep.subr.bf16.mxu0 0
      %1503 = vmatpush1.bf16.msra.mxu0 0
      %1504 = vmatprep.subr.bf16.mxu0 0
      %1505 = vmatpush1.bf16.msra.mxu0 0
      %1506 = vmatprep.subr.bf16.mxu0 0
      %1507 = vmatpush1.bf16.msra.mxu0 0
      %1508 = vmatprep.subr.bf16.mxu0 0
      %1509 = vmatpush1.bf16.msra.mxu0 0
      %1510 = vmatprep.subr.bf16.mxu0 0
      %1511 = vmatpush1.bf16.msra.mxu0 0
      %1512 = vmatprep.subr.bf16.mxu0 0
      %1513 = vmatpush1.bf16.msra.mxu0 0
      %1514 = vmatprep.subr.bf16.mxu0 0
      %1515 = vmatpush1.bf16.msra.mxu0 0
      %1516 = vmatprep.subr.bf16.mxu0 0
      %1517 = vmatpush1.bf16.msra.mxu0 0
      %1518 = vmatprep.subr.bf16.mxu0 0
      %1519 = vmatpush1.bf16.msra.mxu0 0
      %1520 = vmatprep.mubr.bf16.mxu0 0
      %1521 = vmatmul.mubr.bf16.gmra.mrb[0].mxu0 %v1477
      %v1522 = vpop.f32.mrb[0].mxu0
      %v1523 = vadd.f32 0.0, %v1522
      %v1524 = vpop.f32.mrb[0].mxu0
      %v1525 = vadd.f32 0.0, %v1524
      %v1526 = vpop.f32.mrb[0].mxu0
      %v1527 = vadd.f32 0.0, %v1526
      %v1528 = vpop.f32.mrb[0].mxu0
      %v1529 = vadd.f32 0.0, %v1528
      %1530 = vmatprep.mubr.bf16.mxu0 0
      %1531 = vmatmul.mubr.bf16.gmra.mrb[0].mxu0 %v1480
      %v1532 = vpop.f32.mrb[0].mxu0
      %v1533 = vadd.f32 0.0, %v1532
      %v1534 = vpop.f32.mrb[0].mxu0
      %v1535 = vadd.f32 0.0, %v1534
      %v1536 = vpop.f32.mrb[0].mxu0
      %v1537 = vadd.f32 0.0, %v1536
      %v1538 = vpop.f32.mrb[0].mxu0
      %v1539 = vadd.f32 0.0, %v1538
      %1540 = vmatprep.mubr.bf16.mxu0 0
      %1541 = vmatmul.mubr.bf16.gmra.mrb[0].mxu0 %v1483
      %v1542 = vpop.f32.mrb[0].mxu0
      %v1543 = vadd.f32 0.0, %v1542
      %v1544 = vpop.f32.mrb[0].mxu0
      %v1545 = vadd.f32 0.0, %v1544
      %v1546 = vpop.f32.mrb[0].mxu0
      %v1547 = vadd.f32 0.0, %v1546
      %v1548 = vpop.f32.mrb[0].mxu0
      %v1549 = vadd.f32 0.0, %v1548
      %1550 = vmatprep.mubr.bf16.mxu0 0
      %1551 = vmatmul.mubr.bf16.gmra.mrb[0].mxu0 %v1486
      %v1552 = vpop.f32.mrb[0].mxu0
      %v1553 = vadd.f32 0.0, %v1552
      %v1554 = vpop.f32.mrb[0].mxu0
      %v1555 = vadd.f32 0.0, %v1554
      %v1556 = vpop.f32.mrb[0].mxu0
      %v1557 = vadd.f32 0.0, %v1556
      %v1558 = vpop.f32.mrb[0].mxu0
      %v1559 = vadd.f32 0.0, %v1558
      %1560 = vdwg.mxu0
      %v1561 = vadd.f32 %v1402, %v1523
      %v1562 = vadd.f32 %v1403, %v1525
      %v1563 = vadd.f32 %v1404, %v1527
      %v1564 = vadd.f32 %v1405, %v1529
      %v1565 = vadd.f32 %v1406, %v1533
      %v1566 = vadd.f32 %v1407, %v1535
      %v1567 = vadd.f32 %v1408, %v1537
      %v1568 = vadd.f32 %v1409, %v1539
      %v1569 = vadd.f32 %v1410, %v1543
      %v1570 = vadd.f32 %v1411, %v1545
      %v1571 = vadd.f32 %v1412, %v1547
      %v1572 = vadd.f32 %v1413, %v1549
      %v1573 = vadd.f32 %v1414, %v1553
      %v1574 = vadd.f32 %v1415, %v1555
      %v1575 = vadd.f32 %v1416, %v1557
      %v1576 = vadd.f32 %v1417, %v1559
      %s1577 = scalar_lea.vmem %s333, 224
      %v1578 = vld [vmem:[%s1577] sm:$0xf]
      %v1579 = vld [vmem:[%s1577 + $0x4] sm:$0xf]
      %v1580 = vld [vmem:[%s1577 + $0x8] sm:$0xf]
      %v1581 = vld [vmem:[%s1577 + $0xc] sm:$0xf]
      %v1582 = vld [vmem:[%s1577 + $0x10] sm:$0xf]
      %v1583 = vld [vmem:[%s1577 + $0x14] sm:$0xf]
      %v1584 = vld [vmem:[%s1577 + $0x18] sm:$0xf]
      %v1585 = vld [vmem:[%s1577 + $0x1c] sm:$0xf]
      %v1594 = vunpack.c.l.b16 %v1578
      %v1595 = vunpack.c.l.b16 %v1579
      %v1596 = vunpack.c.l.b16 %v1580
      %v1597 = vunpack.c.l.b16 %v1581
      %v1598 = vunpack.c.l.b16 %v1582
      %v1599 = vunpack.c.l.b16 %v1583
      %v1600 = vunpack.c.l.b16 %v1584
      %v1601 = vunpack.c.l.b16 %v1585
      %v1602 = vpack.c.b16 %v1595, %v1594
      %v1603 = vpack.c.b16 %v1597, %v1596
      %v1604 = vpack.c.b16 %v1599, %v1598
      %v1605 = vpack.c.b16 %v1601, %v1600
      %1606 = vrot.lane.b32.xlu0 %v1142, 118
      %v1607 = vpop.permute.xlu0 %1606
      %1608 = vrot.lane.b32.xlu0 %v1143, 118
      %v1609 = vpop.permute.xlu0 %1608
      %1610 = vrot.lane.b32.xlu0 %v1144, 118
      %v1611 = vpop.permute.xlu0 %1610
      %1612 = vrot.lane.b32.xlu0 %v1145, 118
      %v1613 = vpop.permute.xlu0 %1612
      %1614 = vrot.lane.b32.xlu0 %v1146, 118
      %v1615 = vpop.permute.xlu0 %1614
      %1616 = vrot.lane.b32.xlu0 %v1147, 118
      %v1617 = vpop.permute.xlu0 %1616
      %1618 = vrot.lane.b32.xlu0 %v1148, 118
      %v1619 = vpop.permute.xlu0 %1618
      %1620 = vrot.lane.b32.xlu0 %v1149, 118
      %v1621 = vpop.permute.xlu0 %1620
      %vm1622 = vcmask 965632
      %v1623 = vsel %vm1622, %v1607, %v1609
      %v1624 = vsel %vm1622, %v1611, %v1613
      %v1625 = vsel %vm1622, %v1615, %v1617
      %v1626 = vsel %vm1622, %v1619, %v1621
      %v1636 = vsel %vm507, %v1602, 0
      %v1639 = vsel %vm507, %v1603, 0
      %v1642 = vsel %vm507, %v1604, 0
      %v1645 = vsel %vm507, %v1605, 0
      %1647 = vmatprep.subr.bf16.mxu0 %v1609
      %1648 = vmatpush1.bf16.msra.mxu0 %v1623
      %1649 = vmatprep.subr.bf16.mxu0 %v1613
      %1650 = vmatpush1.bf16.msra.mxu0 %v1624
      %1651 = vmatprep.subr.bf16.mxu0 %v1617
      %1652 = vmatpush1.bf16.msra.mxu0 %v1625
      %1653 = vmatprep.subr.bf16.mxu0 %v1621
      %1654 = vmatpush1.bf16.msra.mxu0 %v1626
      %1655 = vmatprep.subr.bf16.mxu0 0
      %1656 = vmatpush1.bf16.msra.mxu0 0
      %1657 = vmatprep.subr.bf16.mxu0 0
      %1658 = vmatpush1.bf16.msra.mxu0 0
      %1659 = vmatprep.subr.bf16.mxu0 0
      %1660 = vmatpush1.bf16.msra.mxu0 0
      %1661 = vmatprep.subr.bf16.mxu0 0
      %1662 = vmatpush1.bf16.msra.mxu0 0
      %1663 = vmatprep.subr.bf16.mxu0 0
      %1664 = vmatpush1.bf16.msra.mxu0 0
      %1665 = vmatprep.subr.bf16.mxu0 0
      %1666 = vmatpush1.bf16.msra.mxu0 0
      %1667 = vmatprep.subr.bf16.mxu0 0
      %1668 = vmatpush1.bf16.msra.mxu0 0
      %1669 = vmatprep.subr.bf16.mxu0 0
      %1670 = vmatpush1.bf16.msra.mxu0 0
      %1671 = vmatprep.subr.bf16.mxu0 0
      %1672 = vmatpush1.bf16.msra.mxu0 0
      %1673 = vmatprep.subr.bf16.mxu0 0
      %1674 = vmatpush1.bf16.msra.mxu0 0
      %1675 = vmatprep.subr.bf16.mxu0 0
      %1676 = vmatpush1.bf16.msra.mxu0 0
      %1677 = vmatprep.subr.bf16.mxu0 0
      %1678 = vmatpush1.bf16.msra.mxu0 0
      %1679 = vmatprep.mubr.bf16.mxu0 0
      %1680 = vmatmul.mubr.bf16.gmra.mrb[0].mxu0 %v1636
      %v1681 = vpop.f32.mrb[0].mxu0
      %v1682 = vadd.f32 0.0, %v1681
      %v1683 = vpop.f32.mrb[0].mxu0
      %v1684 = vadd.f32 0.0, %v1683
      %v1685 = vpop.f32.mrb[0].mxu0
      %v1686 = vadd.f32 0.0, %v1685
      %v1687 = vpop.f32.mrb[0].mxu0
      %v1688 = vadd.f32 0.0, %v1687
      %1689 = vmatprep.mubr.bf16.mxu0 0
      %1690 = vmatmul.mubr.bf16.gmra.mrb[0].mxu0 %v1639
      %v1691 = vpop.f32.mrb[0].mxu0
      %v1692 = vadd.f32 0.0, %v1691
      %v1693 = vpop.f32.mrb[0].mxu0
      %v1694 = vadd.f32 0.0, %v1693
      %v1695 = vpop.f32.mrb[0].mxu0
      %v1696 = vadd.f32 0.0, %v1695
      %v1697 = vpop.f32.mrb[0].mxu0
      %v1698 = vadd.f32 0.0, %v1697
      %1699 = vmatprep.mubr.bf16.mxu0 0
      %1700 = vmatmul.mubr.bf16.gmra.mrb[0].mxu0 %v1642
      %v1701 = vpop.f32.mrb[0].mxu0
      %v1702 = vadd.f32 0.0, %v1701
      %v1703 = vpop.f32.mrb[0].mxu0
      %v1704 = vadd.f32 0.0, %v1703
      %v1705 = vpop.f32.mrb[0].mxu0
      %v1706 = vadd.f32 0.0, %v1705
      %v1707 = vpop.f32.mrb[0].mxu0
      %v1708 = vadd.f32 0.0, %v1707
      %1709 = vmatprep.mubr.bf16.mxu0 0
      %1710 = vmatmul.mubr.bf16.gmra.mrb[0].mxu0 %v1645
      %v1711 = vpop.f32.mrb[0].mxu0
      %v1712 = vadd.f32 0.0, %v1711
      %v1713 = vpop.f32.mrb[0].mxu0
      %v1714 = vadd.f32 0.0, %v1713
      %v1715 = vpop.f32.mrb[0].mxu0
      %v1716 = vadd.f32 0.0, %v1715
      %v1717 = vpop.f32.mrb[0].mxu0
      %v1718 = vadd.f32 0.0, %v1717
      %1719 = vdwg.mxu0
      %v1720 = vadd.f32 %v1561, %v1682
      %v1721 = vadd.f32 %v1562, %v1684
      %v1722 = vadd.f32 %v1563, %v1686
      %v1723 = vadd.f32 %v1564, %v1688
      %v1724 = vadd.f32 %v1565, %v1692
      %v1725 = vadd.f32 %v1566, %v1694
      %v1726 = vadd.f32 %v1567, %v1696
      %v1727 = vadd.f32 %v1568, %v1698
      %v1728 = vadd.f32 %v1569, %v1702
      %v1729 = vadd.f32 %v1570, %v1704
      %v1730 = vadd.f32 %v1571, %v1706
      %v1731 = vadd.f32 %v1572, %v1708
      %v1732 = vadd.f32 %v1573, %v1712
      %v1733 = vadd.f32 %v1574, %v1714
      %v1734 = vadd.f32 %v1575, %v1716
      %v1735 = vadd.f32 %v1576, %v1718
      %s1736 = scalar_lea.vmem %s333, 256
      %v1737 = vld [vmem:[%s1736] sm:$0xf]
      %v1738 = vld [vmem:[%s1736 + $0x4] sm:$0xf]
      %v1739 = vld [vmem:[%s1736 + $0x8] sm:$0xf]
      %v1740 = vld [vmem:[%s1736 + $0xc] sm:$0xf]
      %v1741 = vld [vmem:[%s1736 + $0x10] sm:$0xf]
      %v1742 = vld [vmem:[%s1736 + $0x14] sm:$0xf]
      %v1743 = vld [vmem:[%s1736 + $0x18] sm:$0xf]
      %v1744 = vld [vmem:[%s1736 + $0x1c] sm:$0xf]
      %v1753 = vunpack.c.l.b16 %v1737
      %v1754 = vunpack.c.l.b16 %v1738
      %v1755 = vunpack.c.l.b16 %v1739
      %v1756 = vunpack.c.l.b16 %v1740
      %v1757 = vunpack.c.l.b16 %v1741
      %v1758 = vunpack.c.l.b16 %v1742
      %v1759 = vunpack.c.l.b16 %v1743
      %v1760 = vunpack.c.l.b16 %v1744
      %v1761 = vpack.c.b16 %v1754, %v1753
      %v1762 = vpack.c.b16 %v1756, %v1755
      %v1763 = vpack.c.b16 %v1758, %v1757
      %v1764 = vpack.c.b16 %v1760, %v1759
      %1765 = vrot.lane.b32.xlu0 %v1142, 117
      %v1766 = vpop.permute.xlu0 %1765
      %1767 = vrot.lane.b32.xlu0 %v1143, 117
      %v1768 = vpop.permute.xlu0 %1767
      %1769 = vrot.lane.b32.xlu0 %v1144, 117
      %v1770 = vpop.permute.xlu0 %1769
      %1771 = vrot.lane.b32.xlu0 %v1145, 117
      %v1772 = vpop.permute.xlu0 %1771
      %1773 = vrot.lane.b32.xlu0 %v1146, 117
      %v1774 = vpop.permute.xlu0 %1773
      %1775 = vrot.lane.b32.xlu0 %v1147, 117
      %v1776 = vpop.permute.xlu0 %1775
      %1777 = vrot.lane.b32.xlu0 %v1148, 117
      %v1778 = vpop.permute.xlu0 %1777
      %1779 = vrot.lane.b32.xlu0 %v1149, 117
      %v1780 = vpop.permute.xlu0 %1779
      %vm1781 = vcmask 957440
      %v1782 = vsel %vm1781, %v1766, %v1768
      %v1783 = vsel %vm1781, %v1770, %v1772
      %v1784 = vsel %vm1781, %v1774, %v1776
      %v1785 = vsel %vm1781, %v1778, %v1780
      %v1795 = vsel %vm507, %v1761, 0
      %v1798 = vsel %vm507, %v1762, 0
      %v1801 = vsel %vm507, %v1763, 0
      %v1804 = vsel %vm507, %v1764, 0
      %1806 = vmatprep.subr.bf16.mxu0 %v1768
      %1807 = vmatpush1.bf16.msra.mxu0 %v1782
      %1808 = vmatprep.subr.bf16.mxu0 %v1772
      %1809 = vmatpush1.bf16.msra.mxu0 %v1783
      %1810 = vmatprep.subr.bf16.mxu0 %v1776
      %1811 = vmatpush1.bf16.msra.mxu0 %v1784
      %1812 = vmatprep.subr.bf16.mxu0 %v1780
      %1813 = vmatpush1.bf16.msra.mxu0 %v1785
      %1814 = vmatprep.subr.bf16.mxu0 0
      %1815 = vmatpush1.bf16.msra.mxu0 0
      %1816 = vmatprep.subr.bf16.mxu0 0
      %1817 = vmatpush1.bf16.msra.mxu0 0
      %1818 = vmatprep.subr.bf16.mxu0 0
      %1819 = vmatpush1.bf16.msra.mxu0 0
      %1820 = vmatprep.subr.bf16.mxu0 0
      %1821 = vmatpush1.bf16.msra.mxu0 0
      %1822 = vmatprep.subr.bf16.mxu0 0
      %1823 = vmatpush1.bf16.msra.mxu0 0
      %1824 = vmatprep.subr.bf16.mxu0 0
      %1825 = vmatpush1.bf16.msra.mxu0 0
      %1826 = vmatprep.subr.bf16.mxu0 0
      %1827 = vmatpush1.bf16.msra.mxu0 0
      %1828 = vmatprep.subr.bf16.mxu0 0
      %1829 = vmatpush1.bf16.msra.mxu0 0
      %1830 = vmatprep.subr.bf16.mxu0 0
      %1831 = vmatpush1.bf16.msra.mxu0 0
      %1832 = vmatprep.subr.bf16.mxu0 0
      %1833 = vmatpush1.bf16.msra.mxu0 0
      %1834 = vmatprep.subr.bf16.mxu0 0
      %1835 = vmatpush1.bf16.msra.mxu0 0
      %1836 = vmatprep.subr.bf16.mxu0 0
      %1837 = vmatpush1.bf16.msra.mxu0 0
      %1838 = vmatprep.mubr.bf16.mxu0 0
      %1839 = vmatmul.mubr.bf16.gmra.mrb[0].mxu0 %v1795
      %v1840 = vpop.f32.mrb[0].mxu0
      %v1841 = vadd.f32 0.0, %v1840
      %v1842 = vpop.f32.mrb[0].mxu0
      %v1843 = vadd.f32 0.0, %v1842
      %v1844 = vpop.f32.mrb[0].mxu0
      %v1845 = vadd.f32 0.0, %v1844
      %v1846 = vpop.f32.mrb[0].mxu0
      %v1847 = vadd.f32 0.0, %v1846
      %1848 = vmatprep.mubr.bf16.mxu0 0
      %1849 = vmatmul.mubr.bf16.gmra.mrb[0].mxu0 %v1798
      %v1850 = vpop.f32.mrb[0].mxu0
      %v1851 = vadd.f32 0.0, %v1850
      %v1852 = vpop.f32.mrb[0].mxu0
      %v1853 = vadd.f32 0.0, %v1852
      %v1854 = vpop.f32.mrb[0].mxu0
      %v1855 = vadd.f32 0.0, %v1854
      %v1856 = vpop.f32.mrb[0].mxu0
      %v1857 = vadd.f32 0.0, %v1856
      %1858 = vmatprep.mubr.bf16.mxu0 0
      %1859 = vmatmul.mubr.bf16.gmra.mrb[0].mxu0 %v1801
      %v1860 = vpop.f32.mrb[0].mxu0
      %v1861 = vadd.f32 0.0, %v1860
      %v1862 = vpop.f32.mrb[0].mxu0
      %v1863 = vadd.f32 0.0, %v1862
      %v1864 = vpop.f32.mrb[0].mxu0
      %v1865 = vadd.f32 0.0, %v1864
      %v1866 = vpop.f32.mrb[0].mxu0
      %v1867 = vadd.f32 0.0, %v1866
      %1868 = vmatprep.mubr.bf16.mxu0 0
      %1869 = vmatmul.mubr.bf16.gmra.mrb[0].mxu0 %v1804
      %v1870 = vpop.f32.mrb[0].mxu0
      %v1871 = vadd.f32 0.0, %v1870
      %v1872 = vpop.f32.mrb[0].mxu0
      %v1873 = vadd.f32 0.0, %v1872
      %v1874 = vpop.f32.mrb[0].mxu0
      %v1875 = vadd.f32 0.0, %v1874
      %v1876 = vpop.f32.mrb[0].mxu0
      %v1877 = vadd.f32 0.0, %v1876
      %1878 = vdwg.mxu0
      %v1879 = vadd.f32 %v1720, %v1841
      %v1880 = vadd.f32 %v1721, %v1843
      %v1881 = vadd.f32 %v1722, %v1845
      %v1882 = vadd.f32 %v1723, %v1847
      %v1883 = vadd.f32 %v1724, %v1851
      %v1884 = vadd.f32 %v1725, %v1853
      %v1885 = vadd.f32 %v1726, %v1855
      %v1886 = vadd.f32 %v1727, %v1857
      %v1887 = vadd.f32 %v1728, %v1861
      %v1888 = vadd.f32 %v1729, %v1863
      %v1889 = vadd.f32 %v1730, %v1865
      %v1890 = vadd.f32 %v1731, %v1867
      %v1891 = vadd.f32 %v1732, %v1871
      %v1892 = vadd.f32 %v1733, %v1873
      %v1893 = vadd.f32 %v1734, %v1875
      %v1894 = vadd.f32 %v1735, %v1877
      %v1895 = vld [vmem:[%s338] sm:$0xff]
      %v1896 = vld [vmem:[%s338 + $0x8] sm:$0xff]
      %v1897 = vld [vmem:[%s338 + $0x10] sm:$0xff]
      %v1898 = vld [vmem:[%s338 + $0x18] sm:$0xff]
      %v1899 = vld [vmem:[%s338 + $0x20] sm:$0xff]
      %v1900 = vld [vmem:[%s338 + $0x28] sm:$0xff]
      %v1901 = vld [vmem:[%s338 + $0x30] sm:$0xff]
      %v1902 = vld [vmem:[%s338 + $0x38] sm:$0xff]
      %1904 = vset.pattern.permute.xlu0 0
      %1905 = vperm.xlu0 %1904, %v1895
      %v1906 = vpop.permute.xlu0 %1905
      %1909 = vset.pattern.permute.xlu0 0
      %1910 = vperm.xlu0 %1909, %v1896
      %v1911 = vpop.permute.xlu0 %1910
      %1914 = vset.pattern.permute.xlu0 0
      %1915 = vperm.xlu0 %1914, %v1897
      %v1916 = vpop.permute.xlu0 %1915
      %1919 = vset.pattern.permute.xlu0 0
      %1920 = vperm.xlu0 %1919, %v1898
      %v1921 = vpop.permute.xlu0 %1920
      %1924 = vset.pattern.permute.xlu0 0
      %1925 = vperm.xlu0 %1924, %v1899
      %v1926 = vpop.permute.xlu0 %1925
      %1929 = vset.pattern.permute.xlu0 0
      %1930 = vperm.xlu0 %1929, %v1900
      %v1931 = vpop.permute.xlu0 %1930
      %1934 = vset.pattern.permute.xlu0 0
      %1935 = vperm.xlu0 %1934, %v1901
      %v1936 = vpop.permute.xlu0 %1935
      %1939 = vset.pattern.permute.xlu0 0
      %1940 = vperm.xlu0 %1939, %v1902
      %v1941 = vpop.permute.xlu0 %1940
      %v1943 = vadd.f32 %v1879, %v1906
      %v1944 = vadd.f32 %v1880, %v1906
      %v1945 = vadd.f32 %v1881, %v1911
      %v1946 = vadd.f32 %v1882, %v1911
      %v1947 = vadd.f32 %v1883, %v1916
      %v1948 = vadd.f32 %v1884, %v1916
      %v1949 = vadd.f32 %v1885, %v1921
      %v1950 = vadd.f32 %v1886, %v1921
      %v1951 = vadd.f32 %v1887, %v1926
      %v1952 = vadd.f32 %v1888, %v1926
      %v1953 = vadd.f32 %v1889, %v1931
      %v1954 = vadd.f32 %v1890, %v1931
      %v1955 = vadd.f32 %v1891, %v1936
      %v1956 = vadd.f32 %v1892, %v1936
      %v1957 = vadd.f32 %v1893, %v1941
      %v1958 = vadd.f32 %v1894, %v1941
      %v1959 = vmax.f32 %v1943, 0.0
      %v1960 = vmax.f32 %v1944, 0.0
      %v1961 = vmax.f32 %v1945, 0.0
      %v1962 = vmax.f32 %v1946, 0.0
      %v1963 = vmax.f32 %v1947, 0.0
      %v1964 = vmax.f32 %v1948, 0.0
      %v1965 = vmax.f32 %v1949, 0.0
      %v1966 = vmax.f32 %v1950, 0.0
      %v1967 = vmax.f32 %v1951, 0.0
      %v1968 = vmax.f32 %v1952, 0.0
      %v1969 = vmax.f32 %v1953, 0.0
      %v1970 = vmax.f32 %v1954, 0.0
      %v1971 = vmax.f32 %v1955, 0.0
      %v1972 = vmax.f32 %v1956, 0.0
      %v1973 = vmax.f32 %v1957, 0.0
      %v1974 = vmax.f32 %v1958, 0.0
      %v1976 = vlaneseq
      %v1977 = vshrl.u32 %v1976, 7
      %v1978 = vsub.s32 0, %v1977
      %v1979 = vrot.slane %v360, %v1978
      %v1980 = vlaneseq
      %v1981 = vshrl.u32 %v1980, 7
      %v1982 = vsub.s32 1, %v1981
      %v1983 = vrot.slane %v360, %v1982
      %v1986 = vmul.f32 %v1959, %v1979
      %v1987 = vmul.f32 %v1960, %v1983
      %v1988 = vmul.f32 %v1961, %v1979
      %v1989 = vmul.f32 %v1962, %v1983
      %v1990 = vmul.f32 %v1963, %v1979
      %v1991 = vmul.f32 %v1964, %v1983
      %v1992 = vmul.f32 %v1965, %v1979
      %v1993 = vmul.f32 %v1966, %v1983
      %v1994 = vmul.f32 %v1967, %v1979
      %v1995 = vmul.f32 %v1968, %v1983
      %v1996 = vmul.f32 %v1969, %v1979
      %v1997 = vmul.f32 %v1970, %v1983
      %v1998 = vmul.f32 %v1971, %v1979
      %v1999 = vmul.f32 %v1972, %v1983
      %v2000 = vmul.f32 %v1973, %v1979
      %v2001 = vmul.f32 %v1974, %v1983
      %2002 = vst [vmem:[#allocation2] sm:$0xff] 0
      %2003 = vst [vmem:[#allocation2 + $0x8] sm:$0xff] 0
      %2004 = vst [vmem:[#allocation2 + $0x10] sm:$0xff] 0
      %vm2005 = vcmask 588800
      %2006 = vst.msk [vmem:[#allocation2 + $0x18] sm:$0xff] %vm2005, 0
      %2007 = vst [vmem:[#allocation2 + $0x20] sm:$0xff] 0
      %2008 = vst [vmem:[#allocation2 + $0x28] sm:$0xff] 0
      %2009 = vst [vmem:[#allocation2 + $0x30] sm:$0xff] 0
      %2010 = vst.msk [vmem:[#allocation2 + $0x38] sm:$0xff] %vm2005, 0
      %2011 = vst [vmem:[#allocation2 + $0x40] sm:$0xff] 0
      %2012 = vst [vmem:[#allocation2 + $0x48] sm:$0xff] 0
      %2013 = vst [vmem:[#allocation2 + $0x50] sm:$0xff] 0
      %2014 = vst.msk [vmem:[#allocation2 + $0x58] sm:$0xff] %vm2005, 0
      %2015 = vst [vmem:[#allocation2 + $0x60] sm:$0xff] 0
      %2016 = vst [vmem:[#allocation2 + $0x68] sm:$0xff] 0
      %2017 = vst [vmem:[#allocation2 + $0x70] sm:$0xff] 0
      %2018 = vst.msk [vmem:[#allocation2 + $0x78] sm:$0xff] %vm2005, 0
      %v2019 = vpack.c.bf16 %v1988, %v1986
      %v2020 = vpack.c.bf16 %v1989, %v1987
      %v2021 = vpack.c.bf16 %v1992, %v1990
      %v2022 = vpack.c.bf16 %v1993, %v1991
      %v2023 = vpack.c.bf16 %v1996, %v1994
      %v2024 = vpack.c.bf16 %v1997, %v1995
      %v2025 = vpack.c.bf16 %v2000, %v1998
      %v2026 = vpack.c.bf16 %v2001, %v1999
      %2027 = vst [vmem:[#allocation2 + $0x8] sm:$0xff] %v2019
      %2028 = vst.msk [vmem:[#allocation2 + $0x10] sm:$0xff] %vm2005, %v2020
      %2029 = vst [vmem:[#allocation2 + $0x28] sm:$0xff] %v2021
      %2030 = vst.msk [vmem:[#allocation2 + $0x30] sm:$0xff] %vm2005, %v2022
      %2031 = vst [vmem:[#allocation2 + $0x48] sm:$0xff] %v2023
      %2032 = vst.msk [vmem:[#allocation2 + $0x50] sm:$0xff] %vm2005, %v2024
      %2033 = vst [vmem:[#allocation2 + $0x68] sm:$0xff] %v2025
      %2034 = vst.msk [vmem:[#allocation2 + $0x70] sm:$0xff] %vm2005, %v2026
      %v2035 = vld [vmem:[#allocation2] sm:$0xff]
      %v2036 = vld [vmem:[#allocation2 + $0x8] sm:$0xff]
      %v2037 = vld [vmem:[#allocation2 + $0x10] sm:$0xff]
      %v2038 = vld [vmem:[#allocation2 + $0x20] sm:$0xff]
      %v2039 = vld [vmem:[#allocation2 + $0x28] sm:$0xff]
      %v2040 = vld [vmem:[#allocation2 + $0x30] sm:$0xff]
      %v2041 = vld [vmem:[#allocation2 + $0x40] sm:$0xff]
      %v2042 = vld [vmem:[#allocation2 + $0x48] sm:$0xff]
      %v2043 = vld [vmem:[#allocation2 + $0x50] sm:$0xff]
      %v2044 = vld [vmem:[#allocation2 + $0x60] sm:$0xff]
      %v2045 = vld [vmem:[#allocation2 + $0x68] sm:$0xff]
      %v2046 = vld [vmem:[#allocation2 + $0x70] sm:$0xff]
      %v2047 = vld [vmem:[%s343] sm:$0xf]
      %v2048 = vld [vmem:[%s343 + $0x4] sm:$0xf]
      %v2049 = vld [vmem:[%s343 + $0x8] sm:$0xf]
      %v2050 = vld [vmem:[%s343 + $0xc] sm:$0xf]
      %v2051 = vld [vmem:[%s343 + $0x10] sm:$0xf]
      %v2052 = vld [vmem:[%s343 + $0x14] sm:$0xf]
      %v2053 = vld [vmem:[%s343 + $0x18] sm:$0xf]
      %v2054 = vld [vmem:[%s343 + $0x1c] sm:$0xf]
      %s2055 = scalar_lea.vmem %s343, 32
      %v2056 = vld [vmem:[%s2055] sm:$0xf]
      %v2057 = vld [vmem:[%s2055 + $0x4] sm:$0xf]
      %v2058 = vld [vmem:[%s2055 + $0x8] sm:$0xf]
      %v2059 = vld [vmem:[%s2055 + $0xc] sm:$0xf]
      %v2060 = vld [vmem:[%s2055 + $0x10] sm:$0xf]
      %v2061 = vld [vmem:[%s2055 + $0x14] sm:$0xf]
      %v2062 = vld [vmem:[%s2055 + $0x18] sm:$0xf]
      %v2063 = vld [vmem:[%s2055 + $0x1c] sm:$0xf]
      %v2072 = vunpack.c.l.b16 %v2056
      %v2073 = vunpack.c.l.b16 %v2057
      %v2074 = vunpack.c.l.b16 %v2058
      %v2075 = vunpack.c.l.b16 %v2059
      %v2076 = vunpack.c.l.b16 %v2060
      %v2077 = vunpack.c.l.b16 %v2061
      %v2078 = vunpack.c.l.b16 %v2062
      %v2079 = vunpack.c.l.b16 %v2063
      %v2080 = vpack.c.b16 %v2073, %v2072
      %v2081 = vpack.c.b16 %v2075, %v2074
      %v2082 = vpack.c.b16 %v2077, %v2076
      %v2083 = vpack.c.b16 %v2079, %v2078
      %2096 = vrot.lane.b32.xlu0 %v2035, 10
      %v2097 = vpop.permute.xlu0 %2096
      %2098 = vrot.lane.b32.xlu0 %v2036, 10
      %v2099 = vpop.permute.xlu0 %2098
      %2100 = vrot.lane.b32.xlu0 %v2037, 10
      %v2101 = vpop.permute.xlu0 %2100
      %2102 = vrot.lane.b32.xlu0 %v2038, 10
      %v2103 = vpop.permute.xlu0 %2102
      %2104 = vrot.lane.b32.xlu0 %v2039, 10
      %v2105 = vpop.permute.xlu0 %2104
      %2106 = vrot.lane.b32.xlu0 %v2040, 10
      %v2107 = vpop.permute.xlu0 %2106
      %2108 = vrot.lane.b32.xlu0 %v2041, 10
      %v2109 = vpop.permute.xlu0 %2108
      %2110 = vrot.lane.b32.xlu0 %v2042, 10
      %v2111 = vpop.permute.xlu0 %2110
      %2112 = vrot.lane.b32.xlu0 %v2043, 10
      %v2113 = vpop.permute.xlu0 %2112
      %2114 = vrot.lane.b32.xlu0 %v2044, 10
      %v2115 = vpop.permute.xlu0 %2114
      %2116 = vrot.lane.b32.xlu0 %v2045, 10
      %v2117 = vpop.permute.xlu0 %2116
      %2118 = vrot.lane.b32.xlu0 %v2046, 10
      %v2119 = vpop.permute.xlu0 %2118
      %v2120 = vsel %vm490, %v2097, %v2099
      %v2121 = vsel %vm490, %v2099, %v2101
      %v2122 = vsel %vm490, %v2103, %v2105
      %v2123 = vsel %vm490, %v2105, %v2107
      %v2124 = vsel %vm490, %v2109, %v2111
      %v2125 = vsel %vm490, %v2111, %v2113
      %v2126 = vsel %vm490, %v2115, %v2117
      %v2127 = vsel %vm490, %v2117, %v2119
      %v2137 = vsel %vm507, %v2080, 0
      %v2140 = vsel %vm507, %v2081, 0
      %v2143 = vsel %vm507, %v2082, 0
      %v2146 = vsel %vm507, %v2083, 0
      %2148 = vmatprep.subr.bf16.mxu0 %v2121
      %2149 = vmatpush1.bf16.msra.mxu0 %v2120
      %2150 = vmatprep.subr.bf16.mxu0 %v2123
      %2151 = vmatpush1.bf16.msra.mxu0 %v2122
      %2152 = vmatprep.subr.bf16.mxu0 %v2125
      %2153 = vmatpush1.bf16.msra.mxu0 %v2124
      %2154 = vmatprep.subr.bf16.mxu0 %v2127
      %2155 = vmatpush1.bf16.msra.mxu0 %v2126
      %2156 = vmatprep.subr.bf16.mxu0 0
      %2157 = vmatpush1.bf16.msra.mxu0 0
      %2158 = vmatprep.subr.bf16.mxu0 0
      %2159 = vmatpush1.bf16.msra.mxu0 0
      %2160 = vmatprep.subr.bf16.mxu0 0
      %2161 = vmatpush1.bf16.msra.mxu0 0
      %2162 = vmatprep.subr.bf16.mxu0 0
      %2163 = vmatpush1.bf16.msra.mxu0 0
      %2164 = vmatprep.subr.bf16.mxu0 0
      %2165 = vmatpush1.bf16.msra.mxu0 0
      %2166 = vmatprep.subr.bf16.mxu0 0
      %2167 = vmatpush1.bf16.msra.mxu0 0
      %2168 = vmatprep.subr.bf16.mxu0 0
      %2169 = vmatpush1.bf16.msra.mxu0 0
      %2170 = vmatprep.subr.bf16.mxu0 0
      %2171 = vmatpush1.bf16.msra.mxu0 0
      %2172 = vmatprep.subr.bf16.mxu0 0
      %2173 = vmatpush1.bf16.msra.mxu0 0
      %2174 = vmatprep.subr.bf16.mxu0 0
      %2175 = vmatpush1.bf16.msra.mxu0 0
      %2176 = vmatprep.subr.bf16.mxu0 0
      %2177 = vmatpush1.bf16.msra.mxu0 0
      %2178 = vmatprep.subr.bf16.mxu0 0
      %2179 = vmatpush1.bf16.msra.mxu0 0
      %2180 = vmatprep.mubr.bf16.mxu0 0
      %2181 = vmatmul.mubr.bf16.gmra.mrb[0].mxu0 %v2137
      %v2182 = vpop.f32.mrb[0].mxu0
      %v2183 = vadd.f32 0.0, %v2182
      %v2184 = vpop.f32.mrb[0].mxu0
      %v2185 = vadd.f32 0.0, %v2184
      %v2186 = vpop.f32.mrb[0].mxu0
      %v2187 = vadd.f32 0.0, %v2186
      %v2188 = vpop.f32.mrb[0].mxu0
      %v2189 = vadd.f32 0.0, %v2188
      %2190 = vmatprep.mubr.bf16.mxu0 0
      %2191 = vmatmul.mubr.bf16.gmra.mrb[0].mxu0 %v2140
      %v2192 = vpop.f32.mrb[0].mxu0
      %v2193 = vadd.f32 0.0, %v2192
      %v2194 = vpop.f32.mrb[0].mxu0
      %v2195 = vadd.f32 0.0, %v2194
      %v2196 = vpop.f32.mrb[0].mxu0
      %v2197 = vadd.f32 0.0, %v2196
      %v2198 = vpop.f32.mrb[0].mxu0
      %v2199 = vadd.f32 0.0, %v2198
      %2200 = vmatprep.mubr.bf16.mxu0 0
      %2201 = vmatmul.mubr.bf16.gmra.mrb[0].mxu0 %v2143
      %v2202 = vpop.f32.mrb[0].mxu0
      %v2203 = vadd.f32 0.0, %v2202
      %v2204 = vpop.f32.mrb[0].mxu0
      %v2205 = vadd.f32 0.0, %v2204
      %v2206 = vpop.f32.mrb[0].mxu0
      %v2207 = vadd.f32 0.0, %v2206
      %v2208 = vpop.f32.mrb[0].mxu0
      %v2209 = vadd.f32 0.0, %v2208
      %2210 = vmatprep.mubr.bf16.mxu0 0
      %2211 = vmatmul.mubr.bf16.gmra.mrb[0].mxu0 %v2146
      %v2212 = vpop.f32.mrb[0].mxu0
      %v2213 = vadd.f32 0.0, %v2212
      %v2214 = vpop.f32.mrb[0].mxu0
      %v2215 = vadd.f32 0.0, %v2214
      %v2216 = vpop.f32.mrb[0].mxu0
      %v2217 = vadd.f32 0.0, %v2216
      %v2218 = vpop.f32.mrb[0].mxu0
      %v2219 = vadd.f32 0.0, %v2218
      %2220 = vdwg.mxu0
      %v2229 = vunpack.c.l.b16 %v2047
      %v2230 = vunpack.c.l.b16 %v2048
      %v2231 = vunpack.c.l.b16 %v2049
      %v2232 = vunpack.c.l.b16 %v2050
      %v2233 = vunpack.c.l.b16 %v2051
      %v2234 = vunpack.c.l.b16 %v2052
      %v2235 = vunpack.c.l.b16 %v2053
      %v2236 = vunpack.c.l.b16 %v2054
      %v2237 = vpack.c.b16 %v2230, %v2229
      %v2238 = vpack.c.b16 %v2232, %v2231
      %v2239 = vpack.c.b16 %v2234, %v2233
      %v2240 = vpack.c.b16 %v2236, %v2235
      %2241 = vrot.lane.b32.xlu0 %v2035, 11
      %v2242 = vpop.permute.xlu0 %2241
      %2243 = vrot.lane.b32.xlu0 %v2036, 11
      %v2244 = vpop.permute.xlu0 %2243
      %2245 = vrot.lane.b32.xlu0 %v2037, 11
      %v2246 = vpop.permute.xlu0 %2245
      %2247 = vrot.lane.b32.xlu0 %v2038, 11
      %v2248 = vpop.permute.xlu0 %2247
      %2249 = vrot.lane.b32.xlu0 %v2039, 11
      %v2250 = vpop.permute.xlu0 %2249
      %2251 = vrot.lane.b32.xlu0 %v2040, 11
      %v2252 = vpop.permute.xlu0 %2251
      %2253 = vrot.lane.b32.xlu0 %v2041, 11
      %v2254 = vpop.permute.xlu0 %2253
      %2255 = vrot.lane.b32.xlu0 %v2042, 11
      %v2256 = vpop.permute.xlu0 %2255
      %2257 = vrot.lane.b32.xlu0 %v2043, 11
      %v2258 = vpop.permute.xlu0 %2257
      %2259 = vrot.lane.b32.xlu0 %v2044, 11
      %v2260 = vpop.permute.xlu0 %2259
      %2261 = vrot.lane.b32.xlu0 %v2045, 11
      %v2262 = vpop.permute.xlu0 %2261
      %2263 = vrot.lane.b32.xlu0 %v2046, 11
      %v2264 = vpop.permute.xlu0 %2263
      %v2265 = vsel %vm637, %v2242, %v2244
      %v2266 = vsel %vm637, %v2244, %v2246
      %v2267 = vsel %vm637, %v2248, %v2250
      %v2268 = vsel %vm637, %v2250, %v2252
      %v2269 = vsel %vm637, %v2254, %v2256
      %v2270 = vsel %vm637, %v2256, %v2258
      %v2271 = vsel %vm637, %v2260, %v2262
      %v2272 = vsel %vm637, %v2262, %v2264
      %v2282 = vsel %vm507, %v2237, 0
      %v2285 = vsel %vm507, %v2238, 0
      %v2288 = vsel %vm507, %v2239, 0
      %v2291 = vsel %vm507, %v2240, 0
      %2293 = vmatprep.subr.bf16.mxu0 %v2266
      %2294 = vmatpush1.bf16.msra.mxu0 %v2265
      %2295 = vmatprep.subr.bf16.mxu0 %v2268
      %2296 = vmatpush1.bf16.msra.mxu0 %v2267
      %2297 = vmatprep.subr.bf16.mxu0 %v2270
      %2298 = vmatpush1.bf16.msra.mxu0 %v2269
      %2299 = vmatprep.subr.bf16.mxu0 %v2272
      %2300 = vmatpush1.bf16.msra.mxu0 %v2271
      %2301 = vmatprep.subr.bf16.mxu0 0
      %2302 = vmatpush1.bf16.msra.mxu0 0
      %2303 = vmatprep.subr.bf16.mxu0 0
      %2304 = vmatpush1.bf16.msra.mxu0 0
      %2305 = vmatprep.subr.bf16.mxu0 0
      %2306 = vmatpush1.bf16.msra.mxu0 0
      %2307 = vmatprep.subr.bf16.mxu0 0
      %2308 = vmatpush1.bf16.msra.mxu0 0
      %2309 = vmatprep.subr.bf16.mxu0 0
      %2310 = vmatpush1.bf16.msra.mxu0 0
      %2311 = vmatprep.subr.bf16.mxu0 0
      %2312 = vmatpush1.bf16.msra.mxu0 0
      %2313 = vmatprep.subr.bf16.mxu0 0
      %2314 = vmatpush1.bf16.msra.mxu0 0
      %2315 = vmatprep.subr.bf16.mxu0 0
      %2316 = vmatpush1.bf16.msra.mxu0 0
      %2317 = vmatprep.subr.bf16.mxu0 0
      %2318 = vmatpush1.bf16.msra.mxu0 0
      %2319 = vmatprep.subr.bf16.mxu0 0
      %2320 = vmatpush1.bf16.msra.mxu0 0
      %2321 = vmatprep.subr.bf16.mxu0 0
      %2322 = vmatpush1.bf16.msra.mxu0 0
      %2323 = vmatprep.subr.bf16.mxu0 0
      %2324 = vmatpush1.bf16.msra.mxu0 0
      %2325 = vmatprep.mubr.bf16.mxu0 0
      %2326 = vmatmul.mubr.bf16.gmra.mrb[0].mxu0 %v2282
      %v2327 = vpop.f32.mrb[0].mxu0
      %v2328 = vadd.f32 %v2183, %v2327
      %v2329 = vpop.f32.mrb[0].mxu0
      %v2330 = vadd.f32 %v2185, %v2329
      %v2331 = vpop.f32.mrb[0].mxu0
      %v2332 = vadd.f32 %v2187, %v2331
      %v2333 = vpop.f32.mrb[0].mxu0
      %v2334 = vadd.f32 %v2189, %v2333
      %2335 = vmatprep.mubr.bf16.mxu0 0
      %2336 = vmatmul.mubr.bf16.gmra.mrb[0].mxu0 %v2285
      %v2337 = vpop.f32.mrb[0].mxu0
      %v2338 = vadd.f32 %v2193, %v2337
      %v2339 = vpop.f32.mrb[0].mxu0
      %v2340 = vadd.f32 %v2195, %v2339
      %v2341 = vpop.f32.mrb[0].mxu0
      %v2342 = vadd.f32 %v2197, %v2341
      %v2343 = vpop.f32.mrb[0].mxu0
      %v2344 = vadd.f32 %v2199, %v2343
      %2345 = vmatprep.mubr.bf16.mxu0 0
      %2346 = vmatmul.mubr.bf16.gmra.mrb[0].mxu0 %v2288
      %v2347 = vpop.f32.mrb[0].mxu0
      %v2348 = vadd.f32 %v2203, %v2347
      %v2349 = vpop.f32.mrb[0].mxu0
      %v2350 = vadd.f32 %v2205, %v2349
      %v2351 = vpop.f32.mrb[0].mxu0
      %v2352 = vadd.f32 %v2207, %v2351
      %v2353 = vpop.f32.mrb[0].mxu0
      %v2354 = vadd.f32 %v2209, %v2353
      %2355 = vmatprep.mubr.bf16.mxu0 0
      %2356 = vmatmul.mubr.bf16.gmra.mrb[0].mxu0 %v2291
      %v2357 = vpop.f32.mrb[0].mxu0
      %v2358 = vadd.f32 %v2213, %v2357
      %v2359 = vpop.f32.mrb[0].mxu0
      %v2360 = vadd.f32 %v2215, %v2359
      %v2361 = vpop.f32.mrb[0].mxu0
      %v2362 = vadd.f32 %v2217, %v2361
      %v2363 = vpop.f32.mrb[0].mxu0
      %v2364 = vadd.f32 %v2219, %v2363
      %2365 = vdwg.mxu0
      %s2366 = scalar_lea.vmem %s343, 64
      %v2367 = vld [vmem:[%s2366] sm:$0xf]
      %v2368 = vld [vmem:[%s2366 + $0x4] sm:$0xf]
      %v2369 = vld [vmem:[%s2366 + $0x8] sm:$0xf]
      %v2370 = vld [vmem:[%s2366 + $0xc] sm:$0xf]
      %v2371 = vld [vmem:[%s2366 + $0x10] sm:$0xf]
      %v2372 = vld [vmem:[%s2366 + $0x14] sm:$0xf]
      %v2373 = vld [vmem:[%s2366 + $0x18] sm:$0xf]
      %v2374 = vld [vmem:[%s2366 + $0x1c] sm:$0xf]
      %v2383 = vunpack.c.l.b16 %v2367
      %v2384 = vunpack.c.l.b16 %v2368
      %v2385 = vunpack.c.l.b16 %v2369
      %v2386 = vunpack.c.l.b16 %v2370
      %v2387 = vunpack.c.l.b16 %v2371
      %v2388 = vunpack.c.l.b16 %v2372
      %v2389 = vunpack.c.l.b16 %v2373
      %v2390 = vunpack.c.l.b16 %v2374
      %v2391 = vpack.c.b16 %v2384, %v2383
      %v2392 = vpack.c.b16 %v2386, %v2385
      %v2393 = vpack.c.b16 %v2388, %v2387
      %v2394 = vpack.c.b16 %v2390, %v2389
      %2395 = vrot.lane.b32.xlu0 %v2035, 9
      %v2396 = vpop.permute.xlu0 %2395
      %2397 = vrot.lane.b32.xlu0 %v2036, 9
      %v2398 = vpop.permute.xlu0 %2397
      %2399 = vrot.lane.b32.xlu0 %v2037, 9
      %v2400 = vpop.permute.xlu0 %2399
      %2401 = vrot.lane.b32.xlu0 %v2038, 9
      %v2402 = vpop.permute.xlu0 %2401
      %2403 = vrot.lane.b32.xlu0 %v2039, 9
      %v2404 = vpop.permute.xlu0 %2403
      %2405 = vrot.lane.b32.xlu0 %v2040, 9
      %v2406 = vpop.permute.xlu0 %2405
      %2407 = vrot.lane.b32.xlu0 %v2041, 9
      %v2408 = vpop.permute.xlu0 %2407
      %2409 = vrot.lane.b32.xlu0 %v2042, 9
      %v2410 = vpop.permute.xlu0 %2409
      %2411 = vrot.lane.b32.xlu0 %v2043, 9
      %v2412 = vpop.permute.xlu0 %2411
      %2413 = vrot.lane.b32.xlu0 %v2044, 9
      %v2414 = vpop.permute.xlu0 %2413
      %2415 = vrot.lane.b32.xlu0 %v2045, 9
      %v2416 = vpop.permute.xlu0 %2415
      %2417 = vrot.lane.b32.xlu0 %v2046, 9
      %v2418 = vpop.permute.xlu0 %2417
      %v2419 = vsel %vm792, %v2396, %v2398
      %v2420 = vsel %vm792, %v2398, %v2400
      %v2421 = vsel %vm792, %v2402, %v2404
      %v2422 = vsel %vm792, %v2404, %v2406
      %v2423 = vsel %vm792, %v2408, %v2410
      %v2424 = vsel %vm792, %v2410, %v2412
      %v2425 = vsel %vm792, %v2414, %v2416
      %v2426 = vsel %vm792, %v2416, %v2418
      %v2436 = vsel %vm507, %v2391, 0
      %v2439 = vsel %vm507, %v2392, 0
      %v2442 = vsel %vm507, %v2393, 0
      %v2445 = vsel %vm507, %v2394, 0
      %2447 = vmatprep.subr.bf16.mxu0 %v2420
      %2448 = vmatpush1.bf16.msra.mxu0 %v2419
      %2449 = vmatprep.subr.bf16.mxu0 %v2422
      %2450 = vmatpush1.bf16.msra.mxu0 %v2421
      %2451 = vmatprep.subr.bf16.mxu0 %v2424
      %2452 = vmatpush1.bf16.msra.mxu0 %v2423
      %2453 = vmatprep.subr.bf16.mxu0 %v2426
      %2454 = vmatpush1.bf16.msra.mxu0 %v2425
      %2455 = vmatprep.subr.bf16.mxu0 0
      %2456 = vmatpush1.bf16.msra.mxu0 0
      %2457 = vmatprep.subr.bf16.mxu0 0
      %2458 = vmatpush1.bf16.msra.mxu0 0
      %2459 = vmatprep.subr.bf16.mxu0 0
      %2460 = vmatpush1.bf16.msra.mxu0 0
      %2461 = vmatprep.subr.bf16.mxu0 0
      %2462 = vmatpush1.bf16.msra.mxu0 0
      %2463 = vmatprep.subr.bf16.mxu0 0
      %2464 = vmatpush1.bf16.msra.mxu0 0
      %2465 = vmatprep.subr.bf16.mxu0 0
      %2466 = vmatpush1.bf16.msra.mxu0 0
      %2467 = vmatprep.subr.bf16.mxu0 0
      %2468 = vmatpush1.bf16.msra.mxu0 0
      %2469 = vmatprep.subr.bf16.mxu0 0
      %2470 = vmatpush1.bf16.msra.mxu0 0
      %2471 = vmatprep.subr.bf16.mxu0 0
      %2472 = vmatpush1.bf16.msra.mxu0 0
      %2473 = vmatprep.subr.bf16.mxu0 0
      %2474 = vmatpush1.bf16.msra.mxu0 0
      %2475 = vmatprep.subr.bf16.mxu0 0
      %2476 = vmatpush1.bf16.msra.mxu0 0
      %2477 = vmatprep.subr.bf16.mxu0 0
      %2478 = vmatpush1.bf16.msra.mxu0 0
      %2479 = vmatprep.mubr.bf16.mxu0 0
      %2480 = vmatmul.mubr.bf16.gmra.mrb[0].mxu0 %v2436
      %v2481 = vpop.f32.mrb[0].mxu0
      %v2482 = vadd.f32 0.0, %v2481
      %v2483 = vpop.f32.mrb[0].mxu0
      %v2484 = vadd.f32 0.0, %v2483
      %v2485 = vpop.f32.mrb[0].mxu0
      %v2486 = vadd.f32 0.0, %v2485
      %v2487 = vpop.f32.mrb[0].mxu0
      %v2488 = vadd.f32 0.0, %v2487
      %2489 = vmatprep.mubr.bf16.mxu0 0
      %2490 = vmatmul.mubr.bf16.gmra.mrb[0].mxu0 %v2439
      %v2491 = vpop.f32.mrb[0].mxu0
      %v2492 = vadd.f32 0.0, %v2491
      %v2493 = vpop.f32.mrb[0].mxu0
      %v2494 = vadd.f32 0.0, %v2493
      %v2495 = vpop.f32.mrb[0].mxu0
      %v2496 = vadd.f32 0.0, %v2495
      %v2497 = vpop.f32.mrb[0].mxu0
      %v2498 = vadd.f32 0.0, %v2497
      %2499 = vmatprep.mubr.bf16.mxu0 0
      %2500 = vmatmul.mubr.bf16.gmra.mrb[0].mxu0 %v2442
      %v2501 = vpop.f32.mrb[0].mxu0
      %v2502 = vadd.f32 0.0, %v2501
      %v2503 = vpop.f32.mrb[0].mxu0
      %v2504 = vadd.f32 0.0, %v2503
      %v2505 = vpop.f32.mrb[0].mxu0
      %v2506 = vadd.f32 0.0, %v2505
      %v2507 = vpop.f32.mrb[0].mxu0
      %v2508 = vadd.f32 0.0, %v2507
      %2509 = vmatprep.mubr.bf16.mxu0 0
      %2510 = vmatmul.mubr.bf16.gmra.mrb[0].mxu0 %v2445
      %v2511 = vpop.f32.mrb[0].mxu0
      %v2512 = vadd.f32 0.0, %v2511
      %v2513 = vpop.f32.mrb[0].mxu0
      %v2514 = vadd.f32 0.0, %v2513
      %v2515 = vpop.f32.mrb[0].mxu0
      %v2516 = vadd.f32 0.0, %v2515
      %v2517 = vpop.f32.mrb[0].mxu0
      %v2518 = vadd.f32 0.0, %v2517
      %2519 = vdwg.mxu0
      %v2520 = vadd.f32 %v2328, %v2482
      %v2521 = vadd.f32 %v2330, %v2484
      %v2522 = vadd.f32 %v2332, %v2486
      %v2523 = vadd.f32 %v2334, %v2488
      %v2524 = vadd.f32 %v2338, %v2492
      %v2525 = vadd.f32 %v2340, %v2494
      %v2526 = vadd.f32 %v2342, %v2496
      %v2527 = vadd.f32 %v2344, %v2498
      %v2528 = vadd.f32 %v2348, %v2502
      %v2529 = vadd.f32 %v2350, %v2504
      %v2530 = vadd.f32 %v2352, %v2506
      %v2531 = vadd.f32 %v2354, %v2508
      %v2532 = vadd.f32 %v2358, %v2512
      %v2533 = vadd.f32 %v2360, %v2514
      %v2534 = vadd.f32 %v2362, %v2516
      %v2535 = vadd.f32 %v2364, %v2518
      %s2536 = scalar_lea.vmem %s343, 96
      %v2537 = vld [vmem:[%s2536] sm:$0xf]
      %v2538 = vld [vmem:[%s2536 + $0x4] sm:$0xf]
      %v2539 = vld [vmem:[%s2536 + $0x8] sm:$0xf]
      %v2540 = vld [vmem:[%s2536 + $0xc] sm:$0xf]
      %v2541 = vld [vmem:[%s2536 + $0x10] sm:$0xf]
      %v2542 = vld [vmem:[%s2536 + $0x14] sm:$0xf]
      %v2543 = vld [vmem:[%s2536 + $0x18] sm:$0xf]
      %v2544 = vld [vmem:[%s2536 + $0x1c] sm:$0xf]
      %v2553 = vunpack.c.l.b16 %v2537
      %v2554 = vunpack.c.l.b16 %v2538
      %v2555 = vunpack.c.l.b16 %v2539
      %v2556 = vunpack.c.l.b16 %v2540
      %v2557 = vunpack.c.l.b16 %v2541
      %v2558 = vunpack.c.l.b16 %v2542
      %v2559 = vunpack.c.l.b16 %v2543
      %v2560 = vunpack.c.l.b16 %v2544
      %v2561 = vpack.c.b16 %v2554, %v2553
      %v2562 = vpack.c.b16 %v2556, %v2555
      %v2563 = vpack.c.b16 %v2558, %v2557
      %v2564 = vpack.c.b16 %v2560, %v2559
      %2565 = vrot.lane.b32.xlu0 %v2035, 1
      %v2566 = vpop.permute.xlu0 %2565
      %2567 = vrot.lane.b32.xlu0 %v2036, 1
      %v2568 = vpop.permute.xlu0 %2567
      %2569 = vrot.lane.b32.xlu0 %v2037, 1
      %v2570 = vpop.permute.xlu0 %2569
      %2571 = vrot.lane.b32.xlu0 %v2038, 1
      %v2572 = vpop.permute.xlu0 %2571
      %2573 = vrot.lane.b32.xlu0 %v2039, 1
      %v2574 = vpop.permute.xlu0 %2573
      %2575 = vrot.lane.b32.xlu0 %v2040, 1
      %v2576 = vpop.permute.xlu0 %2575
      %2577 = vrot.lane.b32.xlu0 %v2041, 1
      %v2578 = vpop.permute.xlu0 %2577
      %2579 = vrot.lane.b32.xlu0 %v2042, 1
      %v2580 = vpop.permute.xlu0 %2579
      %2581 = vrot.lane.b32.xlu0 %v2043, 1
      %v2582 = vpop.permute.xlu0 %2581
      %2583 = vrot.lane.b32.xlu0 %v2044, 1
      %v2584 = vpop.permute.xlu0 %2583
      %2585 = vrot.lane.b32.xlu0 %v2045, 1
      %v2586 = vpop.permute.xlu0 %2585
      %2587 = vrot.lane.b32.xlu0 %v2046, 1
      %v2588 = vpop.permute.xlu0 %2587
      %v2589 = vsel %vm963, %v2566, %v2568
      %v2590 = vsel %vm963, %v2568, %v2570
      %v2591 = vsel %vm963, %v2572, %v2574
      %v2592 = vsel %vm963, %v2574, %v2576
      %v2593 = vsel %vm963, %v2578, %v2580
      %v2594 = vsel %vm963, %v2580, %v2582
      %v2595 = vsel %vm963, %v2584, %v2586
      %v2596 = vsel %vm963, %v2586, %v2588
      %v2606 = vsel %vm507, %v2561, 0
      %v2609 = vsel %vm507, %v2562, 0
      %v2612 = vsel %vm507, %v2563, 0
      %v2615 = vsel %vm507, %v2564, 0
      %2617 = vmatprep.subr.bf16.mxu0 %v2590
      %2618 = vmatpush1.bf16.msra.mxu0 %v2589
      %2619 = vmatprep.subr.bf16.mxu0 %v2592
      %2620 = vmatpush1.bf16.msra.mxu0 %v2591
      %2621 = vmatprep.subr.bf16.mxu0 %v2594
      %2622 = vmatpush1.bf16.msra.mxu0 %v2593
      %2623 = vmatprep.subr.bf16.mxu0 %v2596
      %2624 = vmatpush1.bf16.msra.mxu0 %v2595
      %2625 = vmatprep.subr.bf16.mxu0 0
      %2626 = vmatpush1.bf16.msra.mxu0 0
      %2627 = vmatprep.subr.bf16.mxu0 0
      %2628 = vmatpush1.bf16.msra.mxu0 0
      %2629 = vmatprep.subr.bf16.mxu0 0
      %2630 = vmatpush1.bf16.msra.mxu0 0
      %2631 = vmatprep.subr.bf16.mxu0 0
      %2632 = vmatpush1.bf16.msra.mxu0 0
      %2633 = vmatprep.subr.bf16.mxu0 0
      %2634 = vmatpush1.bf16.msra.mxu0 0
      %2635 = vmatprep.subr.bf16.mxu0 0
      %2636 = vmatpush1.bf16.msra.mxu0 0
      %2637 = vmatprep.subr.bf16.mxu0 0
      %2638 = vmatpush1.bf16.msra.mxu0 0
      %2639 = vmatprep.subr.bf16.mxu0 0
      %2640 = vmatpush1.bf16.msra.mxu0 0
      %2641 = vmatprep.subr.bf16.mxu0 0
      %2642 = vmatpush1.bf16.msra.mxu0 0
      %2643 = vmatprep.subr.bf16.mxu0 0
      %2644 = vmatpush1.bf16.msra.mxu0 0
      %2645 = vmatprep.subr.bf16.mxu0 0
      %2646 = vmatpush1.bf16.msra.mxu0 0
      %2647 = vmatprep.subr.bf16.mxu0 0
      %2648 = vmatpush1.bf16.msra.mxu0 0
      %2649 = vmatprep.mubr.bf16.mxu0 0
      %2650 = vmatmul.mubr.bf16.gmra.mrb[0].mxu0 %v2606
      %v2651 = vpop.f32.mrb[0].mxu0
      %v2652 = vadd.f32 0.0, %v2651
      %v2653 = vpop.f32.mrb[0].mxu0
      %v2654 = vadd.f32 0.0, %v2653
      %v2655 = vpop.f32.mrb[0].mxu0
      %v2656 = vadd.f32 0.0, %v2655
      %v2657 = vpop.f32.mrb[0].mxu0
      %v2658 = vadd.f32 0.0, %v2657
      %2659 = vmatprep.mubr.bf16.mxu0 0
      %2660 = vmatmul.mubr.bf16.gmra.mrb[0].mxu0 %v2609
      %v2661 = vpop.f32.mrb[0].mxu0
      %v2662 = vadd.f32 0.0, %v2661
      %v2663 = vpop.f32.mrb[0].mxu0
      %v2664 = vadd.f32 0.0, %v2663
      %v2665 = vpop.f32.mrb[0].mxu0
      %v2666 = vadd.f32 0.0, %v2665
      %v2667 = vpop.f32.mrb[0].mxu0
      %v2668 = vadd.f32 0.0, %v2667
      %2669 = vmatprep.mubr.bf16.mxu0 0
      %2670 = vmatmul.mubr.bf16.gmra.mrb[0].mxu0 %v2612
      %v2671 = vpop.f32.mrb[0].mxu0
      %v2672 = vadd.f32 0.0, %v2671
      %v2673 = vpop.f32.mrb[0].mxu0
      %v2674 = vadd.f32 0.0, %v2673
      %v2675 = vpop.f32.mrb[0].mxu0
      %v2676 = vadd.f32 0.0, %v2675
      %v2677 = vpop.f32.mrb[0].mxu0
      %v2678 = vadd.f32 0.0, %v2677
      %2679 = vmatprep.mubr.bf16.mxu0 0
      %2680 = vmatmul.mubr.bf16.gmra.mrb[0].mxu0 %v2615
      %v2681 = vpop.f32.mrb[0].mxu0
      %v2682 = vadd.f32 0.0, %v2681
      %v2683 = vpop.f32.mrb[0].mxu0
      %v2684 = vadd.f32 0.0, %v2683
      %v2685 = vpop.f32.mrb[0].mxu0
      %v2686 = vadd.f32 0.0, %v2685
      %v2687 = vpop.f32.mrb[0].mxu0
      %v2688 = vadd.f32 0.0, %v2687
      %2689 = vdwg.mxu0
      %v2690 = vadd.f32 %v2520, %v2652
      %v2691 = vadd.f32 %v2521, %v2654
      %v2692 = vadd.f32 %v2522, %v2656
      %v2693 = vadd.f32 %v2523, %v2658
      %v2694 = vadd.f32 %v2524, %v2662
      %v2695 = vadd.f32 %v2525, %v2664
      %v2696 = vadd.f32 %v2526, %v2666
      %v2697 = vadd.f32 %v2527, %v2668
      %v2698 = vadd.f32 %v2528, %v2672
      %v2699 = vadd.f32 %v2529, %v2674
      %v2700 = vadd.f32 %v2530, %v2676
      %v2701 = vadd.f32 %v2531, %v2678
      %v2702 = vadd.f32 %v2532, %v2682
      %v2703 = vadd.f32 %v2533, %v2684
      %v2704 = vadd.f32 %v2534, %v2686
      %v2705 = vadd.f32 %v2535, %v2688
      %s2706 = scalar_lea.vmem %s343, 128
      %v2707 = vld [vmem:[%s2706] sm:$0xf]
      %v2708 = vld [vmem:[%s2706 + $0x4] sm:$0xf]
      %v2709 = vld [vmem:[%s2706 + $0x8] sm:$0xf]
      %v2710 = vld [vmem:[%s2706 + $0xc] sm:$0xf]
      %v2711 = vld [vmem:[%s2706 + $0x10] sm:$0xf]
      %v2712 = vld [vmem:[%s2706 + $0x14] sm:$0xf]
      %v2713 = vld [vmem:[%s2706 + $0x18] sm:$0xf]
      %v2714 = vld [vmem:[%s2706 + $0x1c] sm:$0xf]
      %v2723 = vunpack.c.l.b16 %v2707
      %v2724 = vunpack.c.l.b16 %v2708
      %v2725 = vunpack.c.l.b16 %v2709
      %v2726 = vunpack.c.l.b16 %v2710
      %v2727 = vunpack.c.l.b16 %v2711
      %v2728 = vunpack.c.l.b16 %v2712
      %v2729 = vunpack.c.l.b16 %v2713
      %v2730 = vunpack.c.l.b16 %v2714
      %v2731 = vpack.c.b16 %v2724, %v2723
      %v2732 = vpack.c.b16 %v2726, %v2725
      %v2733 = vpack.c.b16 %v2728, %v2727
      %v2734 = vpack.c.b16 %v2730, %v2729
      %v2736 = vsel %vm507, %v2731, 0
      %v2739 = vsel %vm507, %v2732, 0
      %v2742 = vsel %vm507, %v2733, 0
      %v2745 = vsel %vm507, %v2734, 0
      %2747 = vmatprep.subr.bf16.mxu0 %v2037
      %2748 = vmatpush1.bf16.msra.mxu0 %v2036
      %2749 = vmatprep.subr.bf16.mxu0 %v2040
      %2750 = vmatpush1.bf16.msra.mxu0 %v2039
      %2751 = vmatprep.subr.bf16.mxu0 %v2043
      %2752 = vmatpush1.bf16.msra.mxu0 %v2042
      %2753 = vmatprep.subr.bf16.mxu0 %v2046
      %2754 = vmatpush1.bf16.msra.mxu0 %v2045
      %2755 = vmatprep.subr.bf16.mxu0 0
      %2756 = vmatpush1.bf16.msra.mxu0 0
      %2757 = vmatprep.subr.bf16.mxu0 0
      %2758 = vmatpush1.bf16.msra.mxu0 0
      %2759 = vmatprep.subr.bf16.mxu0 0
      %2760 = vmatpush1.bf16.msra.mxu0 0
      %2761 = vmatprep.subr.bf16.mxu0 0
      %2762 = vmatpush1.bf16.msra.mxu0 0
      %2763 = vmatprep.subr.bf16.mxu0 0
      %2764 = vmatpush1.bf16.msra.mxu0 0
      %2765 = vmatprep.subr.bf16.mxu0 0
      %2766 = vmatpush1.bf16.msra.mxu0 0
      %2767 = vmatprep.subr.bf16.mxu0 0
      %2768 = vmatpush1.bf16.msra.mxu0 0
      %2769 = vmatprep.subr.bf16.mxu0 0
      %2770 = vmatpush1.bf16.msra.mxu0 0
      %2771 = vmatprep.subr.bf16.mxu0 0
      %2772 = vmatpush1.bf16.msra.mxu0 0
      %2773 = vmatprep.subr.bf16.mxu0 0
      %2774 = vmatpush1.bf16.msra.mxu0 0
      %2775 = vmatprep.subr.bf16.mxu0 0
      %2776 = vmatpush1.bf16.msra.mxu0 0
      %2777 = vmatprep.subr.bf16.mxu0 0
      %2778 = vmatpush1.bf16.msra.mxu0 0
      %2779 = vmatprep.mubr.bf16.mxu0 0
      %2780 = vmatmul.mubr.bf16.gmra.mrb[0].mxu0 %v2736
      %v2781 = vpop.f32.mrb[0].mxu0
      %v2782 = vadd.f32 0.0, %v2781
      %v2783 = vpop.f32.mrb[0].mxu0
      %v2784 = vadd.f32 0.0, %v2783
      %v2785 = vpop.f32.mrb[0].mxu0
      %v2786 = vadd.f32 0.0, %v2785
      %v2787 = vpop.f32.mrb[0].mxu0
      %v2788 = vadd.f32 0.0, %v2787
      %2789 = vmatprep.mubr.bf16.mxu0 0
      %2790 = vmatmul.mubr.bf16.gmra.mrb[0].mxu0 %v2739
      %v2791 = vpop.f32.mrb[0].mxu0
      %v2792 = vadd.f32 0.0, %v2791
      %v2793 = vpop.f32.mrb[0].mxu0
      %v2794 = vadd.f32 0.0, %v2793
      %v2795 = vpop.f32.mrb[0].mxu0
      %v2796 = vadd.f32 0.0, %v2795
      %v2797 = vpop.f32.mrb[0].mxu0
      %v2798 = vadd.f32 0.0, %v2797
      %2799 = vmatprep.mubr.bf16.mxu0 0
      %2800 = vmatmul.mubr.bf16.gmra.mrb[0].mxu0 %v2742
      %v2801 = vpop.f32.mrb[0].mxu0
      %v2802 = vadd.f32 0.0, %v2801
      %v2803 = vpop.f32.mrb[0].mxu0
      %v2804 = vadd.f32 0.0, %v2803
      %v2805 = vpop.f32.mrb[0].mxu0
      %v2806 = vadd.f32 0.0, %v2805
      %v2807 = vpop.f32.mrb[0].mxu0
      %v2808 = vadd.f32 0.0, %v2807
      %2809 = vmatprep.mubr.bf16.mxu0 0
      %2810 = vmatmul.mubr.bf16.gmra.mrb[0].mxu0 %v2745
      %v2811 = vpop.f32.mrb[0].mxu0
      %v2812 = vadd.f32 0.0, %v2811
      %v2813 = vpop.f32.mrb[0].mxu0
      %v2814 = vadd.f32 0.0, %v2813
      %v2815 = vpop.f32.mrb[0].mxu0
      %v2816 = vadd.f32 0.0, %v2815
      %v2817 = vpop.f32.mrb[0].mxu0
      %v2818 = vadd.f32 0.0, %v2817
      %2819 = vdwg.mxu0
      %v2820 = vadd.f32 %v2690, %v2782
      %v2821 = vadd.f32 %v2691, %v2784
      %v2822 = vadd.f32 %v2692, %v2786
      %v2823 = vadd.f32 %v2693, %v2788
      %v2824 = vadd.f32 %v2694, %v2792
      %v2825 = vadd.f32 %v2695, %v2794
      %v2826 = vadd.f32 %v2696, %v2796
      %v2827 = vadd.f32 %v2697, %v2798
      %v2828 = vadd.f32 %v2698, %v2802
      %v2829 = vadd.f32 %v2699, %v2804
      %v2830 = vadd.f32 %v2700, %v2806
      %v2831 = vadd.f32 %v2701, %v2808
      %v2832 = vadd.f32 %v2702, %v2812
      %v2833 = vadd.f32 %v2703, %v2814
      %v2834 = vadd.f32 %v2704, %v2816
      %v2835 = vadd.f32 %v2705, %v2818
      %s2836 = scalar_lea.vmem %s343, 160
      %v2837 = vld [vmem:[%s2836] sm:$0xf]
      %v2838 = vld [vmem:[%s2836 + $0x4] sm:$0xf]
      %v2839 = vld [vmem:[%s2836 + $0x8] sm:$0xf]
      %v2840 = vld [vmem:[%s2836 + $0xc] sm:$0xf]
      %v2841 = vld [vmem:[%s2836 + $0x10] sm:$0xf]
      %v2842 = vld [vmem:[%s2836 + $0x14] sm:$0xf]
      %v2843 = vld [vmem:[%s2836 + $0x18] sm:$0xf]
      %v2844 = vld [vmem:[%s2836 + $0x1c] sm:$0xf]
      %v2853 = vunpack.c.l.b16 %v2837
      %v2854 = vunpack.c.l.b16 %v2838
      %v2855 = vunpack.c.l.b16 %v2839
      %v2856 = vunpack.c.l.b16 %v2840
      %v2857 = vunpack.c.l.b16 %v2841
      %v2858 = vunpack.c.l.b16 %v2842
      %v2859 = vunpack.c.l.b16 %v2843
      %v2860 = vunpack.c.l.b16 %v2844
      %v2861 = vpack.c.b16 %v2854, %v2853
      %v2862 = vpack.c.b16 %v2856, %v2855
      %v2863 = vpack.c.b16 %v2858, %v2857
      %v2864 = vpack.c.b16 %v2860, %v2859
      %2865 = vrot.lane.b32.xlu0 %v2036, 127
      %v2866 = vpop.permute.xlu0 %2865
      %2867 = vrot.lane.b32.xlu0 %v2037, 127
      %v2868 = vpop.permute.xlu0 %2867
      %2869 = vrot.lane.b32.xlu0 %v2039, 127
      %v2870 = vpop.permute.xlu0 %2869
      %2871 = vrot.lane.b32.xlu0 %v2040, 127
      %v2872 = vpop.permute.xlu0 %2871
      %2873 = vrot.lane.b32.xlu0 %v2042, 127
      %v2874 = vpop.permute.xlu0 %2873
      %2875 = vrot.lane.b32.xlu0 %v2043, 127
      %v2876 = vpop.permute.xlu0 %2875
      %2877 = vrot.lane.b32.xlu0 %v2045, 127
      %v2878 = vpop.permute.xlu0 %2877
      %2879 = vrot.lane.b32.xlu0 %v2046, 127
      %v2880 = vpop.permute.xlu0 %2879
      %v2881 = vsel %vm1304, %v2866, %v2868
      %v2882 = vsel %vm1304, %v2870, %v2872
      %v2883 = vsel %vm1304, %v2874, %v2876
      %v2884 = vsel %vm1304, %v2878, %v2880
      %v2894 = vsel %vm507, %v2861, 0
      %v2897 = vsel %vm507, %v2862, 0
      %v2900 = vsel %vm507, %v2863, 0
      %v2903 = vsel %vm507, %v2864, 0
      %2905 = vmatprep.subr.bf16.mxu0 %v2868
      %2906 = vmatpush1.bf16.msra.mxu0 %v2881
      %2907 = vmatprep.subr.bf16.mxu0 %v2872
      %2908 = vmatpush1.bf16.msra.mxu0 %v2882
      %2909 = vmatprep.subr.bf16.mxu0 %v2876
      %2910 = vmatpush1.bf16.msra.mxu0 %v2883
      %2911 = vmatprep.subr.bf16.mxu0 %v2880
      %2912 = vmatpush1.bf16.msra.mxu0 %v2884
      %2913 = vmatprep.subr.bf16.mxu0 0
      %2914 = vmatpush1.bf16.msra.mxu0 0
      %2915 = vmatprep.subr.bf16.mxu0 0
      %2916 = vmatpush1.bf16.msra.mxu0 0
      %2917 = vmatprep.subr.bf16.mxu0 0
      %2918 = vmatpush1.bf16.msra.mxu0 0
      %2919 = vmatprep.subr.bf16.mxu0 0
      %2920 = vmatpush1.bf16.msra.mxu0 0
      %2921 = vmatprep.subr.bf16.mxu0 0
      %2922 = vmatpush1.bf16.msra.mxu0 0
      %2923 = vmatprep.subr.bf16.mxu0 0
      %2924 = vmatpush1.bf16.msra.mxu0 0
      %2925 = vmatprep.subr.bf16.mxu0 0
      %2926 = vmatpush1.bf16.msra.mxu0 0
      %2927 = vmatprep.subr.bf16.mxu0 0
      %2928 = vmatpush1.bf16.msra.mxu0 0
      %2929 = vmatprep.subr.bf16.mxu0 0
      %2930 = vmatpush1.bf16.msra.mxu0 0
      %2931 = vmatprep.subr.bf16.mxu0 0
      %2932 = vmatpush1.bf16.msra.mxu0 0
      %2933 = vmatprep.subr.bf16.mxu0 0
      %2934 = vmatpush1.bf16.msra.mxu0 0
      %2935 = vmatprep.subr.bf16.mxu0 0
      %2936 = vmatpush1.bf16.msra.mxu0 0
      %2937 = vmatprep.mubr.bf16.mxu0 0
      %2938 = vmatmul.mubr.bf16.gmra.mrb[0].mxu0 %v2894
      %v2939 = vpop.f32.mrb[0].mxu0
      %v2940 = vadd.f32 0.0, %v2939
      %v2941 = vpop.f32.mrb[0].mxu0
      %v2942 = vadd.f32 0.0, %v2941
      %v2943 = vpop.f32.mrb[0].mxu0
      %v2944 = vadd.f32 0.0, %v2943
      %v2945 = vpop.f32.mrb[0].mxu0
      %v2946 = vadd.f32 0.0, %v2945
      %2947 = vmatprep.mubr.bf16.mxu0 0
      %2948 = vmatmul.mubr.bf16.gmra.mrb[0].mxu0 %v2897
      %v2949 = vpop.f32.mrb[0].mxu0
      %v2950 = vadd.f32 0.0, %v2949
      %v2951 = vpop.f32.mrb[0].mxu0
      %v2952 = vadd.f32 0.0, %v2951
      %v2953 = vpop.f32.mrb[0].mxu0
      %v2954 = vadd.f32 0.0, %v2953
      %v2955 = vpop.f32.mrb[0].mxu0
      %v2956 = vadd.f32 0.0, %v2955
      %2957 = vmatprep.mubr.bf16.mxu0 0
      %2958 = vmatmul.mubr.bf16.gmra.mrb[0].mxu0 %v2900
      %v2959 = vpop.f32.mrb[0].mxu0
      %v2960 = vadd.f32 0.0, %v2959
      %v2961 = vpop.f32.mrb[0].mxu0
      %v2962 = vadd.f32 0.0, %v2961
      %v2963 = vpop.f32.mrb[0].mxu0
      %v2964 = vadd.f32 0.0, %v2963
      %v2965 = vpop.f32.mrb[0].mxu0
      %v2966 = vadd.f32 0.0, %v2965
      %2967 = vmatprep.mubr.bf16.mxu0 0
      %2968 = vmatmul.mubr.bf16.gmra.mrb[0].mxu0 %v2903
      %v2969 = vpop.f32.mrb[0].mxu0
      %v2970 = vadd.f32 0.0, %v2969
      %v2971 = vpop.f32.mrb[0].mxu0
      %v2972 = vadd.f32 0.0, %v2971
      %v2973 = vpop.f32.mrb[0].mxu0
      %v2974 = vadd.f32 0.0, %v2973
      %v2975 = vpop.f32.mrb[0].mxu0
      %v2976 = vadd.f32 0.0, %v2975
      %2977 = vdwg.mxu0
      %v2978 = vadd.f32 %v2820, %v2940
      %v2979 = vadd.f32 %v2821, %v2942
      %v2980 = vadd.f32 %v2822, %v2944
      %v2981 = vadd.f32 %v2823, %v2946
      %v2982 = vadd.f32 %v2824, %v2950
      %v2983 = vadd.f32 %v2825, %v2952
      %v2984 = vadd.f32 %v2826, %v2954
      %v2985 = vadd.f32 %v2827, %v2956
      %v2986 = vadd.f32 %v2828, %v2960
      %v2987 = vadd.f32 %v2829, %v2962
      %v2988 = vadd.f32 %v2830, %v2964
      %v2989 = vadd.f32 %v2831, %v2966
      %v2990 = vadd.f32 %v2832, %v2970
      %v2991 = vadd.f32 %v2833, %v2972
      %v2992 = vadd.f32 %v2834, %v2974
      %v2993 = vadd.f32 %v2835, %v2976
      %s2994 = scalar_lea.vmem %s343, 192
      %v2995 = vld [vmem:[%s2994] sm:$0xf]
      %v2996 = vld [vmem:[%s2994 + $0x4] sm:$0xf]
      %v2997 = vld [vmem:[%s2994 + $0x8] sm:$0xf]
      %v2998 = vld [vmem:[%s2994 + $0xc] sm:$0xf]
      %v2999 = vld [vmem:[%s2994 + $0x10] sm:$0xf]
      %v3000 = vld [vmem:[%s2994 + $0x14] sm:$0xf]
      %v3001 = vld [vmem:[%s2994 + $0x18] sm:$0xf]
      %v3002 = vld [vmem:[%s2994 + $0x1c] sm:$0xf]
      %v3011 = vunpack.c.l.b16 %v2995
      %v3012 = vunpack.c.l.b16 %v2996
      %v3013 = vunpack.c.l.b16 %v2997
      %v3014 = vunpack.c.l.b16 %v2998
      %v3015 = vunpack.c.l.b16 %v2999
      %v3016 = vunpack.c.l.b16 %v3000
      %v3017 = vunpack.c.l.b16 %v3001
      %v3018 = vunpack.c.l.b16 %v3002
      %v3019 = vpack.c.b16 %v3012, %v3011
      %v3020 = vpack.c.b16 %v3014, %v3013
      %v3021 = vpack.c.b16 %v3016, %v3015
      %v3022 = vpack.c.b16 %v3018, %v3017
      %3023 = vrot.lane.b32.xlu0 %v2036, 119
      %v3024 = vpop.permute.xlu0 %3023
      %3025 = vrot.lane.b32.xlu0 %v2037, 119
      %v3026 = vpop.permute.xlu0 %3025
      %3027 = vrot.lane.b32.xlu0 %v2039, 119
      %v3028 = vpop.permute.xlu0 %3027
      %3029 = vrot.lane.b32.xlu0 %v2040, 119
      %v3030 = vpop.permute.xlu0 %3029
      %3031 = vrot.lane.b32.xlu0 %v2042, 119
      %v3032 = vpop.permute.xlu0 %3031
      %3033 = vrot.lane.b32.xlu0 %v2043, 119
      %v3034 = vpop.permute.xlu0 %3033
      %3035 = vrot.lane.b32.xlu0 %v2045, 119
      %v3036 = vpop.permute.xlu0 %3035
      %3037 = vrot.lane.b32.xlu0 %v2046, 119
      %v3038 = vpop.permute.xlu0 %3037
      %v3039 = vsel %vm1463, %v3024, %v3026
      %v3040 = vsel %vm1463, %v3028, %v3030
      %v3041 = vsel %vm1463, %v3032, %v3034
      %v3042 = vsel %vm1463, %v3036, %v3038
      %v3052 = vsel %vm507, %v3019, 0
      %v3055 = vsel %vm507, %v3020, 0
      %v3058 = vsel %vm507, %v3021, 0
      %v3061 = vsel %vm507, %v3022, 0
      %3063 = vmatprep.subr.bf16.mxu0 %v3026
      %3064 = vmatpush1.bf16.msra.mxu0 %v3039
      %3065 = vmatprep.subr.bf16.mxu0 %v3030
      %3066 = vmatpush1.bf16.msra.mxu0 %v3040
      %3067 = vmatprep.subr.bf16.mxu0 %v3034
      %3068 = vmatpush1.bf16.msra.mxu0 %v3041
      %3069 = vmatprep.subr.bf16.mxu0 %v3038
      %3070 = vmatpush1.bf16.msra.mxu0 %v3042
      %3071 = vmatprep.subr.bf16.mxu0 0
      %3072 = vmatpush1.bf16.msra.mxu0 0
      %3073 = vmatprep.subr.bf16.mxu0 0
      %3074 = vmatpush1.bf16.msra.mxu0 0
      %3075 = vmatprep.subr.bf16.mxu0 0
      %3076 = vmatpush1.bf16.msra.mxu0 0
      %3077 = vmatprep.subr.bf16.mxu0 0
      %3078 = vmatpush1.bf16.msra.mxu0 0
      %3079 = vmatprep.subr.bf16.mxu0 0
      %3080 = vmatpush1.bf16.msra.mxu0 0
      %3081 = vmatprep.subr.bf16.mxu0 0
      %3082 = vmatpush1.bf16.msra.mxu0 0
      %3083 = vmatprep.subr.bf16.mxu0 0
      %3084 = vmatpush1.bf16.msra.mxu0 0
      %3085 = vmatprep.subr.bf16.mxu0 0
      %3086 = vmatpush1.bf16.msra.mxu0 0
      %3087 = vmatprep.subr.bf16.mxu0 0
      %3088 = vmatpush1.bf16.msra.mxu0 0
      %3089 = vmatprep.subr.bf16.mxu0 0
      %3090 = vmatpush1.bf16.msra.mxu0 0
      %3091 = vmatprep.subr.bf16.mxu0 0
      %3092 = vmatpush1.bf16.msra.mxu0 0
      %3093 = vmatprep.subr.bf16.mxu0 0
      %3094 = vmatpush1.bf16.msra.mxu0 0
      %3095 = vmatprep.mubr.bf16.mxu0 0
      %3096 = vmatmul.mubr.bf16.gmra.mrb[0].mxu0 %v3052
      %v3097 = vpop.f32.mrb[0].mxu0
      %v3098 = vadd.f32 0.0, %v3097
      %v3099 = vpop.f32.mrb[0].mxu0
      %v3100 = vadd.f32 0.0, %v3099
      %v3101 = vpop.f32.mrb[0].mxu0
      %v3102 = vadd.f32 0.0, %v3101
      %v3103 = vpop.f32.mrb[0].mxu0
      %v3104 = vadd.f32 0.0, %v3103
      %3105 = vmatprep.mubr.bf16.mxu0 0
      %3106 = vmatmul.mubr.bf16.gmra.mrb[0].mxu0 %v3055
      %v3107 = vpop.f32.mrb[0].mxu0
      %v3108 = vadd.f32 0.0, %v3107
      %v3109 = vpop.f32.mrb[0].mxu0
      %v3110 = vadd.f32 0.0, %v3109
      %v3111 = vpop.f32.mrb[0].mxu0
      %v3112 = vadd.f32 0.0, %v3111
      %v3113 = vpop.f32.mrb[0].mxu0
      %v3114 = vadd.f32 0.0, %v3113
      %3115 = vmatprep.mubr.bf16.mxu0 0
      %3116 = vmatmul.mubr.bf16.gmra.mrb[0].mxu0 %v3058
      %v3117 = vpop.f32.mrb[0].mxu0
      %v3118 = vadd.f32 0.0, %v3117
      %v3119 = vpop.f32.mrb[0].mxu0
      %v3120 = vadd.f32 0.0, %v3119
      %v3121 = vpop.f32.mrb[0].mxu0
      %v3122 = vadd.f32 0.0, %v3121
      %v3123 = vpop.f32.mrb[0].mxu0
      %v3124 = vadd.f32 0.0, %v3123
      %3125 = vmatprep.mubr.bf16.mxu0 0
      %3126 = vmatmul.mubr.bf16.gmra.mrb[0].mxu0 %v3061
      %v3127 = vpop.f32.mrb[0].mxu0
      %v3128 = vadd.f32 0.0, %v3127
      %v3129 = vpop.f32.mrb[0].mxu0
      %v3130 = vadd.f32 0.0, %v3129
      %v3131 = vpop.f32.mrb[0].mxu0
      %v3132 = vadd.f32 0.0, %v3131
      %v3133 = vpop.f32.mrb[0].mxu0
      %v3134 = vadd.f32 0.0, %v3133
      %3135 = vdwg.mxu0
      %v3136 = vadd.f32 %v2978, %v3098
      %v3137 = vadd.f32 %v2979, %v3100
      %v3138 = vadd.f32 %v2980, %v3102
      %v3139 = vadd.f32 %v2981, %v3104
      %v3140 = vadd.f32 %v2982, %v3108
      %v3141 = vadd.f32 %v2983, %v3110
      %v3142 = vadd.f32 %v2984, %v3112
      %v3143 = vadd.f32 %v2985, %v3114
      %v3144 = vadd.f32 %v2986, %v3118
      %v3145 = vadd.f32 %v2987, %v3120
      %v3146 = vadd.f32 %v2988, %v3122
      %v3147 = vadd.f32 %v2989, %v3124
      %v3148 = vadd.f32 %v2990, %v3128
      %v3149 = vadd.f32 %v2991, %v3130
      %v3150 = vadd.f32 %v2992, %v3132
      %v3151 = vadd.f32 %v2993, %v3134
      %s3152 = scalar_lea.vmem %s343, 224
      %v3153 = vld [vmem:[%s3152] sm:$0xf]
      %v3154 = vld [vmem:[%s3152 + $0x4] sm:$0xf]
      %v3155 = vld [vmem:[%s3152 + $0x8] sm:$0xf]
      %v3156 = vld [vmem:[%s3152 + $0xc] sm:$0xf]
      %v3157 = vld [vmem:[%s3152 + $0x10] sm:$0xf]
      %v3158 = vld [vmem:[%s3152 + $0x14] sm:$0xf]
      %v3159 = vld [vmem:[%s3152 + $0x18] sm:$0xf]
      %v3160 = vld [vmem:[%s3152 + $0x1c] sm:$0xf]
      %v3169 = vunpack.c.l.b16 %v3153
      %v3170 = vunpack.c.l.b16 %v3154
      %v3171 = vunpack.c.l.b16 %v3155
      %v3172 = vunpack.c.l.b16 %v3156
      %v3173 = vunpack.c.l.b16 %v3157
      %v3174 = vunpack.c.l.b16 %v3158
      %v3175 = vunpack.c.l.b16 %v3159
      %v3176 = vunpack.c.l.b16 %v3160
      %v3177 = vpack.c.b16 %v3170, %v3169
      %v3178 = vpack.c.b16 %v3172, %v3171
      %v3179 = vpack.c.b16 %v3174, %v3173
      %v3180 = vpack.c.b16 %v3176, %v3175
      %3181 = vrot.lane.b32.xlu0 %v2036, 118
      %v3182 = vpop.permute.xlu0 %3181
      %3183 = vrot.lane.b32.xlu0 %v2037, 118
      %v3184 = vpop.permute.xlu0 %3183
      %3185 = vrot.lane.b32.xlu0 %v2039, 118
      %v3186 = vpop.permute.xlu0 %3185
      %3187 = vrot.lane.b32.xlu0 %v2040, 118
      %v3188 = vpop.permute.xlu0 %3187
      %3189 = vrot.lane.b32.xlu0 %v2042, 118
      %v3190 = vpop.permute.xlu0 %3189
      %3191 = vrot.lane.b32.xlu0 %v2043, 118
      %v3192 = vpop.permute.xlu0 %3191
      %3193 = vrot.lane.b32.xlu0 %v2045, 118
      %v3194 = vpop.permute.xlu0 %3193
      %3195 = vrot.lane.b32.xlu0 %v2046, 118
      %v3196 = vpop.permute.xlu0 %3195
      %v3197 = vsel %vm1622, %v3182, %v3184
      %v3198 = vsel %vm1622, %v3186, %v3188
      %v3199 = vsel %vm1622, %v3190, %v3192
      %v3200 = vsel %vm1622, %v3194, %v3196
      %v3210 = vsel %vm507, %v3177, 0
      %v3213 = vsel %vm507, %v3178, 0
      %v3216 = vsel %vm507, %v3179, 0
      %v3219 = vsel %vm507, %v3180, 0
      %3221 = vmatprep.subr.bf16.mxu0 %v3184
      %3222 = vmatpush1.bf16.msra.mxu0 %v3197
      %3223 = vmatprep.subr.bf16.mxu0 %v3188
      %3224 = vmatpush1.bf16.msra.mxu0 %v3198
      %3225 = vmatprep.subr.bf16.mxu0 %v3192
      %3226 = vmatpush1.bf16.msra.mxu0 %v3199
      %3227 = vmatprep.subr.bf16.mxu0 %v3196
      %3228 = vmatpush1.bf16.msra.mxu0 %v3200
      %3229 = vmatprep.subr.bf16.mxu0 0
      %3230 = vmatpush1.bf16.msra.mxu0 0
      %3231 = vmatprep.subr.bf16.mxu0 0
      %3232 = vmatpush1.bf16.msra.mxu0 0
      %3233 = vmatprep.subr.bf16.mxu0 0
      %3234 = vmatpush1.bf16.msra.mxu0 0
      %3235 = vmatprep.subr.bf16.mxu0 0
      %3236 = vmatpush1.bf16.msra.mxu0 0
      %3237 = vmatprep.subr.bf16.mxu0 0
      %3238 = vmatpush1.bf16.msra.mxu0 0
      %3239 = vmatprep.subr.bf16.mxu0 0
      %3240 = vmatpush1.bf16.msra.mxu0 0
      %3241 = vmatprep.subr.bf16.mxu0 0
      %3242 = vmatpush1.bf16.msra.mxu0 0
      %3243 = vmatprep.subr.bf16.mxu0 0
      %3244 = vmatpush1.bf16.msra.mxu0 0
      %3245 = vmatprep.subr.bf16.mxu0 0
      %3246 = vmatpush1.bf16.msra.mxu0 0
      %3247 = vmatprep.subr.bf16.mxu0 0
      %3248 = vmatpush1.bf16.msra.mxu0 0
      %3249 = vmatprep.subr.bf16.mxu0 0
      %3250 = vmatpush1.bf16.msra.mxu0 0
      %3251 = vmatprep.subr.bf16.mxu0 0
      %3252 = vmatpush1.bf16.msra.mxu0 0
      %3253 = vmatprep.mubr.bf16.mxu0 0
      %3254 = vmatmul.mubr.bf16.gmra.mrb[0].mxu0 %v3210
      %v3255 = vpop.f32.mrb[0].mxu0
      %v3256 = vadd.f32 0.0, %v3255
      %v3257 = vpop.f32.mrb[0].mxu0
      %v3258 = vadd.f32 0.0, %v3257
      %v3259 = vpop.f32.mrb[0].mxu0
      %v3260 = vadd.f32 0.0, %v3259
      %v3261 = vpop.f32.mrb[0].mxu0
      %v3262 = vadd.f32 0.0, %v3261
      %3263 = vmatprep.mubr.bf16.mxu0 0
      %3264 = vmatmul.mubr.bf16.gmra.mrb[0].mxu0 %v3213
      %v3265 = vpop.f32.mrb[0].mxu0
      %v3266 = vadd.f32 0.0, %v3265
      %v3267 = vpop.f32.mrb[0].mxu0
      %v3268 = vadd.f32 0.0, %v3267
      %v3269 = vpop.f32.mrb[0].mxu0
      %v3270 = vadd.f32 0.0, %v3269
      %v3271 = vpop.f32.mrb[0].mxu0
      %v3272 = vadd.f32 0.0, %v3271
      %3273 = vmatprep.mubr.bf16.mxu0 0
      %3274 = vmatmul.mubr.bf16.gmra.mrb[0].mxu0 %v3216
      %v3275 = vpop.f32.mrb[0].mxu0
      %v3276 = vadd.f32 0.0, %v3275
      %v3277 = vpop.f32.mrb[0].mxu0
      %v3278 = vadd.f32 0.0, %v3277
      %v3279 = vpop.f32.mrb[0].mxu0
      %v3280 = vadd.f32 0.0, %v3279
      %v3281 = vpop.f32.mrb[0].mxu0
      %v3282 = vadd.f32 0.0, %v3281
      %3283 = vmatprep.mubr.bf16.mxu0 0
      %3284 = vmatmul.mubr.bf16.gmra.mrb[0].mxu0 %v3219
      %v3285 = vpop.f32.mrb[0].mxu0
      %v3286 = vadd.f32 0.0, %v3285
      %v3287 = vpop.f32.mrb[0].mxu0
      %v3288 = vadd.f32 0.0, %v3287
      %v3289 = vpop.f32.mrb[0].mxu0
      %v3290 = vadd.f32 0.0, %v3289
      %v3291 = vpop.f32.mrb[0].mxu0
      %v3292 = vadd.f32 0.0, %v3291
      %3293 = vdwg.mxu0
      %v3294 = vadd.f32 %v3136, %v3256
      %v3295 = vadd.f32 %v3137, %v3258
      %v3296 = vadd.f32 %v3138, %v3260
      %v3297 = vadd.f32 %v3139, %v3262
      %v3298 = vadd.f32 %v3140, %v3266
      %v3299 = vadd.f32 %v3141, %v3268
      %v3300 = vadd.f32 %v3142, %v3270
      %v3301 = vadd.f32 %v3143, %v3272
      %v3302 = vadd.f32 %v3144, %v3276
      %v3303 = vadd.f32 %v3145, %v3278
      %v3304 = vadd.f32 %v3146, %v3280
      %v3305 = vadd.f32 %v3147, %v3282
      %v3306 = vadd.f32 %v3148, %v3286
      %v3307 = vadd.f32 %v3149, %v3288
      %v3308 = vadd.f32 %v3150, %v3290
      %v3309 = vadd.f32 %v3151, %v3292
      %s3310 = scalar_lea.vmem %s343, 256
      %v3311 = vld [vmem:[%s3310] sm:$0xf]
      %v3312 = vld [vmem:[%s3310 + $0x4] sm:$0xf]
      %v3313 = vld [vmem:[%s3310 + $0x8] sm:$0xf]
      %v3314 = vld [vmem:[%s3310 + $0xc] sm:$0xf]
      %v3315 = vld [vmem:[%s3310 + $0x10] sm:$0xf]
      %v3316 = vld [vmem:[%s3310 + $0x14] sm:$0xf]
      %v3317 = vld [vmem:[%s3310 + $0x18] sm:$0xf]
      %v3318 = vld [vmem:[%s3310 + $0x1c] sm:$0xf]
      %v3327 = vunpack.c.l.b16 %v3311
      %v3328 = vunpack.c.l.b16 %v3312
      %v3329 = vunpack.c.l.b16 %v3313
      %v3330 = vunpack.c.l.b16 %v3314
      %v3331 = vunpack.c.l.b16 %v3315
      %v3332 = vunpack.c.l.b16 %v3316
      %v3333 = vunpack.c.l.b16 %v3317
      %v3334 = vunpack.c.l.b16 %v3318
      %v3335 = vpack.c.b16 %v3328, %v3327
      %v3336 = vpack.c.b16 %v3330, %v3329
      %v3337 = vpack.c.b16 %v3332, %v3331
      %v3338 = vpack.c.b16 %v3334, %v3333
      %3339 = vrot.lane.b32.xlu0 %v2036, 117
      %v3340 = vpop.permute.xlu0 %3339
      %3341 = vrot.lane.b32.xlu0 %v2037, 117
      %v3342 = vpop.permute.xlu0 %3341
      %3343 = vrot.lane.b32.xlu0 %v2039, 117
      %v3344 = vpop.permute.xlu0 %3343
      %3345 = vrot.lane.b32.xlu0 %v2040, 117
      %v3346 = vpop.permute.xlu0 %3345
      %3347 = vrot.lane.b32.xlu0 %v2042, 117
      %v3348 = vpop.permute.xlu0 %3347
      %3349 = vrot.lane.b32.xlu0 %v2043, 117
      %v3350 = vpop.permute.xlu0 %3349
      %3351 = vrot.lane.b32.xlu0 %v2045, 117
      %v3352 = vpop.permute.xlu0 %3351
      %3353 = vrot.lane.b32.xlu0 %v2046, 117
      %v3354 = vpop.permute.xlu0 %3353
      %v3355 = vsel %vm1781, %v3340, %v3342
      %v3356 = vsel %vm1781, %v3344, %v3346
      %v3357 = vsel %vm1781, %v3348, %v3350
      %v3358 = vsel %vm1781, %v3352, %v3354
      %v3368 = vsel %vm507, %v3335, 0
      %v3371 = vsel %vm507, %v3336, 0
      %v3374 = vsel %vm507, %v3337, 0
      %v3377 = vsel %vm507, %v3338, 0
      %3379 = vmatprep.subr.bf16.mxu0 %v3342
      %3380 = vmatpush1.bf16.msra.mxu0 %v3355
      %3381 = vmatprep.subr.bf16.mxu0 %v3346
      %3382 = vmatpush1.bf16.msra.mxu0 %v3356
      %3383 = vmatprep.subr.bf16.mxu0 %v3350
      %3384 = vmatpush1.bf16.msra.mxu0 %v3357
      %3385 = vmatprep.subr.bf16.mxu0 %v3354
      %3386 = vmatpush1.bf16.msra.mxu0 %v3358
      %3387 = vmatprep.subr.bf16.mxu0 0
      %3388 = vmatpush1.bf16.msra.mxu0 0
      %3389 = vmatprep.subr.bf16.mxu0 0
      %3390 = vmatpush1.bf16.msra.mxu0 0
      %3391 = vmatprep.subr.bf16.mxu0 0
      %3392 = vmatpush1.bf16.msra.mxu0 0
      %3393 = vmatprep.subr.bf16.mxu0 0
      %3394 = vmatpush1.bf16.msra.mxu0 0
      %3395 = vmatprep.subr.bf16.mxu0 0
      %3396 = vmatpush1.bf16.msra.mxu0 0
      %3397 = vmatprep.subr.bf16.mxu0 0
      %3398 = vmatpush1.bf16.msra.mxu0 0
      %3399 = vmatprep.subr.bf16.mxu0 0
      %3400 = vmatpush1.bf16.msra.mxu0 0
      %3401 = vmatprep.subr.bf16.mxu0 0
      %3402 = vmatpush1.bf16.msra.mxu0 0
      %3403 = vmatprep.subr.bf16.mxu0 0
      %3404 = vmatpush1.bf16.msra.mxu0 0
      %3405 = vmatprep.subr.bf16.mxu0 0
      %3406 = vmatpush1.bf16.msra.mxu0 0
      %3407 = vmatprep.subr.bf16.mxu0 0
      %3408 = vmatpush1.bf16.msra.mxu0 0
      %3409 = vmatprep.subr.bf16.mxu0 0
      %3410 = vmatpush1.bf16.msra.mxu0 0
      %3411 = vmatprep.mubr.bf16.mxu0 0
      %3412 = vmatmul.mubr.bf16.gmra.mrb[0].mxu0 %v3368
      %v3413 = vpop.f32.mrb[0].mxu0
      %v3414 = vadd.f32 0.0, %v3413
      %v3415 = vpop.f32.mrb[0].mxu0
      %v3416 = vadd.f32 0.0, %v3415
      %v3417 = vpop.f32.mrb[0].mxu0
      %v3418 = vadd.f32 0.0, %v3417
      %v3419 = vpop.f32.mrb[0].mxu0
      %v3420 = vadd.f32 0.0, %v3419
      %3421 = vmatprep.mubr.bf16.mxu0 0
      %3422 = vmatmul.mubr.bf16.gmra.mrb[0].mxu0 %v3371
      %v3423 = vpop.f32.mrb[0].mxu0
      %v3424 = vadd.f32 0.0, %v3423
      %v3425 = vpop.f32.mrb[0].mxu0
      %v3426 = vadd.f32 0.0, %v3425
      %v3427 = vpop.f32.mrb[0].mxu0
      %v3428 = vadd.f32 0.0, %v3427
      %v3429 = vpop.f32.mrb[0].mxu0
      %v3430 = vadd.f32 0.0, %v3429
      %3431 = vmatprep.mubr.bf16.mxu0 0
      %3432 = vmatmul.mubr.bf16.gmra.mrb[0].mxu0 %v3374
      %v3433 = vpop.f32.mrb[0].mxu0
      %v3434 = vadd.f32 0.0, %v3433
      %v3435 = vpop.f32.mrb[0].mxu0
      %v3436 = vadd.f32 0.0, %v3435
      %v3437 = vpop.f32.mrb[0].mxu0
      %v3438 = vadd.f32 0.0, %v3437
      %v3439 = vpop.f32.mrb[0].mxu0
      %v3440 = vadd.f32 0.0, %v3439
      %3441 = vmatprep.mubr.bf16.mxu0 0
      %3442 = vmatmul.mubr.bf16.gmra.mrb[0].mxu0 %v3377
      %v3443 = vpop.f32.mrb[0].mxu0
      %v3444 = vadd.f32 0.0, %v3443
      %v3445 = vpop.f32.mrb[0].mxu0
      %v3446 = vadd.f32 0.0, %v3445
      %v3447 = vpop.f32.mrb[0].mxu0
      %v3448 = vadd.f32 0.0, %v3447
      %v3449 = vpop.f32.mrb[0].mxu0
      %v3450 = vadd.f32 0.0, %v3449
      %3451 = vdwg.mxu0
      %v3452 = vadd.f32 %v3294, %v3414
      %v3453 = vadd.f32 %v3295, %v3416
      %v3454 = vadd.f32 %v3296, %v3418
      %v3455 = vadd.f32 %v3297, %v3420
      %v3456 = vadd.f32 %v3298, %v3424
      %v3457 = vadd.f32 %v3299, %v3426
      %v3458 = vadd.f32 %v3300, %v3428
      %v3459 = vadd.f32 %v3301, %v3430
      %v3460 = vadd.f32 %v3302, %v3434
      %v3461 = vadd.f32 %v3303, %v3436
      %v3462 = vadd.f32 %v3304, %v3438
      %v3463 = vadd.f32 %v3305, %v3440
      %v3464 = vadd.f32 %v3306, %v3444
      %v3465 = vadd.f32 %v3307, %v3446
      %v3466 = vadd.f32 %v3308, %v3448
      %v3467 = vadd.f32 %v3309, %v3450
      %v3468 = vld [vmem:[%s0 + $0x4] sm:$0xff]
      %v3469 = vld [vmem:[%s0 + $0x14] sm:$0xff]
      %v3470 = vld [vmem:[%s0 + $0x24] sm:$0xff]
      %v3471 = vld [vmem:[%s0 + $0x34] sm:$0xff]
      %v3472 = vld [vmem:[%s0 + $0x44] sm:$0xff]
      %v3473 = vld [vmem:[%s0 + $0x54] sm:$0xff]
      %v3474 = vld [vmem:[%s0 + $0x64] sm:$0xff]
      %v3475 = vld [vmem:[%s0 + $0x74] sm:$0xff]
      %v3476 = vunpack.c.l.bf16 %v3468
      %v3477 = vunpack.c.h.bf16 %v3468
      %v3478 = vunpack.c.l.bf16 %v3469
      %v3479 = vunpack.c.h.bf16 %v3469
      %v3480 = vunpack.c.l.bf16 %v3470
      %v3481 = vunpack.c.h.bf16 %v3470
      %v3482 = vunpack.c.l.bf16 %v3471
      %v3483 = vunpack.c.h.bf16 %v3471
      %v3484 = vunpack.c.l.bf16 %v3472
      %v3485 = vunpack.c.h.bf16 %v3472
      %v3486 = vunpack.c.l.bf16 %v3473
      %v3487 = vunpack.c.h.bf16 %v3473
      %v3488 = vunpack.c.l.bf16 %v3474
      %v3489 = vunpack.c.h.bf16 %v3474
      %v3490 = vunpack.c.l.bf16 %v3475
      %v3491 = vunpack.c.h.bf16 %v3475
      %v3492 = vld [vmem:[%s348] sm:$0xff]
      %v3493 = vld [vmem:[%s348 + $0x8] sm:$0xff]
      %v3494 = vld [vmem:[%s348 + $0x10] sm:$0xff]
      %v3495 = vld [vmem:[%s348 + $0x18] sm:$0xff]
      %v3496 = vld [vmem:[%s348 + $0x20] sm:$0xff]
      %v3497 = vld [vmem:[%s348 + $0x28] sm:$0xff]
      %v3498 = vld [vmem:[%s348 + $0x30] sm:$0xff]
      %v3499 = vld [vmem:[%s348 + $0x38] sm:$0xff]
      %3501 = vset.pattern.permute.xlu0 0
      %3502 = vperm.xlu0 %3501, %v3492
      %v3503 = vpop.permute.xlu0 %3502
      %3506 = vset.pattern.permute.xlu0 0
      %3507 = vperm.xlu0 %3506, %v3493
      %v3508 = vpop.permute.xlu0 %3507
      %3511 = vset.pattern.permute.xlu0 0
      %3512 = vperm.xlu0 %3511, %v3494
      %v3513 = vpop.permute.xlu0 %3512
      %3516 = vset.pattern.permute.xlu0 0
      %3517 = vperm.xlu0 %3516, %v3495
      %v3518 = vpop.permute.xlu0 %3517
      %3521 = vset.pattern.permute.xlu0 0
      %3522 = vperm.xlu0 %3521, %v3496
      %v3523 = vpop.permute.xlu0 %3522
      %3526 = vset.pattern.permute.xlu0 0
      %3527 = vperm.xlu0 %3526, %v3497
      %v3528 = vpop.permute.xlu0 %3527
      %3531 = vset.pattern.permute.xlu0 0
      %3532 = vperm.xlu0 %3531, %v3498
      %v3533 = vpop.permute.xlu0 %3532
      %3536 = vset.pattern.permute.xlu0 0
      %3537 = vperm.xlu0 %3536, %v3499
      %v3538 = vpop.permute.xlu0 %3537
      %v3540 = vadd.f32 %v3452, %v3503
      %v3541 = vadd.f32 %v3453, %v3503
      %v3542 = vadd.f32 %v3454, %v3508
      %v3543 = vadd.f32 %v3455, %v3508
      %v3544 = vadd.f32 %v3456, %v3513
      %v3545 = vadd.f32 %v3457, %v3513
      %v3546 = vadd.f32 %v3458, %v3518
      %v3547 = vadd.f32 %v3459, %v3518
      %v3548 = vadd.f32 %v3460, %v3523
      %v3549 = vadd.f32 %v3461, %v3523
      %v3550 = vadd.f32 %v3462, %v3528
      %v3551 = vadd.f32 %v3463, %v3528
      %v3552 = vadd.f32 %v3464, %v3533
      %v3553 = vadd.f32 %v3465, %v3533
      %v3554 = vadd.f32 %v3466, %v3538
      %v3555 = vadd.f32 %v3467, %v3538
      %v3556 = vadd.f32 %v3540, %v3476
      %v3557 = vadd.f32 %v3541, %v3477
      %v3558 = vadd.f32 %v3542, %v3478
      %v3559 = vadd.f32 %v3543, %v3479
      %v3560 = vadd.f32 %v3544, %v3480
      %v3561 = vadd.f32 %v3545, %v3481
      %v3562 = vadd.f32 %v3546, %v3482
      %v3563 = vadd.f32 %v3547, %v3483
      %v3564 = vadd.f32 %v3548, %v3484
      %v3565 = vadd.f32 %v3549, %v3485
      %v3566 = vadd.f32 %v3550, %v3486
      %v3567 = vadd.f32 %v3551, %v3487
      %v3568 = vadd.f32 %v3552, %v3488
      %v3569 = vadd.f32 %v3553, %v3489
      %v3570 = vadd.f32 %v3554, %v3490
      %v3571 = vadd.f32 %v3555, %v3491
      %v3572 = vmax.f32 %v3556, 0.0
      %v3573 = vmax.f32 %v3557, 0.0
      %v3574 = vmax.f32 %v3558, 0.0
      %v3575 = vmax.f32 %v3559, 0.0
      %v3576 = vmax.f32 %v3560, 0.0
      %v3577 = vmax.f32 %v3561, 0.0
      %v3578 = vmax.f32 %v3562, 0.0
      %v3579 = vmax.f32 %v3563, 0.0
      %v3580 = vmax.f32 %v3564, 0.0
      %v3581 = vmax.f32 %v3565, 0.0
      %v3582 = vmax.f32 %v3566, 0.0
      %v3583 = vmax.f32 %v3567, 0.0
      %v3584 = vmax.f32 %v3568, 0.0
      %v3585 = vmax.f32 %v3569, 0.0
      %v3586 = vmax.f32 %v3570, 0.0
      %v3587 = vmax.f32 %v3571, 0.0
      %v3588 = vmul.f32 %v3572, %v1979
      %v3589 = vmul.f32 %v3573, %v1983
      %v3590 = vmul.f32 %v3574, %v1979
      %v3591 = vmul.f32 %v3575, %v1983
      %v3592 = vmul.f32 %v3576, %v1979
      %v3593 = vmul.f32 %v3577, %v1983
      %v3594 = vmul.f32 %v3578, %v1979
      %v3595 = vmul.f32 %v3579, %v1983
      %v3596 = vmul.f32 %v3580, %v1979
      %v3597 = vmul.f32 %v3581, %v1983
      %v3598 = vmul.f32 %v3582, %v1979
      %v3599 = vmul.f32 %v3583, %v1983
      %v3600 = vmul.f32 %v3584, %v1979
      %v3601 = vmul.f32 %v3585, %v1983
      %v3602 = vmul.f32 %v3586, %v1979
      %v3603 = vmul.f32 %v3587, %v1983
      %3604 = vst [vmem:[#allocation3] sm:$0xff] 0
      %3605 = vst [vmem:[#allocation3 + $0x8] sm:$0xff] 0
      %3606 = vst [vmem:[#allocation3 + $0x10] sm:$0xff] 0
      %3607 = vst.msk [vmem:[#allocation3 + $0x18] sm:$0xff] %vm2005, 0
      %3608 = vst [vmem:[#allocation3 + $0x20] sm:$0xff] 0
      %3609 = vst [vmem:[#allocation3 + $0x28] sm:$0xff] 0
      %3610 = vst [vmem:[#allocation3 + $0x30] sm:$0xff] 0
      %3611 = vst.msk [vmem:[#allocation3 + $0x38] sm:$0xff] %vm2005, 0
      %3612 = vst [vmem:[#allocation3 + $0x40] sm:$0xff] 0
      %3613 = vst [vmem:[#allocation3 + $0x48] sm:$0xff] 0
      %3614 = vst [vmem:[#allocation3 + $0x50] sm:$0xff] 0
      %3615 = vst.msk [vmem:[#allocation3 + $0x58] sm:$0xff] %vm2005, 0
      %3616 = vst [vmem:[#allocation3 + $0x60] sm:$0xff] 0
      %3617 = vst [vmem:[#allocation3 + $0x68] sm:$0xff] 0
      %3618 = vst [vmem:[#allocation3 + $0x70] sm:$0xff] 0
      %3619 = vst.msk [vmem:[#allocation3 + $0x78] sm:$0xff] %vm2005, 0
      %v3620 = vpack.c.bf16 %v3590, %v3588
      %v3621 = vpack.c.bf16 %v3591, %v3589
      %v3622 = vpack.c.bf16 %v3594, %v3592
      %v3623 = vpack.c.bf16 %v3595, %v3593
      %v3624 = vpack.c.bf16 %v3598, %v3596
      %v3625 = vpack.c.bf16 %v3599, %v3597
      %v3626 = vpack.c.bf16 %v3602, %v3600
      %v3627 = vpack.c.bf16 %v3603, %v3601
      %3628 = vst [vmem:[#allocation3 + $0x8] sm:$0xff] %v3620
      %3629 = vst.msk [vmem:[#allocation3 + $0x10] sm:$0xff] %vm2005, %v3621
      %3630 = vst [vmem:[#allocation3 + $0x28] sm:$0xff] %v3622
      %3631 = vst.msk [vmem:[#allocation3 + $0x30] sm:$0xff] %vm2005, %v3623
      %3632 = vst [vmem:[#allocation3 + $0x48] sm:$0xff] %v3624
      %3633 = vst.msk [vmem:[#allocation3 + $0x50] sm:$0xff] %vm2005, %v3625
      %3634 = vst [vmem:[#allocation3 + $0x68] sm:$0xff] %v3626
      %3635 = vst.msk [vmem:[#allocation3 + $0x70] sm:$0xff] %vm2005, %v3627
      %v3636 = vld [vmem:[#allocation3] sm:$0xff]
      %v3637 = vld [vmem:[#allocation3 + $0x8] sm:$0xff]
      %v3638 = vld [vmem:[#allocation3 + $0x10] sm:$0xff]
      %v3639 = vld [vmem:[#allocation3 + $0x20] sm:$0xff]
      %v3640 = vld [vmem:[#allocation3 + $0x28] sm:$0xff]
      %v3641 = vld [vmem:[#allocation3 + $0x30] sm:$0xff]
      %v3642 = vld [vmem:[#allocation3 + $0x40] sm:$0xff]
      %v3643 = vld [vmem:[#allocation3 + $0x48] sm:$0xff]
      %v3644 = vld [vmem:[#allocation3 + $0x50] sm:$0xff]
      %v3645 = vld [vmem:[#allocation3 + $0x60] sm:$0xff]
      %v3646 = vld [vmem:[#allocation3 + $0x68] sm:$0xff]
      %v3647 = vld [vmem:[#allocation3 + $0x70] sm:$0xff]
      %v3648 = vld [vmem:[%s353] sm:$0xf]
      %s3649 = scalar_lea.vmem %s353, 4
      %v3650 = vld [vmem:[%s3649] sm:$0xf]
      %3663 = vrot.lane.b32.xlu0 %v3636, 10
      %v3664 = vpop.permute.xlu0 %3663
      %3665 = vrot.lane.b32.xlu0 %v3637, 10
      %v3666 = vpop.permute.xlu0 %3665
      %3667 = vrot.lane.b32.xlu0 %v3638, 10
      %v3668 = vpop.permute.xlu0 %3667
      %3669 = vrot.lane.b32.xlu0 %v3639, 10
      %v3670 = vpop.permute.xlu0 %3669
      %3671 = vrot.lane.b32.xlu0 %v3640, 10
      %v3672 = vpop.permute.xlu0 %3671
      %3673 = vrot.lane.b32.xlu0 %v3641, 10
      %v3674 = vpop.permute.xlu0 %3673
      %3675 = vrot.lane.b32.xlu0 %v3642, 10
      %v3676 = vpop.permute.xlu0 %3675
      %3677 = vrot.lane.b32.xlu0 %v3643, 10
      %v3678 = vpop.permute.xlu0 %3677
      %3679 = vrot.lane.b32.xlu0 %v3644, 10
      %v3680 = vpop.permute.xlu0 %3679
      %3681 = vrot.lane.b32.xlu0 %v3645, 10
      %v3682 = vpop.permute.xlu0 %3681
      %3683 = vrot.lane.b32.xlu0 %v3646, 10
      %v3684 = vpop.permute.xlu0 %3683
      %3685 = vrot.lane.b32.xlu0 %v3647, 10
      %v3686 = vpop.permute.xlu0 %3685
      %v3687 = vsel %vm490, %v3664, %v3666
      %v3688 = vsel %vm490, %v3666, %v3668
      %v3689 = vsel %vm490, %v3670, %v3672
      %v3690 = vsel %vm490, %v3672, %v3674
      %v3691 = vsel %vm490, %v3676, %v3678
      %v3692 = vsel %vm490, %v3678, %v3680
      %v3693 = vsel %vm490, %v3682, %v3684
      %v3694 = vsel %vm490, %v3684, %v3686
      %v3704 = vsel %vm507, %v3650, 0
      %3706 = vmatprep.subr.bf16.mxu0 %v3688
      %3707 = vmatpush1.bf16.msra.mxu0 %v3687
      %3708 = vmatprep.subr.bf16.mxu0 %v3690
      %3709 = vmatpush1.bf16.msra.mxu0 %v3689
      %3710 = vmatprep.subr.bf16.mxu0 %v3692
      %3711 = vmatpush1.bf16.msra.mxu0 %v3691
      %3712 = vmatprep.subr.bf16.mxu0 %v3694
      %3713 = vmatpush1.bf16.msra.mxu0 %v3693
      %3714 = vmatprep.subr.bf16.mxu0 0
      %3715 = vmatpush1.bf16.msra.mxu0 0
      %3716 = vmatprep.subr.bf16.mxu0 0
      %3717 = vmatpush1.bf16.msra.mxu0 0
      %3718 = vmatprep.subr.bf16.mxu0 0
      %3719 = vmatpush1.bf16.msra.mxu0 0
      %3720 = vmatprep.subr.bf16.mxu0 0
      %3721 = vmatpush1.bf16.msra.mxu0 0
      %3722 = vmatprep.subr.bf16.mxu0 0
      %3723 = vmatpush1.bf16.msra.mxu0 0
      %3724 = vmatprep.subr.bf16.mxu0 0
      %3725 = vmatpush1.bf16.msra.mxu0 0
      %3726 = vmatprep.subr.bf16.mxu0 0
      %3727 = vmatpush1.bf16.msra.mxu0 0
      %3728 = vmatprep.subr.bf16.mxu0 0
      %3729 = vmatpush1.bf16.msra.mxu0 0
      %3730 = vmatprep.subr.bf16.mxu0 0
      %3731 = vmatpush1.bf16.msra.mxu0 0
      %3732 = vmatprep.subr.bf16.mxu0 0
      %3733 = vmatpush1.bf16.msra.mxu0 0
      %3734 = vmatprep.subr.bf16.mxu0 0
      %3735 = vmatpush1.bf16.msra.mxu0 0
      %3736 = vmatprep.subr.bf16.mxu0 0
      %3737 = vmatpush1.bf16.msra.mxu0 0
      %3738 = vmatprep.mubr.bf16.mxu0 0
      %3739 = vmatmul.mubr.bf16.gmra.mrb[0].mxu0 %v3704
      %v3740 = vpop.f32.mrb[0].mxu0
      %v3741 = vadd.f32 0.0, %v3740
      %v3742 = vpop.f32.mrb[0].mxu0
      %v3743 = vadd.f32 0.0, %v3742
      %v3744 = vpop.f32.mrb[0].mxu0
      %v3745 = vpop.f32.mrb[0].mxu0
      %3746 = vdwg.mxu0
      %3747 = vrot.lane.b32.xlu0 %v3636, 11
      %v3748 = vpop.permute.xlu0 %3747
      %3749 = vrot.lane.b32.xlu0 %v3637, 11
      %v3750 = vpop.permute.xlu0 %3749
      %3751 = vrot.lane.b32.xlu0 %v3638, 11
      %v3752 = vpop.permute.xlu0 %3751
      %3753 = vrot.lane.b32.xlu0 %v3639, 11
      %v3754 = vpop.permute.xlu0 %3753
      %3755 = vrot.lane.b32.xlu0 %v3640, 11
      %v3756 = vpop.permute.xlu0 %3755
      %3757 = vrot.lane.b32.xlu0 %v3641, 11
      %v3758 = vpop.permute.xlu0 %3757
      %3759 = vrot.lane.b32.xlu0 %v3642, 11
      %v3760 = vpop.permute.xlu0 %3759
      %3761 = vrot.lane.b32.xlu0 %v3643, 11
      %v3762 = vpop.permute.xlu0 %3761
      %3763 = vrot.lane.b32.xlu0 %v3644, 11
      %v3764 = vpop.permute.xlu0 %3763
      %3765 = vrot.lane.b32.xlu0 %v3645, 11
      %v3766 = vpop.permute.xlu0 %3765
      %3767 = vrot.lane.b32.xlu0 %v3646, 11
      %v3768 = vpop.permute.xlu0 %3767
      %3769 = vrot.lane.b32.xlu0 %v3647, 11
      %v3770 = vpop.permute.xlu0 %3769
      %v3771 = vsel %vm637, %v3748, %v3750
      %v3772 = vsel %vm637, %v3750, %v3752
      %v3773 = vsel %vm637, %v3754, %v3756
      %v3774 = vsel %vm637, %v3756, %v3758
      %v3775 = vsel %vm637, %v3760, %v3762
      %v3776 = vsel %vm637, %v3762, %v3764
      %v3777 = vsel %vm637, %v3766, %v3768
      %v3778 = vsel %vm637, %v3768, %v3770
      %v3788 = vsel %vm507, %v3648, 0
      %3790 = vmatprep.subr.bf16.mxu0 %v3772
      %3791 = vmatpush1.bf16.msra.mxu0 %v3771
      %3792 = vmatprep.subr.bf16.mxu0 %v3774
      %3793 = vmatpush1.bf16.msra.mxu0 %v3773
      %3794 = vmatprep.subr.bf16.mxu0 %v3776
      %3795 = vmatpush1.bf16.msra.mxu0 %v3775
      %3796 = vmatprep.subr.bf16.mxu0 %v3778
      %3797 = vmatpush1.bf16.msra.mxu0 %v3777
      %3798 = vmatprep.subr.bf16.mxu0 0
      %3799 = vmatpush1.bf16.msra.mxu0 0
      %3800 = vmatprep.subr.bf16.mxu0 0
      %3801 = vmatpush1.bf16.msra.mxu0 0
      %3802 = vmatprep.subr.bf16.mxu0 0
      %3803 = vmatpush1.bf16.msra.mxu0 0
      %3804 = vmatprep.subr.bf16.mxu0 0
      %3805 = vmatpush1.bf16.msra.mxu0 0
      %3806 = vmatprep.subr.bf16.mxu0 0
      %3807 = vmatpush1.bf16.msra.mxu0 0
      %3808 = vmatprep.subr.bf16.mxu0 0
      %3809 = vmatpush1.bf16.msra.mxu0 0
      %3810 = vmatprep.subr.bf16.mxu0 0
      %3811 = vmatpush1.bf16.msra.mxu0 0
      %3812 = vmatprep.subr.bf16.mxu0 0
      %3813 = vmatpush1.bf16.msra.mxu0 0
      %3814 = vmatprep.subr.bf16.mxu0 0
      %3815 = vmatpush1.bf16.msra.mxu0 0
      %3816 = vmatprep.subr.bf16.mxu0 0
      %3817 = vmatpush1.bf16.msra.mxu0 0
      %3818 = vmatprep.subr.bf16.mxu0 0
      %3819 = vmatpush1.bf16.msra.mxu0 0
      %3820 = vmatprep.subr.bf16.mxu0 0
      %3821 = vmatpush1.bf16.msra.mxu0 0
      %3822 = vmatprep.mubr.bf16.mxu0 0
      %3823 = vmatmul.mubr.bf16.gmra.mrb[0].mxu0 %v3788
      %v3824 = vpop.f32.mrb[0].mxu0
      %v3825 = vadd.f32 %v3741, %v3824
      %v3826 = vpop.f32.mrb[0].mxu0
      %v3827 = vadd.f32 %v3743, %v3826
      %v3828 = vpop.f32.mrb[0].mxu0
      %v3829 = vpop.f32.mrb[0].mxu0
      %3830 = vdwg.mxu0
      %s3831 = scalar_lea.vmem %s353, 8
      %v3832 = vld [vmem:[%s3831] sm:$0xf]
      %3833 = vrot.lane.b32.xlu0 %v3636, 9
      %v3834 = vpop.permute.xlu0 %3833
      %3835 = vrot.lane.b32.xlu0 %v3637, 9
      %v3836 = vpop.permute.xlu0 %3835
      %3837 = vrot.lane.b32.xlu0 %v3638, 9
      %v3838 = vpop.permute.xlu0 %3837
      %3839 = vrot.lane.b32.xlu0 %v3639, 9
      %v3840 = vpop.permute.xlu0 %3839
      %3841 = vrot.lane.b32.xlu0 %v3640, 9
      %v3842 = vpop.permute.xlu0 %3841
      %3843 = vrot.lane.b32.xlu0 %v3641, 9
      %v3844 = vpop.permute.xlu0 %3843
      %3845 = vrot.lane.b32.xlu0 %v3642, 9
      %v3846 = vpop.permute.xlu0 %3845
      %3847 = vrot.lane.b32.xlu0 %v3643, 9
      %v3848 = vpop.permute.xlu0 %3847
      %3849 = vrot.lane.b32.xlu0 %v3644, 9
      %v3850 = vpop.permute.xlu0 %3849
      %3851 = vrot.lane.b32.xlu0 %v3645, 9
      %v3852 = vpop.permute.xlu0 %3851
      %3853 = vrot.lane.b32.xlu0 %v3646, 9
      %v3854 = vpop.permute.xlu0 %3853
      %3855 = vrot.lane.b32.xlu0 %v3647, 9
      %v3856 = vpop.permute.xlu0 %3855
      %v3857 = vsel %vm792, %v3834, %v3836
      %v3858 = vsel %vm792, %v3836, %v3838
      %v3859 = vsel %vm792, %v3840, %v3842
      %v3860 = vsel %vm792, %v3842, %v3844
      %v3861 = vsel %vm792, %v3846, %v3848
      %v3862 = vsel %vm792, %v3848, %v3850
      %v3863 = vsel %vm792, %v3852, %v3854
      %v3864 = vsel %vm792, %v3854, %v3856
      %v3874 = vsel %vm507, %v3832, 0
      %3876 = vmatprep.subr.bf16.mxu0 %v3858
      %3877 = vmatpush1.bf16.msra.mxu0 %v3857
      %3878 = vmatprep.subr.bf16.mxu0 %v3860
      %3879 = vmatpush1.bf16.msra.mxu0 %v3859
      %3880 = vmatprep.subr.bf16.mxu0 %v3862
      %3881 = vmatpush1.bf16.msra.mxu0 %v3861
      %3882 = vmatprep.subr.bf16.mxu0 %v3864
      %3883 = vmatpush1.bf16.msra.mxu0 %v3863
      %3884 = vmatprep.subr.bf16.mxu0 0
      %3885 = vmatpush1.bf16.msra.mxu0 0
      %3886 = vmatprep.subr.bf16.mxu0 0
      %3887 = vmatpush1.bf16.msra.mxu0 0
      %3888 = vmatprep.subr.bf16.mxu0 0
      %3889 = vmatpush1.bf16.msra.mxu0 0
      %3890 = vmatprep.subr.bf16.mxu0 0
      %3891 = vmatpush1.bf16.msra.mxu0 0
      %3892 = vmatprep.subr.bf16.mxu0 0
      %3893 = vmatpush1.bf16.msra.mxu0 0
      %3894 = vmatprep.subr.bf16.mxu0 0
      %3895 = vmatpush1.bf16.msra.mxu0 0
      %3896 = vmatprep.subr.bf16.mxu0 0
      %3897 = vmatpush1.bf16.msra.mxu0 0
      %3898 = vmatprep.subr.bf16.mxu0 0
      %3899 = vmatpush1.bf16.msra.mxu0 0
      %3900 = vmatprep.subr.bf16.mxu0 0
      %3901 = vmatpush1.bf16.msra.mxu0 0
      %3902 = vmatprep.subr.bf16.mxu0 0
      %3903 = vmatpush1.bf16.msra.mxu0 0
      %3904 = vmatprep.subr.bf16.mxu0 0
      %3905 = vmatpush1.bf16.msra.mxu0 0
      %3906 = vmatprep.subr.bf16.mxu0 0
      %3907 = vmatpush1.bf16.msra.mxu0 0
      %3908 = vmatprep.mubr.bf16.mxu0 0
      %3909 = vmatmul.mubr.bf16.gmra.mrb[0].mxu0 %v3874
      %v3910 = vpop.f32.mrb[0].mxu0
      %v3911 = vadd.f32 0.0, %v3910
      %v3912 = vpop.f32.mrb[0].mxu0
      %v3913 = vadd.f32 0.0, %v3912
      %v3914 = vpop.f32.mrb[0].mxu0
      %v3915 = vpop.f32.mrb[0].mxu0
      %3916 = vdwg.mxu0
      %v3917 = vadd.f32 %v3825, %v3911
      %v3918 = vadd.f32 %v3827, %v3913
      %s3919 = scalar_lea.vmem %s353, 12
      %v3920 = vld [vmem:[%s3919] sm:$0xf]
      %3921 = vrot.lane.b32.xlu0 %v3636, 1
      %v3922 = vpop.permute.xlu0 %3921
      %3923 = vrot.lane.b32.xlu0 %v3637, 1
      %v3924 = vpop.permute.xlu0 %3923
      %3925 = vrot.lane.b32.xlu0 %v3638, 1
      %v3926 = vpop.permute.xlu0 %3925
      %3927 = vrot.lane.b32.xlu0 %v3639, 1
      %v3928 = vpop.permute.xlu0 %3927
      %3929 = vrot.lane.b32.xlu0 %v3640, 1
      %v3930 = vpop.permute.xlu0 %3929
      %3931 = vrot.lane.b32.xlu0 %v3641, 1
      %v3932 = vpop.permute.xlu0 %3931
      %3933 = vrot.lane.b32.xlu0 %v3642, 1
      %v3934 = vpop.permute.xlu0 %3933
      %3935 = vrot.lane.b32.xlu0 %v3643, 1
      %v3936 = vpop.permute.xlu0 %3935
      %3937 = vrot.lane.b32.xlu0 %v3644, 1
      %v3938 = vpop.permute.xlu0 %3937
      %3939 = vrot.lane.b32.xlu0 %v3645, 1
      %v3940 = vpop.permute.xlu0 %3939
      %3941 = vrot.lane.b32.xlu0 %v3646, 1
      %v3942 = vpop.permute.xlu0 %3941
      %3943 = vrot.lane.b32.xlu0 %v3647, 1
      %v3944 = vpop.permute.xlu0 %3943
      %v3945 = vsel %vm963, %v3922, %v3924
      %v3946 = vsel %vm963, %v3924, %v3926
      %v3947 = vsel %vm963, %v3928, %v3930
      %v3948 = vsel %vm963, %v3930, %v3932
      %v3949 = vsel %vm963, %v3934, %v3936
      %v3950 = vsel %vm963, %v3936, %v3938
      %v3951 = vsel %vm963, %v3940, %v3942
      %v3952 = vsel %vm963, %v3942, %v3944
      %v3962 = vsel %vm507, %v3920, 0
      %3964 = vmatprep.subr.bf16.mxu0 %v3946
      %3965 = vmatpush1.bf16.msra.mxu0 %v3945
      %3966 = vmatprep.subr.bf16.mxu0 %v3948
      %3967 = vmatpush1.bf16.msra.mxu0 %v3947
      %3968 = vmatprep.subr.bf16.mxu0 %v3950
      %3969 = vmatpush1.bf16.msra.mxu0 %v3949
      %3970 = vmatprep.subr.bf16.mxu0 %v3952
      %3971 = vmatpush1.bf16.msra.mxu0 %v3951
      %3972 = vmatprep.subr.bf16.mxu0 0
      %3973 = vmatpush1.bf16.msra.mxu0 0
      %3974 = vmatprep.subr.bf16.mxu0 0
      %3975 = vmatpush1.bf16.msra.mxu0 0
      %3976 = vmatprep.subr.bf16.mxu0 0
      %3977 = vmatpush1.bf16.msra.mxu0 0
      %3978 = vmatprep.subr.bf16.mxu0 0
      %3979 = vmatpush1.bf16.msra.mxu0 0
      %3980 = vmatprep.subr.bf16.mxu0 0
      %3981 = vmatpush1.bf16.msra.mxu0 0
      %3982 = vmatprep.subr.bf16.mxu0 0
      %3983 = vmatpush1.bf16.msra.mxu0 0
      %3984 = vmatprep.subr.bf16.mxu0 0
      %3985 = vmatpush1.bf16.msra.mxu0 0
      %3986 = vmatprep.subr.bf16.mxu0 0
      %3987 = vmatpush1.bf16.msra.mxu0 0
      %3988 = vmatprep.subr.bf16.mxu0 0
      %3989 = vmatpush1.bf16.msra.mxu0 0
      %3990 = vmatprep.subr.bf16.mxu0 0
      %3991 = vmatpush1.bf16.msra.mxu0 0
      %3992 = vmatprep.subr.bf16.mxu0 0
      %3993 = vmatpush1.bf16.msra.mxu0 0
      %3994 = vmatprep.subr.bf16.mxu0 0
      %3995 = vmatpush1.bf16.msra.mxu0 0
      %3996 = vmatprep.mubr.bf16.mxu0 0
      %3997 = vmatmul.mubr.bf16.gmra.mrb[0].mxu0 %v3962
      %v3998 = vpop.f32.mrb[0].mxu0
      %v3999 = vadd.f32 0.0, %v3998
      %v4000 = vpop.f32.mrb[0].mxu0
      %v4001 = vadd.f32 0.0, %v4000
      %v4002 = vpop.f32.mrb[0].mxu0
      %v4003 = vpop.f32.mrb[0].mxu0
      %4004 = vdwg.mxu0
      %v4005 = vadd.f32 %v3917, %v3999
      %v4006 = vadd.f32 %v3918, %v4001
      %s4007 = scalar_lea.vmem %s353, 16
      %v4008 = vld [vmem:[%s4007] sm:$0xf]
      %v4010 = vsel %vm507, %v4008, 0
      %4012 = vmatprep.subr.bf16.mxu0 %v3638
      %4013 = vmatpush1.bf16.msra.mxu0 %v3637
      %4014 = vmatprep.subr.bf16.mxu0 %v3641
      %4015 = vmatpush1.bf16.msra.mxu0 %v3640
      %4016 = vmatprep.subr.bf16.mxu0 %v3644
      %4017 = vmatpush1.bf16.msra.mxu0 %v3643
      %4018 = vmatprep.subr.bf16.mxu0 %v3647
      %4019 = vmatpush1.bf16.msra.mxu0 %v3646
      %4020 = vmatprep.subr.bf16.mxu0 0
      %4021 = vmatpush1.bf16.msra.mxu0 0
      %4022 = vmatprep.subr.bf16.mxu0 0
      %4023 = vmatpush1.bf16.msra.mxu0 0
      %4024 = vmatprep.subr.bf16.mxu0 0
      %4025 = vmatpush1.bf16.msra.mxu0 0
      %4026 = vmatprep.subr.bf16.mxu0 0
      %4027 = vmatpush1.bf16.msra.mxu0 0
      %4028 = vmatprep.subr.bf16.mxu0 0
      %4029 = vmatpush1.bf16.msra.mxu0 0
      %4030 = vmatprep.subr.bf16.mxu0 0
      %4031 = vmatpush1.bf16.msra.mxu0 0
      %4032 = vmatprep.subr.bf16.mxu0 0
      %4033 = vmatpush1.bf16.msra.mxu0 0
      %4034 = vmatprep.subr.bf16.mxu0 0
      %4035 = vmatpush1.bf16.msra.mxu0 0
      %4036 = vmatprep.subr.bf16.mxu0 0
      %4037 = vmatpush1.bf16.msra.mxu0 0
      %4038 = vmatprep.subr.bf16.mxu0 0
      %4039 = vmatpush1.bf16.msra.mxu0 0
      %4040 = vmatprep.subr.bf16.mxu0 0
      %4041 = vmatpush1.bf16.msra.mxu0 0
      %4042 = vmatprep.subr.bf16.mxu0 0
      %4043 = vmatpush1.bf16.msra.mxu0 0
      %4044 = vmatprep.mubr.bf16.mxu0 0
      %4045 = vmatmul.mubr.bf16.gmra.mrb[0].mxu0 %v4010
      %v4046 = vpop.f32.mrb[0].mxu0
      %v4047 = vadd.f32 0.0, %v4046
      %v4048 = vpop.f32.mrb[0].mxu0
      %v4049 = vadd.f32 0.0, %v4048
      %v4050 = vpop.f32.mrb[0].mxu0
      %v4051 = vpop.f32.mrb[0].mxu0
      %4052 = vdwg.mxu0
      %v4053 = vadd.f32 %v4005, %v4047
      %v4054 = vadd.f32 %v4006, %v4049
      %s4055 = scalar_lea.vmem %s353, 20
      %v4056 = vld [vmem:[%s4055] sm:$0xf]
      %4057 = vrot.lane.b32.xlu0 %v3637, 127
      %v4058 = vpop.permute.xlu0 %4057
      %4059 = vrot.lane.b32.xlu0 %v3638, 127
      %v4060 = vpop.permute.xlu0 %4059
      %4061 = vrot.lane.b32.xlu0 %v3640, 127
      %v4062 = vpop.permute.xlu0 %4061
      %4063 = vrot.lane.b32.xlu0 %v3641, 127
      %v4064 = vpop.permute.xlu0 %4063
      %4065 = vrot.lane.b32.xlu0 %v3643, 127
      %v4066 = vpop.permute.xlu0 %4065
      %4067 = vrot.lane.b32.xlu0 %v3644, 127
      %v4068 = vpop.permute.xlu0 %4067
      %4069 = vrot.lane.b32.xlu0 %v3646, 127
      %v4070 = vpop.permute.xlu0 %4069
      %4071 = vrot.lane.b32.xlu0 %v3647, 127
      %v4072 = vpop.permute.xlu0 %4071
      %v4073 = vsel %vm1304, %v4058, %v4060
      %v4074 = vsel %vm1304, %v4062, %v4064
      %v4075 = vsel %vm1304, %v4066, %v4068
      %v4076 = vsel %vm1304, %v4070, %v4072
      %v4086 = vsel %vm507, %v4056, 0
      %4088 = vmatprep.subr.bf16.mxu0 %v4060
      %4089 = vmatpush1.bf16.msra.mxu0 %v4073
      %4090 = vmatprep.subr.bf16.mxu0 %v4064
      %4091 = vmatpush1.bf16.msra.mxu0 %v4074
      %4092 = vmatprep.subr.bf16.mxu0 %v4068
      %4093 = vmatpush1.bf16.msra.mxu0 %v4075
      %4094 = vmatprep.subr.bf16.mxu0 %v4072
      %4095 = vmatpush1.bf16.msra.mxu0 %v4076
      %4096 = vmatprep.subr.bf16.mxu0 0
      %4097 = vmatpush1.bf16.msra.mxu0 0
      %4098 = vmatprep.subr.bf16.mxu0 0
      %4099 = vmatpush1.bf16.msra.mxu0 0
      %4100 = vmatprep.subr.bf16.mxu0 0
      %4101 = vmatpush1.bf16.msra.mxu0 0
      %4102 = vmatprep.subr.bf16.mxu0 0
      %4103 = vmatpush1.bf16.msra.mxu0 0
      %4104 = vmatprep.subr.bf16.mxu0 0
      %4105 = vmatpush1.bf16.msra.mxu0 0
      %4106 = vmatprep.subr.bf16.mxu0 0
      %4107 = vmatpush1.bf16.msra.mxu0 0
      %4108 = vmatprep.subr.bf16.mxu0 0
      %4109 = vmatpush1.bf16.msra.mxu0 0
      %4110 = vmatprep.subr.bf16.mxu0 0
      %4111 = vmatpush1.bf16.msra.mxu0 0
      %4112 = vmatprep.subr.bf16.mxu0 0
      %4113 = vmatpush1.bf16.msra.mxu0 0
      %4114 = vmatprep.subr.bf16.mxu0 0
      %4115 = vmatpush1.bf16.msra.mxu0 0
      %4116 = vmatprep.subr.bf16.mxu0 0
      %4117 = vmatpush1.bf16.msra.mxu0 0
      %4118 = vmatprep.subr.bf16.mxu0 0
      %4119 = vmatpush1.bf16.msra.mxu0 0
      %4120 = vmatprep.mubr.bf16.mxu0 0
      %4121 = vmatmul.mubr.bf16.gmra.mrb[0].mxu0 %v4086
      %v4122 = vpop.f32.mrb[0].mxu0
      %v4123 = vadd.f32 0.0, %v4122
      %v4124 = vpop.f32.mrb[0].mxu0
      %v4125 = vadd.f32 0.0, %v4124
      %v4126 = vpop.f32.mrb[0].mxu0
      %v4127 = vpop.f32.mrb[0].mxu0
      %4128 = vdwg.mxu0
      %v4129 = vadd.f32 %v4053, %v4123
      %v4130 = vadd.f32 %v4054, %v4125
      %s4131 = scalar_lea.vmem %s353, 24
      %v4132 = vld [vmem:[%s4131] sm:$0xf]
      %4133 = vrot.lane.b32.xlu0 %v3637, 119
      %v4134 = vpop.permute.xlu0 %4133
      %4135 = vrot.lane.b32.xlu0 %v3638, 119
      %v4136 = vpop.permute.xlu0 %4135
      %4137 = vrot.lane.b32.xlu0 %v3640, 119
      %v4138 = vpop.permute.xlu0 %4137
      %4139 = vrot.lane.b32.xlu0 %v3641, 119
      %v4140 = vpop.permute.xlu0 %4139
      %4141 = vrot.lane.b32.xlu0 %v3643, 119
      %v4142 = vpop.permute.xlu0 %4141
      %4143 = vrot.lane.b32.xlu0 %v3644, 119
      %v4144 = vpop.permute.xlu0 %4143
      %4145 = vrot.lane.b32.xlu0 %v3646, 119
      %v4146 = vpop.permute.xlu0 %4145
      %4147 = vrot.lane.b32.xlu0 %v3647, 119
      %v4148 = vpop.permute.xlu0 %4147
      %v4149 = vsel %vm1463, %v4134, %v4136
      %v4150 = vsel %vm1463, %v4138, %v4140
      %v4151 = vsel %vm1463, %v4142, %v4144
      %v4152 = vsel %vm1463, %v4146, %v4148
      %v4162 = vsel %vm507, %v4132, 0
      %4164 = vmatprep.subr.bf16.mxu0 %v4136
      %4165 = vmatpush1.bf16.msra.mxu0 %v4149
      %4166 = vmatprep.subr.bf16.mxu0 %v4140
      %4167 = vmatpush1.bf16.msra.mxu0 %v4150
      %4168 = vmatprep.subr.bf16.mxu0 %v4144
      %4169 = vmatpush1.bf16.msra.mxu0 %v4151
      %4170 = vmatprep.subr.bf16.mxu0 %v4148
      %4171 = vmatpush1.bf16.msra.mxu0 %v4152
      %4172 = vmatprep.subr.bf16.mxu0 0
      %4173 = vmatpush1.bf16.msra.mxu0 0
      %4174 = vmatprep.subr.bf16.mxu0 0
      %4175 = vmatpush1.bf16.msra.mxu0 0
      %4176 = vmatprep.subr.bf16.mxu0 0
      %4177 = vmatpush1.bf16.msra.mxu0 0
      %4178 = vmatprep.subr.bf16.mxu0 0
      %4179 = vmatpush1.bf16.msra.mxu0 0
      %4180 = vmatprep.subr.bf16.mxu0 0
      %4181 = vmatpush1.bf16.msra.mxu0 0
      %4182 = vmatprep.subr.bf16.mxu0 0
      %4183 = vmatpush1.bf16.msra.mxu0 0
      %4184 = vmatprep.subr.bf16.mxu0 0
      %4185 = vmatpush1.bf16.msra.mxu0 0
      %4186 = vmatprep.subr.bf16.mxu0 0
      %4187 = vmatpush1.bf16.msra.mxu0 0
      %4188 = vmatprep.subr.bf16.mxu0 0
      %4189 = vmatpush1.bf16.msra.mxu0 0
      %4190 = vmatprep.subr.bf16.mxu0 0
      %4191 = vmatpush1.bf16.msra.mxu0 0
      %4192 = vmatprep.subr.bf16.mxu0 0
      %4193 = vmatpush1.bf16.msra.mxu0 0
      %4194 = vmatprep.subr.bf16.mxu0 0
      %4195 = vmatpush1.bf16.msra.mxu0 0
      %4196 = vmatprep.mubr.bf16.mxu0 0
      %4197 = vmatmul.mubr.bf16.gmra.mrb[0].mxu0 %v4162
      %v4198 = vpop.f32.mrb[0].mxu0
      %v4199 = vadd.f32 0.0, %v4198
      %v4200 = vpop.f32.mrb[0].mxu0
      %v4201 = vadd.f32 0.0, %v4200
      %v4202 = vpop.f32.mrb[0].mxu0
      %v4203 = vpop.f32.mrb[0].mxu0
      %4204 = vdwg.mxu0
      %v4205 = vadd.f32 %v4129, %v4199
      %v4206 = vadd.f32 %v4130, %v4201
      %s4207 = scalar_lea.vmem %s353, 28
      %v4208 = vld [vmem:[%s4207] sm:$0xf]
      %4209 = vrot.lane.b32.xlu0 %v3637, 118
      %v4210 = vpop.permute.xlu0 %4209
      %4211 = vrot.lane.b32.xlu0 %v3638, 118
      %v4212 = vpop.permute.xlu0 %4211
      %4213 = vrot.lane.b32.xlu0 %v3640, 118
      %v4214 = vpop.permute.xlu0 %4213
      %4215 = vrot.lane.b32.xlu0 %v3641, 118
      %v4216 = vpop.permute.xlu0 %4215
      %4217 = vrot.lane.b32.xlu0 %v3643, 118
      %v4218 = vpop.permute.xlu0 %4217
      %4219 = vrot.lane.b32.xlu0 %v3644, 118
      %v4220 = vpop.permute.xlu0 %4219
      %4221 = vrot.lane.b32.xlu0 %v3646, 118
      %v4222 = vpop.permute.xlu0 %4221
      %4223 = vrot.lane.b32.xlu0 %v3647, 118
      %v4224 = vpop.permute.xlu0 %4223
      %v4225 = vsel %vm1622, %v4210, %v4212
      %v4226 = vsel %vm1622, %v4214, %v4216
      %v4227 = vsel %vm1622, %v4218, %v4220
      %v4228 = vsel %vm1622, %v4222, %v4224
      %v4238 = vsel %vm507, %v4208, 0
      %4240 = vmatprep.subr.bf16.mxu0 %v4212
      %4241 = vmatpush1.bf16.msra.mxu0 %v4225
      %4242 = vmatprep.subr.bf16.mxu0 %v4216
      %4243 = vmatpush1.bf16.msra.mxu0 %v4226
      %4244 = vmatprep.subr.bf16.mxu0 %v4220
      %4245 = vmatpush1.bf16.msra.mxu0 %v4227
      %4246 = vmatprep.subr.bf16.mxu0 %v4224
      %4247 = vmatpush1.bf16.msra.mxu0 %v4228
      %4248 = vmatprep.subr.bf16.mxu0 0
      %4249 = vmatpush1.bf16.msra.mxu0 0
      %4250 = vmatprep.subr.bf16.mxu0 0
      %4251 = vmatpush1.bf16.msra.mxu0 0
      %4252 = vmatprep.subr.bf16.mxu0 0
      %4253 = vmatpush1.bf16.msra.mxu0 0
      %4254 = vmatprep.subr.bf16.mxu0 0
      %4255 = vmatpush1.bf16.msra.mxu0 0
      %4256 = vmatprep.subr.bf16.mxu0 0
      %4257 = vmatpush1.bf16.msra.mxu0 0
      %4258 = vmatprep.subr.bf16.mxu0 0
      %4259 = vmatpush1.bf16.msra.mxu0 0
      %4260 = vmatprep.subr.bf16.mxu0 0
      %4261 = vmatpush1.bf16.msra.mxu0 0
      %4262 = vmatprep.subr.bf16.mxu0 0
      %4263 = vmatpush1.bf16.msra.mxu0 0
      %4264 = vmatprep.subr.bf16.mxu0 0
      %4265 = vmatpush1.bf16.msra.mxu0 0
      %4266 = vmatprep.subr.bf16.mxu0 0
      %4267 = vmatpush1.bf16.msra.mxu0 0
      %4268 = vmatprep.subr.bf16.mxu0 0
      %4269 = vmatpush1.bf16.msra.mxu0 0
      %4270 = vmatprep.subr.bf16.mxu0 0
      %4271 = vmatpush1.bf16.msra.mxu0 0
      %4272 = vmatprep.mubr.bf16.mxu0 0
      %4273 = vmatmul.mubr.bf16.gmra.mrb[0].mxu0 %v4238
      %v4274 = vpop.f32.mrb[0].mxu0
      %v4275 = vadd.f32 0.0, %v4274
      %v4276 = vpop.f32.mrb[0].mxu0
      %v4277 = vadd.f32 0.0, %v4276
      %v4278 = vpop.f32.mrb[0].mxu0
      %v4279 = vpop.f32.mrb[0].mxu0
      %4280 = vdwg.mxu0
      %v4281 = vadd.f32 %v4205, %v4275
      %v4282 = vadd.f32 %v4206, %v4277
      %s4283 = scalar_lea.vmem %s353, 32
      %v4284 = vld [vmem:[%s4283] sm:$0xf]
      %4285 = vrot.lane.b32.xlu0 %v3637, 117
      %v4286 = vpop.permute.xlu0 %4285
      %4287 = vrot.lane.b32.xlu0 %v3638, 117
      %v4288 = vpop.permute.xlu0 %4287
      %4289 = vrot.lane.b32.xlu0 %v3640, 117
      %v4290 = vpop.permute.xlu0 %4289
      %4291 = vrot.lane.b32.xlu0 %v3641, 117
      %v4292 = vpop.permute.xlu0 %4291
      %4293 = vrot.lane.b32.xlu0 %v3643, 117
      %v4294 = vpop.permute.xlu0 %4293
      %4295 = vrot.lane.b32.xlu0 %v3644, 117
      %v4296 = vpop.permute.xlu0 %4295
      %4297 = vrot.lane.b32.xlu0 %v3646, 117
      %v4298 = vpop.permute.xlu0 %4297
      %4299 = vrot.lane.b32.xlu0 %v3647, 117
      %v4300 = vpop.permute.xlu0 %4299
      %v4301 = vsel %vm1781, %v4286, %v4288
      %v4302 = vsel %vm1781, %v4290, %v4292
      %v4303 = vsel %vm1781, %v4294, %v4296
      %v4304 = vsel %vm1781, %v4298, %v4300
      %v4314 = vsel %vm507, %v4284, 0
      %4316 = vmatprep.subr.bf16.mxu0 %v4288
      %4317 = vmatpush1.bf16.msra.mxu0 %v4301
      %4318 = vmatprep.subr.bf16.mxu0 %v4292
      %4319 = vmatpush1.bf16.msra.mxu0 %v4302
      %4320 = vmatprep.subr.bf16.mxu0 %v4296
      %4321 = vmatpush1.bf16.msra.mxu0 %v4303
      %4322 = vmatprep.subr.bf16.mxu0 %v4300
      %4323 = vmatpush1.bf16.msra.mxu0 %v4304
      %4324 = vmatprep.subr.bf16.mxu0 0
      %4325 = vmatpush1.bf16.msra.mxu0 0
      %4326 = vmatprep.subr.bf16.mxu0 0
      %4327 = vmatpush1.bf16.msra.mxu0 0
      %4328 = vmatprep.subr.bf16.mxu0 0
      %4329 = vmatpush1.bf16.msra.mxu0 0
      %4330 = vmatprep.subr.bf16.mxu0 0
      %4331 = vmatpush1.bf16.msra.mxu0 0
      %4332 = vmatprep.subr.bf16.mxu0 0
      %4333 = vmatpush1.bf16.msra.mxu0 0
      %4334 = vmatprep.subr.bf16.mxu0 0
      %4335 = vmatpush1.bf16.msra.mxu0 0
      %4336 = vmatprep.subr.bf16.mxu0 0
      %4337 = vmatpush1.bf16.msra.mxu0 0
      %4338 = vmatprep.subr.bf16.mxu0 0
      %4339 = vmatpush1.bf16.msra.mxu0 0
      %4340 = vmatprep.subr.bf16.mxu0 0
      %4341 = vmatpush1.bf16.msra.mxu0 0
      %4342 = vmatprep.subr.bf16.mxu0 0
      %4343 = vmatpush1.bf16.msra.mxu0 0
      %4344 = vmatprep.subr.bf16.mxu0 0
      %4345 = vmatpush1.bf16.msra.mxu0 0
      %4346 = vmatprep.subr.bf16.mxu0 0
      %4347 = vmatpush1.bf16.msra.mxu0 0
      %4348 = vmatprep.mubr.bf16.mxu0 0
      %4349 = vmatmul.mubr.bf16.gmra.mrb[0].mxu0 %v4314
      %v4350 = vpop.f32.mrb[0].mxu0
      %v4351 = vadd.f32 0.0, %v4350
      %v4352 = vpop.f32.mrb[0].mxu0
      %v4353 = vadd.f32 0.0, %v4352
      %v4354 = vpop.f32.mrb[0].mxu0
      %v4355 = vpop.f32.mrb[0].mxu0
      %4356 = vdwg.mxu0
      %v4357 = vadd.f32 %v4281, %v4351
      %v4358 = vadd.f32 %v4282, %v4353
      %4359 = vst [vmem:[%s358] sm:$0xff] 0.0
      %4360 = vst [vmem:[%s358 + $0x8] sm:$0xff] 0.0
      %4361 = vst [vmem:[%s358 + $0x10] sm:$0xff] 0.0
      %4362 = vst.msk [vmem:[%s358 + $0x18] sm:$0xff] %vm2005, 0.0
      %4363 = vst [vmem:[%s358 + $0x8] sm:$0xff] %v4357
      %4364 = vst.msk [vmem:[%s358 + $0x10] sm:$0xff] %vm2005, %v4358
      %p4365 = scmp.lt.s32.totalorder %s18, 2
      %s4366 = scalar_select %p4365, %s18, 2
      %s4367 = smul.addr %s4366, 4
      %s4368 = smul.addr %s4367, 8
      %s4369 = scalar_lea.vmem %s7, %s4368
      // Predicated region
      $region49: #{forward.5} parent=47 // pred_check
        %p4370 = pneg %p208
      $region50: #{forward.5} parent=47 // pred_check_branch
        %4372 = sbr.rel (%p4370) target = $region52
      $region51: #{forward.5} parent=47 // pred_region
        _
      $region52: #{forward.5} parent=47 // pred_fallthru
        _
    $region48: #{forward.5} parent=5 // pred_fallthru
      _
    %p4373 = scmp.le.s32.totalorder 2, %s13
    // Predicated region
    $region53: #{forward.5} parent=5 // pred_check
      %p4374 = pneg %p4373
    $region54: #{forward.5} parent=5 // pred_check_branch
      %4376 = sbr.rel (%p4374) target = $region56
    $region55: #{forward.5} parent=5 // pred_region
      %s4377 = ssub.s32 %s13, 2
      // Predicated region
      $region57: #{forward.5} parent=55 // pred_check
        %p4378 = pneg %p214
      $region58: #{forward.5} parent=55 // pred_check_branch
        %4380 = sbr.rel (%p4378) target = $region60
      $region59: #{forward.5} parent=55 // pred_region
        %p4381 = scmp.lt.s32.totalorder %s19, 2
        %s4382 = scalar_select %p4381, %s19, 2
        %s4383 = smul.addr %s4382, 4
        %s4384 = smul.addr %s4383, 8
        %s4385 = scalar_lea.vmem %s7, %s4384
      $region60: #{forward.5} parent=55 // pred_fallthru
        _
    $region56: #{forward.5} parent=5 // pred_fallthru
      _
  $region6: #{forward.5} parent=0 // loop_footer
    %s17 = sadd.s32 1, %s13
  $region7: #{forward.5} parent=0 // loop_footer_branch
    %12 = sbr.rel target = $region3
  $region8: #{forward.5} parent=0 // loop_exit
    _

</llo_original>
